<compile_context>
chip_gen: v6e
topology: v6e:2x2x1
jax: 0.10.0
libtpu: 0.0.40
codegen_flags: <defaults>
</compile_context>

<pallas_src>
import math
from functools import partial

import jax
import jax.numpy as jnp
from jax.experimental import pallas as pl
from jax.experimental.pallas import tpu as pltpu


# ----------------------------------------------------------------------------
# Fused Pallas kernels
# ----------------------------------------------------------------------------

def _mha_block_kernel(xq_ref, xkv_ref, wqkv_ref, bqkv_ref, wo_ref, bo_ref,
                      am_ref, kpm_ref, g_ref, beta_ref, o_ref, *, nhead, scale):
    """Per-batch fused: QKV proj -> MHA -> out proj -> +residual -> LayerNorm.

    xq_ref: (1, Lq, E) query-side input (also the residual)
    xkv_ref: (1, Lk, E) key/value-side input (== xq for self-attention)
    wqkv_ref: (E, 3E) bf16 pre-transposed in_proj weight, bqkv_ref: (1, 3E) f32
    wo_ref:   (E, E)  bf16 pre-transposed out_proj weight, bo_ref:  (1, E) f32
    am_ref:   (Lq, Lk) additive attention mask (shared across batch & heads)
    kpm_ref:  (1, 1, Lk) additive key-padding mask for this batch element
    """
    E = xq_ref.shape[2]
    H = nhead
    Dh = E // H

    xq = xq_ref[0]                              # (Lq, E) f32 (residual)
    xkv = xkv_ref[0]                            # (Lk, E) f32
    wqkv = wqkv_ref[...]                        # (E, 3E) bf16
    bqkv = bqkv_ref[...]                        # (1, 3E) f32
    wo = wo_ref[...]                            # (E, E)  bf16
    mask = am_ref[...] + kpm_ref[0]             # (Lq, Lk)

    xq_b = xq.astype(jnp.bfloat16)
    xkv_b = xkv.astype(jnp.bfloat16)
    # Fused projections: one Q matmul, one KV matmul (single 2E-wide output).
    q = jnp.dot(xq_b, wqkv[:, :E], preferred_element_type=jnp.float32) + bqkv[:, :E]
    kv = jnp.dot(xkv_b, wqkv[:, E:], preferred_element_type=jnp.float32) + bqkv[:, E:]

    # Output projection folded into the per-head epilogue:
    #   concat_h(o_h) @ Wo^T == sum_h o_h @ Wo^T[h*Dh:(h+1)*Dh, :]
    y = bo_ref[...]                             # (1, E) -> broadcasts to (Lq, E)
    for h in range(H):                          # static unroll (H small)
        qh = q[:, h * Dh:(h + 1) * Dh].astype(jnp.bfloat16)           # (Lq, Dh)
        kh = kv[:, h * Dh:(h + 1) * Dh].astype(jnp.bfloat16)          # (Lk, Dh)
        vh = kv[:, E + h * Dh:E + (h + 1) * Dh].astype(jnp.bfloat16)  # (Lk, Dh)
        s = jax.lax.dot_general(qh, kh, (((1,), (1,)), ((), ())),
                                preferred_element_type=jnp.float32)   # (Lq, Lk)
        s = s * scale + mask
        s = s - jnp.max(s, axis=-1, keepdims=True)
        p = jnp.exp(s)
        p = p * pl.reciprocal(jnp.sum(p, axis=-1, keepdims=True), approx=True)
        oh = jnp.dot(p.astype(jnp.bfloat16), vh,
                     preferred_element_type=jnp.float32)              # (Lq, Dh)
        y = y + jnp.dot(oh.astype(jnp.bfloat16), wo[h * Dh:(h + 1) * Dh, :],
                        preferred_element_type=jnp.float32)           # (Lq, E)

    # residual + LayerNorm epilogue (post-norm, eps=1e-5 like PyTorch)
    z = xq + y
    mean = jnp.mean(z, axis=-1, keepdims=True)
    var = jnp.mean(jnp.square(z - mean), axis=-1, keepdims=True)
    o_ref[0] = ((z - mean) * jax.lax.rsqrt(var + 1e-5) * g_ref[...]
                + beta_ref[...]).astype(o_ref.dtype)


def _ffn_block_kernel(x_ref, w1_ref, b1_ref, w2_ref, b2_ref, g_ref, beta_ref, o_ref):
    """Fused linear1 -> ReLU -> linear2 -> +residual -> LayerNorm."""
    x = x_ref[0]                                                        # (L, E) f32
    h = jnp.dot(x.astype(jnp.bfloat16), w1_ref[...],
                preferred_element_type=jnp.float32) + b1_ref[...]       # (L, F)
    h = jnp.maximum(h, 0.0)
    y = jnp.dot(h.astype(jnp.bfloat16), w2_ref[...],
                preferred_element_type=jnp.float32) + b2_ref[...]       # (L, E)
    z = x + y
    mean = jnp.mean(z, axis=-1, keepdims=True)
    var = jnp.mean(jnp.square(z - mean), axis=-1, keepdims=True)
    o_ref[0] = ((z - mean) * jax.lax.rsqrt(var + 1e-5) * g_ref[...]
                + beta_ref[...]).astype(o_ref.dtype)


def _layernorm_kernel(x_ref, g_ref, b_ref, o_ref):
    x = x_ref[0]
    mean = jnp.mean(x, axis=-1, keepdims=True)
    var = jnp.mean(jnp.square(x - mean), axis=-1, keepdims=True)
    o_ref[0] = ((x - mean) * jax.lax.rsqrt(var + 1e-5) * g_ref[...]
                + b_ref[...]).astype(o_ref.dtype)


def _norm_generator_kernel(x_ref, g_ref, b_ref, w_ref, bias_ref, o_ref):
    """Fused decoder-final LayerNorm + generator linear (lane-dense output)."""
    x = x_ref[0]                                                        # (T, E)
    mean = jnp.mean(x, axis=-1, keepdims=True)
    var = jnp.mean(jnp.square(x - mean), axis=-1, keepdims=True)
    z = (x - mean) * jax.lax.rsqrt(var + 1e-5) * g_ref[...] + b_ref[...]
    o_ref[0] = (jnp.dot(z.astype(jnp.bfloat16), w_ref[...],
                        preferred_element_type=jnp.float32)
                + bias_ref[...]).astype(o_ref.dtype)


# ----------------------------------------------------------------------------
# pallas_call wrappers (grid over batch, "parallel" for v7x megacore)
# ----------------------------------------------------------------------------

_PARALLEL = pltpu.CompilerParams(dimension_semantics=("parallel",))


def mha_block(xq, xkv, attn_mask, kpm_add, ap, ln, nhead):
    N, Lq, E = xq.shape
    Lk = xkv.shape[1]
    scale = 1.0 / math.sqrt(E // nhead)
    return pl.pallas_call(
        partial(_mha_block_kernel, nhead=nhead, scale=scale),
        out_shape=jax.ShapeDtypeStruct((N, Lq, E), jnp.float32),
        grid=(N,),
        in_specs=[
            pl.BlockSpec((1, Lq, E), lambda n: (n, 0, 0)),
            pl.BlockSpec((1, Lk, E), lambda n: (n, 0, 0)),
            pl.BlockSpec((E, 3 * E), lambda n: (0, 0)),
            pl.BlockSpec((1, 3 * E), lambda n: (0, 0)),
            pl.BlockSpec((E, E), lambda n: (0, 0)),
            pl.BlockSpec((1, E), lambda n: (0, 0)),
            pl.BlockSpec((Lq, Lk), lambda n: (0, 0)),
            pl.BlockSpec((1, 1, Lk), lambda n: (n, 0, 0)),
            pl.BlockSpec((1, E), lambda n: (0, 0)),
            pl.BlockSpec((1, E), lambda n: (0, 0)),
        ],
        out_specs=pl.BlockSpec((1, Lq, E), lambda n: (n, 0, 0)),
        compiler_params=_PARALLEL,
    )(xq, xkv, ap['wqkv_t'], ap['bqkv'], ap['wo_t'], ap['bo'],
      attn_mask, kpm_add, ln['g'], ln['b'])


def ffn_block(x, fp, ln):
    N, L, E = x.shape
    F = fp['b1'].shape[1]
    return pl.pallas_call(
        _ffn_block_kernel,
        out_shape=jax.ShapeDtypeStruct((N, L, E), jnp.float32),
        grid=(N,),
        in_specs=[
            pl.BlockSpec((1, L, E), lambda n: (n, 0, 0)),
            pl.BlockSpec((E, F), lambda n: (0, 0)),
            pl.BlockSpec((1, F), lambda n: (0, 0)),
            pl.BlockSpec((F, E), lambda n: (0, 0)),
            pl.BlockSpec((1, E), lambda n: (0, 0)),
            pl.BlockSpec((1, E), lambda n: (0, 0)),
            pl.BlockSpec((1, E), lambda n: (0, 0)),
        ],
        out_specs=pl.BlockSpec((1, L, E), lambda n: (n, 0, 0)),
        compiler_params=_PARALLEL,
    )(x, fp['w1_t'], fp['b1'], fp['w2_t'], fp['b2'], ln['g'], ln['b'])


def layernorm_block(x, ln):
    N, L, E = x.shape
    return pl.pallas_call(
        _layernorm_kernel,
        out_shape=jax.ShapeDtypeStruct((N, L, E), jnp.float32),
        grid=(N,),
        in_specs=[
            pl.BlockSpec((1, L, E), lambda n: (n, 0, 0)),
            pl.BlockSpec((1, E), lambda n: (0, 0)),
            pl.BlockSpec((1, E), lambda n: (0, 0)),
        ],
        out_specs=pl.BlockSpec((1, L, E), lambda n: (n, 0, 0)),
        compiler_params=_PARALLEL,
    )(x, ln['g'], ln['b'])


def norm_generator_block(x, ln, gen_w_t, gen_b):
    N, L, E = x.shape
    Vp = gen_w_t.shape[1]
    return pl.pallas_call(
        _norm_generator_kernel,
        out_shape=jax.ShapeDtypeStruct((N, L, Vp), jnp.float32),
        grid=(N,),
        in_specs=[
            pl.BlockSpec((1, L, E), lambda n: (n, 0, 0)),
            pl.BlockSpec((1, E), lambda n: (0, 0)),
            pl.BlockSpec((1, E), lambda n: (0, 0)),
            pl.BlockSpec((E, Vp), lambda n: (0, 0)),
            pl.BlockSpec((1, Vp), lambda n: (0, 0)),
        ],
        out_specs=pl.BlockSpec((1, L, Vp), lambda n: (n, 0, 0)),
        compiler_params=_PARALLEL,
    )(x, ln['g'], ln['b'], gen_w_t, gen_b)


# ----------------------------------------------------------------------------
# Forward pass (embedding / mask prep is cheap JAX glue; body is Pallas)
# ----------------------------------------------------------------------------

@partial(jax.jit, static_argnames=("nhead", "tgt_vocab"))
def seq2seq_forward(params, src, trg, src_mask, tgt_mask,
                    src_padding_mask, tgt_padding_mask, memory_key_padding_mask,
                    *, nhead, tgt_vocab):
    E = params['pos_emb'].shape[1]
    S = src.shape[0]
    T = trg.shape[0]
    sqrt_e = math.sqrt(E)

    # TokenEmbedding * sqrt(E) + PositionalEncoding, batch-first (N, L, E)
    src_x = jnp.take(params['src_emb'], src.T, axis=0) * sqrt_e \
        + params['pos_emb'][:S][None, :, :]
    tgt_x = jnp.take(params['tgt_emb'], trg.T, axis=0) * sqrt_e \
        + params['pos_emb'][:T][None, :, :]

    # Additive masks; key-padding masks stay (N, 1, L) — never expanded per head.
    src_kpm = jnp.where(src_padding_mask, -1e9, 0.0).astype(jnp.float32)[:, None, :]
    tgt_kpm = jnp.where(tgt_padding_mask, -1e9, 0.0).astype(jnp.float32)[:, None, :]
    mem_kpm = jnp.where(memory_key_padding_mask, -1e9, 0.0).astype(jnp.float32)[:, None, :]
    src_am = src_mask.astype(jnp.float32)
    tgt_am = tgt_mask.astype(jnp.float32)
    cross_am = jnp.zeros((T, S), jnp.float32)

    # Encoder
    mem = src_x
    for lp in params['enc_layers']:
        mem = mha_block(mem, mem, src_am, src_kpm, lp['self_attn'], lp['norm1'], nhead)
        mem = ffn_block(mem, lp['ffn'], lp['norm2'])
    mem = layernorm_block(mem, params['enc_norm'])

    # Decoder
    out = tgt_x
    for lp in params['dec_layers']:
        out = mha_block(out, out, tgt_am, tgt_kpm, lp['self_attn'], lp['norm1'], nhead)
        out = mha_block(out, mem, cross_am, mem_kpm, lp['cross_attn'], lp['norm2'], nhead)
        out = ffn_block(out, lp['ffn'], lp['norm3'])

    # Decoder final norm + generator (padded lane-dense output), back to (T, N, V)
    logits = norm_generator_block(out, params['dec_norm'],
                                  params['gen_w_t'], params['gen_b'])
    return jnp.transpose(logits[:, :, :tgt_vocab], (1, 0, 2))


# ----------------------------------------------------------------------------
# Deterministic parameter init (shapes from Seq2SeqTransformer.__init__);
# weights stored pre-transposed (K-major) and in bf16, biases/LN in f32.
# ----------------------------------------------------------------------------

def make_params(key, num_enc, num_dec, emb_size, nhead, src_vocab, tgt_vocab,
                dim_ff, maxlen=64):
    E, F = emb_size, dim_ff
    v_pad = ((tgt_vocab + 127) // 128) * 128
    kit = iter(jax.random.split(key, 1024))

    def nrm(shape, scale=0.02):
        return (scale * jax.random.normal(next(kit), shape)).astype(jnp.float32)

    def attn():
        in_w, in_b = nrm((3 * E, E)), nrm((3 * E,))
        out_w, out_b = nrm((E, E)), nrm((E,))
        return dict(wqkv_t=in_w.T.astype(jnp.bfloat16),       # (E, 3E)
                    bqkv=in_b.reshape(1, 3 * E),
                    wo_t=out_w.T.astype(jnp.bfloat16),         # (E, E)
                    bo=out_b.reshape(1, E))

    def ffn():
        w1, b1 = nrm((F, E)), nrm((F,))
        w2, b2 = nrm((E, F)), nrm((E,))
        return dict(w1_t=w1.T.astype(jnp.bfloat16), b1=b1.reshape(1, F),
                    w2_t=w2.T.astype(jnp.bfloat16), b2=b2.reshape(1, E))

    def ln():
        return dict(g=jnp.ones((1, E), jnp.float32), b=jnp.zeros((1, E), jnp.float32))

    def enc_layer():
        return dict(self_attn=attn(), ffn=ffn(), norm1=ln(), norm2=ln())

    def dec_layer():
        return dict(self_attn=attn(), cross_attn=attn(), ffn=ffn(),
                    norm1=ln(), norm2=ln(), norm3=ln())

    # PositionalEncoding buffer (same formula as the PyTorch module)
    den = jnp.exp(-jnp.arange(0, E, 2, dtype=jnp.float32) * (math.log(10000.0) / E))
    pos = jnp.arange(0, maxlen, dtype=jnp.float32)[:, None]
    pe = jnp.zeros((maxlen, E), jnp.float32)
    pe = pe.at[:, 0::2].set(jnp.sin(pos * den))
    pe = pe.at[:, 1::2].set(jnp.cos(pos * den))

    gen_w, gen_b = nrm((tgt_vocab, E)), nrm((tgt_vocab,))
    gen_w_t = (jnp.zeros((E, v_pad), jnp.float32)
               .at[:, :tgt_vocab].set(gen_w.T).astype(jnp.bfloat16))
    gen_b_p = jnp.zeros((1, v_pad), jnp.float32).at[0, :tgt_vocab].set(gen_b)

    return dict(
        src_emb=nrm((src_vocab, E), 1.0),
        tgt_emb=nrm((tgt_vocab, E), 1.0),
        pos_emb=pe,                                        # (maxlen, E)
        enc_layers=[enc_layer() for _ in range(num_enc)],
        dec_layers=[dec_layer() for _ in range(num_dec)],
        enc_norm=ln(), dec_norm=ln(),
        gen_w_t=gen_w_t, gen_b=gen_b_p,
    )


# ----------------------------------------------------------------------------
# Main
# ----------------------------------------------------------------------------

if __name__ == "__main__":
    NUM_ENC, NUM_DEC = 2, 2
    EMB, NHEAD, DIM_FF = 32, 4, 64
    SRC_VOCAB, TGT_VOCAB = 50, 60
    S, T, N = 12, 10, 2

    key = jax.random.PRNGKey(0)
    pkey, skey, tkey = jax.random.split(key, 3)
    params = make_params(pkey, NUM_ENC, NUM_DEC, EMB, NHEAD, SRC_VOCAB, TGT_VOCAB, DIM_FF)

    src = jax.random.randint(skey, (S, N), 0, SRC_VOCAB, dtype=jnp.int32)
    trg = jax.random.randint(tkey, (T, N), 0, TGT_VOCAB, dtype=jnp.int32)

    # masks mirroring the typical PyTorch create_mask() usage
    src_mask = jnp.zeros((S, S), jnp.float32)
    causal = jnp.triu(jnp.ones((T, T), dtype=jnp.bool_), k=1)
    tgt_mask = jnp.where(causal, -1e9, 0.0).astype(jnp.float32)
    src_padding_mask = jnp.zeros((N, S), jnp.bool_).at[0, S - 1].set(True)
    tgt_padding_mask = jnp.zeros((N, T), jnp.bool_).at[1, T - 1].set(True)
    memory_key_padding_mask = src_padding_mask

    logits = seq2seq_forward(params, src, trg, src_mask, tgt_mask,
                             src_padding_mask, tgt_padding_mask,
                             memory_key_padding_mask,
                             nhead=NHEAD, tgt_vocab=TGT_VOCAB)
    logits = jax.block_until_ready(logits)

    assert logits.shape == (T, N, TGT_VOCAB), logits.shape
    assert bool(jnp.all(jnp.isfinite(logits)))
    print("KERNEL_OK")
</pallas_src>

<mosaic_0001>
module attributes {stable_mosaic.version = 11 : i64} {
  func.func @_ffn_block_kernel(%arg0: i32, %arg1: memref<1x12x32xf32, #tpu.memory_space<vmem>>, %arg2: memref<32x64xbf16, #tpu.memory_space<vmem>>, %arg3: memref<1x64xf32, #tpu.memory_space<vmem>>, %arg4: memref<64x32xbf16, #tpu.memory_space<vmem>>, %arg5: memref<1x32xf32, #tpu.memory_space<vmem>>, %arg6: memref<1x32xf32, #tpu.memory_space<vmem>>, %arg7: memref<1x32xf32, #tpu.memory_space<vmem>>, %arg8: memref<1x12x32xf32, #tpu.memory_space<vmem>>) attributes {dimension_semantics = [#tpu.dimension_semantics<parallel>], iteration_bounds = array<i64: 2>, scalar_prefetch = 0 : i64, scratch_operands = 0 : i64, tpu.core_type = #tpu.core_type<tc>, window_params = [{transform_indices = @transform_0, window_bounds = array<i64: 1, 12, 32>}, {pipeline_mode = #tpu.pipeline_mode<synchronous>, transform_indices = @transform_1, window_bounds = array<i64: 32, 64>}, {pipeline_mode = #tpu.pipeline_mode<synchronous>, transform_indices = @transform_2, window_bounds = array<i64: 1, 64>}, {pipeline_mode = #tpu.pipeline_mode<synchronous>, transform_indices = @transform_3, window_bounds = array<i64: 64, 32>}, {pipeline_mode = #tpu.pipeline_mode<synchronous>, transform_indices = @transform_4, window_bounds = array<i64: 1, 32>}, {pipeline_mode = #tpu.pipeline_mode<synchronous>, transform_indices = @transform_5, window_bounds = array<i64: 1, 32>}, {pipeline_mode = #tpu.pipeline_mode<synchronous>, transform_indices = @transform_6, window_bounds = array<i64: 1, 32>}, {transform_indices = @transform_7, window_bounds = array<i64: 1, 12, 32>}]} {
    %c0 = arith.constant 0 : index
    %c0_0 = arith.constant 0 : index
    %c0_1 = arith.constant 0 : index
    %0 = vector.load %arg1[%c0, %c0_0, %c0_1] : memref<1x12x32xf32, #tpu.memory_space<vmem>>, vector<1x12x32xf32>
    %1 = vector.shape_cast %0 : vector<1x12x32xf32> to vector<12x32xf32>
    %2 = arith.truncf %1 : vector<12x32xf32> to vector<12x32xbf16>
    %c0_2 = arith.constant 0 : index
    %c0_3 = arith.constant 0 : index
    %3 = vector.load %arg2[%c0_2, %c0_3] : memref<32x64xbf16, #tpu.memory_space<vmem>>, vector<32x64xbf16>
    %cst = arith.constant dense<0.000000e+00> : vector<12x64xf32>
    %4 = tpu.matmul %2, %3, %cst {dimension_numbers = #tpu.dot_dimension_numbers<[1], [0], [0], [1], [0, 0, 1, 1], [], []>} : vector<12x32xbf16>, vector<32x64xbf16>, vector<12x64xf32> -> vector<12x64xf32>
    %c0_4 = arith.constant 0 : index
    %c0_5 = arith.constant 0 : index
    %5 = vector.load %arg3[%c0_4, %c0_5] : memref<1x64xf32, #tpu.memory_space<vmem>>, vector<1x64xf32>
    %6 = vector.broadcast %5 : vector<1x64xf32> to vector<12x64xf32>
    %7 = arith.addf %4, %6 : vector<12x64xf32>
    %cst_6 = arith.constant 0.000000e+00 : f32
    %8 = vector.broadcast %cst_6 : f32 to vector<12x64xf32>
    %9 = arith.maximumf %7, %8 : vector<12x64xf32>
    %10 = arith.truncf %9 : vector<12x64xf32> to vector<12x64xbf16>
    %c0_7 = arith.constant 0 : index
    %c0_8 = arith.constant 0 : index
    %11 = vector.load %arg4[%c0_7, %c0_8] : memref<64x32xbf16, #tpu.memory_space<vmem>>, vector<64x32xbf16>
    %cst_9 = arith.constant dense<0.000000e+00> : vector<12x32xf32>
    %12 = tpu.matmul %10, %11, %cst_9 {dimension_numbers = #tpu.dot_dimension_numbers<[1], [0], [0], [1], [0, 0, 1, 1], [], []>} : vector<12x64xbf16>, vector<64x32xbf16>, vector<12x32xf32> -> vector<12x32xf32>
    %c0_10 = arith.constant 0 : index
    %c0_11 = arith.constant 0 : index
    %13 = vector.load %arg5[%c0_10, %c0_11] : memref<1x32xf32, #tpu.memory_space<vmem>>, vector<1x32xf32>
    %14 = vector.broadcast %13 : vector<1x32xf32> to vector<12x32xf32>
    %15 = arith.addf %12, %14 : vector<12x32xf32>
    %16 = arith.addf %1, %15 : vector<12x32xf32>
    %cst_12 = arith.constant dense<0.000000e+00> : vector<12xf32>
    %17 = vector.multi_reduction <add>, %16, %cst_12 [1] : vector<12x32xf32> to vector<12xf32>
    %18 = vector.shape_cast %17 : vector<12xf32> to vector<12x1xf32>
    %cst_13 = arith.constant 3.200000e+01 : f32
    %19 = vector.broadcast %cst_13 : f32 to vector<12x1xf32>
    %20 = arith.divf %18, %19 : vector<12x1xf32>
    %21 = vector.broadcast %20 : vector<12x1xf32> to vector<12x32xf32>
    %22 = arith.subf %16, %21 : vector<12x32xf32>
    %23 = arith.mulf %22, %22 : vector<12x32xf32>
    %cst_14 = arith.constant dense<0.000000e+00> : vector<12xf32>
    %24 = vector.multi_reduction <add>, %23, %cst_14 [1] : vector<12x32xf32> to vector<12xf32>
    %25 = vector.shape_cast %24 : vector<12xf32> to vector<12x1xf32>
    %cst_15 = arith.constant 3.200000e+01 : f32
    %26 = vector.broadcast %cst_15 : f32 to vector<12x1xf32>
    %27 = arith.divf %25, %26 : vector<12x1xf32>
    %28 = vector.broadcast %20 : vector<12x1xf32> to vector<12x32xf32>
    %29 = arith.subf %16, %28 : vector<12x32xf32>
    %cst_16 = arith.constant 9.99999974E-6 : f32
    %30 = vector.broadcast %cst_16 : f32 to vector<12x1xf32>
    %31 = arith.addf %27, %30 : vector<12x1xf32>
    %32 = math.rsqrt %31 : vector<12x1xf32>
    %33 = vector.broadcast %32 : vector<12x1xf32> to vector<12x32xf32>
    %34 = arith.mulf %29, %33 : vector<12x32xf32>
    %c0_17 = arith.constant 0 : index
    %c0_18 = arith.constant 0 : index
    %35 = vector.load %arg6[%c0_17, %c0_18] : memref<1x32xf32, #tpu.memory_space<vmem>>, vector<1x32xf32>
    %36 = vector.broadcast %35 : vector<1x32xf32> to vector<12x32xf32>
    %37 = arith.mulf %34, %36 : vector<12x32xf32>
    %c0_19 = arith.constant 0 : index
    %c0_20 = arith.constant 0 : index
    %38 = vector.load %arg7[%c0_19, %c0_20] : memref<1x32xf32, #tpu.memory_space<vmem>>, vector<1x32xf32>
    %39 = vector.broadcast %38 : vector<1x32xf32> to vector<12x32xf32>
    %40 = arith.addf %37, %39 : vector<12x32xf32>
    %c0_21 = arith.constant 0 : index
    %c0_22 = arith.constant 0 : index
    %c0_23 = arith.constant 0 : index
    %41 = vector.load %arg8[%c0_21, %c0_22, %c0_23] : memref<1x12x32xf32, #tpu.memory_space<vmem>>, vector<1x12x32xf32>
    %42 = vector.shape_cast %41 : vector<1x12x32xf32> to vector<12x32xf32>
    %43 = vector.shape_cast %40 : vector<12x32xf32> to vector<1x12x32xf32>
    tpu.vector_store %arg8[%c0_21, %c0_22, %c0_23], %43 {strides = array<i32>} : memref<1x12x32xf32, #tpu.memory_space<vmem>>, vector<1x12x32xf32>,
    return
  }
  func.func @transform_0(%arg0: i32) -> (i32, i32, i32) {
    %c0_i32 = arith.constant 0 : i32
    %c0_i32_0 = arith.constant 0 : i32
    %c0_i32_1 = arith.constant 0 : i32
    return %arg0, %c0_i32, %c0_i32_0 : i32, i32, i32
  }
  func.func @transform_1(%arg0: i32) -> (i32, i32) {
    %c0_i32 = arith.constant 0 : i32
    %c0_i32_0 = arith.constant 0 : i32
    %c0_i32_1 = arith.constant 0 : i32
    return %c0_i32, %c0_i32_0 : i32, i32
  }
  func.func @transform_2(%arg0: i32) -> (i32, i32) {
    %c0_i32 = arith.constant 0 : i32
    %c0_i32_0 = arith.constant 0 : i32
    %c0_i32_1 = arith.constant 0 : i32
    return %c0_i32, %c0_i32_0 : i32, i32
  }
  func.func @transform_3(%arg0: i32) -> (i32, i32) {
    %c0_i32 = arith.constant 0 : i32
    %c0_i32_0 = arith.constant 0 : i32
    %c0_i32_1 = arith.constant 0 : i32
    return %c0_i32, %c0_i32_0 : i32, i32
  }
  func.func @transform_4(%arg0: i32) -> (i32, i32) {
    %c0_i32 = arith.constant 0 : i32
    %c0_i32_0 = arith.constant 0 : i32
    %c0_i32_1 = arith.constant 0 : i32
    return %c0_i32, %c0_i32_0 : i32, i32
  }
  func.func @transform_5(%arg0: i32) -> (i32, i32) {
    %c0_i32 = arith.constant 0 : i32
    %c0_i32_0 = arith.constant 0 : i32
    %c0_i32_1 = arith.constant 0 : i32
    return %c0_i32, %c0_i32_0 : i32, i32
  }
  func.func @transform_6(%arg0: i32) -> (i32, i32) {
    %c0_i32 = arith.constant 0 : i32
    %c0_i32_0 = arith.constant 0 : i32
    %c0_i32_1 = arith.constant 0 : i32
    return %c0_i32, %c0_i32_0 : i32, i32
  }
  func.func @transform_7(%arg0: i32) -> (i32, i32, i32) {
    %c0_i32 = arith.constant 0 : i32
    %c0_i32_0 = arith.constant 0 : i32
    %c0_i32_1 = arith.constant 0 : i32
    return %arg0, %c0_i32, %c0_i32_0 : i32, i32, i32
  }
}

module attributes {stable_mosaic.version = 11 : i64} {
  func.func @_mha_block_kernel(%arg0: i32, %arg1: memref<1x12x32xf32, #tpu.memory_space<vmem>>, %arg2: memref<1x12x32xf32, #tpu.memory_space<vmem>>, %arg3: memref<32x96xbf16, #tpu.memory_space<vmem>>, %arg4: memref<1x96xf32, #tpu.memory_space<vmem>>, %arg5: memref<32x32xbf16, #tpu.memory_space<vmem>>, %arg6: memref<1x32xf32, #tpu.memory_space<vmem>>, %arg7: memref<12x12xf32, #tpu.memory_space<vmem>>, %arg8: memref<1x1x12xf32, #tpu.memory_space<vmem>>, %arg9: memref<1x32xf32, #tpu.memory_space<vmem>>, %arg10: memref<1x32xf32, #tpu.memory_space<vmem>>, %arg11: memref<1x12x32xf32, #tpu.memory_space<vmem>>) attributes {dimension_semantics = [#tpu.dimension_semantics<parallel>], iteration_bounds = array<i64: 2>, scalar_prefetch = 0 : i64, scratch_operands = 0 : i64, tpu.core_type = #tpu.core_type<tc>, window_params = [{transform_indices = @transform_0, window_bounds = array<i64: 1, 12, 32>}, {transform_indices = @transform_1, window_bounds = array<i64: 1, 12, 32>}, {pipeline_mode = #tpu.pipeline_mode<synchronous>, transform_indices = @transform_2, window_bounds = array<i64: 32, 96>}, {pipeline_mode = #tpu.pipeline_mode<synchronous>, transform_indices = @transform_3, window_bounds = array<i64: 1, 96>}, {pipeline_mode = #tpu.pipeline_mode<synchronous>, transform_indices = @transform_4, window_bounds = array<i64: 32, 32>}, {pipeline_mode = #tpu.pipeline_mode<synchronous>, transform_indices = @transform_5, window_bounds = array<i64: 1, 32>}, {pipeline_mode = #tpu.pipeline_mode<synchronous>, transform_indices = @transform_6, window_bounds = array<i64: 12, 12>}, {transform_indices = @transform_7, window_bounds = array<i64: 1, 1, 12>}, {pipeline_mode = #tpu.pipeline_mode<synchronous>, transform_indices = @transform_8, window_bounds = array<i64: 1, 32>}, {pipeline_mode = #tpu.pipeline_mode<synchronous>, transform_indices = @transform_9, window_bounds = array<i64: 1, 32>}, {transform_indices = @transform_10, window_bounds = array<i64: 1, 12, 32>}]} {
    %c0 = arith.constant 0 : index
    %c0_0 = arith.constant 0 : index
    %c0_1 = arith.constant 0 : index
    %0 = vector.load %arg1[%c0, %c0_0, %c0_1] : memref<1x12x32xf32, #tpu.memory_space<vmem>>, vector<1x12x32xf32>
    %1 = vector.shape_cast %0 : vector<1x12x32xf32> to vector<12x32xf32>
    %c0_2 = arith.constant 0 : index
    %c0_3 = arith.constant 0 : index
    %c0_4 = arith.constant 0 : index
    %2 = vector.load %arg2[%c0_2, %c0_3, %c0_4] : memref<1x12x32xf32, #tpu.memory_space<vmem>>, vector<1x12x32xf32>
    %3 = vector.shape_cast %2 : vector<1x12x32xf32> to vector<12x32xf32>
    %c0_5 = arith.constant 0 : index
    %c0_6 = arith.constant 0 : index
    %4 = vector.load %arg3[%c0_5, %c0_6] : memref<32x96xbf16, #tpu.memory_space<vmem>>, vector<32x96xbf16>
    %c0_7 = arith.constant 0 : index
    %c0_8 = arith.constant 0 : index
    %5 = vector.load %arg4[%c0_7, %c0_8] : memref<1x96xf32, #tpu.memory_space<vmem>>, vector<1x96xf32>
    %c0_9 = arith.constant 0 : index
    %c0_10 = arith.constant 0 : index
    %6 = vector.load %arg5[%c0_9, %c0_10] : memref<32x32xbf16, #tpu.memory_space<vmem>>, vector<32x32xbf16>
    %c0_11 = arith.constant 0 : index
    %c0_12 = arith.constant 0 : index
    %7 = vector.load %arg7[%c0_11, %c0_12] : memref<12x12xf32, #tpu.memory_space<vmem>>, vector<12x12xf32>
    %c0_13 = arith.constant 0 : index
    %c0_14 = arith.constant 0 : index
    %c0_15 = arith.constant 0 : index
    %8 = vector.load %arg8[%c0_13, %c0_14, %c0_15] : memref<1x1x12xf32, #tpu.memory_space<vmem>>, vector<1x1x12xf32>
    %9 = vector.shape_cast %8 : vector<1x1x12xf32> to vector<1x12xf32>
    %10 = vector.broadcast %9 : vector<1x12xf32> to vector<12x12xf32>
    %11 = arith.addf %7, %10 : vector<12x12xf32>
    %12 = arith.truncf %1 : vector<12x32xf32> to vector<12x32xbf16>
    %13 = arith.truncf %3 : vector<12x32xf32> to vector<12x32xbf16>
    %14 = vector.extract_strided_slice %4 {offsets = [0, 0], sizes = [32, 32], strides = [1, 1]} : vector<32x96xbf16> to vector<32x32xbf16>
    %cst = arith.constant dense<0.000000e+00> : vector<12x32xf32>
    %15 = tpu.matmul %12, %14, %cst {dimension_numbers = #tpu.dot_dimension_numbers<[1], [0], [0], [1], [0, 0, 1, 1], [], []>} : vector<12x32xbf16>, vector<32x32xbf16>, vector<12x32xf32> -> vector<12x32xf32>
    %16 = vector.extract_strided_slice %5 {offsets = [0, 0], sizes = [1, 32], strides = [1, 1]} : vector<1x96xf32> to vector<1x32xf32>
    %17 = vector.broadcast %16 : vector<1x32xf32> to vector<12x32xf32>
    %18 = arith.addf %15, %17 : vector<12x32xf32>
    %19 = vector.extract_strided_slice %4 {offsets = [0, 32], sizes = [32, 64], strides = [1, 1]} : vector<32x96xbf16> to vector<32x64xbf16>
    %cst_16 = arith.constant dense<0.000000e+00> : vector<12x64xf32>
    %20 = tpu.matmul %13, %19, %cst_16 {dimension_numbers = #tpu.dot_dimension_numbers<[1], [0], [0], [1], [0, 0, 1, 1], [], []>} : vector<12x32xbf16>, vector<32x64xbf16>, vector<12x64xf32> -> vector<12x64xf32>
    %21 = vector.extract_strided_slice %5 {offsets = [0, 32], sizes = [1, 64], strides = [1, 1]} : vector<1x96xf32> to vector<1x64xf32>
    %22 = vector.broadcast %21 : vector<1x64xf32> to vector<12x64xf32>
    %23 = arith.addf %20, %22 : vector<12x64xf32>
    %c0_17 = arith.constant 0 : index
    %c0_18 = arith.constant 0 : index
    %24 = vector.load %arg6[%c0_17, %c0_18] : memref<1x32xf32, #tpu.memory_space<vmem>>, vector<1x32xf32>
    %25 = vector.extract_strided_slice %18 {offsets = [0, 0], sizes = [12, 8], strides = [1, 1]} : vector<12x32xf32> to vector<12x8xf32>
    %26 = arith.truncf %25 : vector<12x8xf32> to vector<12x8xbf16>
    %27 = vector.extract_strided_slice %23 {offsets = [0, 0], sizes = [12, 8], strides = [1, 1]} : vector<12x64xf32> to vector<12x8xf32>
    %28 = arith.truncf %27 : vector<12x8xf32> to vector<12x8xbf16>
    %29 = vector.extract_strided_slice %23 {offsets = [0, 32], sizes = [12, 8], strides = [1, 1]} : vector<12x64xf32> to vector<12x8xf32>
    %30 = arith.truncf %29 : vector<12x8xf32> to vector<12x8xbf16>
    %cst_19 = arith.constant dense<0.000000e+00> : vector<12x12xf32>
    %31 = tpu.matmul %26, %28, %cst_19 {dimension_numbers = #tpu.dot_dimension_numbers<[1], [1], [0], [0], [0, 0, 1, 0], [], []>} : vector<12x8xbf16>, vector<12x8xbf16>, vector<12x12xf32> -> vector<12x12xf32>
    %cst_20 = arith.constant 0.353553385 : f32
    %32 = vector.broadcast %cst_20 : f32 to vector<12x12xf32>
    %33 = arith.mulf %31, %32 : vector<12x12xf32>
    %34 = arith.addf %33, %11 : vector<12x12xf32>
    %cst_21 = arith.constant dense<0xFF800000> : vector<12xf32>
    %35 = vector.multi_reduction <maximumf>, %34, %cst_21 [1] : vector<12x12xf32> to vector<12xf32>
    %36 = vector.shape_cast %35 : vector<12xf32> to vector<12x1xf32>
    %37 = vector.broadcast %36 : vector<12x1xf32> to vector<12x12xf32>
    %38 = arith.subf %34, %37 : vector<12x12xf32>
    %39 = math.exp %38 : vector<12x12xf32>
    %cst_22 = arith.constant dense<0.000000e+00> : vector<12xf32>
    %40 = vector.multi_reduction <add>, %39, %cst_22 [1] : vector<12x12xf32> to vector<12xf32>
    %41 = vector.shape_cast %40 : vector<12xf32> to vector<12x1xf32>
    %42 = tpu.reciprocal %41 {approx = true} : vector<12x1xf32> -> vector<12x1xf32>
    %43 = vector.broadcast %42 : vector<12x1xf32> to vector<12x12xf32>
    %44 = arith.mulf %39, %43 : vector<12x12xf32>
    %45 = arith.truncf %44 : vector<12x12xf32> to vector<12x12xbf16>
    %cst_23 = arith.constant dense<0.000000e+00> : vector<12x8xf32>
    %46 = tpu.matmul %45, %30, %cst_23 {dimension_numbers = #tpu.dot_dimension_numbers<[1], [0], [0], [1], [0, 0, 1, 1], [], []>} : vector<12x12xbf16>, vector<12x8xbf16>, vector<12x8xf32> -> vector<12x8xf32>
    %47 = arith.truncf %46 : vector<12x8xf32> to vector<12x8xbf16>
    %48 = vector.extract_strided_slice %6 {offsets = [0, 0], sizes = [8, 32], strides = [1, 1]} : vector<32x32xbf16> to vector<8x32xbf16>
    %cst_24 = arith.constant dense<0.000000e+00> : vector<12x32xf32>
    %49 = tpu.matmul %47, %48, %cst_24 {dimension_numbers = #tpu.dot_dimension_numbers<[1], [0], [0], [1], [0, 0, 1, 1], [], []>} : vector<12x8xbf16>, vector<8x32xbf16>, vector<12x32xf32> -> vector<12x32xf32>
    %50 = vector.broadcast %24 : vector<1x32xf32> to vector<12x32xf32>
    %51 = arith.addf %50, %49 : vector<12x32xf32>
    %52 = vector.extract_strided_slice %18 {offsets = [0, 8], sizes = [12, 8], strides = [1, 1]} : vector<12x32xf32> to vector<12x8xf32>
    %53 = arith.truncf %52 : vector<12x8xf32> to vector<12x8xbf16>
    %54 = vector.extract_strided_slice %23 {offsets = [0, 8], sizes = [12, 8], strides = [1, 1]} : vector<12x64xf32> to vector<12x8xf32>
    %55 = arith.truncf %54 : vector<12x8xf32> to vector<12x8xbf16>
    %56 = vector.extract_strided_slice %23 {offsets = [0, 40], sizes = [12, 8], strides = [1, 1]} : vector<12x64xf32> to vector<12x8xf32>
    %57 = arith.truncf %56 : vector<12x8xf32> to vector<12x8xbf16>
    %cst_25 = arith.constant dense<0.000000e+00> : vector<12x12xf32>
    %58 = tpu.matmul %53, %55, %cst_25 {dimension_numbers = #tpu.dot_dimension_numbers<[1], [1], [0], [0], [0, 0, 1, 0], [], []>} : vector<12x8xbf16>, vector<12x8xbf16>, vector<12x12xf32> -> vector<12x12xf32>
    %cst_26 = arith.constant 0.353553385 : f32
    %59 = vector.broadcast %cst_26 : f32 to vector<12x12xf32>
    %60 = arith.mulf %58, %59 : vector<12x12xf32>
    %61 = arith.addf %60, %11 : vector<12x12xf32>
    %cst_27 = arith.constant dense<0xFF800000> : vector<12xf32>
    %62 = vector.multi_reduction <maximumf>, %61, %cst_27 [1] : vector<12x12xf32> to vector<12xf32>
    %63 = vector.shape_cast %62 : vector<12xf32> to vector<12x1xf32>
    %64 = vector.broadcast %63 : vector<12x1xf32> to vector<12x12xf32>
    %65 = arith.subf %61, %64 : vector<12x12xf32>
    %66 = math.exp %65 : vector<12x12xf32>
    %cst_28 = arith.constant dense<0.000000e+00> : vector<12xf32>
    %67 = vector.multi_reduction <add>, %66, %cst_28 [1] : vector<12x12xf32> to vector<12xf32>
    %68 = vector.shape_cast %67 : vector<12xf32> to vector<12x1xf32>
    %69 = tpu.reciprocal %68 {approx = true} : vector<12x1xf32> -> vector<12x1xf32>
    %70 = vector.broadcast %69 : vector<12x1xf32> to vector<12x12xf32>
    %71 = arith.mulf %66, %70 : vector<12x12xf32>
    %72 = arith.truncf %71 : vector<12x12xf32> to vector<12x12xbf16>
    %cst_29 = arith.constant dense<0.000000e+00> : vector<12x8xf32>
    %73 = tpu.matmul %72, %57, %cst_29 {dimension_numbers = #tpu.dot_dimension_numbers<[1], [0], [0], [1], [0, 0, 1, 1], [], []>} : vector<12x12xbf16>, vector<12x8xbf16>, vector<12x8xf32> -> vector<12x8xf32>
    %74 = arith.truncf %73 : vector<12x8xf32> to vector<12x8xbf16>
    %75 = vector.extract_strided_slice %6 {offsets = [8, 0], sizes = [8, 32], strides = [1, 1]} : vector<32x32xbf16> to vector<8x32xbf16>
    %cst_30 = arith.constant dense<0.000000e+00> : vector<12x32xf32>
    %76 = tpu.matmul %74, %75, %cst_30 {dimension_numbers = #tpu.dot_dimension_numbers<[1], [0], [0], [1], [0, 0, 1, 1], [], []>} : vector<12x8xbf16>, vector<8x32xbf16>, vector<12x32xf32> -> vector<12x32xf32>
    %77 = arith.addf %51, %76 : vector<12x32xf32>
    %78 = vector.extract_strided_slice %18 {offsets = [0, 16], sizes = [12, 8], strides = [1, 1]} : vector<12x32xf32> to vector<12x8xf32>
    %79 = arith.truncf %78 : vector<12x8xf32> to vector<12x8xbf16>
    %80 = vector.extract_strided_slice %23 {offsets = [0, 16], sizes = [12, 8], strides = [1, 1]} : vector<12x64xf32> to vector<12x8xf32>
    %81 = arith.truncf %80 : vector<12x8xf32> to vector<12x8xbf16>
    %82 = vector.extract_strided_slice %23 {offsets = [0, 48], sizes = [12, 8], strides = [1, 1]} : vector<12x64xf32> to vector<12x8xf32>
    %83 = arith.truncf %82 : vector<12x8xf32> to vector<12x8xbf16>
    %cst_31 = arith.constant dense<0.000000e+00> : vector<12x12xf32>
    %84 = tpu.matmul %79, %81, %cst_31 {dimension_numbers = #tpu.dot_dimension_numbers<[1], [1], [0], [0], [0, 0, 1, 0], [], []>} : vector<12x8xbf16>, vector<12x8xbf16>, vector<12x12xf32> -> vector<12x12xf32>
    %cst_32 = arith.constant 0.353553385 : f32
    %85 = vector.broadcast %cst_32 : f32 to vector<12x12xf32>
    %86 = arith.mulf %84, %85 : vector<12x12xf32>
    %87 = arith.addf %86, %11 : vector<12x12xf32>
    %cst_33 = arith.constant dense<0xFF800000> : vector<12xf32>
    %88 = vector.multi_reduction <maximumf>, %87, %cst_33 [1] : vector<12x12xf32> to vector<12xf32>
    %89 = vector.shape_cast %88 : vector<12xf32> to vector<12x1xf32>
    %90 = vector.broadcast %89 : vector<12x1xf32> to vector<12x12xf32>
    %91 = arith.subf %87, %90 : vector<12x12xf32>
    %92 = math.exp %91 : vector<12x12xf32>
    %cst_34 = arith.constant dense<0.000000e+00> : vector<12xf32>
    %93 = vector.multi_reduction <add>, %92, %cst_34 [1] : vector<12x12xf32> to vector<12xf32>
    %94 = vector.shape_cast %93 : vector<12xf32> to vector<12x1xf32>
    %95 = tpu.reciprocal %94 {approx = true} : vector<12x1xf32> -> vector<12x1xf32>
    %96 = vector.broadcast %95 : vector<12x1xf32> to vector<12x12xf32>
    %97 = arith.mulf %92, %96 : vector<12x12xf32>
    %98 = arith.truncf %97 : vector<12x12xf32> to vector<12x12xbf16>
    %cst_35 = arith.constant dense<0.000000e+00> : vector<12x8xf32>
    %99 = tpu.matmul %98, %83, %cst_35 {dimension_numbers = #tpu.dot_dimension_numbers<[1], [0], [0], [1], [0, 0, 1, 1], [], []>} : vector<12x12xbf16>, vector<12x8xbf16>, vector<12x8xf32> -> vector<12x8xf32>
    %100 = arith.truncf %99 : vector<12x8xf32> to vector<12x8xbf16>
    %101 = vector.extract_strided_slice %6 {offsets = [16, 0], sizes = [8, 32], strides = [1, 1]} : vector<32x32xbf16> to vector<8x32xbf16>
    %cst_36 = arith.constant dense<0.000000e+00> : vector<12x32xf32>
    %102 = tpu.matmul %100, %101, %cst_36 {dimension_numbers = #tpu.dot_dimension_numbers<[1], [0], [0], [1], [0, 0, 1, 1], [], []>} : vector<12x8xbf16>, vector<8x32xbf16>, vector<12x32xf32> -> vector<12x32xf32>
    %103 = arith.addf %77, %102 : vector<12x32xf32>
    %104 = vector.extract_strided_slice %18 {offsets = [0, 24], sizes = [12, 8], strides = [1, 1]} : vector<12x32xf32> to vector<12x8xf32>
    %105 = arith.truncf %104 : vector<12x8xf32> to vector<12x8xbf16>
    %106 = vector.extract_strided_slice %23 {offsets = [0, 24], sizes = [12, 8], strides = [1, 1]} : vector<12x64xf32> to vector<12x8xf32>
    %107 = arith.truncf %106 : vector<12x8xf32> to vector<12x8xbf16>
    %108 = vector.extract_strided_slice %23 {offsets = [0, 56], sizes = [12, 8], strides = [1, 1]} : vector<12x64xf32> to vector<12x8xf32>
    %109 = arith.truncf %108 : vector<12x8xf32> to vector<12x8xbf16>
    %cst_37 = arith.constant dense<0.000000e+00> : vector<12x12xf32>
    %110 = tpu.matmul %105, %107, %cst_37 {dimension_numbers = #tpu.dot_dimension_numbers<[1], [1], [0], [0], [0, 0, 1, 0], [], []>} : vector<12x8xbf16>, vector<12x8xbf16>, vector<12x12xf32> -> vector<12x12xf32>
    %cst_38 = arith.constant 0.353553385 : f32
    %111 = vector.broadcast %cst_38 : f32 to vector<12x12xf32>
    %112 = arith.mulf %110, %111 : vector<12x12xf32>
    %113 = arith.addf %112, %11 : vector<12x12xf32>
    %cst_39 = arith.constant dense<0xFF800000> : vector<12xf32>
    %114 = vector.multi_reduction <maximumf>, %113, %cst_39 [1] : vector<12x12xf32> to vector<12xf32>
    %115 = vector.shape_cast %114 : vector<12xf32> to vector<12x1xf32>
    %116 = vector.broadcast %115 : vector<12x1xf32> to vector<12x12xf32>
    %117 = arith.subf %113, %116 : vector<12x12xf32>
    %118 = math.exp %117 : vector<12x12xf32>
    %cst_40 = arith.constant dense<0.000000e+00> : vector<12xf32>
    %119 = vector.multi_reduction <add>, %118, %cst_40 [1] : vector<12x12xf32> to vector<12xf32>
    %120 = vector.shape_cast %119 : vector<12xf32> to vector<12x1xf32>
    %121 = tpu.reciprocal %120 {approx = true} : vector<12x1xf32> -> vector<12x1xf32>
    %122 = vector.broadcast %121 : vector<12x1xf32> to vector<12x12xf32>
    %123 = arith.mulf %118, %122 : vector<12x12xf32>
    %124 = arith.truncf %123 : vector<12x12xf32> to vector<12x12xbf16>
    %cst_41 = arith.constant dense<0.000000e+00> : vector<12x8xf32>
    %125 = tpu.matmul %124, %109, %cst_41 {dimension_numbers = #tpu.dot_dimension_numbers<[1], [0], [0], [1], [0, 0, 1, 1], [], []>} : vector<12x12xbf16>, vector<12x8xbf16>, vector<12x8xf32> -> vector<12x8xf32>
    %126 = arith.truncf %125 : vector<12x8xf32> to vector<12x8xbf16>
    %127 = vector.extract_strided_slice %6 {offsets = [24, 0], sizes = [8, 32], strides = [1, 1]} : vector<32x32xbf16> to vector<8x32xbf16>
    %cst_42 = arith.constant dense<0.000000e+00> : vector<12x32xf32>
    %128 = tpu.matmul %126, %127, %cst_42 {dimension_numbers = #tpu.dot_dimension_numbers<[1], [0], [0], [1], [0, 0, 1, 1], [], []>} : vector<12x8xbf16>, vector<8x32xbf16>, vector<12x32xf32> -> vector<12x32xf32>
    %129 = arith.addf %103, %128 : vector<12x32xf32>
    %130 = arith.addf %1, %129 : vector<12x32xf32>
    %cst_43 = arith.constant dense<0.000000e+00> : vector<12xf32>
    %131 = vector.multi_reduction <add>, %130, %cst_43 [1] : vector<12x32xf32> to vector<12xf32>
    %132 = vector.shape_cast %131 : vector<12xf32> to vector<12x1xf32>
    %cst_44 = arith.constant 3.200000e+01 : f32
    %133 = vector.broadcast %cst_44 : f32 to vector<12x1xf32>
    %134 = arith.divf %132, %133 : vector<12x1xf32>
    %135 = vector.broadcast %134 : vector<12x1xf32> to vector<12x32xf32>
    %136 = arith.subf %130, %135 : vector<12x32xf32>
    %137 = arith.mulf %136, %136 : vector<12x32xf32>
    %cst_45 = arith.constant dense<0.000000e+00> : vector<12xf32>
    %138 = vector.multi_reduction <add>, %137, %cst_45 [1] : vector<12x32xf32> to vector<12xf32>
    %139 = vector.shape_cast %138 : vector<12xf32> to vector<12x1xf32>
    %cst_46 = arith.constant 3.200000e+01 : f32
    %140 = vector.broadcast %cst_46 : f32 to vector<12x1xf32>
    %141 = arith.divf %139, %140 : vector<12x1xf32>
    %142 = vector.broadcast %134 : vector<12x1xf32> to vector<12x32xf32>
    %143 = arith.subf %130, %142 : vector<12x32xf32>
    %cst_47 = arith.constant 9.99999974E-6 : f32
    %144 = vector.broadcast %cst_47 : f32 to vector<12x1xf32>
    %145 = arith.addf %141, %144 : vector<12x1xf32>
    %146 = math.rsqrt %145 : vector<12x1xf32>
    %147 = vector.broadcast %146 : vector<12x1xf32> to vector<12x32xf32>
    %148 = arith.mulf %143, %147 : vector<12x32xf32>
    %c0_48 = arith.constant 0 : index
    %c0_49 = arith.constant 0 : index
    %149 = vector.load %arg9[%c0_48, %c0_49] : memref<1x32xf32, #tpu.memory_space<vmem>>, vector<1x32xf32>
    %150 = vector.broadcast %149 : vector<1x32xf32> to vector<12x32xf32>
    %151 = arith.mulf %148, %150 : vector<12x32xf32>
    %c0_50 = arith.constant 0 : index
    %c0_51 = arith.constant 0 : index
    %152 = vector.load %arg10[%c0_50, %c0_51] : memref<1x32xf32, #tpu.memory_space<vmem>>, vector<1x32xf32>
    %153 = vector.broadcast %152 : vector<1x32xf32> to vector<12x32xf32>
    %154 = arith.addf %151, %153 : vector<12x32xf32>
    %c0_52 = arith.constant 0 : index
    %c0_53 = arith.constant 0 : index
    %c0_54 = arith.constant 0 : index
    %155 = vector.load %arg11[%c0_52, %c0_53, %c0_54] : memref<1x12x32xf32, #tpu.memory_space<vmem>>, vector<1x12x32xf32>
    %156 = vector.shape_cast %155 : vector<1x12x32xf32> to vector<12x32xf32>
    %157 = vector.shape_cast %154 : vector<12x32xf32> to vector<1x12x32xf32>
    tpu.vector_store %arg11[%c0_52, %c0_53, %c0_54], %157 {strides = array<i32>} : memref<1x12x32xf32, #tpu.memory_space<vmem>>, vector<1x12x32xf32>,
    return
  }
  func.func @transform_0(%arg0: i32) -> (i32, i32, i32) {
    %c0_i32 = arith.constant 0 : i32
    %c0_i32_0 = arith.constant 0 : i32
    %c0_i32_1 = arith.constant 0 : i32
    return %arg0, %c0_i32, %c0_i32_0 : i32, i32, i32
  }
  func.func @transform_1(%arg0: i32) -> (i32, i32, i32) {
    %c0_i32 = arith.constant 0 : i32
    %c0_i32_0 = arith.constant 0 : i32
    %c0_i32_1 = arith.constant 0 : i32
    return %arg0, %c0_i32, %c0_i32_0 : i32, i32, i32
  }
  func.func @transform_2(%arg0: i32) -> (i32, i32) {
    %c0_i32 = arith.constant 0 : i32
    %c0_i32_0 = arith.constant 0 : i32
    %c0_i32_1 = arith.constant 0 : i32
    return %c0_i32, %c0_i32_0 : i32, i32
  }
  func.func @transform_3(%arg0: i32) -> (i32, i32) {
    %c0_i32 = arith.constant 0 : i32
    %c0_i32_0 = arith.constant 0 : i32
    %c0_i32_1 = arith.constant 0 : i32
    return %c0_i32, %c0_i32_0 : i32, i32
  }
  func.func @transform_4(%arg0: i32) -> (i32, i32) {
    %c0_i32 = arith.constant 0 : i32
    %c0_i32_0 = arith.constant 0 : i32
    %c0_i32_1 = arith.constant 0 : i32
    return %c0_i32, %c0_i32_0 : i32, i32
  }
  func.func @transform_5(%arg0: i32) -> (i32, i32) {
    %c0_i32 = arith.constant 0 : i32
    %c0_i32_0 = arith.constant 0 : i32
    %c0_i32_1 = arith.constant 0 : i32
    return %c0_i32, %c0_i32_0 : i32, i32
  }
  func.func @transform_6(%arg0: i32) -> (i32, i32) {
    %c0_i32 = arith.constant 0 : i32
    %c0_i32_0 = arith.constant 0 : i32
    %c0_i32_1 = arith.constant 0 : i32
    return %c0_i32, %c0_i32_0 : i32, i32
  }
  func.func @transform_7(%arg0: i32) -> (i32, i32, i32) {
    %c0_i32 = arith.constant 0 : i32
    %c0_i32_0 = arith.constant 0 : i32
    %c0_i32_1 = arith.constant 0 : i32
    return %arg0, %c0_i32, %c0_i32_0 : i32, i32, i32
  }
  func.func @transform_8(%arg0: i32) -> (i32, i32) {
    %c0_i32 = arith.constant 0 : i32
    %c0_i32_0 = arith.constant 0 : i32
    %c0_i32_1 = arith.constant 0 : i32
    return %c0_i32, %c0_i32_0 : i32, i32
  }
  func.func @transform_9(%arg0: i32) -> (i32, i32) {
    %c0_i32 = arith.constant 0 : i32
    %c0_i32_0 = arith.constant 0 : i32
    %c0_i32_1 = arith.constant 0 : i32
    return %c0_i32, %c0_i32_0 : i32, i32
  }
  func.func @transform_10(%arg0: i32) -> (i32, i32, i32) {
    %c0_i32 = arith.constant 0 : i32
    %c0_i32_0 = arith.constant 0 : i32
    %c0_i32_1 = arith.constant 0 : i32
    return %arg0, %c0_i32, %c0_i32_0 : i32, i32, i32
  }
}

module attributes {stable_mosaic.version = 11 : i64} {
  func.func @_layernorm_kernel(%arg0: i32, %arg1: memref<1x12x32xf32, #tpu.memory_space<vmem>>, %arg2: memref<1x32xf32, #tpu.memory_space<vmem>>, %arg3: memref<1x32xf32, #tpu.memory_space<vmem>>, %arg4: memref<1x12x32xf32, #tpu.memory_space<vmem>>) attributes {dimension_semantics = [#tpu.dimension_semantics<parallel>], iteration_bounds = array<i64: 2>, scalar_prefetch = 0 : i64, scratch_operands = 0 : i64, tpu.core_type = #tpu.core_type<tc>, window_params = [{transform_indices = @transform_0, window_bounds = array<i64: 1, 12, 32>}, {pipeline_mode = #tpu.pipeline_mode<synchronous>, transform_indices = @transform_1, window_bounds = array<i64: 1, 32>}, {pipeline_mode = #tpu.pipeline_mode<synchronous>, transform_indices = @transform_2, window_bounds = array<i64: 1, 32>}, {transform_indices = @transform_3, window_bounds = array<i64: 1, 12, 32>}]} {
    %c0 = arith.constant 0 : index
    %c0_0 = arith.constant 0 : index
    %c0_1 = arith.constant 0 : index
    %0 = vector.load %arg1[%c0, %c0_0, %c0_1] : memref<1x12x32xf32, #tpu.memory_space<vmem>>, vector<1x12x32xf32>
    %1 = vector.shape_cast %0 : vector<1x12x32xf32> to vector<12x32xf32>
    %cst = arith.constant dense<0.000000e+00> : vector<12xf32>
    %2 = vector.multi_reduction <add>, %1, %cst [1] : vector<12x32xf32> to vector<12xf32>
    %3 = vector.shape_cast %2 : vector<12xf32> to vector<12x1xf32>
    %cst_2 = arith.constant 3.200000e+01 : f32
    %4 = vector.broadcast %cst_2 : f32 to vector<12x1xf32>
    %5 = arith.divf %3, %4 : vector<12x1xf32>
    %6 = vector.broadcast %5 : vector<12x1xf32> to vector<12x32xf32>
    %7 = arith.subf %1, %6 : vector<12x32xf32>
    %8 = arith.mulf %7, %7 : vector<12x32xf32>
    %cst_3 = arith.constant dense<0.000000e+00> : vector<12xf32>
    %9 = vector.multi_reduction <add>, %8, %cst_3 [1] : vector<12x32xf32> to vector<12xf32>
    %10 = vector.shape_cast %9 : vector<12xf32> to vector<12x1xf32>
    %cst_4 = arith.constant 3.200000e+01 : f32
    %11 = vector.broadcast %cst_4 : f32 to vector<12x1xf32>
    %12 = arith.divf %10, %11 : vector<12x1xf32>
    %13 = vector.broadcast %5 : vector<12x1xf32> to vector<12x32xf32>
    %14 = arith.subf %1, %13 : vector<12x32xf32>
    %cst_5 = arith.constant 9.99999974E-6 : f32
    %15 = vector.broadcast %cst_5 : f32 to vector<12x1xf32>
    %16 = arith.addf %12, %15 : vector<12x1xf32>
    %17 = math.rsqrt %16 : vector<12x1xf32>
    %18 = vector.broadcast %17 : vector<12x1xf32> to vector<12x32xf32>
    %19 = arith.mulf %14, %18 : vector<12x32xf32>
    %c0_6 = arith.constant 0 : index
    %c0_7 = arith.constant 0 : index
    %20 = vector.load %arg2[%c0_6, %c0_7] : memref<1x32xf32, #tpu.memory_space<vmem>>, vector<1x32xf32>
    %21 = vector.broadcast %20 : vector<1x32xf32> to vector<12x32xf32>
    %22 = arith.mulf %19, %21 : vector<12x32xf32>
    %c0_8 = arith.constant 0 : index
    %c0_9 = arith.constant 0 : index
    %23 = vector.load %arg3[%c0_8, %c0_9] : memref<1x32xf32, #tpu.memory_space<vmem>>, vector<1x32xf32>
    %24 = vector.broadcast %23 : vector<1x32xf32> to vector<12x32xf32>
    %25 = arith.addf %22, %24 : vector<12x32xf32>
    %c0_10 = arith.constant 0 : index
    %c0_11 = arith.constant 0 : index
    %c0_12 = arith.constant 0 : index
    %26 = vector.load %arg4[%c0_10, %c0_11, %c0_12] : memref<1x12x32xf32, #tpu.memory_space<vmem>>, vector<1x12x32xf32>
    %27 = vector.shape_cast %26 : vector<1x12x32xf32> to vector<12x32xf32>
    %28 = vector.shape_cast %25 : vector<12x32xf32> to vector<1x12x32xf32>
    tpu.vector_store %arg4[%c0_10, %c0_11, %c0_12], %28 {strides = array<i32>} : memref<1x12x32xf32, #tpu.memory_space<vmem>>, vector<1x12x32xf32>,
    return
  }
  func.func @transform_0(%arg0: i32) -> (i32, i32, i32) {
    %c0_i32 = arith.constant 0 : i32
    %c0_i32_0 = arith.constant 0 : i32
    %c0_i32_1 = arith.constant 0 : i32
    return %arg0, %c0_i32, %c0_i32_0 : i32, i32, i32
  }
  func.func @transform_1(%arg0: i32) -> (i32, i32) {
    %c0_i32 = arith.constant 0 : i32
    %c0_i32_0 = arith.constant 0 : i32
    %c0_i32_1 = arith.constant 0 : i32
    return %c0_i32, %c0_i32_0 : i32, i32
  }
  func.func @transform_2(%arg0: i32) -> (i32, i32) {
    %c0_i32 = arith.constant 0 : i32
    %c0_i32_0 = arith.constant 0 : i32
    %c0_i32_1 = arith.constant 0 : i32
    return %c0_i32, %c0_i32_0 : i32, i32
  }
  func.func @transform_3(%arg0: i32) -> (i32, i32, i32) {
    %c0_i32 = arith.constant 0 : i32
    %c0_i32_0 = arith.constant 0 : i32
    %c0_i32_1 = arith.constant 0 : i32
    return %arg0, %c0_i32, %c0_i32_0 : i32, i32, i32
  }
}

module attributes {stable_mosaic.version = 11 : i64} {
  func.func @_mha_block_kernel(%arg0: i32, %arg1: memref<1x10x32xf32, #tpu.memory_space<vmem>>, %arg2: memref<1x10x32xf32, #tpu.memory_space<vmem>>, %arg3: memref<32x96xbf16, #tpu.memory_space<vmem>>, %arg4: memref<1x96xf32, #tpu.memory_space<vmem>>, %arg5: memref<32x32xbf16, #tpu.memory_space<vmem>>, %arg6: memref<1x32xf32, #tpu.memory_space<vmem>>, %arg7: memref<10x10xf32, #tpu.memory_space<vmem>>, %arg8: memref<1x1x10xf32, #tpu.memory_space<vmem>>, %arg9: memref<1x32xf32, #tpu.memory_space<vmem>>, %arg10: memref<1x32xf32, #tpu.memory_space<vmem>>, %arg11: memref<1x10x32xf32, #tpu.memory_space<vmem>>) attributes {dimension_semantics = [#tpu.dimension_semantics<parallel>], iteration_bounds = array<i64: 2>, scalar_prefetch = 0 : i64, scratch_operands = 0 : i64, tpu.core_type = #tpu.core_type<tc>, window_params = [{transform_indices = @transform_0, window_bounds = array<i64: 1, 10, 32>}, {transform_indices = @transform_1, window_bounds = array<i64: 1, 10, 32>}, {pipeline_mode = #tpu.pipeline_mode<synchronous>, transform_indices = @transform_2, window_bounds = array<i64: 32, 96>}, {pipeline_mode = #tpu.pipeline_mode<synchronous>, transform_indices = @transform_3, window_bounds = array<i64: 1, 96>}, {pipeline_mode = #tpu.pipeline_mode<synchronous>, transform_indices = @transform_4, window_bounds = array<i64: 32, 32>}, {pipeline_mode = #tpu.pipeline_mode<synchronous>, transform_indices = @transform_5, window_bounds = array<i64: 1, 32>}, {pipeline_mode = #tpu.pipeline_mode<synchronous>, transform_indices = @transform_6, window_bounds = array<i64: 10, 10>}, {transform_indices = @transform_7, window_bounds = array<i64: 1, 1, 10>}, {pipeline_mode = #tpu.pipeline_mode<synchronous>, transform_indices = @transform_8, window_bounds = array<i64: 1, 32>}, {pipeline_mode = #tpu.pipeline_mode<synchronous>, transform_indices = @transform_9, window_bounds = array<i64: 1, 32>}, {transform_indices = @transform_10, window_bounds = array<i64: 1, 10, 32>}]} {
    %c0 = arith.constant 0 : index
    %c0_0 = arith.constant 0 : index
    %c0_1 = arith.constant 0 : index
    %0 = vector.load %arg1[%c0, %c0_0, %c0_1] : memref<1x10x32xf32, #tpu.memory_space<vmem>>, vector<1x10x32xf32>
    %1 = vector.shape_cast %0 : vector<1x10x32xf32> to vector<10x32xf32>
    %c0_2 = arith.constant 0 : index
    %c0_3 = arith.constant 0 : index
    %c0_4 = arith.constant 0 : index
    %2 = vector.load %arg2[%c0_2, %c0_3, %c0_4] : memref<1x10x32xf32, #tpu.memory_space<vmem>>, vector<1x10x32xf32>
    %3 = vector.shape_cast %2 : vector<1x10x32xf32> to vector<10x32xf32>
    %c0_5 = arith.constant 0 : index
    %c0_6 = arith.constant 0 : index
    %4 = vector.load %arg3[%c0_5, %c0_6] : memref<32x96xbf16, #tpu.memory_space<vmem>>, vector<32x96xbf16>
    %c0_7 = arith.constant 0 : index
    %c0_8 = arith.constant 0 : index
    %5 = vector.load %arg4[%c0_7, %c0_8] : memref<1x96xf32, #tpu.memory_space<vmem>>, vector<1x96xf32>
    %c0_9 = arith.constant 0 : index
    %c0_10 = arith.constant 0 : index
    %6 = vector.load %arg5[%c0_9, %c0_10] : memref<32x32xbf16, #tpu.memory_space<vmem>>, vector<32x32xbf16>
    %c0_11 = arith.constant 0 : index
    %c0_12 = arith.constant 0 : index
    %7 = vector.load %arg7[%c0_11, %c0_12] : memref<10x10xf32, #tpu.memory_space<vmem>>, vector<10x10xf32>
    %c0_13 = arith.constant 0 : index
    %c0_14 = arith.constant 0 : index
    %c0_15 = arith.constant 0 : index
    %8 = vector.load %arg8[%c0_13, %c0_14, %c0_15] : memref<1x1x10xf32, #tpu.memory_space<vmem>>, vector<1x1x10xf32>
    %9 = vector.shape_cast %8 : vector<1x1x10xf32> to vector<1x10xf32>
    %10 = vector.broadcast %9 : vector<1x10xf32> to vector<10x10xf32>
    %11 = arith.addf %7, %10 : vector<10x10xf32>
    %12 = arith.truncf %1 : vector<10x32xf32> to vector<10x32xbf16>
    %13 = arith.truncf %3 : vector<10x32xf32> to vector<10x32xbf16>
    %14 = vector.extract_strided_slice %4 {offsets = [0, 0], sizes = [32, 32], strides = [1, 1]} : vector<32x96xbf16> to vector<32x32xbf16>
    %cst = arith.constant dense<0.000000e+00> : vector<10x32xf32>
    %15 = tpu.matmul %12, %14, %cst {dimension_numbers = #tpu.dot_dimension_numbers<[1], [0], [0], [1], [0, 0, 1, 1], [], []>} : vector<10x32xbf16>, vector<32x32xbf16>, vector<10x32xf32> -> vector<10x32xf32>
    %16 = vector.extract_strided_slice %5 {offsets = [0, 0], sizes = [1, 32], strides = [1, 1]} : vector<1x96xf32> to vector<1x32xf32>
    %17 = vector.broadcast %16 : vector<1x32xf32> to vector<10x32xf32>
    %18 = arith.addf %15, %17 : vector<10x32xf32>
    %19 = vector.extract_strided_slice %4 {offsets = [0, 32], sizes = [32, 64], strides = [1, 1]} : vector<32x96xbf16> to vector<32x64xbf16>
    %cst_16 = arith.constant dense<0.000000e+00> : vector<10x64xf32>
    %20 = tpu.matmul %13, %19, %cst_16 {dimension_numbers = #tpu.dot_dimension_numbers<[1], [0], [0], [1], [0, 0, 1, 1], [], []>} : vector<10x32xbf16>, vector<32x64xbf16>, vector<10x64xf32> -> vector<10x64xf32>
    %21 = vector.extract_strided_slice %5 {offsets = [0, 32], sizes = [1, 64], strides = [1, 1]} : vector<1x96xf32> to vector<1x64xf32>
    %22 = vector.broadcast %21 : vector<1x64xf32> to vector<10x64xf32>
    %23 = arith.addf %20, %22 : vector<10x64xf32>
    %c0_17 = arith.constant 0 : index
    %c0_18 = arith.constant 0 : index
    %24 = vector.load %arg6[%c0_17, %c0_18] : memref<1x32xf32, #tpu.memory_space<vmem>>, vector<1x32xf32>
    %25 = vector.extract_strided_slice %18 {offsets = [0, 0], sizes = [10, 8], strides = [1, 1]} : vector<10x32xf32> to vector<10x8xf32>
    %26 = arith.truncf %25 : vector<10x8xf32> to vector<10x8xbf16>
    %27 = vector.extract_strided_slice %23 {offsets = [0, 0], sizes = [10, 8], strides = [1, 1]} : vector<10x64xf32> to vector<10x8xf32>
    %28 = arith.truncf %27 : vector<10x8xf32> to vector<10x8xbf16>
    %29 = vector.extract_strided_slice %23 {offsets = [0, 32], sizes = [10, 8], strides = [1, 1]} : vector<10x64xf32> to vector<10x8xf32>
    %30 = arith.truncf %29 : vector<10x8xf32> to vector<10x8xbf16>
    %cst_19 = arith.constant dense<0.000000e+00> : vector<10x10xf32>
    %31 = tpu.matmul %26, %28, %cst_19 {dimension_numbers = #tpu.dot_dimension_numbers<[1], [1], [0], [0], [0, 0, 1, 0], [], []>} : vector<10x8xbf16>, vector<10x8xbf16>, vector<10x10xf32> -> vector<10x10xf32>
    %cst_20 = arith.constant 0.353553385 : f32
    %32 = vector.broadcast %cst_20 : f32 to vector<10x10xf32>
    %33 = arith.mulf %31, %32 : vector<10x10xf32>
    %34 = arith.addf %33, %11 : vector<10x10xf32>
    %cst_21 = arith.constant dense<0xFF800000> : vector<10xf32>
    %35 = vector.multi_reduction <maximumf>, %34, %cst_21 [1] : vector<10x10xf32> to vector<10xf32>
    %36 = vector.shape_cast %35 : vector<10xf32> to vector<10x1xf32>
    %37 = vector.broadcast %36 : vector<10x1xf32> to vector<10x10xf32>
    %38 = arith.subf %34, %37 : vector<10x10xf32>
    %39 = math.exp %38 : vector<10x10xf32>
    %cst_22 = arith.constant dense<0.000000e+00> : vector<10xf32>
    %40 = vector.multi_reduction <add>, %39, %cst_22 [1] : vector<10x10xf32> to vector<10xf32>
    %41 = vector.shape_cast %40 : vector<10xf32> to vector<10x1xf32>
    %42 = tpu.reciprocal %41 {approx = true} : vector<10x1xf32> -> vector<10x1xf32>
    %43 = vector.broadcast %42 : vector<10x1xf32> to vector<10x10xf32>
    %44 = arith.mulf %39, %43 : vector<10x10xf32>
    %45 = arith.truncf %44 : vector<10x10xf32> to vector<10x10xbf16>
    %cst_23 = arith.constant dense<0.000000e+00> : vector<10x8xf32>
    %46 = tpu.matmul %45, %30, %cst_23 {dimension_numbers = #tpu.dot_dimension_numbers<[1], [0], [0], [1], [0, 0, 1, 1], [], []>} : vector<10x10xbf16>, vector<10x8xbf16>, vector<10x8xf32> -> vector<10x8xf32>
    %47 = arith.truncf %46 : vector<10x8xf32> to vector<10x8xbf16>
    %48 = vector.extract_strided_slice %6 {offsets = [0, 0], sizes = [8, 32], strides = [1, 1]} : vector<32x32xbf16> to vector<8x32xbf16>
    %cst_24 = arith.constant dense<0.000000e+00> : vector<10x32xf32>
    %49 = tpu.matmul %47, %48, %cst_24 {dimension_numbers = #tpu.dot_dimension_numbers<[1], [0], [0], [1], [0, 0, 1, 1], [], []>} : vector<10x8xbf16>, vector<8x32xbf16>, vector<10x32xf32> -> vector<10x32xf32>
    %50 = vector.broadcast %24 : vector<1x32xf32> to vector<10x32xf32>
    %51 = arith.addf %50, %49 : vector<10x32xf32>
    %52 = vector.extract_strided_slice %18 {offsets = [0, 8], sizes = [10, 8], strides = [1, 1]} : vector<10x32xf32> to vector<10x8xf32>
    %53 = arith.truncf %52 : vector<10x8xf32> to vector<10x8xbf16>
    %54 = vector.extract_strided_slice %23 {offsets = [0, 8], sizes = [10, 8], strides = [1, 1]} : vector<10x64xf32> to vector<10x8xf32>
    %55 = arith.truncf %54 : vector<10x8xf32> to vector<10x8xbf16>
    %56 = vector.extract_strided_slice %23 {offsets = [0, 40], sizes = [10, 8], strides = [1, 1]} : vector<10x64xf32> to vector<10x8xf32>
    %57 = arith.truncf %56 : vector<10x8xf32> to vector<10x8xbf16>
    %cst_25 = arith.constant dense<0.000000e+00> : vector<10x10xf32>
    %58 = tpu.matmul %53, %55, %cst_25 {dimension_numbers = #tpu.dot_dimension_numbers<[1], [1], [0], [0], [0, 0, 1, 0], [], []>} : vector<10x8xbf16>, vector<10x8xbf16>, vector<10x10xf32> -> vector<10x10xf32>
    %cst_26 = arith.constant 0.353553385 : f32
    %59 = vector.broadcast %cst_26 : f32 to vector<10x10xf32>
    %60 = arith.mulf %58, %59 : vector<10x10xf32>
    %61 = arith.addf %60, %11 : vector<10x10xf32>
    %cst_27 = arith.constant dense<0xFF800000> : vector<10xf32>
    %62 = vector.multi_reduction <maximumf>, %61, %cst_27 [1] : vector<10x10xf32> to vector<10xf32>
    %63 = vector.shape_cast %62 : vector<10xf32> to vector<10x1xf32>
    %64 = vector.broadcast %63 : vector<10x1xf32> to vector<10x10xf32>
    %65 = arith.subf %61, %64 : vector<10x10xf32>
    %66 = math.exp %65 : vector<10x10xf32>
    %cst_28 = arith.constant dense<0.000000e+00> : vector<10xf32>
    %67 = vector.multi_reduction <add>, %66, %cst_28 [1] : vector<10x10xf32> to vector<10xf32>
    %68 = vector.shape_cast %67 : vector<10xf32> to vector<10x1xf32>
    %69 = tpu.reciprocal %68 {approx = true} : vector<10x1xf32> -> vector<10x1xf32>
    %70 = vector.broadcast %69 : vector<10x1xf32> to vector<10x10xf32>
    %71 = arith.mulf %66, %70 : vector<10x10xf32>
    %72 = arith.truncf %71 : vector<10x10xf32> to vector<10x10xbf16>
    %cst_29 = arith.constant dense<0.000000e+00> : vector<10x8xf32>
    %73 = tpu.matmul %72, %57, %cst_29 {dimension_numbers = #tpu.dot_dimension_numbers<[1], [0], [0], [1], [0, 0, 1, 1], [], []>} : vector<10x10xbf16>, vector<10x8xbf16>, vector<10x8xf32> -> vector<10x8xf32>
    %74 = arith.truncf %73 : vector<10x8xf32> to vector<10x8xbf16>
    %75 = vector.extract_strided_slice %6 {offsets = [8, 0], sizes = [8, 32], strides = [1, 1]} : vector<32x32xbf16> to vector<8x32xbf16>
    %cst_30 = arith.constant dense<0.000000e+00> : vector<10x32xf32>
    %76 = tpu.matmul %74, %75, %cst_30 {dimension_numbers = #tpu.dot_dimension_numbers<[1], [0], [0], [1], [0, 0, 1, 1], [], []>} : vector<10x8xbf16>, vector<8x32xbf16>, vector<10x32xf32> -> vector<10x32xf32>
    %77 = arith.addf %51, %76 : vector<10x32xf32>
    %78 = vector.extract_strided_slice %18 {offsets = [0, 16], sizes = [10, 8], strides = [1, 1]} : vector<10x32xf32> to vector<10x8xf32>
    %79 = arith.truncf %78 : vector<10x8xf32> to vector<10x8xbf16>
    %80 = vector.extract_strided_slice %23 {offsets = [0, 16], sizes = [10, 8], strides = [1, 1]} : vector<10x64xf32> to vector<10x8xf32>
    %81 = arith.truncf %80 : vector<10x8xf32> to vector<10x8xbf16>
    %82 = vector.extract_strided_slice %23 {offsets = [0, 48], sizes = [10, 8], strides = [1, 1]} : vector<10x64xf32> to vector<10x8xf32>
    %83 = arith.truncf %82 : vector<10x8xf32> to vector<10x8xbf16>
    %cst_31 = arith.constant dense<0.000000e+00> : vector<10x10xf32>
    %84 = tpu.matmul %79, %81, %cst_31 {dimension_numbers = #tpu.dot_dimension_numbers<[1], [1], [0], [0], [0, 0, 1, 0], [], []>} : vector<10x8xbf16>, vector<10x8xbf16>, vector<10x10xf32> -> vector<10x10xf32>
    %cst_32 = arith.constant 0.353553385 : f32
    %85 = vector.broadcast %cst_32 : f32 to vector<10x10xf32>
    %86 = arith.mulf %84, %85 : vector<10x10xf32>
    %87 = arith.addf %86, %11 : vector<10x10xf32>
    %cst_33 = arith.constant dense<0xFF800000> : vector<10xf32>
    %88 = vector.multi_reduction <maximumf>, %87, %cst_33 [1] : vector<10x10xf32> to vector<10xf32>
    %89 = vector.shape_cast %88 : vector<10xf32> to vector<10x1xf32>
    %90 = vector.broadcast %89 : vector<10x1xf32> to vector<10x10xf32>
    %91 = arith.subf %87, %90 : vector<10x10xf32>
    %92 = math.exp %91 : vector<10x10xf32>
    %cst_34 = arith.constant dense<0.000000e+00> : vector<10xf32>
    %93 = vector.multi_reduction <add>, %92, %cst_34 [1] : vector<10x10xf32> to vector<10xf32>
    %94 = vector.shape_cast %93 : vector<10xf32> to vector<10x1xf32>
    %95 = tpu.reciprocal %94 {approx = true} : vector<10x1xf32> -> vector<10x1xf32>
    %96 = vector.broadcast %95 : vector<10x1xf32> to vector<10x10xf32>
    %97 = arith.mulf %92, %96 : vector<10x10xf32>
    %98 = arith.truncf %97 : vector<10x10xf32> to vector<10x10xbf16>
    %cst_35 = arith.constant dense<0.000000e+00> : vector<10x8xf32>
    %99 = tpu.matmul %98, %83, %cst_35 {dimension_numbers = #tpu.dot_dimension_numbers<[1], [0], [0], [1], [0, 0, 1, 1], [], []>} : vector<10x10xbf16>, vector<10x8xbf16>, vector<10x8xf32> -> vector<10x8xf32>
    %100 = arith.truncf %99 : vector<10x8xf32> to vector<10x8xbf16>
    %101 = vector.extract_strided_slice %6 {offsets = [16, 0], sizes = [8, 32], strides = [1, 1]} : vector<32x32xbf16> to vector<8x32xbf16>
    %cst_36 = arith.constant dense<0.000000e+00> : vector<10x32xf32>
    %102 = tpu.matmul %100, %101, %cst_36 {dimension_numbers = #tpu.dot_dimension_numbers<[1], [0], [0], [1], [0, 0, 1, 1], [], []>} : vector<10x8xbf16>, vector<8x32xbf16>, vector<10x32xf32> -> vector<10x32xf32>
    %103 = arith.addf %77, %102 : vector<10x32xf32>
    %104 = vector.extract_strided_slice %18 {offsets = [0, 24], sizes = [10, 8], strides = [1, 1]} : vector<10x32xf32> to vector<10x8xf32>
    %105 = arith.truncf %104 : vector<10x8xf32> to vector<10x8xbf16>
    %106 = vector.extract_strided_slice %23 {offsets = [0, 24], sizes = [10, 8], strides = [1, 1]} : vector<10x64xf32> to vector<10x8xf32>
    %107 = arith.truncf %106 : vector<10x8xf32> to vector<10x8xbf16>
    %108 = vector.extract_strided_slice %23 {offsets = [0, 56], sizes = [10, 8], strides = [1, 1]} : vector<10x64xf32> to vector<10x8xf32>
    %109 = arith.truncf %108 : vector<10x8xf32> to vector<10x8xbf16>
    %cst_37 = arith.constant dense<0.000000e+00> : vector<10x10xf32>
    %110 = tpu.matmul %105, %107, %cst_37 {dimension_numbers = #tpu.dot_dimension_numbers<[1], [1], [0], [0], [0, 0, 1, 0], [], []>} : vector<10x8xbf16>, vector<10x8xbf16>, vector<10x10xf32> -> vector<10x10xf32>
    %cst_38 = arith.constant 0.353553385 : f32
    %111 = vector.broadcast %cst_38 : f32 to vector<10x10xf32>
    %112 = arith.mulf %110, %111 : vector<10x10xf32>
    %113 = arith.addf %112, %11 : vector<10x10xf32>
    %cst_39 = arith.constant dense<0xFF800000> : vector<10xf32>
    %114 = vector.multi_reduction <maximumf>, %113, %cst_39 [1] : vector<10x10xf32> to vector<10xf32>
    %115 = vector.shape_cast %114 : vector<10xf32> to vector<10x1xf32>
    %116 = vector.broadcast %115 : vector<10x1xf32> to vector<10x10xf32>
    %117 = arith.subf %113, %116 : vector<10x10xf32>
    %118 = math.exp %117 : vector<10x10xf32>
    %cst_40 = arith.constant dense<0.000000e+00> : vector<10xf32>
    %119 = vector.multi_reduction <add>, %118, %cst_40 [1] : vector<10x10xf32> to vector<10xf32>
    %120 = vector.shape_cast %119 : vector<10xf32> to vector<10x1xf32>
    %121 = tpu.reciprocal %120 {approx = true} : vector<10x1xf32> -> vector<10x1xf32>
    %122 = vector.broadcast %121 : vector<10x1xf32> to vector<10x10xf32>
    %123 = arith.mulf %118, %122 : vector<10x10xf32>
    %124 = arith.truncf %123 : vector<10x10xf32> to vector<10x10xbf16>
    %cst_41 = arith.constant dense<0.000000e+00> : vector<10x8xf32>
    %125 = tpu.matmul %124, %109, %cst_41 {dimension_numbers = #tpu.dot_dimension_numbers<[1], [0], [0], [1], [0, 0, 1, 1], [], []>} : vector<10x10xbf16>, vector<10x8xbf16>, vector<10x8xf32> -> vector<10x8xf32>
    %126 = arith.truncf %125 : vector<10x8xf32> to vector<10x8xbf16>
    %127 = vector.extract_strided_slice %6 {offsets = [24, 0], sizes = [8, 32], strides = [1, 1]} : vector<32x32xbf16> to vector<8x32xbf16>
    %cst_42 = arith.constant dense<0.000000e+00> : vector<10x32xf32>
    %128 = tpu.matmul %126, %127, %cst_42 {dimension_numbers = #tpu.dot_dimension_numbers<[1], [0], [0], [1], [0, 0, 1, 1], [], []>} : vector<10x8xbf16>, vector<8x32xbf16>, vector<10x32xf32> -> vector<10x32xf32>
    %129 = arith.addf %103, %128 : vector<10x32xf32>
    %130 = arith.addf %1, %129 : vector<10x32xf32>
    %cst_43 = arith.constant dense<0.000000e+00> : vector<10xf32>
    %131 = vector.multi_reduction <add>, %130, %cst_43 [1] : vector<10x32xf32> to vector<10xf32>
    %132 = vector.shape_cast %131 : vector<10xf32> to vector<10x1xf32>
    %cst_44 = arith.constant 3.200000e+01 : f32
    %133 = vector.broadcast %cst_44 : f32 to vector<10x1xf32>
    %134 = arith.divf %132, %133 : vector<10x1xf32>
    %135 = vector.broadcast %134 : vector<10x1xf32> to vector<10x32xf32>
    %136 = arith.subf %130, %135 : vector<10x32xf32>
    %137 = arith.mulf %136, %136 : vector<10x32xf32>
    %cst_45 = arith.constant dense<0.000000e+00> : vector<10xf32>
    %138 = vector.multi_reduction <add>, %137, %cst_45 [1] : vector<10x32xf32> to vector<10xf32>
    %139 = vector.shape_cast %138 : vector<10xf32> to vector<10x1xf32>
    %cst_46 = arith.constant 3.200000e+01 : f32
    %140 = vector.broadcast %cst_46 : f32 to vector<10x1xf32>
    %141 = arith.divf %139, %140 : vector<10x1xf32>
    %142 = vector.broadcast %134 : vector<10x1xf32> to vector<10x32xf32>
    %143 = arith.subf %130, %142 : vector<10x32xf32>
    %cst_47 = arith.constant 9.99999974E-6 : f32
    %144 = vector.broadcast %cst_47 : f32 to vector<10x1xf32>
    %145 = arith.addf %141, %144 : vector<10x1xf32>
    %146 = math.rsqrt %145 : vector<10x1xf32>
    %147 = vector.broadcast %146 : vector<10x1xf32> to vector<10x32xf32>
    %148 = arith.mulf %143, %147 : vector<10x32xf32>
    %c0_48 = arith.constant 0 : index
    %c0_49 = arith.constant 0 : index
    %149 = vector.load %arg9[%c0_48, %c0_49] : memref<1x32xf32, #tpu.memory_space<vmem>>, vector<1x32xf32>
    %150 = vector.broadcast %149 : vector<1x32xf32> to vector<10x32xf32>
    %151 = arith.mulf %148, %150 : vector<10x32xf32>
    %c0_50 = arith.constant 0 : index
    %c0_51 = arith.constant 0 : index
    %152 = vector.load %arg10[%c0_50, %c0_51] : memref<1x32xf32, #tpu.memory_space<vmem>>, vector<1x32xf32>
    %153 = vector.broadcast %152 : vector<1x32xf32> to vector<10x32xf32>
    %154 = arith.addf %151, %153 : vector<10x32xf32>
    %c0_52 = arith.constant 0 : index
    %c0_53 = arith.constant 0 : index
    %c0_54 = arith.constant 0 : index
    %155 = vector.load %arg11[%c0_52, %c0_53, %c0_54] : memref<1x10x32xf32, #tpu.memory_space<vmem>>, vector<1x10x32xf32>
    %156 = vector.shape_cast %155 : vector<1x10x32xf32> to vector<10x32xf32>
    %157 = vector.shape_cast %154 : vector<10x32xf32> to vector<1x10x32xf32>
    tpu.vector_store %arg11[%c0_52, %c0_53, %c0_54], %157 {strides = array<i32>} : memref<1x10x32xf32, #tpu.memory_space<vmem>>, vector<1x10x32xf32>,
    return
  }
  func.func @transform_0(%arg0: i32) -> (i32, i32, i32) {
    %c0_i32 = arith.constant 0 : i32
    %c0_i32_0 = arith.constant 0 : i32
    %c0_i32_1 = arith.constant 0 : i32
    return %arg0, %c0_i32, %c0_i32_0 : i32, i32, i32
  }
  func.func @transform_1(%arg0: i32) -> (i32, i32, i32) {
    %c0_i32 = arith.constant 0 : i32
    %c0_i32_0 = arith.constant 0 : i32
    %c0_i32_1 = arith.constant 0 : i32
    return %arg0, %c0_i32, %c0_i32_0 : i32, i32, i32
  }
  func.func @transform_2(%arg0: i32) -> (i32, i32) {
    %c0_i32 = arith.constant 0 : i32
    %c0_i32_0 = arith.constant 0 : i32
    %c0_i32_1 = arith.constant 0 : i32
    return %c0_i32, %c0_i32_0 : i32, i32
  }
  func.func @transform_3(%arg0: i32) -> (i32, i32) {
    %c0_i32 = arith.constant 0 : i32
    %c0_i32_0 = arith.constant 0 : i32
    %c0_i32_1 = arith.constant 0 : i32
    return %c0_i32, %c0_i32_0 : i32, i32
  }
  func.func @transform_4(%arg0: i32) -> (i32, i32) {
    %c0_i32 = arith.constant 0 : i32
    %c0_i32_0 = arith.constant 0 : i32
    %c0_i32_1 = arith.constant 0 : i32
    return %c0_i32, %c0_i32_0 : i32, i32
  }
  func.func @transform_5(%arg0: i32) -> (i32, i32) {
    %c0_i32 = arith.constant 0 : i32
    %c0_i32_0 = arith.constant 0 : i32
    %c0_i32_1 = arith.constant 0 : i32
    return %c0_i32, %c0_i32_0 : i32, i32
  }
  func.func @transform_6(%arg0: i32) -> (i32, i32) {
    %c0_i32 = arith.constant 0 : i32
    %c0_i32_0 = arith.constant 0 : i32
    %c0_i32_1 = arith.constant 0 : i32
    return %c0_i32, %c0_i32_0 : i32, i32
  }
  func.func @transform_7(%arg0: i32) -> (i32, i32, i32) {
    %c0_i32 = arith.constant 0 : i32
    %c0_i32_0 = arith.constant 0 : i32
    %c0_i32_1 = arith.constant 0 : i32
    return %arg0, %c0_i32, %c0_i32_0 : i32, i32, i32
  }
  func.func @transform_8(%arg0: i32) -> (i32, i32) {
    %c0_i32 = arith.constant 0 : i32
    %c0_i32_0 = arith.constant 0 : i32
    %c0_i32_1 = arith.constant 0 : i32
    return %c0_i32, %c0_i32_0 : i32, i32
  }
  func.func @transform_9(%arg0: i32) -> (i32, i32) {
    %c0_i32 = arith.constant 0 : i32
    %c0_i32_0 = arith.constant 0 : i32
    %c0_i32_1 = arith.constant 0 : i32
    return %c0_i32, %c0_i32_0 : i32, i32
  }
  func.func @transform_10(%arg0: i32) -> (i32, i32, i32) {
    %c0_i32 = arith.constant 0 : i32
    %c0_i32_0 = arith.constant 0 : i32
    %c0_i32_1 = arith.constant 0 : i32
    return %arg0, %c0_i32, %c0_i32_0 : i32, i32, i32
  }
}

module attributes {stable_mosaic.version = 11 : i64} {
  func.func @_mha_block_kernel(%arg0: i32, %arg1: memref<1x10x32xf32, #tpu.memory_space<vmem>>, %arg2: memref<1x12x32xf32, #tpu.memory_space<vmem>>, %arg3: memref<32x96xbf16, #tpu.memory_space<vmem>>, %arg4: memref<1x96xf32, #tpu.memory_space<vmem>>, %arg5: memref<32x32xbf16, #tpu.memory_space<vmem>>, %arg6: memref<1x32xf32, #tpu.memory_space<vmem>>, %arg7: memref<10x12xf32, #tpu.memory_space<vmem>>, %arg8: memref<1x1x12xf32, #tpu.memory_space<vmem>>, %arg9: memref<1x32xf32, #tpu.memory_space<vmem>>, %arg10: memref<1x32xf32, #tpu.memory_space<vmem>>, %arg11: memref<1x10x32xf32, #tpu.memory_space<vmem>>) attributes {dimension_semantics = [#tpu.dimension_semantics<parallel>], iteration_bounds = array<i64: 2>, scalar_prefetch = 0 : i64, scratch_operands = 0 : i64, tpu.core_type = #tpu.core_type<tc>, window_params = [{transform_indices = @transform_0, window_bounds = array<i64: 1, 10, 32>}, {transform_indices = @transform_1, window_bounds = array<i64: 1, 12, 32>}, {pipeline_mode = #tpu.pipeline_mode<synchronous>, transform_indices = @transform_2, window_bounds = array<i64: 32, 96>}, {pipeline_mode = #tpu.pipeline_mode<synchronous>, transform_indices = @transform_3, window_bounds = array<i64: 1, 96>}, {pipeline_mode = #tpu.pipeline_mode<synchronous>, transform_indices = @transform_4, window_bounds = array<i64: 32, 32>}, {pipeline_mode = #tpu.pipeline_mode<synchronous>, transform_indices = @transform_5, window_bounds = array<i64: 1, 32>}, {pipeline_mode = #tpu.pipeline_mode<synchronous>, transform_indices = @transform_6, window_bounds = array<i64: 10, 12>}, {transform_indices = @transform_7, window_bounds = array<i64: 1, 1, 12>}, {pipeline_mode = #tpu.pipeline_mode<synchronous>, transform_indices = @transform_8, window_bounds = array<i64: 1, 32>}, {pipeline_mode = #tpu.pipeline_mode<synchronous>, transform_indices = @transform_9, window_bounds = array<i64: 1, 32>}, {transform_indices = @transform_10, window_bounds = array<i64: 1, 10, 32>}]} {
    %c0 = arith.constant 0 : index
    %c0_0 = arith.constant 0 : index
    %c0_1 = arith.constant 0 : index
    %0 = vector.load %arg1[%c0, %c0_0, %c0_1] : memref<1x10x32xf32, #tpu.memory_space<vmem>>, vector<1x10x32xf32>
    %1 = vector.shape_cast %0 : vector<1x10x32xf32> to vector<10x32xf32>
    %c0_2 = arith.constant 0 : index
    %c0_3 = arith.constant 0 : index
    %c0_4 = arith.constant 0 : index
    %2 = vector.load %arg2[%c0_2, %c0_3, %c0_4] : memref<1x12x32xf32, #tpu.memory_space<vmem>>, vector<1x12x32xf32>
    %3 = vector.shape_cast %2 : vector<1x12x32xf32> to vector<12x32xf32>
    %c0_5 = arith.constant 0 : index
    %c0_6 = arith.constant 0 : index
    %4 = vector.load %arg3[%c0_5, %c0_6] : memref<32x96xbf16, #tpu.memory_space<vmem>>, vector<32x96xbf16>
    %c0_7 = arith.constant 0 : index
    %c0_8 = arith.constant 0 : index
    %5 = vector.load %arg4[%c0_7, %c0_8] : memref<1x96xf32, #tpu.memory_space<vmem>>, vector<1x96xf32>
    %c0_9 = arith.constant 0 : index
    %c0_10 = arith.constant 0 : index
    %6 = vector.load %arg5[%c0_9, %c0_10] : memref<32x32xbf16, #tpu.memory_space<vmem>>, vector<32x32xbf16>
    %c0_11 = arith.constant 0 : index
    %c0_12 = arith.constant 0 : index
    %7 = vector.load %arg7[%c0_11, %c0_12] : memref<10x12xf32, #tpu.memory_space<vmem>>, vector<10x12xf32>
    %c0_13 = arith.constant 0 : index
    %c0_14 = arith.constant 0 : index
    %c0_15 = arith.constant 0 : index
    %8 = vector.load %arg8[%c0_13, %c0_14, %c0_15] : memref<1x1x12xf32, #tpu.memory_space<vmem>>, vector<1x1x12xf32>
    %9 = vector.shape_cast %8 : vector<1x1x12xf32> to vector<1x12xf32>
    %10 = vector.broadcast %9 : vector<1x12xf32> to vector<10x12xf32>
    %11 = arith.addf %7, %10 : vector<10x12xf32>
    %12 = arith.truncf %1 : vector<10x32xf32> to vector<10x32xbf16>
    %13 = arith.truncf %3 : vector<12x32xf32> to vector<12x32xbf16>
    %14 = vector.extract_strided_slice %4 {offsets = [0, 0], sizes = [32, 32], strides = [1, 1]} : vector<32x96xbf16> to vector<32x32xbf16>
    %cst = arith.constant dense<0.000000e+00> : vector<10x32xf32>
    %15 = tpu.matmul %12, %14, %cst {dimension_numbers = #tpu.dot_dimension_numbers<[1], [0], [0], [1], [0, 0, 1, 1], [], []>} : vector<10x32xbf16>, vector<32x32xbf16>, vector<10x32xf32> -> vector<10x32xf32>
    %16 = vector.extract_strided_slice %5 {offsets = [0, 0], sizes = [1, 32], strides = [1, 1]} : vector<1x96xf32> to vector<1x32xf32>
    %17 = vector.broadcast %16 : vector<1x32xf32> to vector<10x32xf32>
    %18 = arith.addf %15, %17 : vector<10x32xf32>
    %19 = vector.extract_strided_slice %4 {offsets = [0, 32], sizes = [32, 64], strides = [1, 1]} : vector<32x96xbf16> to vector<32x64xbf16>
    %cst_16 = arith.constant dense<0.000000e+00> : vector<12x64xf32>
    %20 = tpu.matmul %13, %19, %cst_16 {dimension_numbers = #tpu.dot_dimension_numbers<[1], [0], [0], [1], [0, 0, 1, 1], [], []>} : vector<12x32xbf16>, vector<32x64xbf16>, vector<12x64xf32> -> vector<12x64xf32>
    %21 = vector.extract_strided_slice %5 {offsets = [0, 32], sizes = [1, 64], strides = [1, 1]} : vector<1x96xf32> to vector<1x64xf32>
    %22 = vector.broadcast %21 : vector<1x64xf32> to vector<12x64xf32>
    %23 = arith.addf %20, %22 : vector<12x64xf32>
    %c0_17 = arith.constant 0 : index
    %c0_18 = arith.constant 0 : index
    %24 = vector.load %arg6[%c0_17, %c0_18] : memref<1x32xf32, #tpu.memory_space<vmem>>, vector<1x32xf32>
    %25 = vector.extract_strided_slice %18 {offsets = [0, 0], sizes = [10, 8], strides = [1, 1]} : vector<10x32xf32> to vector<10x8xf32>
    %26 = arith.truncf %25 : vector<10x8xf32> to vector<10x8xbf16>
    %27 = vector.extract_strided_slice %23 {offsets = [0, 0], sizes = [12, 8], strides = [1, 1]} : vector<12x64xf32> to vector<12x8xf32>
    %28 = arith.truncf %27 : vector<12x8xf32> to vector<12x8xbf16>
    %29 = vector.extract_strided_slice %23 {offsets = [0, 32], sizes = [12, 8], strides = [1, 1]} : vector<12x64xf32> to vector<12x8xf32>
    %30 = arith.truncf %29 : vector<12x8xf32> to vector<12x8xbf16>
    %cst_19 = arith.constant dense<0.000000e+00> : vector<10x12xf32>
    %31 = tpu.matmul %26, %28, %cst_19 {dimension_numbers = #tpu.dot_dimension_numbers<[1], [1], [0], [0], [0, 0, 1, 0], [], []>} : vector<10x8xbf16>, vector<12x8xbf16>, vector<10x12xf32> -> vector<10x12xf32>
    %cst_20 = arith.constant 0.353553385 : f32
    %32 = vector.broadcast %cst_20 : f32 to vector<10x12xf32>
    %33 = arith.mulf %31, %32 : vector<10x12xf32>
    %34 = arith.addf %33, %11 : vector<10x12xf32>
    %cst_21 = arith.constant dense<0xFF800000> : vector<10xf32>
    %35 = vector.multi_reduction <maximumf>, %34, %cst_21 [1] : vector<10x12xf32> to vector<10xf32>
    %36 = vector.shape_cast %35 : vector<10xf32> to vector<10x1xf32>
    %37 = vector.broadcast %36 : vector<10x1xf32> to vector<10x12xf32>
    %38 = arith.subf %34, %37 : vector<10x12xf32>
    %39 = math.exp %38 : vector<10x12xf32>
    %cst_22 = arith.constant dense<0.000000e+00> : vector<10xf32>
    %40 = vector.multi_reduction <add>, %39, %cst_22 [1] : vector<10x12xf32> to vector<10xf32>
    %41 = vector.shape_cast %40 : vector<10xf32> to vector<10x1xf32>
    %42 = tpu.reciprocal %41 {approx = true} : vector<10x1xf32> -> vector<10x1xf32>
    %43 = vector.broadcast %42 : vector<10x1xf32> to vector<10x12xf32>
    %44 = arith.mulf %39, %43 : vector<10x12xf32>
    %45 = arith.truncf %44 : vector<10x12xf32> to vector<10x12xbf16>
    %cst_23 = arith.constant dense<0.000000e+00> : vector<10x8xf32>
    %46 = tpu.matmul %45, %30, %cst_23 {dimension_numbers = #tpu.dot_dimension_numbers<[1], [0], [0], [1], [0, 0, 1, 1], [], []>} : vector<10x12xbf16>, vector<12x8xbf16>, vector<10x8xf32> -> vector<10x8xf32>
    %47 = arith.truncf %46 : vector<10x8xf32> to vector<10x8xbf16>
    %48 = vector.extract_strided_slice %6 {offsets = [0, 0], sizes = [8, 32], strides = [1, 1]} : vector<32x32xbf16> to vector<8x32xbf16>
    %cst_24 = arith.constant dense<0.000000e+00> : vector<10x32xf32>
    %49 = tpu.matmul %47, %48, %cst_24 {dimension_numbers = #tpu.dot_dimension_numbers<[1], [0], [0], [1], [0, 0, 1, 1], [], []>} : vector<10x8xbf16>, vector<8x32xbf16>, vector<10x32xf32> -> vector<10x32xf32>
    %50 = vector.broadcast %24 : vector<1x32xf32> to vector<10x32xf32>
    %51 = arith.addf %50, %49 : vector<10x32xf32>
    %52 = vector.extract_strided_slice %18 {offsets = [0, 8], sizes = [10, 8], strides = [1, 1]} : vector<10x32xf32> to vector<10x8xf32>
    %53 = arith.truncf %52 : vector<10x8xf32> to vector<10x8xbf16>
    %54 = vector.extract_strided_slice %23 {offsets = [0, 8], sizes = [12, 8], strides = [1, 1]} : vector<12x64xf32> to vector<12x8xf32>
    %55 = arith.truncf %54 : vector<12x8xf32> to vector<12x8xbf16>
    %56 = vector.extract_strided_slice %23 {offsets = [0, 40], sizes = [12, 8], strides = [1, 1]} : vector<12x64xf32> to vector<12x8xf32>
    %57 = arith.truncf %56 : vector<12x8xf32> to vector<12x8xbf16>
    %cst_25 = arith.constant dense<0.000000e+00> : vector<10x12xf32>
    %58 = tpu.matmul %53, %55, %cst_25 {dimension_numbers = #tpu.dot_dimension_numbers<[1], [1], [0], [0], [0, 0, 1, 0], [], []>} : vector<10x8xbf16>, vector<12x8xbf16>, vector<10x12xf32> -> vector<10x12xf32>
    %cst_26 = arith.constant 0.353553385 : f32
    %59 = vector.broadcast %cst_26 : f32 to vector<10x12xf32>
    %60 = arith.mulf %58, %59 : vector<10x12xf32>
    %61 = arith.addf %60, %11 : vector<10x12xf32>
    %cst_27 = arith.constant dense<0xFF800000> : vector<10xf32>
    %62 = vector.multi_reduction <maximumf>, %61, %cst_27 [1] : vector<10x12xf32> to vector<10xf32>
    %63 = vector.shape_cast %62 : vector<10xf32> to vector<10x1xf32>
    %64 = vector.broadcast %63 : vector<10x1xf32> to vector<10x12xf32>
    %65 = arith.subf %61, %64 : vector<10x12xf32>
    %66 = math.exp %65 : vector<10x12xf32>
    %cst_28 = arith.constant dense<0.000000e+00> : vector<10xf32>
    %67 = vector.multi_reduction <add>, %66, %cst_28 [1] : vector<10x12xf32> to vector<10xf32>
    %68 = vector.shape_cast %67 : vector<10xf32> to vector<10x1xf32>
    %69 = tpu.reciprocal %68 {approx = true} : vector<10x1xf32> -> vector<10x1xf32>
    %70 = vector.broadcast %69 : vector<10x1xf32> to vector<10x12xf32>
    %71 = arith.mulf %66, %70 : vector<10x12xf32>
    %72 = arith.truncf %71 : vector<10x12xf32> to vector<10x12xbf16>
    %cst_29 = arith.constant dense<0.000000e+00> : vector<10x8xf32>
    %73 = tpu.matmul %72, %57, %cst_29 {dimension_numbers = #tpu.dot_dimension_numbers<[1], [0], [0], [1], [0, 0, 1, 1], [], []>} : vector<10x12xbf16>, vector<12x8xbf16>, vector<10x8xf32> -> vector<10x8xf32>
    %74 = arith.truncf %73 : vector<10x8xf32> to vector<10x8xbf16>
    %75 = vector.extract_strided_slice %6 {offsets = [8, 0], sizes = [8, 32], strides = [1, 1]} : vector<32x32xbf16> to vector<8x32xbf16>
    %cst_30 = arith.constant dense<0.000000e+00> : vector<10x32xf32>
    %76 = tpu.matmul %74, %75, %cst_30 {dimension_numbers = #tpu.dot_dimension_numbers<[1], [0], [0], [1], [0, 0, 1, 1], [], []>} : vector<10x8xbf16>, vector<8x32xbf16>, vector<10x32xf32> -> vector<10x32xf32>
    %77 = arith.addf %51, %76 : vector<10x32xf32>
    %78 = vector.extract_strided_slice %18 {offsets = [0, 16], sizes = [10, 8], strides = [1, 1]} : vector<10x32xf32> to vector<10x8xf32>
    %79 = arith.truncf %78 : vector<10x8xf32> to vector<10x8xbf16>
    %80 = vector.extract_strided_slice %23 {offsets = [0, 16], sizes = [12, 8], strides = [1, 1]} : vector<12x64xf32> to vector<12x8xf32>
    %81 = arith.truncf %80 : vector<12x8xf32> to vector<12x8xbf16>
    %82 = vector.extract_strided_slice %23 {offsets = [0, 48], sizes = [12, 8], strides = [1, 1]} : vector<12x64xf32> to vector<12x8xf32>
    %83 = arith.truncf %82 : vector<12x8xf32> to vector<12x8xbf16>
    %cst_31 = arith.constant dense<0.000000e+00> : vector<10x12xf32>
    %84 = tpu.matmul %79, %81, %cst_31 {dimension_numbers = #tpu.dot_dimension_numbers<[1], [1], [0], [0], [0, 0, 1, 0], [], []>} : vector<10x8xbf16>, vector<12x8xbf16>, vector<10x12xf32> -> vector<10x12xf32>
    %cst_32 = arith.constant 0.353553385 : f32
    %85 = vector.broadcast %cst_32 : f32 to vector<10x12xf32>
    %86 = arith.mulf %84, %85 : vector<10x12xf32>
    %87 = arith.addf %86, %11 : vector<10x12xf32>
    %cst_33 = arith.constant dense<0xFF800000> : vector<10xf32>
    %88 = vector.multi_reduction <maximumf>, %87, %cst_33 [1] : vector<10x12xf32> to vector<10xf32>
    %89 = vector.shape_cast %88 : vector<10xf32> to vector<10x1xf32>
    %90 = vector.broadcast %89 : vector<10x1xf32> to vector<10x12xf32>
    %91 = arith.subf %87, %90 : vector<10x12xf32>
    %92 = math.exp %91 : vector<10x12xf32>
    %cst_34 = arith.constant dense<0.000000e+00> : vector<10xf32>
    %93 = vector.multi_reduction <add>, %92, %cst_34 [1] : vector<10x12xf32> to vector<10xf32>
    %94 = vector.shape_cast %93 : vector<10xf32> to vector<10x1xf32>
    %95 = tpu.reciprocal %94 {approx = true} : vector<10x1xf32> -> vector<10x1xf32>
    %96 = vector.broadcast %95 : vector<10x1xf32> to vector<10x12xf32>
    %97 = arith.mulf %92, %96 : vector<10x12xf32>
    %98 = arith.truncf %97 : vector<10x12xf32> to vector<10x12xbf16>
    %cst_35 = arith.constant dense<0.000000e+00> : vector<10x8xf32>
    %99 = tpu.matmul %98, %83, %cst_35 {dimension_numbers = #tpu.dot_dimension_numbers<[1], [0], [0], [1], [0, 0, 1, 1], [], []>} : vector<10x12xbf16>, vector<12x8xbf16>, vector<10x8xf32> -> vector<10x8xf32>
    %100 = arith.truncf %99 : vector<10x8xf32> to vector<10x8xbf16>
    %101 = vector.extract_strided_slice %6 {offsets = [16, 0], sizes = [8, 32], strides = [1, 1]} : vector<32x32xbf16> to vector<8x32xbf16>
    %cst_36 = arith.constant dense<0.000000e+00> : vector<10x32xf32>
    %102 = tpu.matmul %100, %101, %cst_36 {dimension_numbers = #tpu.dot_dimension_numbers<[1], [0], [0], [1], [0, 0, 1, 1], [], []>} : vector<10x8xbf16>, vector<8x32xbf16>, vector<10x32xf32> -> vector<10x32xf32>
    %103 = arith.addf %77, %102 : vector<10x32xf32>
    %104 = vector.extract_strided_slice %18 {offsets = [0, 24], sizes = [10, 8], strides = [1, 1]} : vector<10x32xf32> to vector<10x8xf32>
    %105 = arith.truncf %104 : vector<10x8xf32> to vector<10x8xbf16>
    %106 = vector.extract_strided_slice %23 {offsets = [0, 24], sizes = [12, 8], strides = [1, 1]} : vector<12x64xf32> to vector<12x8xf32>
    %107 = arith.truncf %106 : vector<12x8xf32> to vector<12x8xbf16>
    %108 = vector.extract_strided_slice %23 {offsets = [0, 56], sizes = [12, 8], strides = [1, 1]} : vector<12x64xf32> to vector<12x8xf32>
    %109 = arith.truncf %108 : vector<12x8xf32> to vector<12x8xbf16>
    %cst_37 = arith.constant dense<0.000000e+00> : vector<10x12xf32>
    %110 = tpu.matmul %105, %107, %cst_37 {dimension_numbers = #tpu.dot_dimension_numbers<[1], [1], [0], [0], [0, 0, 1, 0], [], []>} : vector<10x8xbf16>, vector<12x8xbf16>, vector<10x12xf32> -> vector<10x12xf32>
    %cst_38 = arith.constant 0.353553385 : f32
    %111 = vector.broadcast %cst_38 : f32 to vector<10x12xf32>
    %112 = arith.mulf %110, %111 : vector<10x12xf32>
    %113 = arith.addf %112, %11 : vector<10x12xf32>
    %cst_39 = arith.constant dense<0xFF800000> : vector<10xf32>
    %114 = vector.multi_reduction <maximumf>, %113, %cst_39 [1] : vector<10x12xf32> to vector<10xf32>
    %115 = vector.shape_cast %114 : vector<10xf32> to vector<10x1xf32>
    %116 = vector.broadcast %115 : vector<10x1xf32> to vector<10x12xf32>
    %117 = arith.subf %113, %116 : vector<10x12xf32>
    %118 = math.exp %117 : vector<10x12xf32>
    %cst_40 = arith.constant dense<0.000000e+00> : vector<10xf32>
    %119 = vector.multi_reduction <add>, %118, %cst_40 [1] : vector<10x12xf32> to vector<10xf32>
    %120 = vector.shape_cast %119 : vector<10xf32> to vector<10x1xf32>
    %121 = tpu.reciprocal %120 {approx = true} : vector<10x1xf32> -> vector<10x1xf32>
    %122 = vector.broadcast %121 : vector<10x1xf32> to vector<10x12xf32>
    %123 = arith.mulf %118, %122 : vector<10x12xf32>
    %124 = arith.truncf %123 : vector<10x12xf32> to vector<10x12xbf16>
    %cst_41 = arith.constant dense<0.000000e+00> : vector<10x8xf32>
    %125 = tpu.matmul %124, %109, %cst_41 {dimension_numbers = #tpu.dot_dimension_numbers<[1], [0], [0], [1], [0, 0, 1, 1], [], []>} : vector<10x12xbf16>, vector<12x8xbf16>, vector<10x8xf32> -> vector<10x8xf32>
    %126 = arith.truncf %125 : vector<10x8xf32> to vector<10x8xbf16>
    %127 = vector.extract_strided_slice %6 {offsets = [24, 0], sizes = [8, 32], strides = [1, 1]} : vector<32x32xbf16> to vector<8x32xbf16>
    %cst_42 = arith.constant dense<0.000000e+00> : vector<10x32xf32>
    %128 = tpu.matmul %126, %127, %cst_42 {dimension_numbers = #tpu.dot_dimension_numbers<[1], [0], [0], [1], [0, 0, 1, 1], [], []>} : vector<10x8xbf16>, vector<8x32xbf16>, vector<10x32xf32> -> vector<10x32xf32>
    %129 = arith.addf %103, %128 : vector<10x32xf32>
    %130 = arith.addf %1, %129 : vector<10x32xf32>
    %cst_43 = arith.constant dense<0.000000e+00> : vector<10xf32>
    %131 = vector.multi_reduction <add>, %130, %cst_43 [1] : vector<10x32xf32> to vector<10xf32>
    %132 = vector.shape_cast %131 : vector<10xf32> to vector<10x1xf32>
    %cst_44 = arith.constant 3.200000e+01 : f32
    %133 = vector.broadcast %cst_44 : f32 to vector<10x1xf32>
    %134 = arith.divf %132, %133 : vector<10x1xf32>
    %135 = vector.broadcast %134 : vector<10x1xf32> to vector<10x32xf32>
    %136 = arith.subf %130, %135 : vector<10x32xf32>
    %137 = arith.mulf %136, %136 : vector<10x32xf32>
    %cst_45 = arith.constant dense<0.000000e+00> : vector<10xf32>
    %138 = vector.multi_reduction <add>, %137, %cst_45 [1] : vector<10x32xf32> to vector<10xf32>
    %139 = vector.shape_cast %138 : vector<10xf32> to vector<10x1xf32>
    %cst_46 = arith.constant 3.200000e+01 : f32
    %140 = vector.broadcast %cst_46 : f32 to vector<10x1xf32>
    %141 = arith.divf %139, %140 : vector<10x1xf32>
    %142 = vector.broadcast %134 : vector<10x1xf32> to vector<10x32xf32>
    %143 = arith.subf %130, %142 : vector<10x32xf32>
    %cst_47 = arith.constant 9.99999974E-6 : f32
    %144 = vector.broadcast %cst_47 : f32 to vector<10x1xf32>
    %145 = arith.addf %141, %144 : vector<10x1xf32>
    %146 = math.rsqrt %145 : vector<10x1xf32>
    %147 = vector.broadcast %146 : vector<10x1xf32> to vector<10x32xf32>
    %148 = arith.mulf %143, %147 : vector<10x32xf32>
    %c0_48 = arith.constant 0 : index
    %c0_49 = arith.constant 0 : index
    %149 = vector.load %arg9[%c0_48, %c0_49] : memref<1x32xf32, #tpu.memory_space<vmem>>, vector<1x32xf32>
    %150 = vector.broadcast %149 : vector<1x32xf32> to vector<10x32xf32>
    %151 = arith.mulf %148, %150 : vector<10x32xf32>
    %c0_50 = arith.constant 0 : index
    %c0_51 = arith.constant 0 : index
    %152 = vector.load %arg10[%c0_50, %c0_51] : memref<1x32xf32, #tpu.memory_space<vmem>>, vector<1x32xf32>
    %153 = vector.broadcast %152 : vector<1x32xf32> to vector<10x32xf32>
    %154 = arith.addf %151, %153 : vector<10x32xf32>
    %c0_52 = arith.constant 0 : index
    %c0_53 = arith.constant 0 : index
    %c0_54 = arith.constant 0 : index
    %155 = vector.load %arg11[%c0_52, %c0_53, %c0_54] : memref<1x10x32xf32, #tpu.memory_space<vmem>>, vector<1x10x32xf32>
    %156 = vector.shape_cast %155 : vector<1x10x32xf32> to vector<10x32xf32>
    %157 = vector.shape_cast %154 : vector<10x32xf32> to vector<1x10x32xf32>
    tpu.vector_store %arg11[%c0_52, %c0_53, %c0_54], %157 {strides = array<i32>} : memref<1x10x32xf32, #tpu.memory_space<vmem>>, vector<1x10x32xf32>,
    return
  }
  func.func @transform_0(%arg0: i32) -> (i32, i32, i32) {
    %c0_i32 = arith.constant 0 : i32
    %c0_i32_0 = arith.constant 0 : i32
    %c0_i32_1 = arith.constant 0 : i32
    return %arg0, %c0_i32, %c0_i32_0 : i32, i32, i32
  }
  func.func @transform_1(%arg0: i32) -> (i32, i32, i32) {
    %c0_i32 = arith.constant 0 : i32
    %c0_i32_0 = arith.constant 0 : i32
    %c0_i32_1 = arith.constant 0 : i32
    return %arg0, %c0_i32, %c0_i32_0 : i32, i32, i32
  }
  func.func @transform_2(%arg0: i32) -> (i32, i32) {
    %c0_i32 = arith.constant 0 : i32
    %c0_i32_0 = arith.constant 0 : i32
    %c0_i32_1 = arith.constant 0 : i32
    return %c0_i32, %c0_i32_0 : i32, i32
  }
  func.func @transform_3(%arg0: i32) -> (i32, i32) {
    %c0_i32 = arith.constant 0 : i32
    %c0_i32_0 = arith.constant 0 : i32
    %c0_i32_1 = arith.constant 0 : i32
    return %c0_i32, %c0_i32_0 : i32, i32
  }
  func.func @transform_4(%arg0: i32) -> (i32, i32) {
    %c0_i32 = arith.constant 0 : i32
    %c0_i32_0 = arith.constant 0 : i32
    %c0_i32_1 = arith.constant 0 : i32
    return %c0_i32, %c0_i32_0 : i32, i32
  }
  func.func @transform_5(%arg0: i32) -> (i32, i32) {
    %c0_i32 = arith.constant 0 : i32
    %c0_i32_0 = arith.constant 0 : i32
    %c0_i32_1 = arith.constant 0 : i32
    return %c0_i32, %c0_i32_0 : i32, i32
  }
  func.func @transform_6(%arg0: i32) -> (i32, i32) {
    %c0_i32 = arith.constant 0 : i32
    %c0_i32_0 = arith.constant 0 : i32
    %c0_i32_1 = arith.constant 0 : i32
    return %c0_i32, %c0_i32_0 : i32, i32
  }
  func.func @transform_7(%arg0: i32) -> (i32, i32, i32) {
    %c0_i32 = arith.constant 0 : i32
    %c0_i32_0 = arith.constant 0 : i32
    %c0_i32_1 = arith.constant 0 : i32
    return %arg0, %c0_i32, %c0_i32_0 : i32, i32, i32
  }
  func.func @transform_8(%arg0: i32) -> (i32, i32) {
    %c0_i32 = arith.constant 0 : i32
    %c0_i32_0 = arith.constant 0 : i32
    %c0_i32_1 = arith.constant 0 : i32
    return %c0_i32, %c0_i32_0 : i32, i32
  }
  func.func @transform_9(%arg0: i32) -> (i32, i32) {
    %c0_i32 = arith.constant 0 : i32
    %c0_i32_0 = arith.constant 0 : i32
    %c0_i32_1 = arith.constant 0 : i32
    return %c0_i32, %c0_i32_0 : i32, i32
  }
  func.func @transform_10(%arg0: i32) -> (i32, i32, i32) {
    %c0_i32 = arith.constant 0 : i32
    %c0_i32_0 = arith.constant 0 : i32
    %c0_i32_1 = arith.constant 0 : i32
    return %arg0, %c0_i32, %c0_i32_0 : i32, i32, i32
  }
}

module attributes {stable_mosaic.version = 11 : i64} {
  func.func @_ffn_block_kernel(%arg0: i32, %arg1: memref<1x10x32xf32, #tpu.memory_space<vmem>>, %arg2: memref<32x64xbf16, #tpu.memory_space<vmem>>, %arg3: memref<1x64xf32, #tpu.memory_space<vmem>>, %arg4: memref<64x32xbf16, #tpu.memory_space<vmem>>, %arg5: memref<1x32xf32, #tpu.memory_space<vmem>>, %arg6: memref<1x32xf32, #tpu.memory_space<vmem>>, %arg7: memref<1x32xf32, #tpu.memory_space<vmem>>, %arg8: memref<1x10x32xf32, #tpu.memory_space<vmem>>) attributes {dimension_semantics = [#tpu.dimension_semantics<parallel>], iteration_bounds = array<i64: 2>, scalar_prefetch = 0 : i64, scratch_operands = 0 : i64, tpu.core_type = #tpu.core_type<tc>, window_params = [{transform_indices = @transform_0, window_bounds = array<i64: 1, 10, 32>}, {pipeline_mode = #tpu.pipeline_mode<synchronous>, transform_indices = @transform_1, window_bounds = array<i64: 32, 64>}, {pipeline_mode = #tpu.pipeline_mode<synchronous>, transform_indices = @transform_2, window_bounds = array<i64: 1, 64>}, {pipeline_mode = #tpu.pipeline_mode<synchronous>, transform_indices = @transform_3, window_bounds = array<i64: 64, 32>}, {pipeline_mode = #tpu.pipeline_mode<synchronous>, transform_indices = @transform_4, window_bounds = array<i64: 1, 32>}, {pipeline_mode = #tpu.pipeline_mode<synchronous>, transform_indices = @transform_5, window_bounds = array<i64: 1, 32>}, {pipeline_mode = #tpu.pipeline_mode<synchronous>, transform_indices = @transform_6, window_bounds = array<i64: 1, 32>}, {transform_indices = @transform_7, window_bounds = array<i64: 1, 10, 32>}]} {
    %c0 = arith.constant 0 : index
    %c0_0 = arith.constant 0 : index
    %c0_1 = arith.constant 0 : index
    %0 = vector.load %arg1[%c0, %c0_0, %c0_1] : memref<1x10x32xf32, #tpu.memory_space<vmem>>, vector<1x10x32xf32>
    %1 = vector.shape_cast %0 : vector<1x10x32xf32> to vector<10x32xf32>
    %2 = arith.truncf %1 : vector<10x32xf32> to vector<10x32xbf16>
    %c0_2 = arith.constant 0 : index
    %c0_3 = arith.constant 0 : index
    %3 = vector.load %arg2[%c0_2, %c0_3] : memref<32x64xbf16, #tpu.memory_space<vmem>>, vector<32x64xbf16>
    %cst = arith.constant dense<0.000000e+00> : vector<10x64xf32>
    %4 = tpu.matmul %2, %3, %cst {dimension_numbers = #tpu.dot_dimension_numbers<[1], [0], [0], [1], [0, 0, 1, 1], [], []>} : vector<10x32xbf16>, vector<32x64xbf16>, vector<10x64xf32> -> vector<10x64xf32>
    %c0_4 = arith.constant 0 : index
    %c0_5 = arith.constant 0 : index
    %5 = vector.load %arg3[%c0_4, %c0_5] : memref<1x64xf32, #tpu.memory_space<vmem>>, vector<1x64xf32>
    %6 = vector.broadcast %5 : vector<1x64xf32> to vector<10x64xf32>
    %7 = arith.addf %4, %6 : vector<10x64xf32>
    %cst_6 = arith.constant 0.000000e+00 : f32
    %8 = vector.broadcast %cst_6 : f32 to vector<10x64xf32>
    %9 = arith.maximumf %7, %8 : vector<10x64xf32>
    %10 = arith.truncf %9 : vector<10x64xf32> to vector<10x64xbf16>
    %c0_7 = arith.constant 0 : index
    %c0_8 = arith.constant 0 : index
    %11 = vector.load %arg4[%c0_7, %c0_8] : memref<64x32xbf16, #tpu.memory_space<vmem>>, vector<64x32xbf16>
    %cst_9 = arith.constant dense<0.000000e+00> : vector<10x32xf32>
    %12 = tpu.matmul %10, %11, %cst_9 {dimension_numbers = #tpu.dot_dimension_numbers<[1], [0], [0], [1], [0, 0, 1, 1], [], []>} : vector<10x64xbf16>, vector<64x32xbf16>, vector<10x32xf32> -> vector<10x32xf32>
    %c0_10 = arith.constant 0 : index
    %c0_11 = arith.constant 0 : index
    %13 = vector.load %arg5[%c0_10, %c0_11] : memref<1x32xf32, #tpu.memory_space<vmem>>, vector<1x32xf32>
    %14 = vector.broadcast %13 : vector<1x32xf32> to vector<10x32xf32>
    %15 = arith.addf %12, %14 : vector<10x32xf32>
    %16 = arith.addf %1, %15 : vector<10x32xf32>
    %cst_12 = arith.constant dense<0.000000e+00> : vector<10xf32>
    %17 = vector.multi_reduction <add>, %16, %cst_12 [1] : vector<10x32xf32> to vector<10xf32>
    %18 = vector.shape_cast %17 : vector<10xf32> to vector<10x1xf32>
    %cst_13 = arith.constant 3.200000e+01 : f32
    %19 = vector.broadcast %cst_13 : f32 to vector<10x1xf32>
    %20 = arith.divf %18, %19 : vector<10x1xf32>
    %21 = vector.broadcast %20 : vector<10x1xf32> to vector<10x32xf32>
    %22 = arith.subf %16, %21 : vector<10x32xf32>
    %23 = arith.mulf %22, %22 : vector<10x32xf32>
    %cst_14 = arith.constant dense<0.000000e+00> : vector<10xf32>
    %24 = vector.multi_reduction <add>, %23, %cst_14 [1] : vector<10x32xf32> to vector<10xf32>
    %25 = vector.shape_cast %24 : vector<10xf32> to vector<10x1xf32>
    %cst_15 = arith.constant 3.200000e+01 : f32
    %26 = vector.broadcast %cst_15 : f32 to vector<10x1xf32>
    %27 = arith.divf %25, %26 : vector<10x1xf32>
    %28 = vector.broadcast %20 : vector<10x1xf32> to vector<10x32xf32>
    %29 = arith.subf %16, %28 : vector<10x32xf32>
    %cst_16 = arith.constant 9.99999974E-6 : f32
    %30 = vector.broadcast %cst_16 : f32 to vector<10x1xf32>
    %31 = arith.addf %27, %30 : vector<10x1xf32>
    %32 = math.rsqrt %31 : vector<10x1xf32>
    %33 = vector.broadcast %32 : vector<10x1xf32> to vector<10x32xf32>
    %34 = arith.mulf %29, %33 : vector<10x32xf32>
    %c0_17 = arith.constant 0 : index
    %c0_18 = arith.constant 0 : index
    %35 = vector.load %arg6[%c0_17, %c0_18] : memref<1x32xf32, #tpu.memory_space<vmem>>, vector<1x32xf32>
    %36 = vector.broadcast %35 : vector<1x32xf32> to vector<10x32xf32>
    %37 = arith.mulf %34, %36 : vector<10x32xf32>
    %c0_19 = arith.constant 0 : index
    %c0_20 = arith.constant 0 : index
    %38 = vector.load %arg7[%c0_19, %c0_20] : memref<1x32xf32, #tpu.memory_space<vmem>>, vector<1x32xf32>
    %39 = vector.broadcast %38 : vector<1x32xf32> to vector<10x32xf32>
    %40 = arith.addf %37, %39 : vector<10x32xf32>
    %c0_21 = arith.constant 0 : index
    %c0_22 = arith.constant 0 : index
    %c0_23 = arith.constant 0 : index
    %41 = vector.load %arg8[%c0_21, %c0_22, %c0_23] : memref<1x10x32xf32, #tpu.memory_space<vmem>>, vector<1x10x32xf32>
    %42 = vector.shape_cast %41 : vector<1x10x32xf32> to vector<10x32xf32>
    %43 = vector.shape_cast %40 : vector<10x32xf32> to vector<1x10x32xf32>
    tpu.vector_store %arg8[%c0_21, %c0_22, %c0_23], %43 {strides = array<i32>} : memref<1x10x32xf32, #tpu.memory_space<vmem>>, vector<1x10x32xf32>,
    return
  }
  func.func @transform_0(%arg0: i32) -> (i32, i32, i32) {
    %c0_i32 = arith.constant 0 : i32
    %c0_i32_0 = arith.constant 0 : i32
    %c0_i32_1 = arith.constant 0 : i32
    return %arg0, %c0_i32, %c0_i32_0 : i32, i32, i32
  }
  func.func @transform_1(%arg0: i32) -> (i32, i32) {
    %c0_i32 = arith.constant 0 : i32
    %c0_i32_0 = arith.constant 0 : i32
    %c0_i32_1 = arith.constant 0 : i32
    return %c0_i32, %c0_i32_0 : i32, i32
  }
  func.func @transform_2(%arg0: i32) -> (i32, i32) {
    %c0_i32 = arith.constant 0 : i32
    %c0_i32_0 = arith.constant 0 : i32
    %c0_i32_1 = arith.constant 0 : i32
    return %c0_i32, %c0_i32_0 : i32, i32
  }
  func.func @transform_3(%arg0: i32) -> (i32, i32) {
    %c0_i32 = arith.constant 0 : i32
    %c0_i32_0 = arith.constant 0 : i32
    %c0_i32_1 = arith.constant 0 : i32
    return %c0_i32, %c0_i32_0 : i32, i32
  }
  func.func @transform_4(%arg0: i32) -> (i32, i32) {
    %c0_i32 = arith.constant 0 : i32
    %c0_i32_0 = arith.constant 0 : i32
    %c0_i32_1 = arith.constant 0 : i32
    return %c0_i32, %c0_i32_0 : i32, i32
  }
  func.func @transform_5(%arg0: i32) -> (i32, i32) {
    %c0_i32 = arith.constant 0 : i32
    %c0_i32_0 = arith.constant 0 : i32
    %c0_i32_1 = arith.constant 0 : i32
    return %c0_i32, %c0_i32_0 : i32, i32
  }
  func.func @transform_6(%arg0: i32) -> (i32, i32) {
    %c0_i32 = arith.constant 0 : i32
    %c0_i32_0 = arith.constant 0 : i32
    %c0_i32_1 = arith.constant 0 : i32
    return %c0_i32, %c0_i32_0 : i32, i32
  }
  func.func @transform_7(%arg0: i32) -> (i32, i32, i32) {
    %c0_i32 = arith.constant 0 : i32
    %c0_i32_0 = arith.constant 0 : i32
    %c0_i32_1 = arith.constant 0 : i32
    return %arg0, %c0_i32, %c0_i32_0 : i32, i32, i32
  }
}

module attributes {stable_mosaic.version = 11 : i64} {
  func.func @_norm_generator_kernel(%arg0: i32, %arg1: memref<1x10x32xf32, #tpu.memory_space<vmem>>, %arg2: memref<1x32xf32, #tpu.memory_space<vmem>>, %arg3: memref<1x32xf32, #tpu.memory_space<vmem>>, %arg4: memref<32x128xbf16, #tpu.memory_space<vmem>>, %arg5: memref<1x128xf32, #tpu.memory_space<vmem>>, %arg6: memref<1x10x128xf32, #tpu.memory_space<vmem>>) attributes {dimension_semantics = [#tpu.dimension_semantics<parallel>], iteration_bounds = array<i64: 2>, scalar_prefetch = 0 : i64, scratch_operands = 0 : i64, tpu.core_type = #tpu.core_type<tc>, window_params = [{transform_indices = @transform_0, window_bounds = array<i64: 1, 10, 32>}, {pipeline_mode = #tpu.pipeline_mode<synchronous>, transform_indices = @transform_1, window_bounds = array<i64: 1, 32>}, {pipeline_mode = #tpu.pipeline_mode<synchronous>, transform_indices = @transform_2, window_bounds = array<i64: 1, 32>}, {pipeline_mode = #tpu.pipeline_mode<synchronous>, transform_indices = @transform_3, window_bounds = array<i64: 32, 128>}, {pipeline_mode = #tpu.pipeline_mode<synchronous>, transform_indices = @transform_4, window_bounds = array<i64: 1, 128>}, {transform_indices = @transform_5, window_bounds = array<i64: 1, 10, 128>}]} {
    %c0 = arith.constant 0 : index
    %c0_0 = arith.constant 0 : index
    %c0_1 = arith.constant 0 : index
    %0 = vector.load %arg1[%c0, %c0_0, %c0_1] : memref<1x10x32xf32, #tpu.memory_space<vmem>>, vector<1x10x32xf32>
    %1 = vector.shape_cast %0 : vector<1x10x32xf32> to vector<10x32xf32>
    %cst = arith.constant dense<0.000000e+00> : vector<10xf32>
    %2 = vector.multi_reduction <add>, %1, %cst [1] : vector<10x32xf32> to vector<10xf32>
    %3 = vector.shape_cast %2 : vector<10xf32> to vector<10x1xf32>
    %cst_2 = arith.constant 3.200000e+01 : f32
    %4 = vector.broadcast %cst_2 : f32 to vector<10x1xf32>
    %5 = arith.divf %3, %4 : vector<10x1xf32>
    %6 = vector.broadcast %5 : vector<10x1xf32> to vector<10x32xf32>
    %7 = arith.subf %1, %6 : vector<10x32xf32>
    %8 = arith.mulf %7, %7 : vector<10x32xf32>
    %cst_3 = arith.constant dense<0.000000e+00> : vector<10xf32>
    %9 = vector.multi_reduction <add>, %8, %cst_3 [1] : vector<10x32xf32> to vector<10xf32>
    %10 = vector.shape_cast %9 : vector<10xf32> to vector<10x1xf32>
    %cst_4 = arith.constant 3.200000e+01 : f32
    %11 = vector.broadcast %cst_4 : f32 to vector<10x1xf32>
    %12 = arith.divf %10, %11 : vector<10x1xf32>
    %13 = vector.broadcast %5 : vector<10x1xf32> to vector<10x32xf32>
    %14 = arith.subf %1, %13 : vector<10x32xf32>
    %cst_5 = arith.constant 9.99999974E-6 : f32
    %15 = vector.broadcast %cst_5 : f32 to vector<10x1xf32>
    %16 = arith.addf %12, %15 : vector<10x1xf32>
    %17 = math.rsqrt %16 : vector<10x1xf32>
    %18 = vector.broadcast %17 : vector<10x1xf32> to vector<10x32xf32>
    %19 = arith.mulf %14, %18 : vector<10x32xf32>
    %c0_6 = arith.constant 0 : index
    %c0_7 = arith.constant 0 : index
    %20 = vector.load %arg2[%c0_6, %c0_7] : memref<1x32xf32, #tpu.memory_space<vmem>>, vector<1x32xf32>
    %21 = vector.broadcast %20 : vector<1x32xf32> to vector<10x32xf32>
    %22 = arith.mulf %19, %21 : vector<10x32xf32>
    %c0_8 = arith.constant 0 : index
    %c0_9 = arith.constant 0 : index
    %23 = vector.load %arg3[%c0_8, %c0_9] : memref<1x32xf32, #tpu.memory_space<vmem>>, vector<1x32xf32>
    %24 = vector.broadcast %23 : vector<1x32xf32> to vector<10x32xf32>
    %25 = arith.addf %22, %24 : vector<10x32xf32>
    %26 = arith.truncf %25 : vector<10x32xf32> to vector<10x32xbf16>
    %c0_10 = arith.constant 0 : index
    %c0_11 = arith.constant 0 : index
    %27 = vector.load %arg4[%c0_10, %c0_11] : memref<32x128xbf16, #tpu.memory_space<vmem>>, vector<32x128xbf16>
    %cst_12 = arith.constant dense<0.000000e+00> : vector<10x128xf32>
    %28 = tpu.matmul %26, %27, %cst_12 {dimension_numbers = #tpu.dot_dimension_numbers<[1], [0], [0], [1], [0, 0, 1, 1], [], []>} : vector<10x32xbf16>, vector<32x128xbf16>, vector<10x128xf32> -> vector<10x128xf32>
    %c0_13 = arith.constant 0 : index
    %c0_14 = arith.constant 0 : index
    %29 = vector.load %arg5[%c0_13, %c0_14] : memref<1x128xf32, #tpu.memory_space<vmem>>, vector<1x128xf32>
    %30 = vector.broadcast %29 : vector<1x128xf32> to vector<10x128xf32>
    %31 = arith.addf %28, %30 : vector<10x128xf32>
    %c0_15 = arith.constant 0 : index
    %c0_16 = arith.constant 0 : index
    %c0_17 = arith.constant 0 : index
    %32 = vector.load %arg6[%c0_15, %c0_16, %c0_17] : memref<1x10x128xf32, #tpu.memory_space<vmem>>, vector<1x10x128xf32>
    %33 = vector.shape_cast %32 : vector<1x10x128xf32> to vector<10x128xf32>
    %34 = vector.shape_cast %31 : vector<10x128xf32> to vector<1x10x128xf32>
    tpu.vector_store %arg6[%c0_15, %c0_16, %c0_17], %34 {strides = array<i32>} : memref<1x10x128xf32, #tpu.memory_space<vmem>>, vector<1x10x128xf32>,
    return
  }
  func.func @transform_0(%arg0: i32) -> (i32, i32, i32) {
    %c0_i32 = arith.constant 0 : i32
    %c0_i32_0 = arith.constant 0 : i32
    %c0_i32_1 = arith.constant 0 : i32
    return %arg0, %c0_i32, %c0_i32_0 : i32, i32, i32
  }
  func.func @transform_1(%arg0: i32) -> (i32, i32) {
    %c0_i32 = arith.constant 0 : i32
    %c0_i32_0 = arith.constant 0 : i32
    %c0_i32_1 = arith.constant 0 : i32
    return %c0_i32, %c0_i32_0 : i32, i32
  }
  func.func @transform_2(%arg0: i32) -> (i32, i32) {
    %c0_i32 = arith.constant 0 : i32
    %c0_i32_0 = arith.constant 0 : i32
    %c0_i32_1 = arith.constant 0 : i32
    return %c0_i32, %c0_i32_0 : i32, i32
  }
  func.func @transform_3(%arg0: i32) -> (i32, i32) {
    %c0_i32 = arith.constant 0 : i32
    %c0_i32_0 = arith.constant 0 : i32
    %c0_i32_1 = arith.constant 0 : i32
    return %c0_i32, %c0_i32_0 : i32, i32
  }
  func.func @transform_4(%arg0: i32) -> (i32, i32) {
    %c0_i32 = arith.constant 0 : i32
    %c0_i32_0 = arith.constant 0 : i32
    %c0_i32_1 = arith.constant 0 : i32
    return %c0_i32, %c0_i32_0 : i32, i32
  }
  func.func @transform_5(%arg0: i32) -> (i32, i32, i32) {
    %c0_i32 = arith.constant 0 : i32
    %c0_i32_0 = arith.constant 0 : i32
    %c0_i32_1 = arith.constant 0 : i32
    return %arg0, %c0_i32, %c0_i32_0 : i32, i32, i32
  }
}

</mosaic_0001>

<llo_original>
// kernel: seq2seq_forward.16
$region0: #{seq2seq_forward.16}
  #allocation0 [shape = 'u32[]', space=smem, size = 0x4, offset = 0x4, fixed_abs, tag = 'smem constant byte address 0x4 - core index']
  #allocation1 [shape = 'u32[144,128]{1,0:T(1,128)}', space=vmem, size = 0x12000, scoped, tag = 'internal scratch']
  %s0 = inlined_call_operand.vmem [shape: f32[2,12,32], index: 0, kind: input, shape index: {}]
  %s1 = inlined_call_operand.vmem [shape: f32[1,32], index: 1, kind: input, shape index: {}]
  %s2 = inlined_call_operand.vmem [shape: f32[1,32], index: 2, kind: input, shape index: {}]
  %s3 = inlined_call_operand.vmem [shape: f32[2,12,32], index: 3, kind: output, shape index: {}]
  %s4 = sld [smem:[#allocation0]]
  $region45: #{seq2seq_forward.16} parent=0
    _
  %s6 = ssub.s32 1, %s4
  %s7 = scalar_select 0, %s6, %s4
  loop: start=0, step=1, limit=4
  $region2: #{seq2seq_forward.16} parent=0 // loop_pre_header
    _
  $region3: #{seq2seq_forward.16} parent=0 // loop_header
    %s9 = sphi 0, %s13
    %p10 = scmp.ge.s32.totalorder %s9, 4
    %s19 = sphi 0, %s21
    %s22 = sphi 0, %s19
    %s23 = sphi 0, %s22
    %s39 = sphi 0, %s23
    %s43 = sphi 0, %s43
    %s45 = sphi 0, %s43
    %s46 = sphi 0, %s45
    %s60 = sphi 0, %s46
    %s64 = sphi 0, %s64
    %s66 = sphi 0, %s64
    %s67 = sphi 0, %s66
    %s81 = sphi 0, %s67
    %s87 = sphi 0, %s89
    %s90 = sphi 0, %s87
    %s91 = sphi 0, %s90
    %s107 = sphi 0, %s91
  $region4: #{seq2seq_forward.16} parent=0 // loop_header_branch
    %12 = sbr.rel (%p10) target = $region8
  $region5: #{seq2seq_forward.16} parent=0 // loop_body
    %s14 = ssub.s32 %s9, 1
    %s15 = ssub.s32 %s9, 2
    %s16 = sadd.s32 %s9, 1
    %s17 = ssub.s32 %s9, %s16
    %p18 = scmp.eq.s32.totalorder %s17, 0
    %s20 = sadd.s32 %s19, 1
    %s21 = scalar_select %p18, %s19, %s20
    %p24 = pneg %p18
    %p25 = scmp.eq.s32.totalorder %s9, 1
    %p26 = por %p24, %p25
    %p27 = scmp.ne.s32.totalorder %s19, %s22
    %p28 = scmp.eq.s32.totalorder %s9, 0
    %p29 = por %p27, %p28
    %p30 = scmp.ne.s32.totalorder %s19, %s22
    %p31 = scmp.eq.s32.totalorder %s14, 1
    %p32 = por %p30, %p31
    %p33 = scmp.ne.s32.totalorder %s22, %s23
    %p34 = scmp.eq.s32.totalorder %s14, 0
    %p35 = por %p33, %p34
    %p36 = scmp.ne.s32.totalorder %s22, %s23
    %p37 = scmp.eq.s32.totalorder %s15, 1
    %p38 = por %p36, %p37
    %p40 = scmp.ne.s32.totalorder %s23, %s39
    %p41 = scmp.eq.s32.totalorder %s15, 0
    %p42 = por %p40, %p41
    %s44 = sadd.s32 %s43, 1
    %p47 = scmp.eq.s32.totalorder %s9, 1
    %p48 = scmp.ne.s32.totalorder %s43, %s45
    %p49 = scmp.eq.s32.totalorder %s9, 0
    %p50 = por %p48, %p49
    %p51 = scmp.ne.s32.totalorder %s43, %s45
    %p52 = scmp.eq.s32.totalorder %s14, 1
    %p53 = por %p51, %p52
    %p54 = scmp.ne.s32.totalorder %s45, %s46
    %p55 = scmp.eq.s32.totalorder %s14, 0
    %p56 = por %p54, %p55
    %p57 = scmp.ne.s32.totalorder %s45, %s46
    %p58 = scmp.eq.s32.totalorder %s15, 1
    %p59 = por %p57, %p58
    %p61 = scmp.ne.s32.totalorder %s46, %s60
    %p62 = scmp.eq.s32.totalorder %s15, 0
    %p63 = por %p61, %p62
    %s65 = sadd.s32 %s64, 1
    %p68 = scmp.eq.s32.totalorder %s9, 1
    %p69 = scmp.ne.s32.totalorder %s64, %s66
    %p70 = scmp.eq.s32.totalorder %s9, 0
    %p71 = por %p69, %p70
    %p72 = scmp.ne.s32.totalorder %s64, %s66
    %p73 = scmp.eq.s32.totalorder %s14, 1
    %p74 = por %p72, %p73
    %p75 = scmp.ne.s32.totalorder %s66, %s67
    %p76 = scmp.eq.s32.totalorder %s14, 0
    %p77 = por %p75, %p76
    %p78 = scmp.ne.s32.totalorder %s66, %s67
    %p79 = scmp.eq.s32.totalorder %s15, 1
    %p80 = por %p78, %p79
    %p82 = scmp.ne.s32.totalorder %s67, %s81
    %p83 = scmp.eq.s32.totalorder %s15, 0
    %p84 = por %p82, %p83
    %s85 = ssub.s32 %s9, %s16
    %p86 = scmp.eq.s32.totalorder %s85, 0
    %s88 = sadd.s32 %s87, 1
    %s89 = scalar_select %p86, %s87, %s88
    %p92 = pneg %p86
    %p93 = scmp.eq.s32.totalorder %s9, 1
    %p94 = por %p92, %p93
    %p95 = scmp.ne.s32.totalorder %s87, %s90
    %p96 = scmp.eq.s32.totalorder %s9, 0
    %p97 = por %p95, %p96
    %p98 = scmp.ne.s32.totalorder %s87, %s90
    %p99 = scmp.eq.s32.totalorder %s14, 1
    %p100 = por %p98, %p99
    %p101 = scmp.ne.s32.totalorder %s90, %s91
    %p102 = scmp.eq.s32.totalorder %s14, 0
    %p103 = por %p101, %p102
    %p104 = scmp.ne.s32.totalorder %s90, %s91
    %p105 = scmp.eq.s32.totalorder %s15, 1
    %p106 = por %p104, %p105
    %p108 = scmp.ne.s32.totalorder %s91, %s107
    %p109 = scmp.eq.s32.totalorder %s15, 0
    %p110 = por %p108, %p109
    %p111 = scmp.le.s32.totalorder 1, %s9
    %p112 = scmp.lt.s32.totalorder %s9, 3
    %p113 = pnand %p111, %p112
    %p114 = pneg %p113
    // Predicated region
    $region9: #{seq2seq_forward.16} parent=5 // pred_check
      _
    $region10: #{seq2seq_forward.16} parent=5 // pred_check_branch
      %116 = sbr.rel (%p113) target = $region12
    $region11: #{seq2seq_forward.16} parent=5 // pred_region
      %s117 = ssub.s32 %s9, 1
      // Predicated region
      $region13: #{seq2seq_forward.16} parent=11 // pred_check
        %p118 = pneg %p56
      $region14: #{seq2seq_forward.16} parent=11 // pred_check_branch
        %120 = sbr.rel (%p118) target = $region16
      $region15: #{seq2seq_forward.16} parent=11 // pred_region
        _
      $region16: #{seq2seq_forward.16} parent=11 // pred_fallthru
        _
      // Predicated region
      $region17: #{seq2seq_forward.16} parent=11 // pred_check
        %p121 = pneg %p77
      $region18: #{seq2seq_forward.16} parent=11 // pred_check_branch
        %123 = sbr.rel (%p121) target = $region20
      $region19: #{seq2seq_forward.16} parent=11 // pred_region
        _
      $region20: #{seq2seq_forward.16} parent=11 // pred_fallthru
        _
    $region12: #{seq2seq_forward.16} parent=5 // pred_fallthru
      _
    %p124 = scmp.lt.s32.totalorder %s9, 2
    // Predicated region
    $region21: #{seq2seq_forward.16} parent=5 // pred_check
      %p125 = pneg %p124
    $region22: #{seq2seq_forward.16} parent=5 // pred_check_branch
      %127 = sbr.rel (%p125) target = $region24
    $region23: #{seq2seq_forward.16} parent=5 // pred_region
      // Predicated region
      $region25: #{seq2seq_forward.16} parent=23 // pred_check
        %p128 = pneg %p29
      $region26: #{seq2seq_forward.16} parent=23 // pred_check_branch
        %130 = sbr.rel (%p128) target = $region28
      $region27: #{seq2seq_forward.16} parent=23 // pred_region
        %p131 = scmp.lt.s32.totalorder %s9, 1
        %s132 = scalar_select %p131, %s9, 1
        %s133 = smul.addr %s132, 2
        %s134 = smul.addr %s133, 8
        %s135 = scalar_lea.vmem %s0, %s134
      $region28: #{seq2seq_forward.16} parent=23 // pred_fallthru
        _
    $region24: #{seq2seq_forward.16} parent=5 // pred_fallthru
      _
    %p136 = scmp.le.s32.totalorder 1, %s9
    %p137 = scmp.lt.s32.totalorder %s9, 3
    %p138 = pnand %p136, %p137
    %p139 = pneg %p138
    // Predicated region
    $region29: #{seq2seq_forward.16} parent=5 // pred_check
      _
    $region30: #{seq2seq_forward.16} parent=5 // pred_check_branch
      %141 = sbr.rel (%p138) target = $region32
    $region31: #{seq2seq_forward.16} parent=5 // pred_region
      %s142 = ssub.s32 %s9, 1
      %p143 = scmp.lt.s32.totalorder %s14, 1
      %s144 = scalar_select %p143, %s14, 1
      %s145 = smul.addr %s144, 2
      %s146 = smul.addr %s145, 8
      %s147 = scalar_lea.vmem %s0, %s146
      %p148 = pneg %p35
      %p149 = pneg %p32
      %p150 = pneg %p56
      %p151 = pneg %p53
      %p152 = pneg %p77
      %p153 = pneg %p74
      %p154 = pneg %p103
      %p155 = pneg %p100
      %p156 = scmp.lt.s32.totalorder %s14, 1
      %s157 = scalar_select %p156, %s14, 1
      %s158 = smul.addr %s157, 2
      %s159 = smul.addr %s158, 8
      %s160 = scalar_lea.vmem %s3, %s159
      %p161 = scmp.lt.s32.totalorder %s14, 1
      %s162 = scalar_select %p161, %s14, 1
      %s163 = smul.addr %s162, 2
      %s164 = smul.addr %s163, 8
      %s165 = scalar_lea.vmem %s0, %s164
      %p166 = scmp.lt.s32.totalorder %s14, 1
      %s167 = scalar_select %p166, %s14, 1
      %s168 = smul.addr %s167, 2
      %s169 = smul.addr %s168, 8
      %s170 = scalar_lea.vmem %s3, %s169
      %v171 = vld [vmem:[%s165] sm:$0xff]
      %v172 = vld [vmem:[%s165 + $0x8] sm:$0xf]
      %vm173 = vcmask 261120
      %v174 = vsel %vm173, %v171, 0.0
      %175 = vadd.xlane.f32.xlu0 %v174
      %v176 = vpop.xlane.xlu0 %175
      %vm177 = vcmask 257024
      %v178 = vsel %vm177, %v172, 0.0
      %179 = vadd.xlane.f32.xlu0 %v178
      %v180 = vpop.xlane.xlu0 %179
      %v181 = vrcp.pop 32.0
      %v182 = vmul.f32 %v176, %v181
      %v183 = vmul.f32 %v180, %v181
      %v184 = vsub.f32 %v171, %v182
      %v185 = vsub.f32 %v172, %v183
      %v186 = vmul.f32 %v184, %v184
      %v187 = vmul.f32 %v185, %v185
      %v188 = vsel %vm173, %v186, 0.0
      %189 = vadd.xlane.f32.xlu0 %v188
      %v190 = vpop.xlane.xlu0 %189
      %v191 = vsel %vm177, %v187, 0.0
      %192 = vadd.xlane.f32.xlu0 %v191
      %v193 = vpop.xlane.xlu0 %192
      %v194 = vmul.f32 %v190, %v181
      %v195 = vmul.f32 %v193, %v181
      %v196 = vadd.f32 %v194, 1e-05
      %v197 = vadd.f32 %v195, 1e-05
      %v198 = vrsqrt.pop %v196
      %v199 = vrsqrt.pop %v197
      %v200 = vmul.f32 %v184, %v198
      %v201 = vmul.f32 %v185, %v199
      %v202 = vld [vmem:[%s1] sm:$0x1]
      %v204 = vlaneseq
      %v205 = vshrl.u32 %v204, 7
      %v206 = vsub.s32 0, %v205
      %v207 = vrot.slane %v202, %v206
      %v209 = vmul.f32 %v200, %v207
      %v210 = vmul.f32 %v201, %v207
      %v211 = vld [vmem:[%s2] sm:$0x1]
      %v213 = vlaneseq
      %v214 = vshrl.u32 %v213, 7
      %v215 = vsub.s32 0, %v214
      %v216 = vrot.slane %v211, %v215
      %v218 = vadd.f32 %v209, %v216
      %v219 = vadd.f32 %v210, %v216
      %220 = vst.msk [vmem:[%s170] sm:$0xff] %vm173, %v218
      %221 = vst.msk [vmem:[%s170 + $0x8] sm:$0xf] %vm177, %v219
      %p222 = scmp.lt.s32.totalorder %s14, 1
      %s223 = scalar_select %p222, %s14, 1
      %s224 = smul.addr %s223, 2
      %s225 = smul.addr %s224, 8
      %s226 = scalar_lea.vmem %s3, %s225
      // Predicated region
      $region33: #{seq2seq_forward.16} parent=31 // pred_check
        %p227 = pneg %p100
      $region34: #{seq2seq_forward.16} parent=31 // pred_check_branch
        %229 = sbr.rel (%p227) target = $region36
      $region35: #{seq2seq_forward.16} parent=31 // pred_region
        _
      $region36: #{seq2seq_forward.16} parent=31 // pred_fallthru
        _
    $region32: #{seq2seq_forward.16} parent=5 // pred_fallthru
      _
    %p230 = scmp.le.s32.totalorder 2, %s9
    // Predicated region
    $region37: #{seq2seq_forward.16} parent=5 // pred_check
      %p231 = pneg %p230
    $region38: #{seq2seq_forward.16} parent=5 // pred_check_branch
      %233 = sbr.rel (%p231) target = $region40
    $region39: #{seq2seq_forward.16} parent=5 // pred_region
      %s234 = ssub.s32 %s9, 2
      // Predicated region
      $region41: #{seq2seq_forward.16} parent=39 // pred_check
        %p235 = pneg %p106
      $region42: #{seq2seq_forward.16} parent=39 // pred_check_branch
        %237 = sbr.rel (%p235) target = $region44
      $region43: #{seq2seq_forward.16} parent=39 // pred_region
        %p238 = scmp.lt.s32.totalorder %s15, 1
        %s239 = scalar_select %p238, %s15, 1
        %s240 = smul.addr %s239, 2
        %s241 = smul.addr %s240, 8
        %s242 = scalar_lea.vmem %s3, %s241
      $region44: #{seq2seq_forward.16} parent=39 // pred_fallthru
        _
    $region40: #{seq2seq_forward.16} parent=5 // pred_fallthru
      _
  $region6: #{seq2seq_forward.16} parent=0 // loop_footer
    %s13 = sadd.s32 1, %s9
  $region7: #{seq2seq_forward.16} parent=0 // loop_footer_branch
    %8 = sbr.rel target = $region3
  $region8: #{seq2seq_forward.16} parent=0 // loop_exit
    _

// kernel: seq2seq_forward.13
$region0: #{seq2seq_forward.13}
  #allocation0 [shape = 'u32[]', space=smem, size = 0x4, offset = 0x4, fixed_abs, tag = 'smem constant byte address 0x4 - core index']
  #allocation1 [shape = 'u32[144,128]{1,0:T(1,128)}', space=vmem, size = 0x12000, scoped, tag = 'internal scratch']
  %s0 = inlined_call_operand.vmem [shape: f32[2,12,32], index: 0, kind: input, shape index: {}]
  %s1 = inlined_call_operand.vmem [shape: bf16[32,64], index: 1, kind: input, shape index: {}]
  %s2 = inlined_call_operand.vmem [shape: f32[1,64], index: 2, kind: input, shape index: {}]
  %s3 = inlined_call_operand.vmem [shape: bf16[64,32], index: 3, kind: input, shape index: {}]
  %s4 = inlined_call_operand.vmem [shape: f32[1,32], index: 4, kind: input, shape index: {}]
  %s5 = inlined_call_operand.vmem [shape: f32[1,32], index: 5, kind: input, shape index: {}]
  %s6 = inlined_call_operand.vmem [shape: f32[1,32], index: 6, kind: input, shape index: {}]
  %s7 = inlined_call_operand.vmem [shape: f32[2,12,32], index: 7, kind: output, shape index: {}]
  %s8 = sld [smem:[#allocation0]]
  $region61: #{seq2seq_forward.13} parent=0
    _
  %s10 = ssub.s32 1, %s8
  %s11 = scalar_select 0, %s10, %s8
  loop: start=0, step=1, limit=4
  $region2: #{seq2seq_forward.13} parent=0 // loop_pre_header
    _
  $region3: #{seq2seq_forward.13} parent=0 // loop_header
    %s13 = sphi 0, %s17
    %p14 = scmp.ge.s32.totalorder %s13, 4
    %s23 = sphi 0, %s25
    %s26 = sphi 0, %s23
    %s27 = sphi 0, %s26
    %s43 = sphi 0, %s27
    %s47 = sphi 0, %s47
    %s49 = sphi 0, %s47
    %s50 = sphi 0, %s49
    %s64 = sphi 0, %s50
    %s68 = sphi 0, %s68
    %s70 = sphi 0, %s68
    %s71 = sphi 0, %s70
    %s85 = sphi 0, %s71
    %s89 = sphi 0, %s89
    %s91 = sphi 0, %s89
    %s92 = sphi 0, %s91
    %s106 = sphi 0, %s92
    %s110 = sphi 0, %s110
    %s112 = sphi 0, %s110
    %s113 = sphi 0, %s112
    %s127 = sphi 0, %s113
    %s131 = sphi 0, %s131
    %s133 = sphi 0, %s131
    %s134 = sphi 0, %s133
    %s148 = sphi 0, %s134
    %s152 = sphi 0, %s152
    %s154 = sphi 0, %s152
    %s155 = sphi 0, %s154
    %s169 = sphi 0, %s155
    %s175 = sphi 0, %s177
    %s178 = sphi 0, %s175
    %s179 = sphi 0, %s178
    %s195 = sphi 0, %s179
  $region4: #{seq2seq_forward.13} parent=0 // loop_header_branch
    %16 = sbr.rel (%p14) target = $region8
  $region5: #{seq2seq_forward.13} parent=0 // loop_body
    %s18 = ssub.s32 %s13, 1
    %s19 = ssub.s32 %s13, 2
    %s20 = sadd.s32 %s13, 1
    %s21 = ssub.s32 %s13, %s20
    %p22 = scmp.eq.s32.totalorder %s21, 0
    %s24 = sadd.s32 %s23, 1
    %s25 = scalar_select %p22, %s23, %s24
    %p28 = pneg %p22
    %p29 = scmp.eq.s32.totalorder %s13, 1
    %p30 = por %p28, %p29
    %p31 = scmp.ne.s32.totalorder %s23, %s26
    %p32 = scmp.eq.s32.totalorder %s13, 0
    %p33 = por %p31, %p32
    %p34 = scmp.ne.s32.totalorder %s23, %s26
    %p35 = scmp.eq.s32.totalorder %s18, 1
    %p36 = por %p34, %p35
    %p37 = scmp.ne.s32.totalorder %s26, %s27
    %p38 = scmp.eq.s32.totalorder %s18, 0
    %p39 = por %p37, %p38
    %p40 = scmp.ne.s32.totalorder %s26, %s27
    %p41 = scmp.eq.s32.totalorder %s19, 1
    %p42 = por %p40, %p41
    %p44 = scmp.ne.s32.totalorder %s27, %s43
    %p45 = scmp.eq.s32.totalorder %s19, 0
    %p46 = por %p44, %p45
    %s48 = sadd.s32 %s47, 1
    %p51 = scmp.eq.s32.totalorder %s13, 1
    %p52 = scmp.ne.s32.totalorder %s47, %s49
    %p53 = scmp.eq.s32.totalorder %s13, 0
    %p54 = por %p52, %p53
    %p55 = scmp.ne.s32.totalorder %s47, %s49
    %p56 = scmp.eq.s32.totalorder %s18, 1
    %p57 = por %p55, %p56
    %p58 = scmp.ne.s32.totalorder %s49, %s50
    %p59 = scmp.eq.s32.totalorder %s18, 0
    %p60 = por %p58, %p59
    %p61 = scmp.ne.s32.totalorder %s49, %s50
    %p62 = scmp.eq.s32.totalorder %s19, 1
    %p63 = por %p61, %p62
    %p65 = scmp.ne.s32.totalorder %s50, %s64
    %p66 = scmp.eq.s32.totalorder %s19, 0
    %p67 = por %p65, %p66
    %s69 = sadd.s32 %s68, 1
    %p72 = scmp.eq.s32.totalorder %s13, 1
    %p73 = scmp.ne.s32.totalorder %s68, %s70
    %p74 = scmp.eq.s32.totalorder %s13, 0
    %p75 = por %p73, %p74
    %p76 = scmp.ne.s32.totalorder %s68, %s70
    %p77 = scmp.eq.s32.totalorder %s18, 1
    %p78 = por %p76, %p77
    %p79 = scmp.ne.s32.totalorder %s70, %s71
    %p80 = scmp.eq.s32.totalorder %s18, 0
    %p81 = por %p79, %p80
    %p82 = scmp.ne.s32.totalorder %s70, %s71
    %p83 = scmp.eq.s32.totalorder %s19, 1
    %p84 = por %p82, %p83
    %p86 = scmp.ne.s32.totalorder %s71, %s85
    %p87 = scmp.eq.s32.totalorder %s19, 0
    %p88 = por %p86, %p87
    %s90 = sadd.s32 %s89, 1
    %p93 = scmp.eq.s32.totalorder %s13, 1
    %p94 = scmp.ne.s32.totalorder %s89, %s91
    %p95 = scmp.eq.s32.totalorder %s13, 0
    %p96 = por %p94, %p95
    %p97 = scmp.ne.s32.totalorder %s89, %s91
    %p98 = scmp.eq.s32.totalorder %s18, 1
    %p99 = por %p97, %p98
    %p100 = scmp.ne.s32.totalorder %s91, %s92
    %p101 = scmp.eq.s32.totalorder %s18, 0
    %p102 = por %p100, %p101
    %p103 = scmp.ne.s32.totalorder %s91, %s92
    %p104 = scmp.eq.s32.totalorder %s19, 1
    %p105 = por %p103, %p104
    %p107 = scmp.ne.s32.totalorder %s92, %s106
    %p108 = scmp.eq.s32.totalorder %s19, 0
    %p109 = por %p107, %p108
    %s111 = sadd.s32 %s110, 1
    %p114 = scmp.eq.s32.totalorder %s13, 1
    %p115 = scmp.ne.s32.totalorder %s110, %s112
    %p116 = scmp.eq.s32.totalorder %s13, 0
    %p117 = por %p115, %p116
    %p118 = scmp.ne.s32.totalorder %s110, %s112
    %p119 = scmp.eq.s32.totalorder %s18, 1
    %p120 = por %p118, %p119
    %p121 = scmp.ne.s32.totalorder %s112, %s113
    %p122 = scmp.eq.s32.totalorder %s18, 0
    %p123 = por %p121, %p122
    %p124 = scmp.ne.s32.totalorder %s112, %s113
    %p125 = scmp.eq.s32.totalorder %s19, 1
    %p126 = por %p124, %p125
    %p128 = scmp.ne.s32.totalorder %s113, %s127
    %p129 = scmp.eq.s32.totalorder %s19, 0
    %p130 = por %p128, %p129
    %s132 = sadd.s32 %s131, 1
    %p135 = scmp.eq.s32.totalorder %s13, 1
    %p136 = scmp.ne.s32.totalorder %s131, %s133
    %p137 = scmp.eq.s32.totalorder %s13, 0
    %p138 = por %p136, %p137
    %p139 = scmp.ne.s32.totalorder %s131, %s133
    %p140 = scmp.eq.s32.totalorder %s18, 1
    %p141 = por %p139, %p140
    %p142 = scmp.ne.s32.totalorder %s133, %s134
    %p143 = scmp.eq.s32.totalorder %s18, 0
    %p144 = por %p142, %p143
    %p145 = scmp.ne.s32.totalorder %s133, %s134
    %p146 = scmp.eq.s32.totalorder %s19, 1
    %p147 = por %p145, %p146
    %p149 = scmp.ne.s32.totalorder %s134, %s148
    %p150 = scmp.eq.s32.totalorder %s19, 0
    %p151 = por %p149, %p150
    %s153 = sadd.s32 %s152, 1
    %p156 = scmp.eq.s32.totalorder %s13, 1
    %p157 = scmp.ne.s32.totalorder %s152, %s154
    %p158 = scmp.eq.s32.totalorder %s13, 0
    %p159 = por %p157, %p158
    %p160 = scmp.ne.s32.totalorder %s152, %s154
    %p161 = scmp.eq.s32.totalorder %s18, 1
    %p162 = por %p160, %p161
    %p163 = scmp.ne.s32.totalorder %s154, %s155
    %p164 = scmp.eq.s32.totalorder %s18, 0
    %p165 = por %p163, %p164
    %p166 = scmp.ne.s32.totalorder %s154, %s155
    %p167 = scmp.eq.s32.totalorder %s19, 1
    %p168 = por %p166, %p167
    %p170 = scmp.ne.s32.totalorder %s155, %s169
    %p171 = scmp.eq.s32.totalorder %s19, 0
    %p172 = por %p170, %p171
    %s173 = ssub.s32 %s13, %s20
    %p174 = scmp.eq.s32.totalorder %s173, 0
    %s176 = sadd.s32 %s175, 1
    %s177 = scalar_select %p174, %s175, %s176
    %p180 = pneg %p174
    %p181 = scmp.eq.s32.totalorder %s13, 1
    %p182 = por %p180, %p181
    %p183 = scmp.ne.s32.totalorder %s175, %s178
    %p184 = scmp.eq.s32.totalorder %s13, 0
    %p185 = por %p183, %p184
    %p186 = scmp.ne.s32.totalorder %s175, %s178
    %p187 = scmp.eq.s32.totalorder %s18, 1
    %p188 = por %p186, %p187
    %p189 = scmp.ne.s32.totalorder %s178, %s179
    %p190 = scmp.eq.s32.totalorder %s18, 0
    %p191 = por %p189, %p190
    %p192 = scmp.ne.s32.totalorder %s178, %s179
    %p193 = scmp.eq.s32.totalorder %s19, 1
    %p194 = por %p192, %p193
    %p196 = scmp.ne.s32.totalorder %s179, %s195
    %p197 = scmp.eq.s32.totalorder %s19, 0
    %p198 = por %p196, %p197
    %p199 = scmp.le.s32.totalorder 1, %s13
    %p200 = scmp.lt.s32.totalorder %s13, 3
    %p201 = pnand %p199, %p200
    %p202 = pneg %p201
    // Predicated region
    $region9: #{seq2seq_forward.13} parent=5 // pred_check
      _
    $region10: #{seq2seq_forward.13} parent=5 // pred_check_branch
      %204 = sbr.rel (%p201) target = $region12
    $region11: #{seq2seq_forward.13} parent=5 // pred_region
      %s205 = ssub.s32 %s13, 1
      // Predicated region
      $region13: #{seq2seq_forward.13} parent=11 // pred_check
        %p206 = pneg %p60
      $region14: #{seq2seq_forward.13} parent=11 // pred_check_branch
        %208 = sbr.rel (%p206) target = $region16
      $region15: #{seq2seq_forward.13} parent=11 // pred_region
        _
      $region16: #{seq2seq_forward.13} parent=11 // pred_fallthru
        _
      // Predicated region
      $region17: #{seq2seq_forward.13} parent=11 // pred_check
        %p209 = pneg %p81
      $region18: #{seq2seq_forward.13} parent=11 // pred_check_branch
        %211 = sbr.rel (%p209) target = $region20
      $region19: #{seq2seq_forward.13} parent=11 // pred_region
        _
      $region20: #{seq2seq_forward.13} parent=11 // pred_fallthru
        _
      // Predicated region
      $region21: #{seq2seq_forward.13} parent=11 // pred_check
        %p212 = pneg %p102
      $region22: #{seq2seq_forward.13} parent=11 // pred_check_branch
        %214 = sbr.rel (%p212) target = $region24
      $region23: #{seq2seq_forward.13} parent=11 // pred_region
        _
      $region24: #{seq2seq_forward.13} parent=11 // pred_fallthru
        _
      // Predicated region
      $region25: #{seq2seq_forward.13} parent=11 // pred_check
        %p215 = pneg %p123
      $region26: #{seq2seq_forward.13} parent=11 // pred_check_branch
        %217 = sbr.rel (%p215) target = $region28
      $region27: #{seq2seq_forward.13} parent=11 // pred_region
        _
      $region28: #{seq2seq_forward.13} parent=11 // pred_fallthru
        _
      // Predicated region
      $region29: #{seq2seq_forward.13} parent=11 // pred_check
        %p218 = pneg %p144
      $region30: #{seq2seq_forward.13} parent=11 // pred_check_branch
        %220 = sbr.rel (%p218) target = $region32
      $region31: #{seq2seq_forward.13} parent=11 // pred_region
        _
      $region32: #{seq2seq_forward.13} parent=11 // pred_fallthru
        _
      // Predicated region
      $region33: #{seq2seq_forward.13} parent=11 // pred_check
        %p221 = pneg %p165
      $region34: #{seq2seq_forward.13} parent=11 // pred_check_branch
        %223 = sbr.rel (%p221) target = $region36
      $region35: #{seq2seq_forward.13} parent=11 // pred_region
        _
      $region36: #{seq2seq_forward.13} parent=11 // pred_fallthru
        _
    $region12: #{seq2seq_forward.13} parent=5 // pred_fallthru
      _
    %p224 = scmp.lt.s32.totalorder %s13, 2
    // Predicated region
    $region37: #{seq2seq_forward.13} parent=5 // pred_check
      %p225 = pneg %p224
    $region38: #{seq2seq_forward.13} parent=5 // pred_check_branch
      %227 = sbr.rel (%p225) target = $region40
    $region39: #{seq2seq_forward.13} parent=5 // pred_region
      // Predicated region
      $region41: #{seq2seq_forward.13} parent=39 // pred_check
        %p228 = pneg %p33
      $region42: #{seq2seq_forward.13} parent=39 // pred_check_branch
        %230 = sbr.rel (%p228) target = $region44
      $region43: #{seq2seq_forward.13} parent=39 // pred_region
        %p231 = scmp.lt.s32.totalorder %s13, 1
        %s232 = scalar_select %p231, %s13, 1
        %s233 = smul.addr %s232, 2
        %s234 = smul.addr %s233, 8
        %s235 = scalar_lea.vmem %s0, %s234
      $region44: #{seq2seq_forward.13} parent=39 // pred_fallthru
        _
    $region40: #{seq2seq_forward.13} parent=5 // pred_fallthru
      _
    %p236 = scmp.le.s32.totalorder 1, %s13
    %p237 = scmp.lt.s32.totalorder %s13, 3
    %p238 = pnand %p236, %p237
    %p239 = pneg %p238
    // Predicated region
    $region45: #{seq2seq_forward.13} parent=5 // pred_check
      _
    $region46: #{seq2seq_forward.13} parent=5 // pred_check_branch
      %241 = sbr.rel (%p238) target = $region48
    $region47: #{seq2seq_forward.13} parent=5 // pred_region
      %s242 = ssub.s32 %s13, 1
      %p243 = scmp.lt.s32.totalorder %s18, 1
      %s244 = scalar_select %p243, %s18, 1
      %s245 = smul.addr %s244, 2
      %s246 = smul.addr %s245, 8
      %s247 = scalar_lea.vmem %s0, %s246
      %p248 = pneg %p39
      %p249 = pneg %p36
      %p250 = pneg %p60
      %p251 = pneg %p57
      %p252 = pneg %p81
      %p253 = pneg %p78
      %p254 = pneg %p102
      %p255 = pneg %p99
      %p256 = pneg %p123
      %p257 = pneg %p120
      %p258 = pneg %p144
      %p259 = pneg %p141
      %p260 = pneg %p165
      %p261 = pneg %p162
      %p262 = pneg %p191
      %p263 = pneg %p188
      %p264 = scmp.lt.s32.totalorder %s18, 1
      %s265 = scalar_select %p264, %s18, 1
      %s266 = smul.addr %s265, 2
      %s267 = smul.addr %s266, 8
      %s268 = scalar_lea.vmem %s7, %s267
      %p269 = scmp.lt.s32.totalorder %s18, 1
      %s270 = scalar_select %p269, %s18, 1
      %s271 = smul.addr %s270, 2
      %s272 = smul.addr %s271, 8
      %s273 = scalar_lea.vmem %s0, %s272
      %p274 = scmp.lt.s32.totalorder %s18, 1
      %s275 = scalar_select %p274, %s18, 1
      %s276 = smul.addr %s275, 2
      %s277 = smul.addr %s276, 8
      %s278 = scalar_lea.vmem %s7, %s277
      %v280 = vld [vmem:[%s273] sm:$0xff]
      %v281 = vld [vmem:[%s273 + $0x8] sm:$0xf]
      %v282 = vpack.c.bf16 %v281, %v280
      %v283 = vld [vmem:[%s1] sm:$0xf]
      %v284 = vld [vmem:[%s1 + $0x4] sm:$0xf]
      %v285 = vld [vmem:[%s1 + $0x8] sm:$0xf]
      %v286 = vld [vmem:[%s1 + $0xc] sm:$0xf]
      %v287 = vld [vmem:[%s2] sm:$0x1]
      %v289 = vlaneseq
      %v290 = vshrl.u32 %v289, 7
      %v291 = vsub.s32 0, %v290
      %v292 = vrot.slane %v287, %v291
      %v298 = vunpack.c.l.b16 %v283
      %v299 = vunpack.c.l.b16 %v284
      %v300 = vunpack.c.l.b16 %v285
      %v301 = vunpack.c.l.b16 %v286
      %v302 = vpack.c.b16 %v299, %v298
      %v303 = vpack.c.b16 %v301, %v300
      %vm306 = vcmask 261120
      %v308 = vsel %vm306, %v282, 0
      %310 = vmatprep.subr.bf16.mxu0 0
      %311 = vmatpush1.bf16.msra.mxu0 0
      %312 = vmatprep.subr.bf16.mxu0 0
      %313 = vmatpush1.bf16.msra.mxu0 0
      %314 = vmatprep.subr.bf16.mxu0 0
      %315 = vmatpush1.bf16.msra.mxu0 0
      %316 = vmatprep.subr.bf16.mxu0 0
      %317 = vmatpush1.bf16.msra.mxu0 0
      %318 = vmatprep.subr.bf16.mxu0 0
      %319 = vmatpush1.bf16.msra.mxu0 0
      %320 = vmatprep.subr.bf16.mxu0 0
      %321 = vmatpush1.bf16.msra.mxu0 0
      %322 = vmatprep.subr.bf16.mxu0 0
      %323 = vmatpush1.bf16.msra.mxu0 %v303
      %324 = vmatprep.subr.bf16.mxu0 0
      %325 = vmatpush1.bf16.msra.mxu0 %v302
      %326 = vmatprep.subr.bf16.mxu0 0
      %327 = vmatpush2.bf16.msra.mxu0 0
      %328 = vmatprep.subr.bf16.mxu0 0
      %329 = vmatpush2.bf16.msra.mxu0 0
      %330 = vmatprep.subr.bf16.mxu0 0
      %331 = vmatpush2.bf16.msra.mxu0 0
      %332 = vmatprep.subr.bf16.mxu0 0
      %333 = vmatpush2.bf16.msra.mxu0 0
      %334 = vmatprep.subr.bf16.mxu0 0
      %335 = vmatpush2.bf16.msra.mxu0 0
      %336 = vmatprep.subr.bf16.mxu0 0
      %337 = vmatpush2.bf16.msra.mxu0 0
      %338 = vmatprep.subr.bf16.mxu0 0
      %339 = vmatpush2.bf16.msra.mxu0 0
      %340 = vmatprep.subr.bf16.mxu0 0
      %341 = vmatpush2.bf16.msra.mxu0 0
      %342 = vmatprep.mubr.bf16.mxu0 0
      %343 = vmatmul.mubr.bf16.gmra.mxu0 %v308
      %v344 = vpop.f32.mrf.mxu0
      %v345 = vadd.f32 %v292, %v344
      %v346 = vpop.f32.mrf.mxu0
      %v347 = vpop.f32.mrf.mxu0
      %v348 = vadd.f32 %v292, %v347
      %v349 = vpop.f32.mrf.mxu0
      %350 = vdwg.mxu0
      %v351 = vmax.f32 %v345, 0.0
      %v352 = vmax.f32 %v348, 0.0
      %v353 = vpack.c.bf16 %v352, %v351
      %v354 = vld [vmem:[%s3] sm:$0xf]
      %v355 = vld [vmem:[%s3 + $0x4] sm:$0xf]
      %v356 = vld [vmem:[%s3 + $0x8] sm:$0xf]
      %v357 = vld [vmem:[%s3 + $0xc] sm:$0xf]
      %v358 = vld [vmem:[%s3 + $0x10] sm:$0xf]
      %v359 = vld [vmem:[%s3 + $0x14] sm:$0xf]
      %v360 = vld [vmem:[%s3 + $0x18] sm:$0xf]
      %v361 = vld [vmem:[%s3 + $0x1c] sm:$0xf]
      %v362 = vld [vmem:[%s4] sm:$0x1]
      %v364 = vlaneseq
      %v365 = vshrl.u32 %v364, 7
      %v366 = vsub.s32 0, %v365
      %v367 = vrot.slane %v362, %v366
      %v377 = vunpack.c.l.b16 %v354
      %v378 = vunpack.c.l.b16 %v355
      %v379 = vunpack.c.l.b16 %v356
      %v380 = vunpack.c.l.b16 %v357
      %v381 = vunpack.c.l.b16 %v358
      %v382 = vunpack.c.l.b16 %v359
      %v383 = vunpack.c.l.b16 %v360
      %v384 = vunpack.c.l.b16 %v361
      %v385 = vpack.c.b16 %v378, %v377
      %v386 = vpack.c.b16 %v380, %v379
      %v387 = vpack.c.b16 %v382, %v381
      %v388 = vpack.c.b16 %v384, %v383
      %vm393 = vcmask 523264
      %v395 = vsel %vm393, %v353, 0
      %397 = vmatprep.subr.bf16.mxu0 0
      %398 = vmatpush1.bf16.msra.mxu0 0
      %399 = vmatprep.subr.bf16.mxu0 0
      %400 = vmatpush1.bf16.msra.mxu0 0
      %401 = vmatprep.subr.bf16.mxu0 0
      %402 = vmatpush1.bf16.msra.mxu0 0
      %403 = vmatprep.subr.bf16.mxu0 0
      %404 = vmatpush1.bf16.msra.mxu0 0
      %405 = vmatprep.subr.bf16.mxu0 0
      %406 = vmatpush1.bf16.msra.mxu0 %v388
      %407 = vmatprep.subr.bf16.mxu0 0
      %408 = vmatpush1.bf16.msra.mxu0 %v387
      %409 = vmatprep.subr.bf16.mxu0 0
      %410 = vmatpush1.bf16.msra.mxu0 %v386
      %411 = vmatprep.subr.bf16.mxu0 0
      %412 = vmatpush1.bf16.msra.mxu0 %v385
      %413 = vmatprep.subr.bf16.mxu0 0
      %414 = vmatpush2.bf16.msra.mxu0 0
      %415 = vmatprep.subr.bf16.mxu0 0
      %416 = vmatpush2.bf16.msra.mxu0 0
      %417 = vmatprep.subr.bf16.mxu0 0
      %418 = vmatpush2.bf16.msra.mxu0 0
      %419 = vmatprep.subr.bf16.mxu0 0
      %420 = vmatpush2.bf16.msra.mxu0 0
      %421 = vmatprep.subr.bf16.mxu0 0
      %422 = vmatpush2.bf16.msra.mxu0 0
      %423 = vmatprep.subr.bf16.mxu0 0
      %424 = vmatpush2.bf16.msra.mxu0 0
      %425 = vmatprep.subr.bf16.mxu0 0
      %426 = vmatpush2.bf16.msra.mxu0 0
      %427 = vmatprep.subr.bf16.mxu0 0
      %428 = vmatpush2.bf16.msra.mxu0 0
      %429 = vmatprep.mubr.bf16.mxu0 0
      %430 = vmatmul.mubr.bf16.gmra.mxu0 %v395
      %v431 = vpop.f32.mrf.mxu0
      %v432 = vadd.f32 %v367, %v431
      %v433 = vpop.f32.mrf.mxu0
      %v434 = vpop.f32.mrf.mxu0
      %v435 = vadd.f32 %v367, %v434
      %v436 = vpop.f32.mrf.mxu0
      %437 = vdwg.mxu0
      %v438 = vadd.f32 %v280, %v432
      %v439 = vadd.f32 %v281, %v435
      %v440 = vsel %vm306, %v438, 0.0
      %441 = vadd.xlane.f32.xlu0 %v440
      %v442 = vpop.xlane.xlu0 %441
      %vm443 = vcmask 257024
      %v444 = vsel %vm443, %v439, 0.0
      %445 = vadd.xlane.f32.xlu0 %v444
      %v446 = vpop.xlane.xlu0 %445
      %v447 = vrcp.pop 32.0
      %v448 = vmul.f32 %v442, %v447
      %v449 = vmul.f32 %v446, %v447
      %v450 = vsub.f32 %v438, %v448
      %v451 = vsub.f32 %v439, %v449
      %v452 = vmul.f32 %v450, %v450
      %v453 = vmul.f32 %v451, %v451
      %v454 = vsel %vm306, %v452, 0.0
      %455 = vadd.xlane.f32.xlu0 %v454
      %v456 = vpop.xlane.xlu0 %455
      %v457 = vsel %vm443, %v453, 0.0
      %458 = vadd.xlane.f32.xlu0 %v457
      %v459 = vpop.xlane.xlu0 %458
      %v460 = vmul.f32 %v456, %v447
      %v461 = vmul.f32 %v459, %v447
      %v462 = vadd.f32 %v460, 1e-05
      %v463 = vadd.f32 %v461, 1e-05
      %v464 = vrsqrt.pop %v462
      %v465 = vrsqrt.pop %v463
      %v466 = vmul.f32 %v450, %v464
      %v467 = vmul.f32 %v451, %v465
      %v468 = vld [vmem:[%s5] sm:$0x1]
      %v470 = vlaneseq
      %v471 = vshrl.u32 %v470, 7
      %v472 = vsub.s32 0, %v471
      %v473 = vrot.slane %v468, %v472
      %v475 = vmul.f32 %v466, %v473
      %v476 = vmul.f32 %v467, %v473
      %v477 = vld [vmem:[%s6] sm:$0x1]
      %v479 = vlaneseq
      %v480 = vshrl.u32 %v479, 7
      %v481 = vsub.s32 0, %v480
      %v482 = vrot.slane %v477, %v481
      %v484 = vadd.f32 %v475, %v482
      %v485 = vadd.f32 %v476, %v482
      %486 = vst.msk [vmem:[%s278] sm:$0xff] %vm306, %v484
      %487 = vst.msk [vmem:[%s278 + $0x8] sm:$0xf] %vm443, %v485
      %p488 = scmp.lt.s32.totalorder %s18, 1
      %s489 = scalar_select %p488, %s18, 1
      %s490 = smul.addr %s489, 2
      %s491 = smul.addr %s490, 8
      %s492 = scalar_lea.vmem %s7, %s491
      // Predicated region
      $region49: #{seq2seq_forward.13} parent=47 // pred_check
        %p493 = pneg %p188
      $region50: #{seq2seq_forward.13} parent=47 // pred_check_branch
        %495 = sbr.rel (%p493) target = $region52
      $region51: #{seq2seq_forward.13} parent=47 // pred_region
        _
      $region52: #{seq2seq_forward.13} parent=47 // pred_fallthru
        _
    $region48: #{seq2seq_forward.13} parent=5 // pred_fallthru
      _
    %p496 = scmp.le.s32.totalorder 2, %s13
    // Predicated region
    $region53: #{seq2seq_forward.13} parent=5 // pred_check
      %p497 = pneg %p496
    $region54: #{seq2seq_forward.13} parent=5 // pred_check_branch
      %499 = sbr.rel (%p497) target = $region56
    $region55: #{seq2seq_forward.13} parent=5 // pred_region
      %s500 = ssub.s32 %s13, 2
      // Predicated region
      $region57: #{seq2seq_forward.13} parent=55 // pred_check
        %p501 = pneg %p194
      $region58: #{seq2seq_forward.13} parent=55 // pred_check_branch
        %503 = sbr.rel (%p501) target = $region60
      $region59: #{seq2seq_forward.13} parent=55 // pred_region
        %p504 = scmp.lt.s32.totalorder %s19, 1
        %s505 = scalar_select %p504, %s19, 1
        %s506 = smul.addr %s505, 2
        %s507 = smul.addr %s506, 8
        %s508 = scalar_lea.vmem %s7, %s507
      $region60: #{seq2seq_forward.13} parent=55 // pred_fallthru
        _
    $region56: #{seq2seq_forward.13} parent=5 // pred_fallthru
      _
  $region6: #{seq2seq_forward.13} parent=0 // loop_footer
    %s17 = sadd.s32 1, %s13
  $region7: #{seq2seq_forward.13} parent=0 // loop_footer_branch
    %12 = sbr.rel target = $region3
  $region8: #{seq2seq_forward.13} parent=0 // loop_exit
    _

// kernel: seq2seq_forward.12
$region0: #{seq2seq_forward.12}
  #allocation0 [shape = 'u32[]', space=smem, size = 0x4, offset = 0x4, fixed_abs, tag = 'smem constant byte address 0x4 - core index']
  #allocation1 [shape = 'u32[144,128]{1,0:T(1,128)}', space=vmem, size = 0x12000, scoped, tag = 'internal scratch']
  %s0 = inlined_call_operand.vmem [shape: f32[2,12,32], index: 0, kind: input, shape index: {}, may-alias: {0,1}]
  %s1 = inlined_call_operand.vmem [shape: f32[2,12,32], index: 1, kind: input, shape index: {}, may-alias: {0,1}]
  %s2 = inlined_call_operand.vmem [shape: bf16[32,96], index: 2, kind: input, shape index: {}]
  %s3 = inlined_call_operand.vmem [shape: f32[1,96], index: 3, kind: input, shape index: {}]
  %s4 = inlined_call_operand.vmem [shape: bf16[32,32], index: 4, kind: input, shape index: {}]
  %s5 = inlined_call_operand.vmem [shape: f32[1,32], index: 5, kind: input, shape index: {}]
  %s6 = inlined_call_operand.vmem [shape: f32[12,12], index: 6, kind: input, shape index: {}]
  %s7 = inlined_call_operand.vmem [shape: f32[2,1,12], index: 7, kind: input, shape index: {}]
  %s8 = inlined_call_operand.vmem [shape: f32[1,32], index: 8, kind: input, shape index: {}]
  %s9 = inlined_call_operand.vmem [shape: f32[1,32], index: 9, kind: input, shape index: {}]
  %s10 = inlined_call_operand.vmem [shape: f32[2,12,32], index: 10, kind: output, shape index: {}]
  %s11 = sld [smem:[#allocation0]]
  $region73: #{seq2seq_forward.12} parent=0
    _
  %s13 = ssub.s32 1, %s11
  %s14 = scalar_select 0, %s13, %s11
  loop: start=0, step=1, limit=4
  $region2: #{seq2seq_forward.12} parent=0 // loop_pre_header
    _
  $region3: #{seq2seq_forward.12} parent=0 // loop_header
    %s16 = sphi 0, %s20
    %p17 = scmp.ge.s32.totalorder %s16, 4
    %s26 = sphi 0, %s28
    %s29 = sphi 0, %s26
    %s30 = sphi 0, %s29
    %s46 = sphi 0, %s30
    %s52 = sphi 0, %s54
    %s55 = sphi 0, %s52
    %s56 = sphi 0, %s55
    %s72 = sphi 0, %s56
    %s76 = sphi 0, %s76
    %s78 = sphi 0, %s76
    %s79 = sphi 0, %s78
    %s93 = sphi 0, %s79
    %s97 = sphi 0, %s97
    %s99 = sphi 0, %s97
    %s100 = sphi 0, %s99
    %s114 = sphi 0, %s100
    %s118 = sphi 0, %s118
    %s120 = sphi 0, %s118
    %s121 = sphi 0, %s120
    %s135 = sphi 0, %s121
    %s139 = sphi 0, %s139
    %s141 = sphi 0, %s139
    %s142 = sphi 0, %s141
    %s156 = sphi 0, %s142
    %s160 = sphi 0, %s160
    %s162 = sphi 0, %s160
    %s163 = sphi 0, %s162
    %s177 = sphi 0, %s163
    %s183 = sphi 0, %s185
    %s186 = sphi 0, %s183
    %s187 = sphi 0, %s186
    %s203 = sphi 0, %s187
    %s207 = sphi 0, %s207
    %s209 = sphi 0, %s207
    %s210 = sphi 0, %s209
    %s224 = sphi 0, %s210
    %s228 = sphi 0, %s228
    %s230 = sphi 0, %s228
    %s231 = sphi 0, %s230
    %s245 = sphi 0, %s231
    %s251 = sphi 0, %s253
    %s254 = sphi 0, %s251
    %s255 = sphi 0, %s254
    %s271 = sphi 0, %s255
  $region4: #{seq2seq_forward.12} parent=0 // loop_header_branch
    %19 = sbr.rel (%p17) target = $region8
  $region5: #{seq2seq_forward.12} parent=0 // loop_body
    %s21 = ssub.s32 %s16, 1
    %s22 = ssub.s32 %s16, 2
    %s23 = sadd.s32 %s16, 1
    %s24 = ssub.s32 %s16, %s23
    %p25 = scmp.eq.s32.totalorder %s24, 0
    %s27 = sadd.s32 %s26, 1
    %s28 = scalar_select %p25, %s26, %s27
    %p31 = pneg %p25
    %p32 = scmp.eq.s32.totalorder %s16, 1
    %p33 = por %p31, %p32
    %p34 = scmp.ne.s32.totalorder %s26, %s29
    %p35 = scmp.eq.s32.totalorder %s16, 0
    %p36 = por %p34, %p35
    %p37 = scmp.ne.s32.totalorder %s26, %s29
    %p38 = scmp.eq.s32.totalorder %s21, 1
    %p39 = por %p37, %p38
    %p40 = scmp.ne.s32.totalorder %s29, %s30
    %p41 = scmp.eq.s32.totalorder %s21, 0
    %p42 = por %p40, %p41
    %p43 = scmp.ne.s32.totalorder %s29, %s30
    %p44 = scmp.eq.s32.totalorder %s22, 1
    %p45 = por %p43, %p44
    %p47 = scmp.ne.s32.totalorder %s30, %s46
    %p48 = scmp.eq.s32.totalorder %s22, 0
    %p49 = por %p47, %p48
    %s50 = ssub.s32 %s16, %s23
    %p51 = scmp.eq.s32.totalorder %s50, 0
    %s53 = sadd.s32 %s52, 1
    %s54 = scalar_select %p51, %s52, %s53
    %p57 = pneg %p51
    %p58 = scmp.eq.s32.totalorder %s16, 1
    %p59 = por %p57, %p58
    %p60 = scmp.ne.s32.totalorder %s52, %s55
    %p61 = scmp.eq.s32.totalorder %s16, 0
    %p62 = por %p60, %p61
    %p63 = scmp.ne.s32.totalorder %s52, %s55
    %p64 = scmp.eq.s32.totalorder %s21, 1
    %p65 = por %p63, %p64
    %p66 = scmp.ne.s32.totalorder %s55, %s56
    %p67 = scmp.eq.s32.totalorder %s21, 0
    %p68 = por %p66, %p67
    %p69 = scmp.ne.s32.totalorder %s55, %s56
    %p70 = scmp.eq.s32.totalorder %s22, 1
    %p71 = por %p69, %p70
    %p73 = scmp.ne.s32.totalorder %s56, %s72
    %p74 = scmp.eq.s32.totalorder %s22, 0
    %p75 = por %p73, %p74
    %s77 = sadd.s32 %s76, 1
    %p80 = scmp.eq.s32.totalorder %s16, 1
    %p81 = scmp.ne.s32.totalorder %s76, %s78
    %p82 = scmp.eq.s32.totalorder %s16, 0
    %p83 = por %p81, %p82
    %p84 = scmp.ne.s32.totalorder %s76, %s78
    %p85 = scmp.eq.s32.totalorder %s21, 1
    %p86 = por %p84, %p85
    %p87 = scmp.ne.s32.totalorder %s78, %s79
    %p88 = scmp.eq.s32.totalorder %s21, 0
    %p89 = por %p87, %p88
    %p90 = scmp.ne.s32.totalorder %s78, %s79
    %p91 = scmp.eq.s32.totalorder %s22, 1
    %p92 = por %p90, %p91
    %p94 = scmp.ne.s32.totalorder %s79, %s93
    %p95 = scmp.eq.s32.totalorder %s22, 0
    %p96 = por %p94, %p95
    %s98 = sadd.s32 %s97, 1
    %p101 = scmp.eq.s32.totalorder %s16, 1
    %p102 = scmp.ne.s32.totalorder %s97, %s99
    %p103 = scmp.eq.s32.totalorder %s16, 0
    %p104 = por %p102, %p103
    %p105 = scmp.ne.s32.totalorder %s97, %s99
    %p106 = scmp.eq.s32.totalorder %s21, 1
    %p107 = por %p105, %p106
    %p108 = scmp.ne.s32.totalorder %s99, %s100
    %p109 = scmp.eq.s32.totalorder %s21, 0
    %p110 = por %p108, %p109
    %p111 = scmp.ne.s32.totalorder %s99, %s100
    %p112 = scmp.eq.s32.totalorder %s22, 1
    %p113 = por %p111, %p112
    %p115 = scmp.ne.s32.totalorder %s100, %s114
    %p116 = scmp.eq.s32.totalorder %s22, 0
    %p117 = por %p115, %p116
    %s119 = sadd.s32 %s118, 1
    %p122 = scmp.eq.s32.totalorder %s16, 1
    %p123 = scmp.ne.s32.totalorder %s118, %s120
    %p124 = scmp.eq.s32.totalorder %s16, 0
    %p125 = por %p123, %p124
    %p126 = scmp.ne.s32.totalorder %s118, %s120
    %p127 = scmp.eq.s32.totalorder %s21, 1
    %p128 = por %p126, %p127
    %p129 = scmp.ne.s32.totalorder %s120, %s121
    %p130 = scmp.eq.s32.totalorder %s21, 0
    %p131 = por %p129, %p130
    %p132 = scmp.ne.s32.totalorder %s120, %s121
    %p133 = scmp.eq.s32.totalorder %s22, 1
    %p134 = por %p132, %p133
    %p136 = scmp.ne.s32.totalorder %s121, %s135
    %p137 = scmp.eq.s32.totalorder %s22, 0
    %p138 = por %p136, %p137
    %s140 = sadd.s32 %s139, 1
    %p143 = scmp.eq.s32.totalorder %s16, 1
    %p144 = scmp.ne.s32.totalorder %s139, %s141
    %p145 = scmp.eq.s32.totalorder %s16, 0
    %p146 = por %p144, %p145
    %p147 = scmp.ne.s32.totalorder %s139, %s141
    %p148 = scmp.eq.s32.totalorder %s21, 1
    %p149 = por %p147, %p148
    %p150 = scmp.ne.s32.totalorder %s141, %s142
    %p151 = scmp.eq.s32.totalorder %s21, 0
    %p152 = por %p150, %p151
    %p153 = scmp.ne.s32.totalorder %s141, %s142
    %p154 = scmp.eq.s32.totalorder %s22, 1
    %p155 = por %p153, %p154
    %p157 = scmp.ne.s32.totalorder %s142, %s156
    %p158 = scmp.eq.s32.totalorder %s22, 0
    %p159 = por %p157, %p158
    %s161 = sadd.s32 %s160, 1
    %p164 = scmp.eq.s32.totalorder %s16, 1
    %p165 = scmp.ne.s32.totalorder %s160, %s162
    %p166 = scmp.eq.s32.totalorder %s16, 0
    %p167 = por %p165, %p166
    %p168 = scmp.ne.s32.totalorder %s160, %s162
    %p169 = scmp.eq.s32.totalorder %s21, 1
    %p170 = por %p168, %p169
    %p171 = scmp.ne.s32.totalorder %s162, %s163
    %p172 = scmp.eq.s32.totalorder %s21, 0
    %p173 = por %p171, %p172
    %p174 = scmp.ne.s32.totalorder %s162, %s163
    %p175 = scmp.eq.s32.totalorder %s22, 1
    %p176 = por %p174, %p175
    %p178 = scmp.ne.s32.totalorder %s163, %s177
    %p179 = scmp.eq.s32.totalorder %s22, 0
    %p180 = por %p178, %p179
    %s181 = ssub.s32 %s16, %s23
    %p182 = scmp.eq.s32.totalorder %s181, 0
    %s184 = sadd.s32 %s183, 1
    %s185 = scalar_select %p182, %s183, %s184
    %p188 = pneg %p182
    %p189 = scmp.eq.s32.totalorder %s16, 1
    %p190 = por %p188, %p189
    %p191 = scmp.ne.s32.totalorder %s183, %s186
    %p192 = scmp.eq.s32.totalorder %s16, 0
    %p193 = por %p191, %p192
    %p194 = scmp.ne.s32.totalorder %s183, %s186
    %p195 = scmp.eq.s32.totalorder %s21, 1
    %p196 = por %p194, %p195
    %p197 = scmp.ne.s32.totalorder %s186, %s187
    %p198 = scmp.eq.s32.totalorder %s21, 0
    %p199 = por %p197, %p198
    %p200 = scmp.ne.s32.totalorder %s186, %s187
    %p201 = scmp.eq.s32.totalorder %s22, 1
    %p202 = por %p200, %p201
    %p204 = scmp.ne.s32.totalorder %s187, %s203
    %p205 = scmp.eq.s32.totalorder %s22, 0
    %p206 = por %p204, %p205
    %s208 = sadd.s32 %s207, 1
    %p211 = scmp.eq.s32.totalorder %s16, 1
    %p212 = scmp.ne.s32.totalorder %s207, %s209
    %p213 = scmp.eq.s32.totalorder %s16, 0
    %p214 = por %p212, %p213
    %p215 = scmp.ne.s32.totalorder %s207, %s209
    %p216 = scmp.eq.s32.totalorder %s21, 1
    %p217 = por %p215, %p216
    %p218 = scmp.ne.s32.totalorder %s209, %s210
    %p219 = scmp.eq.s32.totalorder %s21, 0
    %p220 = por %p218, %p219
    %p221 = scmp.ne.s32.totalorder %s209, %s210
    %p222 = scmp.eq.s32.totalorder %s22, 1
    %p223 = por %p221, %p222
    %p225 = scmp.ne.s32.totalorder %s210, %s224
    %p226 = scmp.eq.s32.totalorder %s22, 0
    %p227 = por %p225, %p226
    %s229 = sadd.s32 %s228, 1
    %p232 = scmp.eq.s32.totalorder %s16, 1
    %p233 = scmp.ne.s32.totalorder %s228, %s230
    %p234 = scmp.eq.s32.totalorder %s16, 0
    %p235 = por %p233, %p234
    %p236 = scmp.ne.s32.totalorder %s228, %s230
    %p237 = scmp.eq.s32.totalorder %s21, 1
    %p238 = por %p236, %p237
    %p239 = scmp.ne.s32.totalorder %s230, %s231
    %p240 = scmp.eq.s32.totalorder %s21, 0
    %p241 = por %p239, %p240
    %p242 = scmp.ne.s32.totalorder %s230, %s231
    %p243 = scmp.eq.s32.totalorder %s22, 1
    %p244 = por %p242, %p243
    %p246 = scmp.ne.s32.totalorder %s231, %s245
    %p247 = scmp.eq.s32.totalorder %s22, 0
    %p248 = por %p246, %p247
    %s249 = ssub.s32 %s16, %s23
    %p250 = scmp.eq.s32.totalorder %s249, 0
    %s252 = sadd.s32 %s251, 1
    %s253 = scalar_select %p250, %s251, %s252
    %p256 = pneg %p250
    %p257 = scmp.eq.s32.totalorder %s16, 1
    %p258 = por %p256, %p257
    %p259 = scmp.ne.s32.totalorder %s251, %s254
    %p260 = scmp.eq.s32.totalorder %s16, 0
    %p261 = por %p259, %p260
    %p262 = scmp.ne.s32.totalorder %s251, %s254
    %p263 = scmp.eq.s32.totalorder %s21, 1
    %p264 = por %p262, %p263
    %p265 = scmp.ne.s32.totalorder %s254, %s255
    %p266 = scmp.eq.s32.totalorder %s21, 0
    %p267 = por %p265, %p266
    %p268 = scmp.ne.s32.totalorder %s254, %s255
    %p269 = scmp.eq.s32.totalorder %s22, 1
    %p270 = por %p268, %p269
    %p272 = scmp.ne.s32.totalorder %s255, %s271
    %p273 = scmp.eq.s32.totalorder %s22, 0
    %p274 = por %p272, %p273
    %p275 = scmp.le.s32.totalorder 1, %s16
    %p276 = scmp.lt.s32.totalorder %s16, 3
    %p277 = pnand %p275, %p276
    %p278 = pneg %p277
    // Predicated region
    $region9: #{seq2seq_forward.12} parent=5 // pred_check
      _
    $region10: #{seq2seq_forward.12} parent=5 // pred_check_branch
      %280 = sbr.rel (%p277) target = $region12
    $region11: #{seq2seq_forward.12} parent=5 // pred_region
      %s281 = ssub.s32 %s16, 1
      // Predicated region
      $region13: #{seq2seq_forward.12} parent=11 // pred_check
        %p282 = pneg %p89
      $region14: #{seq2seq_forward.12} parent=11 // pred_check_branch
        %284 = sbr.rel (%p282) target = $region16
      $region15: #{seq2seq_forward.12} parent=11 // pred_region
        _
      $region16: #{seq2seq_forward.12} parent=11 // pred_fallthru
        _
      // Predicated region
      $region17: #{seq2seq_forward.12} parent=11 // pred_check
        %p285 = pneg %p110
      $region18: #{seq2seq_forward.12} parent=11 // pred_check_branch
        %287 = sbr.rel (%p285) target = $region20
      $region19: #{seq2seq_forward.12} parent=11 // pred_region
        _
      $region20: #{seq2seq_forward.12} parent=11 // pred_fallthru
        _
      // Predicated region
      $region21: #{seq2seq_forward.12} parent=11 // pred_check
        %p288 = pneg %p131
      $region22: #{seq2seq_forward.12} parent=11 // pred_check_branch
        %290 = sbr.rel (%p288) target = $region24
      $region23: #{seq2seq_forward.12} parent=11 // pred_region
        _
      $region24: #{seq2seq_forward.12} parent=11 // pred_fallthru
        _
      // Predicated region
      $region25: #{seq2seq_forward.12} parent=11 // pred_check
        %p291 = pneg %p152
      $region26: #{seq2seq_forward.12} parent=11 // pred_check_branch
        %293 = sbr.rel (%p291) target = $region28
      $region27: #{seq2seq_forward.12} parent=11 // pred_region
        _
      $region28: #{seq2seq_forward.12} parent=11 // pred_fallthru
        _
      // Predicated region
      $region29: #{seq2seq_forward.12} parent=11 // pred_check
        %p294 = pneg %p173
      $region30: #{seq2seq_forward.12} parent=11 // pred_check_branch
        %296 = sbr.rel (%p294) target = $region32
      $region31: #{seq2seq_forward.12} parent=11 // pred_region
        _
      $region32: #{seq2seq_forward.12} parent=11 // pred_fallthru
        _
      // Predicated region
      $region33: #{seq2seq_forward.12} parent=11 // pred_check
        %p297 = pneg %p220
      $region34: #{seq2seq_forward.12} parent=11 // pred_check_branch
        %299 = sbr.rel (%p297) target = $region36
      $region35: #{seq2seq_forward.12} parent=11 // pred_region
        _
      $region36: #{seq2seq_forward.12} parent=11 // pred_fallthru
        _
      // Predicated region
      $region37: #{seq2seq_forward.12} parent=11 // pred_check
        %p300 = pneg %p241
      $region38: #{seq2seq_forward.12} parent=11 // pred_check_branch
        %302 = sbr.rel (%p300) target = $region40
      $region39: #{seq2seq_forward.12} parent=11 // pred_region
        _
      $region40: #{seq2seq_forward.12} parent=11 // pred_fallthru
        _
    $region12: #{seq2seq_forward.12} parent=5 // pred_fallthru
      _
    %p303 = scmp.lt.s32.totalorder %s16, 2
    // Predicated region
    $region41: #{seq2seq_forward.12} parent=5 // pred_check
      %p304 = pneg %p303
    $region42: #{seq2seq_forward.12} parent=5 // pred_check_branch
      %306 = sbr.rel (%p304) target = $region44
    $region43: #{seq2seq_forward.12} parent=5 // pred_region
      // Predicated region
      $region45: #{seq2seq_forward.12} parent=43 // pred_check
        %p307 = pneg %p36
      $region46: #{seq2seq_forward.12} parent=43 // pred_check_branch
        %309 = sbr.rel (%p307) target = $region48
      $region47: #{seq2seq_forward.12} parent=43 // pred_region
        %p310 = scmp.lt.s32.totalorder %s16, 1
        %s311 = scalar_select %p310, %s16, 1
        %s312 = smul.addr %s311, 2
        %s313 = smul.addr %s312, 8
        %s314 = scalar_lea.vmem %s0, %s313
      $region48: #{seq2seq_forward.12} parent=43 // pred_fallthru
        _
      // Predicated region
      $region49: #{seq2seq_forward.12} parent=43 // pred_check
        %p315 = pneg %p62
      $region50: #{seq2seq_forward.12} parent=43 // pred_check_branch
        %317 = sbr.rel (%p315) target = $region52
      $region51: #{seq2seq_forward.12} parent=43 // pred_region
        %p318 = scmp.lt.s32.totalorder %s16, 1
        %s319 = scalar_select %p318, %s16, 1
        %s320 = smul.addr %s319, 2
        %s321 = smul.addr %s320, 8
        %s322 = scalar_lea.vmem %s1, %s321
      $region52: #{seq2seq_forward.12} parent=43 // pred_fallthru
        _
      // Predicated region
      $region53: #{seq2seq_forward.12} parent=43 // pred_check
        %p323 = pneg %p193
      $region54: #{seq2seq_forward.12} parent=43 // pred_check_branch
        %325 = sbr.rel (%p323) target = $region56
      $region55: #{seq2seq_forward.12} parent=43 // pred_region
        %p326 = scmp.lt.s32.totalorder %s16, 1
        %s327 = scalar_select %p326, %s16, 1
        %s328 = scalar_lea.vmem %s7, %s327
      $region56: #{seq2seq_forward.12} parent=43 // pred_fallthru
        _
    $region44: #{seq2seq_forward.12} parent=5 // pred_fallthru
      _
    %p329 = scmp.le.s32.totalorder 1, %s16
    %p330 = scmp.lt.s32.totalorder %s16, 3
    %p331 = pnand %p329, %p330
    %p332 = pneg %p331
    // Predicated region
    $region57: #{seq2seq_forward.12} parent=5 // pred_check
      _
    $region58: #{seq2seq_forward.12} parent=5 // pred_check_branch
      %334 = sbr.rel (%p331) target = $region60
    $region59: #{seq2seq_forward.12} parent=5 // pred_region
      %s335 = ssub.s32 %s16, 1
      %p336 = scmp.lt.s32.totalorder %s21, 1
      %s337 = scalar_select %p336, %s21, 1
      %s338 = smul.addr %s337, 2
      %s339 = smul.addr %s338, 8
      %s340 = scalar_lea.vmem %s0, %s339
      %p341 = pneg %p42
      %p342 = pneg %p39
      %p343 = scmp.lt.s32.totalorder %s21, 1
      %s344 = scalar_select %p343, %s21, 1
      %s345 = smul.addr %s344, 2
      %s346 = smul.addr %s345, 8
      %s347 = scalar_lea.vmem %s1, %s346
      %p348 = pneg %p68
      %p349 = pneg %p65
      %p350 = pneg %p89
      %p351 = pneg %p86
      %p352 = pneg %p110
      %p353 = pneg %p107
      %p354 = pneg %p131
      %p355 = pneg %p128
      %p356 = pneg %p152
      %p357 = pneg %p149
      %p358 = pneg %p173
      %p359 = pneg %p170
      %p360 = scmp.lt.s32.totalorder %s21, 1
      %s361 = scalar_select %p360, %s21, 1
      %s362 = scalar_lea.vmem %s7, %s361
      %p363 = pneg %p199
      %p364 = pneg %p196
      %p365 = pneg %p220
      %p366 = pneg %p217
      %p367 = pneg %p241
      %p368 = pneg %p238
      %p369 = pneg %p267
      %p370 = pneg %p264
      %p371 = scmp.lt.s32.totalorder %s21, 1
      %s372 = scalar_select %p371, %s21, 1
      %s373 = smul.addr %s372, 2
      %s374 = smul.addr %s373, 8
      %s375 = scalar_lea.vmem %s10, %s374
      %p376 = scmp.lt.s32.totalorder %s21, 1
      %s377 = scalar_select %p376, %s21, 1
      %s378 = smul.addr %s377, 2
      %s379 = smul.addr %s378, 8
      %s380 = scalar_lea.vmem %s0, %s379
      %p381 = scmp.lt.s32.totalorder %s21, 1
      %s382 = scalar_select %p381, %s21, 1
      %s383 = smul.addr %s382, 2
      %s384 = smul.addr %s383, 8
      %s385 = scalar_lea.vmem %s1, %s384
      %p386 = scmp.lt.s32.totalorder %s21, 1
      %s387 = scalar_select %p386, %s21, 1
      %s388 = scalar_lea.vmem %s7, %s387
      %p389 = scmp.lt.s32.totalorder %s21, 1
      %s390 = scalar_select %p389, %s21, 1
      %s391 = smul.addr %s390, 2
      %s392 = smul.addr %s391, 8
      %s393 = scalar_lea.vmem %s10, %s392
      %v395 = vld [vmem:[%s380] sm:$0xff]
      %v396 = vld [vmem:[%s380 + $0x8] sm:$0xf]
      %v397 = vld [vmem:[%s385] sm:$0xff]
      %v398 = vld [vmem:[%s385 + $0x8] sm:$0xf]
      %v399 = vld [vmem:[%s2] sm:$0xf]
      %v400 = vld [vmem:[%s2 + $0x4] sm:$0xf]
      %v401 = vld [vmem:[%s2 + $0x8] sm:$0xf]
      %v402 = vld [vmem:[%s2 + $0xc] sm:$0xf]
      %v403 = vld [vmem:[%s3] sm:$0x1]
      %v404 = vld [vmem:[%s4] sm:$0xf]
      %v405 = vld [vmem:[%s4 + $0x4] sm:$0xf]
      %v406 = vld [vmem:[%s4 + $0x8] sm:$0xf]
      %v407 = vld [vmem:[%s4 + $0xc] sm:$0xf]
      %v408 = vld [vmem:[%s6] sm:$0xff]
      %v409 = vld [vmem:[%s6 + $0x8] sm:$0xf]
      %v410 = vld [vmem:[%s388] sm:$0x1]
      %v412 = vlaneseq
      %v413 = vshrl.u32 %v412, 7
      %v414 = vsub.s32 0, %v413
      %v415 = vrot.slane %v410, %v414
      %v417 = vadd.f32 %v408, %v415
      %v418 = vadd.f32 %v409, %v415
      %v419 = vpack.c.bf16 %v396, %v395
      %v420 = vpack.c.bf16 %v398, %v397
      %v422 = vlaneseq
      %v423 = vshrl.u32 %v422, 7
      %v424 = vsub.s32 0, %v423
      %v425 = vrot.slane %v403, %v424
      %v431 = vunpack.c.l.b16 %v399
      %v432 = vunpack.c.l.b16 %v400
      %v433 = vunpack.c.l.b16 %v401
      %v434 = vunpack.c.l.b16 %v402
      %v435 = vpack.c.b16 %v432, %v431
      %v436 = vpack.c.b16 %v434, %v433
      %vm439 = vcmask 261120
      %v441 = vsel %vm439, %v419, 0
      %443 = vmatprep.subr.bf16.mxu0 0
      %444 = vmatpush1.bf16.msra.mxu0 0
      %445 = vmatprep.subr.bf16.mxu0 0
      %446 = vmatpush1.bf16.msra.mxu0 0
      %447 = vmatprep.subr.bf16.mxu0 0
      %448 = vmatpush1.bf16.msra.mxu0 0
      %449 = vmatprep.subr.bf16.mxu0 0
      %450 = vmatpush1.bf16.msra.mxu0 0
      %451 = vmatprep.subr.bf16.mxu0 0
      %452 = vmatpush1.bf16.msra.mxu0 0
      %453 = vmatprep.subr.bf16.mxu0 0
      %454 = vmatpush1.bf16.msra.mxu0 0
      %455 = vmatprep.subr.bf16.mxu0 0
      %456 = vmatpush1.bf16.msra.mxu0 %v436
      %457 = vmatprep.subr.bf16.mxu0 0
      %458 = vmatpush1.bf16.msra.mxu0 %v435
      %459 = vmatprep.subr.bf16.mxu0 0
      %460 = vmatpush2.bf16.msra.mxu0 0
      %461 = vmatprep.subr.bf16.mxu0 0
      %462 = vmatpush2.bf16.msra.mxu0 0
      %463 = vmatprep.subr.bf16.mxu0 0
      %464 = vmatpush2.bf16.msra.mxu0 0
      %465 = vmatprep.subr.bf16.mxu0 0
      %466 = vmatpush2.bf16.msra.mxu0 0
      %467 = vmatprep.subr.bf16.mxu0 0
      %468 = vmatpush2.bf16.msra.mxu0 0
      %469 = vmatprep.subr.bf16.mxu0 0
      %470 = vmatpush2.bf16.msra.mxu0 0
      %471 = vmatprep.subr.bf16.mxu0 0
      %472 = vmatpush2.bf16.msra.mxu0 0
      %473 = vmatprep.subr.bf16.mxu0 0
      %474 = vmatpush2.bf16.msra.mxu0 0
      %475 = vmatprep.mubr.bf16.mxu0 0
      %476 = vmatmul.mubr.bf16.gmra.mxu0 %v441
      %v477 = vpop.f32.mrf.mxu0
      %v478 = vadd.f32 %v425, %v477
      %v479 = vpop.f32.mrf.mxu0
      %v480 = vpop.f32.mrf.mxu0
      %v481 = vadd.f32 %v425, %v480
      %v482 = vpop.f32.mrf.mxu0
      %483 = vdwg.mxu0
      %484 = vrot.lane.b32.xlu0 %v435, 96
      %v485 = vpop.permute.xlu0 %484
      %486 = vrot.lane.b32.xlu0 %v436, 96
      %v487 = vpop.permute.xlu0 %486
      %490 = vrot.lane.b32.xlu0 %v425, 96
      %v491 = vpop.permute.xlu0 %490
      %v494 = vsel %vm439, %v420, 0
      %496 = vmatprep.subr.bf16.mxu0 0
      %497 = vmatpush1.bf16.msra.mxu0 0
      %498 = vmatprep.subr.bf16.mxu0 0
      %499 = vmatpush1.bf16.msra.mxu0 0
      %500 = vmatprep.subr.bf16.mxu0 0
      %501 = vmatpush1.bf16.msra.mxu0 0
      %502 = vmatprep.subr.bf16.mxu0 0
      %503 = vmatpush1.bf16.msra.mxu0 0
      %504 = vmatprep.subr.bf16.mxu0 0
      %505 = vmatpush1.bf16.msra.mxu0 0
      %506 = vmatprep.subr.bf16.mxu0 0
      %507 = vmatpush1.bf16.msra.mxu0 0
      %508 = vmatprep.subr.bf16.mxu0 0
      %509 = vmatpush1.bf16.msra.mxu0 %v487
      %510 = vmatprep.subr.bf16.mxu0 0
      %511 = vmatpush1.bf16.msra.mxu0 %v485
      %512 = vmatprep.subr.bf16.mxu0 0
      %513 = vmatpush2.bf16.msra.mxu0 0
      %514 = vmatprep.subr.bf16.mxu0 0
      %515 = vmatpush2.bf16.msra.mxu0 0
      %516 = vmatprep.subr.bf16.mxu0 0
      %517 = vmatpush2.bf16.msra.mxu0 0
      %518 = vmatprep.subr.bf16.mxu0 0
      %519 = vmatpush2.bf16.msra.mxu0 0
      %520 = vmatprep.subr.bf16.mxu0 0
      %521 = vmatpush2.bf16.msra.mxu0 0
      %522 = vmatprep.subr.bf16.mxu0 0
      %523 = vmatpush2.bf16.msra.mxu0 0
      %524 = vmatprep.subr.bf16.mxu0 0
      %525 = vmatpush2.bf16.msra.mxu0 0
      %526 = vmatprep.subr.bf16.mxu0 0
      %527 = vmatpush2.bf16.msra.mxu0 0
      %528 = vmatprep.mubr.bf16.mxu0 0
      %529 = vmatmul.mubr.bf16.gmra.mxu0 %v494
      %v530 = vpop.f32.mrf.mxu0
      %v531 = vadd.f32 %v491, %v530
      %v532 = vpop.f32.mrf.mxu0
      %v533 = vpop.f32.mrf.mxu0
      %v534 = vadd.f32 %v491, %v533
      %v535 = vpop.f32.mrf.mxu0
      %536 = vdwg.mxu0
      %v537 = vld [vmem:[%s5] sm:$0x1]
      %v538 = vpack.c.bf16 %v481, %v478
      %v539 = vpack.c.bf16 %v534, %v531
      %vm540 = vcmask 64512
      %v542 = vsel %vm540, %v538, 0
      %v545 = vsel %vm540, %v539, 0
      %547 = vmatprep.subr.bf16.mxu0 0
      %548 = vmatpush1.bf16.xpose.msra.mxu0 0
      %549 = vmatprep.subr.bf16.mxu0 0
      %550 = vmatpush1.bf16.xpose.msra.mxu0 0
      %551 = vmatprep.subr.bf16.mxu0 0
      %552 = vmatpush1.bf16.xpose.msra.mxu0 0
      %553 = vmatprep.subr.bf16.mxu0 0
      %554 = vmatpush1.bf16.xpose.msra.mxu0 0
      %555 = vmatprep.subr.bf16.mxu0 0
      %556 = vmatpush1.bf16.xpose.msra.mxu0 0
      %557 = vmatprep.subr.bf16.mxu0 0
      %558 = vmatpush1.bf16.xpose.msra.mxu0 0
      %559 = vmatprep.subr.bf16.mxu0 0
      %560 = vmatpush1.bf16.xpose.msra.mxu0 0
      %561 = vmatprep.subr.bf16.mxu0 0
      %562 = vmatpush1.bf16.xpose.msra.mxu0 %v545
      %563 = vmatprep.subr.bf16.mxu0 0
      %564 = vmatpush2.bf16.xpose.msra.mxu0 0
      %565 = vmatprep.subr.bf16.mxu0 0
      %566 = vmatpush2.bf16.xpose.msra.mxu0 0
      %567 = vmatprep.subr.bf16.mxu0 0
      %568 = vmatpush2.bf16.xpose.msra.mxu0 0
      %569 = vmatprep.subr.bf16.mxu0 0
      %570 = vmatpush2.bf16.xpose.msra.mxu0 0
      %571 = vmatprep.subr.bf16.mxu0 0
      %572 = vmatpush2.bf16.xpose.msra.mxu0 0
      %573 = vmatprep.subr.bf16.mxu0 0
      %574 = vmatpush2.bf16.xpose.msra.mxu0 0
      %575 = vmatprep.subr.bf16.mxu0 0
      %576 = vmatpush2.bf16.xpose.msra.mxu0 0
      %577 = vmatprep.subr.bf16.mxu0 0
      %578 = vmatpush2.bf16.xpose.msra.mxu0 0
      %579 = vmatprep.mubr.bf16.mxu0 0
      %580 = vmatmul.mubr.bf16.gmra.mxu0 %v542
      %v581 = vpop.f32.mrf.mxu0
      %v582 = vadd.f32 0.0, %v581
      %v583 = vpop.f32.mrf.mxu0
      %v584 = vpop.f32.mrf.mxu0
      %v585 = vadd.f32 0.0, %v584
      %v586 = vpop.f32.mrf.mxu0
      %587 = vdwg.mxu0
      %v588 = vmul.f32 %v582, 0.35355338
      %v589 = vmul.f32 %v585, 0.35355338
      %v590 = vadd.f32 %v588, %v417
      %v591 = vadd.f32 %v589, %v418
      %vm592 = vcmask 97280
      %v593 = vsel %vm592, %v590, -inf
      %594 = vmax.xlane.f32.xlu0 %v593
      %v595 = vpop.xlane.xlu0 %594
      %vm596 = vcmask 93184
      %v597 = vsel %vm596, %v591, -inf
      %598 = vmax.xlane.f32.xlu0 %v597
      %v599 = vpop.xlane.xlu0 %598
      %v600 = vsub.f32 %v590, %v595
      %v601 = vsub.f32 %v591, %v599
      %v602 = vmul.f32 %v600, 1.442695
      %v603 = vpow.pop %v602
      %v604 = vmul.f32 %v601, 1.442695
      %v605 = vpow.pop %v604
      %v606 = vsel %vm592, %v603, 0.0
      %607 = vadd.xlane.f32.xlu0 %v606
      %v608 = vpop.xlane.xlu0 %607
      %v609 = vsel %vm596, %v605, 0.0
      %610 = vadd.xlane.f32.xlu0 %v609
      %v611 = vpop.xlane.xlu0 %610
      %v612 = vrcp.pop %v608
      %v613 = vrcp.pop %v611
      %v614 = vmul.f32 %v603, %v612
      %v615 = vmul.f32 %v605, %v613
      %v616 = vpack.c.bf16 %v615, %v614
      %618 = vrot.lane.b32.xlu0 %v539, 96
      %v619 = vpop.permute.xlu0 %618
      %v621 = vsel %vm592, %v616, 0
      %vm623 = vcmask 1045504
      %v625 = vsel %vm623, %v619, 0
      %627 = vmatprep.subr.bf16.mxu0 0
      %628 = vmatpush1.bf16.msra.mxu0 0
      %629 = vmatprep.subr.bf16.mxu0 0
      %630 = vmatpush1.bf16.msra.mxu0 0
      %631 = vmatprep.subr.bf16.mxu0 0
      %632 = vmatpush1.bf16.msra.mxu0 0
      %633 = vmatprep.subr.bf16.mxu0 0
      %634 = vmatpush1.bf16.msra.mxu0 0
      %635 = vmatprep.subr.bf16.mxu0 0
      %636 = vmatpush1.bf16.msra.mxu0 0
      %637 = vmatprep.subr.bf16.mxu0 0
      %638 = vmatpush1.bf16.msra.mxu0 0
      %639 = vmatprep.subr.bf16.mxu0 0
      %640 = vmatpush1.bf16.msra.mxu0 0
      %641 = vmatprep.subr.bf16.mxu0 0
      %642 = vmatpush1.bf16.msra.mxu0 %v625
      %643 = vmatprep.subr.bf16.mxu0 0
      %644 = vmatpush2.bf16.msra.mxu0 0
      %645 = vmatprep.subr.bf16.mxu0 0
      %646 = vmatpush2.bf16.msra.mxu0 0
      %647 = vmatprep.subr.bf16.mxu0 0
      %648 = vmatpush2.bf16.msra.mxu0 0
      %649 = vmatprep.subr.bf16.mxu0 0
      %650 = vmatpush2.bf16.msra.mxu0 0
      %651 = vmatprep.subr.bf16.mxu0 0
      %652 = vmatpush2.bf16.msra.mxu0 0
      %653 = vmatprep.subr.bf16.mxu0 0
      %654 = vmatpush2.bf16.msra.mxu0 0
      %655 = vmatprep.subr.bf16.mxu0 0
      %656 = vmatpush2.bf16.msra.mxu0 0
      %657 = vmatprep.subr.bf16.mxu0 0
      %658 = vmatpush2.bf16.msra.mxu0 0
      %659 = vmatprep.mubr.bf16.mxu0 0
      %660 = vmatmul.mubr.bf16.gmra.mxu0 %v621
      %v661 = vpop.f32.mrf.mxu0
      %v662 = vadd.f32 0.0, %v661
      %v663 = vpop.f32.mrf.mxu0
      %v664 = vpop.f32.mrf.mxu0
      %v665 = vadd.f32 0.0, %v664
      %v666 = vpop.f32.mrf.mxu0
      %667 = vdwg.mxu0
      %v668 = vpack.c.bf16 %v665, %v662
      %v670 = vsel %vm540, %v668, 0
      %vm672 = vcmask 1043456
      %v674 = vsel %vm672, %v404, 0
      %676 = vmatprep.subr.bf16.mxu0 0
      %677 = vmatpush1.bf16.msra.mxu0 0
      %678 = vmatprep.subr.bf16.mxu0 0
      %679 = vmatpush1.bf16.msra.mxu0 0
      %680 = vmatprep.subr.bf16.mxu0 0
      %681 = vmatpush1.bf16.msra.mxu0 0
      %682 = vmatprep.subr.bf16.mxu0 0
      %683 = vmatpush1.bf16.msra.mxu0 0
      %684 = vmatprep.subr.bf16.mxu0 0
      %685 = vmatpush1.bf16.msra.mxu0 0
      %686 = vmatprep.subr.bf16.mxu0 0
      %687 = vmatpush1.bf16.msra.mxu0 0
      %688 = vmatprep.subr.bf16.mxu0 0
      %689 = vmatpush1.bf16.msra.mxu0 0
      %690 = vmatprep.subr.bf16.mxu0 0
      %691 = vmatpush1.bf16.msra.mxu0 %v674
      %692 = vmatprep.subr.bf16.mxu0 0
      %693 = vmatpush2.bf16.msra.mxu0 0
      %694 = vmatprep.subr.bf16.mxu0 0
      %695 = vmatpush2.bf16.msra.mxu0 0
      %696 = vmatprep.subr.bf16.mxu0 0
      %697 = vmatpush2.bf16.msra.mxu0 0
      %698 = vmatprep.subr.bf16.mxu0 0
      %699 = vmatpush2.bf16.msra.mxu0 0
      %700 = vmatprep.subr.bf16.mxu0 0
      %701 = vmatpush2.bf16.msra.mxu0 0
      %702 = vmatprep.subr.bf16.mxu0 0
      %703 = vmatpush2.bf16.msra.mxu0 0
      %704 = vmatprep.subr.bf16.mxu0 0
      %705 = vmatpush2.bf16.msra.mxu0 0
      %706 = vmatprep.subr.bf16.mxu0 0
      %707 = vmatpush2.bf16.msra.mxu0 0
      %708 = vmatprep.mubr.bf16.mxu0 0
      %709 = vmatmul.mubr.bf16.gmra.mxu0 %v670
      %v710 = vpop.f32.mrf.mxu0
      %v711 = vadd.f32 0.0, %v710
      %v712 = vpop.f32.mrf.mxu0
      %v713 = vpop.f32.mrf.mxu0
      %v714 = vadd.f32 0.0, %v713
      %v715 = vpop.f32.mrf.mxu0
      %716 = vdwg.mxu0
      %v718 = vlaneseq
      %v719 = vshrl.u32 %v718, 7
      %v720 = vsub.s32 0, %v719
      %v721 = vrot.slane %v537, %v720
      %v723 = vadd.f32 %v721, %v711
      %v724 = vadd.f32 %v721, %v714
      %726 = vrot.lane.b32.xlu0 %v538, 120
      %v727 = vpop.permute.xlu0 %726
      %728 = vrot.lane.b32.xlu0 %v539, 120
      %v729 = vpop.permute.xlu0 %728
      %v731 = vsel %vm540, %v727, 0
      %v734 = vsel %vm540, %v729, 0
      %736 = vmatprep.subr.bf16.mxu0 0
      %737 = vmatpush1.bf16.xpose.msra.mxu0 0
      %738 = vmatprep.subr.bf16.mxu0 0
      %739 = vmatpush1.bf16.xpose.msra.mxu0 0
      %740 = vmatprep.subr.bf16.mxu0 0
      %741 = vmatpush1.bf16.xpose.msra.mxu0 0
      %742 = vmatprep.subr.bf16.mxu0 0
      %743 = vmatpush1.bf16.xpose.msra.mxu0 0
      %744 = vmatprep.subr.bf16.mxu0 0
      %745 = vmatpush1.bf16.xpose.msra.mxu0 0
      %746 = vmatprep.subr.bf16.mxu0 0
      %747 = vmatpush1.bf16.xpose.msra.mxu0 0
      %748 = vmatprep.subr.bf16.mxu0 0
      %749 = vmatpush1.bf16.xpose.msra.mxu0 0
      %750 = vmatprep.subr.bf16.mxu0 0
      %751 = vmatpush1.bf16.xpose.msra.mxu0 %v734
      %752 = vmatprep.subr.bf16.mxu0 0
      %753 = vmatpush2.bf16.xpose.msra.mxu0 0
      %754 = vmatprep.subr.bf16.mxu0 0
      %755 = vmatpush2.bf16.xpose.msra.mxu0 0
      %756 = vmatprep.subr.bf16.mxu0 0
      %757 = vmatpush2.bf16.xpose.msra.mxu0 0
      %758 = vmatprep.subr.bf16.mxu0 0
      %759 = vmatpush2.bf16.xpose.msra.mxu0 0
      %760 = vmatprep.subr.bf16.mxu0 0
      %761 = vmatpush2.bf16.xpose.msra.mxu0 0
      %762 = vmatprep.subr.bf16.mxu0 0
      %763 = vmatpush2.bf16.xpose.msra.mxu0 0
      %764 = vmatprep.subr.bf16.mxu0 0
      %765 = vmatpush2.bf16.xpose.msra.mxu0 0
      %766 = vmatprep.subr.bf16.mxu0 0
      %767 = vmatpush2.bf16.xpose.msra.mxu0 0
      %768 = vmatprep.mubr.bf16.mxu0 0
      %769 = vmatmul.mubr.bf16.gmra.mxu0 %v731
      %v770 = vpop.f32.mrf.mxu0
      %v771 = vadd.f32 0.0, %v770
      %v772 = vpop.f32.mrf.mxu0
      %v773 = vpop.f32.mrf.mxu0
      %v774 = vadd.f32 0.0, %v773
      %v775 = vpop.f32.mrf.mxu0
      %776 = vdwg.mxu0
      %v777 = vmul.f32 %v771, 0.35355338
      %v778 = vmul.f32 %v774, 0.35355338
      %v779 = vadd.f32 %v777, %v417
      %v780 = vadd.f32 %v778, %v418
      %v781 = vsel %vm592, %v779, -inf
      %782 = vmax.xlane.f32.xlu0 %v781
      %v783 = vpop.xlane.xlu0 %782
      %v784 = vsel %vm596, %v780, -inf
      %785 = vmax.xlane.f32.xlu0 %v784
      %v786 = vpop.xlane.xlu0 %785
      %v787 = vsub.f32 %v779, %v783
      %v788 = vsub.f32 %v780, %v786
      %v789 = vmul.f32 %v787, 1.442695
      %v790 = vpow.pop %v789
      %v791 = vmul.f32 %v788, 1.442695
      %v792 = vpow.pop %v791
      %v793 = vsel %vm592, %v790, 0.0
      %794 = vadd.xlane.f32.xlu0 %v793
      %v795 = vpop.xlane.xlu0 %794
      %v796 = vsel %vm596, %v792, 0.0
      %797 = vadd.xlane.f32.xlu0 %v796
      %v798 = vpop.xlane.xlu0 %797
      %v799 = vrcp.pop %v795
      %v800 = vrcp.pop %v798
      %v801 = vmul.f32 %v790, %v799
      %v802 = vmul.f32 %v792, %v800
      %v803 = vpack.c.bf16 %v802, %v801
      %804 = vrot.lane.b32.xlu0 %v539, 88
      %v805 = vpop.permute.xlu0 %804
      %v807 = vsel %vm592, %v803, 0
      %v810 = vsel %vm623, %v805, 0
      %812 = vmatprep.subr.bf16.mxu0 0
      %813 = vmatpush1.bf16.msra.mxu0 0
      %814 = vmatprep.subr.bf16.mxu0 0
      %815 = vmatpush1.bf16.msra.mxu0 0
      %816 = vmatprep.subr.bf16.mxu0 0
      %817 = vmatpush1.bf16.msra.mxu0 0
      %818 = vmatprep.subr.bf16.mxu0 0
      %819 = vmatpush1.bf16.msra.mxu0 0
      %820 = vmatprep.subr.bf16.mxu0 0
      %821 = vmatpush1.bf16.msra.mxu0 0
      %822 = vmatprep.subr.bf16.mxu0 0
      %823 = vmatpush1.bf16.msra.mxu0 0
      %824 = vmatprep.subr.bf16.mxu0 0
      %825 = vmatpush1.bf16.msra.mxu0 0
      %826 = vmatprep.subr.bf16.mxu0 0
      %827 = vmatpush1.bf16.msra.mxu0 %v810
      %828 = vmatprep.subr.bf16.mxu0 0
      %829 = vmatpush2.bf16.msra.mxu0 0
      %830 = vmatprep.subr.bf16.mxu0 0
      %831 = vmatpush2.bf16.msra.mxu0 0
      %832 = vmatprep.subr.bf16.mxu0 0
      %833 = vmatpush2.bf16.msra.mxu0 0
      %834 = vmatprep.subr.bf16.mxu0 0
      %835 = vmatpush2.bf16.msra.mxu0 0
      %836 = vmatprep.subr.bf16.mxu0 0
      %837 = vmatpush2.bf16.msra.mxu0 0
      %838 = vmatprep.subr.bf16.mxu0 0
      %839 = vmatpush2.bf16.msra.mxu0 0
      %840 = vmatprep.subr.bf16.mxu0 0
      %841 = vmatpush2.bf16.msra.mxu0 0
      %842 = vmatprep.subr.bf16.mxu0 0
      %843 = vmatpush2.bf16.msra.mxu0 0
      %844 = vmatprep.mubr.bf16.mxu0 0
      %845 = vmatmul.mubr.bf16.gmra.mxu0 %v807
      %v846 = vpop.f32.mrf.mxu0
      %v847 = vadd.f32 0.0, %v846
      %v848 = vpop.f32.mrf.mxu0
      %v849 = vpop.f32.mrf.mxu0
      %v850 = vadd.f32 0.0, %v849
      %v851 = vpop.f32.mrf.mxu0
      %852 = vdwg.mxu0
      %v853 = vpack.c.bf16 %v850, %v847
      %v855 = vsel %vm540, %v853, 0
      %v858 = vsel %vm672, %v405, 0
      %860 = vmatprep.subr.bf16.mxu0 0
      %861 = vmatpush1.bf16.msra.mxu0 0
      %862 = vmatprep.subr.bf16.mxu0 0
      %863 = vmatpush1.bf16.msra.mxu0 0
      %864 = vmatprep.subr.bf16.mxu0 0
      %865 = vmatpush1.bf16.msra.mxu0 0
      %866 = vmatprep.subr.bf16.mxu0 0
      %867 = vmatpush1.bf16.msra.mxu0 0
      %868 = vmatprep.subr.bf16.mxu0 0
      %869 = vmatpush1.bf16.msra.mxu0 0
      %870 = vmatprep.subr.bf16.mxu0 0
      %871 = vmatpush1.bf16.msra.mxu0 0
      %872 = vmatprep.subr.bf16.mxu0 0
      %873 = vmatpush1.bf16.msra.mxu0 0
      %874 = vmatprep.subr.bf16.mxu0 0
      %875 = vmatpush1.bf16.msra.mxu0 %v858
      %876 = vmatprep.subr.bf16.mxu0 0
      %877 = vmatpush2.bf16.msra.mxu0 0
      %878 = vmatprep.subr.bf16.mxu0 0
      %879 = vmatpush2.bf16.msra.mxu0 0
      %880 = vmatprep.subr.bf16.mxu0 0
      %881 = vmatpush2.bf16.msra.mxu0 0
      %882 = vmatprep.subr.bf16.mxu0 0
      %883 = vmatpush2.bf16.msra.mxu0 0
      %884 = vmatprep.subr.bf16.mxu0 0
      %885 = vmatpush2.bf16.msra.mxu0 0
      %886 = vmatprep.subr.bf16.mxu0 0
      %887 = vmatpush2.bf16.msra.mxu0 0
      %888 = vmatprep.subr.bf16.mxu0 0
      %889 = vmatpush2.bf16.msra.mxu0 0
      %890 = vmatprep.subr.bf16.mxu0 0
      %891 = vmatpush2.bf16.msra.mxu0 0
      %892 = vmatprep.mubr.bf16.mxu0 0
      %893 = vmatmul.mubr.bf16.gmra.mxu0 %v855
      %v894 = vpop.f32.mrf.mxu0
      %v895 = vadd.f32 0.0, %v894
      %v896 = vpop.f32.mrf.mxu0
      %v897 = vpop.f32.mrf.mxu0
      %v898 = vadd.f32 0.0, %v897
      %v899 = vpop.f32.mrf.mxu0
      %900 = vdwg.mxu0
      %v901 = vadd.f32 %v723, %v895
      %v902 = vadd.f32 %v724, %v898
      %903 = vrot.lane.b32.xlu0 %v538, 112
      %v904 = vpop.permute.xlu0 %903
      %905 = vrot.lane.b32.xlu0 %v539, 112
      %v906 = vpop.permute.xlu0 %905
      %v908 = vsel %vm540, %v904, 0
      %v911 = vsel %vm540, %v906, 0
      %913 = vmatprep.subr.bf16.mxu0 0
      %914 = vmatpush1.bf16.xpose.msra.mxu0 0
      %915 = vmatprep.subr.bf16.mxu0 0
      %916 = vmatpush1.bf16.xpose.msra.mxu0 0
      %917 = vmatprep.subr.bf16.mxu0 0
      %918 = vmatpush1.bf16.xpose.msra.mxu0 0
      %919 = vmatprep.subr.bf16.mxu0 0
      %920 = vmatpush1.bf16.xpose.msra.mxu0 0
      %921 = vmatprep.subr.bf16.mxu0 0
      %922 = vmatpush1.bf16.xpose.msra.mxu0 0
      %923 = vmatprep.subr.bf16.mxu0 0
      %924 = vmatpush1.bf16.xpose.msra.mxu0 0
      %925 = vmatprep.subr.bf16.mxu0 0
      %926 = vmatpush1.bf16.xpose.msra.mxu0 0
      %927 = vmatprep.subr.bf16.mxu0 0
      %928 = vmatpush1.bf16.xpose.msra.mxu0 %v911
      %929 = vmatprep.subr.bf16.mxu0 0
      %930 = vmatpush2.bf16.xpose.msra.mxu0 0
      %931 = vmatprep.subr.bf16.mxu0 0
      %932 = vmatpush2.bf16.xpose.msra.mxu0 0
      %933 = vmatprep.subr.bf16.mxu0 0
      %934 = vmatpush2.bf16.xpose.msra.mxu0 0
      %935 = vmatprep.subr.bf16.mxu0 0
      %936 = vmatpush2.bf16.xpose.msra.mxu0 0
      %937 = vmatprep.subr.bf16.mxu0 0
      %938 = vmatpush2.bf16.xpose.msra.mxu0 0
      %939 = vmatprep.subr.bf16.mxu0 0
      %940 = vmatpush2.bf16.xpose.msra.mxu0 0
      %941 = vmatprep.subr.bf16.mxu0 0
      %942 = vmatpush2.bf16.xpose.msra.mxu0 0
      %943 = vmatprep.subr.bf16.mxu0 0
      %944 = vmatpush2.bf16.xpose.msra.mxu0 0
      %945 = vmatprep.mubr.bf16.mxu0 0
      %946 = vmatmul.mubr.bf16.gmra.mxu0 %v908
      %v947 = vpop.f32.mrf.mxu0
      %v948 = vadd.f32 0.0, %v947
      %v949 = vpop.f32.mrf.mxu0
      %v950 = vpop.f32.mrf.mxu0
      %v951 = vadd.f32 0.0, %v950
      %v952 = vpop.f32.mrf.mxu0
      %953 = vdwg.mxu0
      %v954 = vmul.f32 %v948, 0.35355338
      %v955 = vmul.f32 %v951, 0.35355338
      %v956 = vadd.f32 %v954, %v417
      %v957 = vadd.f32 %v955, %v418
      %v958 = vsel %vm592, %v956, -inf
      %959 = vmax.xlane.f32.xlu0 %v958
      %v960 = vpop.xlane.xlu0 %959
      %v961 = vsel %vm596, %v957, -inf
      %962 = vmax.xlane.f32.xlu0 %v961
      %v963 = vpop.xlane.xlu0 %962
      %v964 = vsub.f32 %v956, %v960
      %v965 = vsub.f32 %v957, %v963
      %v966 = vmul.f32 %v964, 1.442695
      %v967 = vpow.pop %v966
      %v968 = vmul.f32 %v965, 1.442695
      %v969 = vpow.pop %v968
      %v970 = vsel %vm592, %v967, 0.0
      %971 = vadd.xlane.f32.xlu0 %v970
      %v972 = vpop.xlane.xlu0 %971
      %v973 = vsel %vm596, %v969, 0.0
      %974 = vadd.xlane.f32.xlu0 %v973
      %v975 = vpop.xlane.xlu0 %974
      %v976 = vrcp.pop %v972
      %v977 = vrcp.pop %v975
      %v978 = vmul.f32 %v967, %v976
      %v979 = vmul.f32 %v969, %v977
      %v980 = vpack.c.bf16 %v979, %v978
      %981 = vrot.lane.b32.xlu0 %v539, 80
      %v982 = vpop.permute.xlu0 %981
      %v984 = vsel %vm592, %v980, 0
      %v987 = vsel %vm623, %v982, 0
      %989 = vmatprep.subr.bf16.mxu0 0
      %990 = vmatpush1.bf16.msra.mxu0 0
      %991 = vmatprep.subr.bf16.mxu0 0
      %992 = vmatpush1.bf16.msra.mxu0 0
      %993 = vmatprep.subr.bf16.mxu0 0
      %994 = vmatpush1.bf16.msra.mxu0 0
      %995 = vmatprep.subr.bf16.mxu0 0
      %996 = vmatpush1.bf16.msra.mxu0 0
      %997 = vmatprep.subr.bf16.mxu0 0
      %998 = vmatpush1.bf16.msra.mxu0 0
      %999 = vmatprep.subr.bf16.mxu0 0
      %1000 = vmatpush1.bf16.msra.mxu0 0
      %1001 = vmatprep.subr.bf16.mxu0 0
      %1002 = vmatpush1.bf16.msra.mxu0 0
      %1003 = vmatprep.subr.bf16.mxu0 0
      %1004 = vmatpush1.bf16.msra.mxu0 %v987
      %1005 = vmatprep.subr.bf16.mxu0 0
      %1006 = vmatpush2.bf16.msra.mxu0 0
      %1007 = vmatprep.subr.bf16.mxu0 0
      %1008 = vmatpush2.bf16.msra.mxu0 0
      %1009 = vmatprep.subr.bf16.mxu0 0
      %1010 = vmatpush2.bf16.msra.mxu0 0
      %1011 = vmatprep.subr.bf16.mxu0 0
      %1012 = vmatpush2.bf16.msra.mxu0 0
      %1013 = vmatprep.subr.bf16.mxu0 0
      %1014 = vmatpush2.bf16.msra.mxu0 0
      %1015 = vmatprep.subr.bf16.mxu0 0
      %1016 = vmatpush2.bf16.msra.mxu0 0
      %1017 = vmatprep.subr.bf16.mxu0 0
      %1018 = vmatpush2.bf16.msra.mxu0 0
      %1019 = vmatprep.subr.bf16.mxu0 0
      %1020 = vmatpush2.bf16.msra.mxu0 0
      %1021 = vmatprep.mubr.bf16.mxu0 0
      %1022 = vmatmul.mubr.bf16.gmra.mxu0 %v984
      %v1023 = vpop.f32.mrf.mxu0
      %v1024 = vadd.f32 0.0, %v1023
      %v1025 = vpop.f32.mrf.mxu0
      %v1026 = vpop.f32.mrf.mxu0
      %v1027 = vadd.f32 0.0, %v1026
      %v1028 = vpop.f32.mrf.mxu0
      %1029 = vdwg.mxu0
      %v1030 = vpack.c.bf16 %v1027, %v1024
      %v1032 = vsel %vm540, %v1030, 0
      %v1035 = vsel %vm672, %v406, 0
      %1037 = vmatprep.subr.bf16.mxu0 0
      %1038 = vmatpush1.bf16.msra.mxu0 0
      %1039 = vmatprep.subr.bf16.mxu0 0
      %1040 = vmatpush1.bf16.msra.mxu0 0
      %1041 = vmatprep.subr.bf16.mxu0 0
      %1042 = vmatpush1.bf16.msra.mxu0 0
      %1043 = vmatprep.subr.bf16.mxu0 0
      %1044 = vmatpush1.bf16.msra.mxu0 0
      %1045 = vmatprep.subr.bf16.mxu0 0
      %1046 = vmatpush1.bf16.msra.mxu0 0
      %1047 = vmatprep.subr.bf16.mxu0 0
      %1048 = vmatpush1.bf16.msra.mxu0 0
      %1049 = vmatprep.subr.bf16.mxu0 0
      %1050 = vmatpush1.bf16.msra.mxu0 0
      %1051 = vmatprep.subr.bf16.mxu0 0
      %1052 = vmatpush1.bf16.msra.mxu0 %v1035
      %1053 = vmatprep.subr.bf16.mxu0 0
      %1054 = vmatpush2.bf16.msra.mxu0 0
      %1055 = vmatprep.subr.bf16.mxu0 0
      %1056 = vmatpush2.bf16.msra.mxu0 0
      %1057 = vmatprep.subr.bf16.mxu0 0
      %1058 = vmatpush2.bf16.msra.mxu0 0
      %1059 = vmatprep.subr.bf16.mxu0 0
      %1060 = vmatpush2.bf16.msra.mxu0 0
      %1061 = vmatprep.subr.bf16.mxu0 0
      %1062 = vmatpush2.bf16.msra.mxu0 0
      %1063 = vmatprep.subr.bf16.mxu0 0
      %1064 = vmatpush2.bf16.msra.mxu0 0
      %1065 = vmatprep.subr.bf16.mxu0 0
      %1066 = vmatpush2.bf16.msra.mxu0 0
      %1067 = vmatprep.subr.bf16.mxu0 0
      %1068 = vmatpush2.bf16.msra.mxu0 0
      %1069 = vmatprep.mubr.bf16.mxu0 0
      %1070 = vmatmul.mubr.bf16.gmra.mxu0 %v1032
      %v1071 = vpop.f32.mrf.mxu0
      %v1072 = vadd.f32 0.0, %v1071
      %v1073 = vpop.f32.mrf.mxu0
      %v1074 = vpop.f32.mrf.mxu0
      %v1075 = vadd.f32 0.0, %v1074
      %v1076 = vpop.f32.mrf.mxu0
      %1077 = vdwg.mxu0
      %v1078 = vadd.f32 %v901, %v1072
      %v1079 = vadd.f32 %v902, %v1075
      %1080 = vrot.lane.b32.xlu0 %v538, 104
      %v1081 = vpop.permute.xlu0 %1080
      %1082 = vrot.lane.b32.xlu0 %v539, 104
      %v1083 = vpop.permute.xlu0 %1082
      %v1085 = vsel %vm540, %v1081, 0
      %v1088 = vsel %vm540, %v1083, 0
      %1090 = vmatprep.subr.bf16.mxu0 0
      %1091 = vmatpush1.bf16.xpose.msra.mxu0 0
      %1092 = vmatprep.subr.bf16.mxu0 0
      %1093 = vmatpush1.bf16.xpose.msra.mxu0 0
      %1094 = vmatprep.subr.bf16.mxu0 0
      %1095 = vmatpush1.bf16.xpose.msra.mxu0 0
      %1096 = vmatprep.subr.bf16.mxu0 0
      %1097 = vmatpush1.bf16.xpose.msra.mxu0 0
      %1098 = vmatprep.subr.bf16.mxu0 0
      %1099 = vmatpush1.bf16.xpose.msra.mxu0 0
      %1100 = vmatprep.subr.bf16.mxu0 0
      %1101 = vmatpush1.bf16.xpose.msra.mxu0 0
      %1102 = vmatprep.subr.bf16.mxu0 0
      %1103 = vmatpush1.bf16.xpose.msra.mxu0 0
      %1104 = vmatprep.subr.bf16.mxu0 0
      %1105 = vmatpush1.bf16.xpose.msra.mxu0 %v1088
      %1106 = vmatprep.subr.bf16.mxu0 0
      %1107 = vmatpush2.bf16.xpose.msra.mxu0 0
      %1108 = vmatprep.subr.bf16.mxu0 0
      %1109 = vmatpush2.bf16.xpose.msra.mxu0 0
      %1110 = vmatprep.subr.bf16.mxu0 0
      %1111 = vmatpush2.bf16.xpose.msra.mxu0 0
      %1112 = vmatprep.subr.bf16.mxu0 0
      %1113 = vmatpush2.bf16.xpose.msra.mxu0 0
      %1114 = vmatprep.subr.bf16.mxu0 0
      %1115 = vmatpush2.bf16.xpose.msra.mxu0 0
      %1116 = vmatprep.subr.bf16.mxu0 0
      %1117 = vmatpush2.bf16.xpose.msra.mxu0 0
      %1118 = vmatprep.subr.bf16.mxu0 0
      %1119 = vmatpush2.bf16.xpose.msra.mxu0 0
      %1120 = vmatprep.subr.bf16.mxu0 0
      %1121 = vmatpush2.bf16.xpose.msra.mxu0 0
      %1122 = vmatprep.mubr.bf16.mxu0 0
      %1123 = vmatmul.mubr.bf16.gmra.mxu0 %v1085
      %v1124 = vpop.f32.mrf.mxu0
      %v1125 = vadd.f32 0.0, %v1124
      %v1126 = vpop.f32.mrf.mxu0
      %v1127 = vpop.f32.mrf.mxu0
      %v1128 = vadd.f32 0.0, %v1127
      %v1129 = vpop.f32.mrf.mxu0
      %1130 = vdwg.mxu0
      %v1131 = vmul.f32 %v1125, 0.35355338
      %v1132 = vmul.f32 %v1128, 0.35355338
      %v1133 = vadd.f32 %v1131, %v417
      %v1134 = vadd.f32 %v1132, %v418
      %v1135 = vsel %vm592, %v1133, -inf
      %1136 = vmax.xlane.f32.xlu0 %v1135
      %v1137 = vpop.xlane.xlu0 %1136
      %v1138 = vsel %vm596, %v1134, -inf
      %1139 = vmax.xlane.f32.xlu0 %v1138
      %v1140 = vpop.xlane.xlu0 %1139
      %v1141 = vsub.f32 %v1133, %v1137
      %v1142 = vsub.f32 %v1134, %v1140
      %v1143 = vmul.f32 %v1141, 1.442695
      %v1144 = vpow.pop %v1143
      %v1145 = vmul.f32 %v1142, 1.442695
      %v1146 = vpow.pop %v1145
      %v1147 = vsel %vm592, %v1144, 0.0
      %1148 = vadd.xlane.f32.xlu0 %v1147
      %v1149 = vpop.xlane.xlu0 %1148
      %v1150 = vsel %vm596, %v1146, 0.0
      %1151 = vadd.xlane.f32.xlu0 %v1150
      %v1152 = vpop.xlane.xlu0 %1151
      %v1153 = vrcp.pop %v1149
      %v1154 = vrcp.pop %v1152
      %v1155 = vmul.f32 %v1144, %v1153
      %v1156 = vmul.f32 %v1146, %v1154
      %v1157 = vpack.c.bf16 %v1156, %v1155
      %1158 = vrot.lane.b32.xlu0 %v539, 72
      %v1159 = vpop.permute.xlu0 %1158
      %v1161 = vsel %vm592, %v1157, 0
      %v1164 = vsel %vm623, %v1159, 0
      %1166 = vmatprep.subr.bf16.mxu0 0
      %1167 = vmatpush1.bf16.msra.mxu0 0
      %1168 = vmatprep.subr.bf16.mxu0 0
      %1169 = vmatpush1.bf16.msra.mxu0 0
      %1170 = vmatprep.subr.bf16.mxu0 0
      %1171 = vmatpush1.bf16.msra.mxu0 0
      %1172 = vmatprep.subr.bf16.mxu0 0
      %1173 = vmatpush1.bf16.msra.mxu0 0
      %1174 = vmatprep.subr.bf16.mxu0 0
      %1175 = vmatpush1.bf16.msra.mxu0 0
      %1176 = vmatprep.subr.bf16.mxu0 0
      %1177 = vmatpush1.bf16.msra.mxu0 0
      %1178 = vmatprep.subr.bf16.mxu0 0
      %1179 = vmatpush1.bf16.msra.mxu0 0
      %1180 = vmatprep.subr.bf16.mxu0 0
      %1181 = vmatpush1.bf16.msra.mxu0 %v1164
      %1182 = vmatprep.subr.bf16.mxu0 0
      %1183 = vmatpush2.bf16.msra.mxu0 0
      %1184 = vmatprep.subr.bf16.mxu0 0
      %1185 = vmatpush2.bf16.msra.mxu0 0
      %1186 = vmatprep.subr.bf16.mxu0 0
      %1187 = vmatpush2.bf16.msra.mxu0 0
      %1188 = vmatprep.subr.bf16.mxu0 0
      %1189 = vmatpush2.bf16.msra.mxu0 0
      %1190 = vmatprep.subr.bf16.mxu0 0
      %1191 = vmatpush2.bf16.msra.mxu0 0
      %1192 = vmatprep.subr.bf16.mxu0 0
      %1193 = vmatpush2.bf16.msra.mxu0 0
      %1194 = vmatprep.subr.bf16.mxu0 0
      %1195 = vmatpush2.bf16.msra.mxu0 0
      %1196 = vmatprep.subr.bf16.mxu0 0
      %1197 = vmatpush2.bf16.msra.mxu0 0
      %1198 = vmatprep.mubr.bf16.mxu0 0
      %1199 = vmatmul.mubr.bf16.gmra.mxu0 %v1161
      %v1200 = vpop.f32.mrf.mxu0
      %v1201 = vadd.f32 0.0, %v1200
      %v1202 = vpop.f32.mrf.mxu0
      %v1203 = vpop.f32.mrf.mxu0
      %v1204 = vadd.f32 0.0, %v1203
      %v1205 = vpop.f32.mrf.mxu0
      %1206 = vdwg.mxu0
      %v1207 = vpack.c.bf16 %v1204, %v1201
      %v1209 = vsel %vm540, %v1207, 0
      %v1212 = vsel %vm672, %v407, 0
      %1214 = vmatprep.subr.bf16.mxu0 0
      %1215 = vmatpush1.bf16.msra.mxu0 0
      %1216 = vmatprep.subr.bf16.mxu0 0
      %1217 = vmatpush1.bf16.msra.mxu0 0
      %1218 = vmatprep.subr.bf16.mxu0 0
      %1219 = vmatpush1.bf16.msra.mxu0 0
      %1220 = vmatprep.subr.bf16.mxu0 0
      %1221 = vmatpush1.bf16.msra.mxu0 0
      %1222 = vmatprep.subr.bf16.mxu0 0
      %1223 = vmatpush1.bf16.msra.mxu0 0
      %1224 = vmatprep.subr.bf16.mxu0 0
      %1225 = vmatpush1.bf16.msra.mxu0 0
      %1226 = vmatprep.subr.bf16.mxu0 0
      %1227 = vmatpush1.bf16.msra.mxu0 0
      %1228 = vmatprep.subr.bf16.mxu0 0
      %1229 = vmatpush1.bf16.msra.mxu0 %v1212
      %1230 = vmatprep.subr.bf16.mxu0 0
      %1231 = vmatpush2.bf16.msra.mxu0 0
      %1232 = vmatprep.subr.bf16.mxu0 0
      %1233 = vmatpush2.bf16.msra.mxu0 0
      %1234 = vmatprep.subr.bf16.mxu0 0
      %1235 = vmatpush2.bf16.msra.mxu0 0
      %1236 = vmatprep.subr.bf16.mxu0 0
      %1237 = vmatpush2.bf16.msra.mxu0 0
      %1238 = vmatprep.subr.bf16.mxu0 0
      %1239 = vmatpush2.bf16.msra.mxu0 0
      %1240 = vmatprep.subr.bf16.mxu0 0
      %1241 = vmatpush2.bf16.msra.mxu0 0
      %1242 = vmatprep.subr.bf16.mxu0 0
      %1243 = vmatpush2.bf16.msra.mxu0 0
      %1244 = vmatprep.subr.bf16.mxu0 0
      %1245 = vmatpush2.bf16.msra.mxu0 0
      %1246 = vmatprep.mubr.bf16.mxu0 0
      %1247 = vmatmul.mubr.bf16.gmra.mxu0 %v1209
      %v1248 = vpop.f32.mrf.mxu0
      %v1249 = vadd.f32 0.0, %v1248
      %v1250 = vpop.f32.mrf.mxu0
      %v1251 = vpop.f32.mrf.mxu0
      %v1252 = vadd.f32 0.0, %v1251
      %v1253 = vpop.f32.mrf.mxu0
      %1254 = vdwg.mxu0
      %v1255 = vadd.f32 %v1078, %v1249
      %v1256 = vadd.f32 %v1079, %v1252
      %v1257 = vadd.f32 %v395, %v1255
      %v1258 = vadd.f32 %v396, %v1256
      %v1259 = vsel %vm439, %v1257, 0.0
      %1260 = vadd.xlane.f32.xlu0 %v1259
      %v1261 = vpop.xlane.xlu0 %1260
      %vm1262 = vcmask 257024
      %v1263 = vsel %vm1262, %v1258, 0.0
      %1264 = vadd.xlane.f32.xlu0 %v1263
      %v1265 = vpop.xlane.xlu0 %1264
      %v1266 = vrcp.pop 32.0
      %v1267 = vmul.f32 %v1261, %v1266
      %v1268 = vmul.f32 %v1265, %v1266
      %v1269 = vsub.f32 %v1257, %v1267
      %v1270 = vsub.f32 %v1258, %v1268
      %v1271 = vmul.f32 %v1269, %v1269
      %v1272 = vmul.f32 %v1270, %v1270
      %v1273 = vsel %vm439, %v1271, 0.0
      %1274 = vadd.xlane.f32.xlu0 %v1273
      %v1275 = vpop.xlane.xlu0 %1274
      %v1276 = vsel %vm1262, %v1272, 0.0
      %1277 = vadd.xlane.f32.xlu0 %v1276
      %v1278 = vpop.xlane.xlu0 %1277
      %v1279 = vmul.f32 %v1275, %v1266
      %v1280 = vmul.f32 %v1278, %v1266
      %v1281 = vadd.f32 %v1279, 1e-05
      %v1282 = vadd.f32 %v1280, 1e-05
      %v1283 = vrsqrt.pop %v1281
      %v1284 = vrsqrt.pop %v1282
      %v1285 = vmul.f32 %v1269, %v1283
      %v1286 = vmul.f32 %v1270, %v1284
      %v1287 = vld [vmem:[%s8] sm:$0x1]
      %v1289 = vlaneseq
      %v1290 = vshrl.u32 %v1289, 7
      %v1291 = vsub.s32 0, %v1290
      %v1292 = vrot.slane %v1287, %v1291
      %v1294 = vmul.f32 %v1285, %v1292
      %v1295 = vmul.f32 %v1286, %v1292
      %v1296 = vld [vmem:[%s9] sm:$0x1]
      %v1298 = vlaneseq
      %v1299 = vshrl.u32 %v1298, 7
      %v1300 = vsub.s32 0, %v1299
      %v1301 = vrot.slane %v1296, %v1300
      %v1303 = vadd.f32 %v1294, %v1301
      %v1304 = vadd.f32 %v1295, %v1301
      %1305 = vst.msk [vmem:[%s393] sm:$0xff] %vm439, %v1303
      %1306 = vst.msk [vmem:[%s393 + $0x8] sm:$0xf] %vm1262, %v1304
      %p1307 = scmp.lt.s32.totalorder %s21, 1
      %s1308 = scalar_select %p1307, %s21, 1
      %s1309 = smul.addr %s1308, 2
      %s1310 = smul.addr %s1309, 8
      %s1311 = scalar_lea.vmem %s10, %s1310
      // Predicated region
      $region61: #{seq2seq_forward.12} parent=59 // pred_check
        %p1312 = pneg %p264
      $region62: #{seq2seq_forward.12} parent=59 // pred_check_branch
        %1314 = sbr.rel (%p1312) target = $region64
      $region63: #{seq2seq_forward.12} parent=59 // pred_region
        _
      $region64: #{seq2seq_forward.12} parent=59 // pred_fallthru
        _
    $region60: #{seq2seq_forward.12} parent=5 // pred_fallthru
      _
    %p1315 = scmp.le.s32.totalorder 2, %s16
    // Predicated region
    $region65: #{seq2seq_forward.12} parent=5 // pred_check
      %p1316 = pneg %p1315
    $region66: #{seq2seq_forward.12} parent=5 // pred_check_branch
      %1318 = sbr.rel (%p1316) target = $region68
    $region67: #{seq2seq_forward.12} parent=5 // pred_region
      %s1319 = ssub.s32 %s16, 2
      // Predicated region
      $region69: #{seq2seq_forward.12} parent=67 // pred_check
        %p1320 = pneg %p270
      $region70: #{seq2seq_forward.12} parent=67 // pred_check_branch
        %1322 = sbr.rel (%p1320) target = $region72
      $region71: #{seq2seq_forward.12} parent=67 // pred_region
        %p1323 = scmp.lt.s32.totalorder %s22, 1
        %s1324 = scalar_select %p1323, %s22, 1
        %s1325 = smul.addr %s1324, 2
        %s1326 = smul.addr %s1325, 8
        %s1327 = scalar_lea.vmem %s10, %s1326
      $region72: #{seq2seq_forward.12} parent=67 // pred_fallthru
        _
    $region68: #{seq2seq_forward.12} parent=5 // pred_fallthru
      _
  $region6: #{seq2seq_forward.12} parent=0 // loop_footer
    %s20 = sadd.s32 1, %s16
  $region7: #{seq2seq_forward.12} parent=0 // loop_footer_branch
    %15 = sbr.rel target = $region3
  $region8: #{seq2seq_forward.12} parent=0 // loop_exit
    _

// kernel: seq2seq_forward.19
$region0: #{seq2seq_forward.19}
  #allocation0 [shape = 'u32[]', space=smem, size = 0x4, offset = 0x4, fixed_abs, tag = 'smem constant byte address 0x4 - core index']
  #allocation1 [shape = 'u32[144,128]{1,0:T(1,128)}', space=vmem, size = 0x12000, scoped, tag = 'internal scratch']
  %s0 = inlined_call_operand.vmem [shape: f32[2,10,32], index: 0, kind: input, shape index: {}]
  %s1 = inlined_call_operand.vmem [shape: bf16[32,64], index: 1, kind: input, shape index: {}]
  %s2 = inlined_call_operand.vmem [shape: f32[1,64], index: 2, kind: input, shape index: {}]
  %s3 = inlined_call_operand.vmem [shape: bf16[64,32], index: 3, kind: input, shape index: {}]
  %s4 = inlined_call_operand.vmem [shape: f32[1,32], index: 4, kind: input, shape index: {}]
  %s5 = inlined_call_operand.vmem [shape: f32[1,32], index: 5, kind: input, shape index: {}]
  %s6 = inlined_call_operand.vmem [shape: f32[1,32], index: 6, kind: input, shape index: {}]
  %s7 = inlined_call_operand.vmem [shape: f32[2,10,32], index: 7, kind: output, shape index: {}]
  %s8 = sld [smem:[#allocation0]]
  $region61: #{seq2seq_forward.19} parent=0
    _
  %s10 = ssub.s32 1, %s8
  %s11 = scalar_select 0, %s10, %s8
  loop: start=0, step=1, limit=4
  $region2: #{seq2seq_forward.19} parent=0 // loop_pre_header
    _
  $region3: #{seq2seq_forward.19} parent=0 // loop_header
    %s13 = sphi 0, %s17
    %p14 = scmp.ge.s32.totalorder %s13, 4
    %s23 = sphi 0, %s25
    %s26 = sphi 0, %s23
    %s27 = sphi 0, %s26
    %s43 = sphi 0, %s27
    %s47 = sphi 0, %s47
    %s49 = sphi 0, %s47
    %s50 = sphi 0, %s49
    %s64 = sphi 0, %s50
    %s68 = sphi 0, %s68
    %s70 = sphi 0, %s68
    %s71 = sphi 0, %s70
    %s85 = sphi 0, %s71
    %s89 = sphi 0, %s89
    %s91 = sphi 0, %s89
    %s92 = sphi 0, %s91
    %s106 = sphi 0, %s92
    %s110 = sphi 0, %s110
    %s112 = sphi 0, %s110
    %s113 = sphi 0, %s112
    %s127 = sphi 0, %s113
    %s131 = sphi 0, %s131
    %s133 = sphi 0, %s131
    %s134 = sphi 0, %s133
    %s148 = sphi 0, %s134
    %s152 = sphi 0, %s152
    %s154 = sphi 0, %s152
    %s155 = sphi 0, %s154
    %s169 = sphi 0, %s155
    %s175 = sphi 0, %s177
    %s178 = sphi 0, %s175
    %s179 = sphi 0, %s178
    %s195 = sphi 0, %s179
  $region4: #{seq2seq_forward.19} parent=0 // loop_header_branch
    %16 = sbr.rel (%p14) target = $region8
  $region5: #{seq2seq_forward.19} parent=0 // loop_body
    %s18 = ssub.s32 %s13, 1
    %s19 = ssub.s32 %s13, 2
    %s20 = sadd.s32 %s13, 1
    %s21 = ssub.s32 %s13, %s20
    %p22 = scmp.eq.s32.totalorder %s21, 0
    %s24 = sadd.s32 %s23, 1
    %s25 = scalar_select %p22, %s23, %s24
    %p28 = pneg %p22
    %p29 = scmp.eq.s32.totalorder %s13, 1
    %p30 = por %p28, %p29
    %p31 = scmp.ne.s32.totalorder %s23, %s26
    %p32 = scmp.eq.s32.totalorder %s13, 0
    %p33 = por %p31, %p32
    %p34 = scmp.ne.s32.totalorder %s23, %s26
    %p35 = scmp.eq.s32.totalorder %s18, 1
    %p36 = por %p34, %p35
    %p37 = scmp.ne.s32.totalorder %s26, %s27
    %p38 = scmp.eq.s32.totalorder %s18, 0
    %p39 = por %p37, %p38
    %p40 = scmp.ne.s32.totalorder %s26, %s27
    %p41 = scmp.eq.s32.totalorder %s19, 1
    %p42 = por %p40, %p41
    %p44 = scmp.ne.s32.totalorder %s27, %s43
    %p45 = scmp.eq.s32.totalorder %s19, 0
    %p46 = por %p44, %p45
    %s48 = sadd.s32 %s47, 1
    %p51 = scmp.eq.s32.totalorder %s13, 1
    %p52 = scmp.ne.s32.totalorder %s47, %s49
    %p53 = scmp.eq.s32.totalorder %s13, 0
    %p54 = por %p52, %p53
    %p55 = scmp.ne.s32.totalorder %s47, %s49
    %p56 = scmp.eq.s32.totalorder %s18, 1
    %p57 = por %p55, %p56
    %p58 = scmp.ne.s32.totalorder %s49, %s50
    %p59 = scmp.eq.s32.totalorder %s18, 0
    %p60 = por %p58, %p59
    %p61 = scmp.ne.s32.totalorder %s49, %s50
    %p62 = scmp.eq.s32.totalorder %s19, 1
    %p63 = por %p61, %p62
    %p65 = scmp.ne.s32.totalorder %s50, %s64
    %p66 = scmp.eq.s32.totalorder %s19, 0
    %p67 = por %p65, %p66
    %s69 = sadd.s32 %s68, 1
    %p72 = scmp.eq.s32.totalorder %s13, 1
    %p73 = scmp.ne.s32.totalorder %s68, %s70
    %p74 = scmp.eq.s32.totalorder %s13, 0
    %p75 = por %p73, %p74
    %p76 = scmp.ne.s32.totalorder %s68, %s70
    %p77 = scmp.eq.s32.totalorder %s18, 1
    %p78 = por %p76, %p77
    %p79 = scmp.ne.s32.totalorder %s70, %s71
    %p80 = scmp.eq.s32.totalorder %s18, 0
    %p81 = por %p79, %p80
    %p82 = scmp.ne.s32.totalorder %s70, %s71
    %p83 = scmp.eq.s32.totalorder %s19, 1
    %p84 = por %p82, %p83
    %p86 = scmp.ne.s32.totalorder %s71, %s85
    %p87 = scmp.eq.s32.totalorder %s19, 0
    %p88 = por %p86, %p87
    %s90 = sadd.s32 %s89, 1
    %p93 = scmp.eq.s32.totalorder %s13, 1
    %p94 = scmp.ne.s32.totalorder %s89, %s91
    %p95 = scmp.eq.s32.totalorder %s13, 0
    %p96 = por %p94, %p95
    %p97 = scmp.ne.s32.totalorder %s89, %s91
    %p98 = scmp.eq.s32.totalorder %s18, 1
    %p99 = por %p97, %p98
    %p100 = scmp.ne.s32.totalorder %s91, %s92
    %p101 = scmp.eq.s32.totalorder %s18, 0
    %p102 = por %p100, %p101
    %p103 = scmp.ne.s32.totalorder %s91, %s92
    %p104 = scmp.eq.s32.totalorder %s19, 1
    %p105 = por %p103, %p104
    %p107 = scmp.ne.s32.totalorder %s92, %s106
    %p108 = scmp.eq.s32.totalorder %s19, 0
    %p109 = por %p107, %p108
    %s111 = sadd.s32 %s110, 1
    %p114 = scmp.eq.s32.totalorder %s13, 1
    %p115 = scmp.ne.s32.totalorder %s110, %s112
    %p116 = scmp.eq.s32.totalorder %s13, 0
    %p117 = por %p115, %p116
    %p118 = scmp.ne.s32.totalorder %s110, %s112
    %p119 = scmp.eq.s32.totalorder %s18, 1
    %p120 = por %p118, %p119
    %p121 = scmp.ne.s32.totalorder %s112, %s113
    %p122 = scmp.eq.s32.totalorder %s18, 0
    %p123 = por %p121, %p122
    %p124 = scmp.ne.s32.totalorder %s112, %s113
    %p125 = scmp.eq.s32.totalorder %s19, 1
    %p126 = por %p124, %p125
    %p128 = scmp.ne.s32.totalorder %s113, %s127
    %p129 = scmp.eq.s32.totalorder %s19, 0
    %p130 = por %p128, %p129
    %s132 = sadd.s32 %s131, 1
    %p135 = scmp.eq.s32.totalorder %s13, 1
    %p136 = scmp.ne.s32.totalorder %s131, %s133
    %p137 = scmp.eq.s32.totalorder %s13, 0
    %p138 = por %p136, %p137
    %p139 = scmp.ne.s32.totalorder %s131, %s133
    %p140 = scmp.eq.s32.totalorder %s18, 1
    %p141 = por %p139, %p140
    %p142 = scmp.ne.s32.totalorder %s133, %s134
    %p143 = scmp.eq.s32.totalorder %s18, 0
    %p144 = por %p142, %p143
    %p145 = scmp.ne.s32.totalorder %s133, %s134
    %p146 = scmp.eq.s32.totalorder %s19, 1
    %p147 = por %p145, %p146
    %p149 = scmp.ne.s32.totalorder %s134, %s148
    %p150 = scmp.eq.s32.totalorder %s19, 0
    %p151 = por %p149, %p150
    %s153 = sadd.s32 %s152, 1
    %p156 = scmp.eq.s32.totalorder %s13, 1
    %p157 = scmp.ne.s32.totalorder %s152, %s154
    %p158 = scmp.eq.s32.totalorder %s13, 0
    %p159 = por %p157, %p158
    %p160 = scmp.ne.s32.totalorder %s152, %s154
    %p161 = scmp.eq.s32.totalorder %s18, 1
    %p162 = por %p160, %p161
    %p163 = scmp.ne.s32.totalorder %s154, %s155
    %p164 = scmp.eq.s32.totalorder %s18, 0
    %p165 = por %p163, %p164
    %p166 = scmp.ne.s32.totalorder %s154, %s155
    %p167 = scmp.eq.s32.totalorder %s19, 1
    %p168 = por %p166, %p167
    %p170 = scmp.ne.s32.totalorder %s155, %s169
    %p171 = scmp.eq.s32.totalorder %s19, 0
    %p172 = por %p170, %p171
    %s173 = ssub.s32 %s13, %s20
    %p174 = scmp.eq.s32.totalorder %s173, 0
    %s176 = sadd.s32 %s175, 1
    %s177 = scalar_select %p174, %s175, %s176
    %p180 = pneg %p174
    %p181 = scmp.eq.s32.totalorder %s13, 1
    %p182 = por %p180, %p181
    %p183 = scmp.ne.s32.totalorder %s175, %s178
    %p184 = scmp.eq.s32.totalorder %s13, 0
    %p185 = por %p183, %p184
    %p186 = scmp.ne.s32.totalorder %s175, %s178
    %p187 = scmp.eq.s32.totalorder %s18, 1
    %p188 = por %p186, %p187
    %p189 = scmp.ne.s32.totalorder %s178, %s179
    %p190 = scmp.eq.s32.totalorder %s18, 0
    %p191 = por %p189, %p190
    %p192 = scmp.ne.s32.totalorder %s178, %s179
    %p193 = scmp.eq.s32.totalorder %s19, 1
    %p194 = por %p192, %p193
    %p196 = scmp.ne.s32.totalorder %s179, %s195
    %p197 = scmp.eq.s32.totalorder %s19, 0
    %p198 = por %p196, %p197
    %p199 = scmp.le.s32.totalorder 1, %s13
    %p200 = scmp.lt.s32.totalorder %s13, 3
    %p201 = pnand %p199, %p200
    %p202 = pneg %p201
    // Predicated region
    $region9: #{seq2seq_forward.19} parent=5 // pred_check
      _
    $region10: #{seq2seq_forward.19} parent=5 // pred_check_branch
      %204 = sbr.rel (%p201) target = $region12
    $region11: #{seq2seq_forward.19} parent=5 // pred_region
      %s205 = ssub.s32 %s13, 1
      // Predicated region
      $region13: #{seq2seq_forward.19} parent=11 // pred_check
        %p206 = pneg %p60
      $region14: #{seq2seq_forward.19} parent=11 // pred_check_branch
        %208 = sbr.rel (%p206) target = $region16
      $region15: #{seq2seq_forward.19} parent=11 // pred_region
        _
      $region16: #{seq2seq_forward.19} parent=11 // pred_fallthru
        _
      // Predicated region
      $region17: #{seq2seq_forward.19} parent=11 // pred_check
        %p209 = pneg %p81
      $region18: #{seq2seq_forward.19} parent=11 // pred_check_branch
        %211 = sbr.rel (%p209) target = $region20
      $region19: #{seq2seq_forward.19} parent=11 // pred_region
        _
      $region20: #{seq2seq_forward.19} parent=11 // pred_fallthru
        _
      // Predicated region
      $region21: #{seq2seq_forward.19} parent=11 // pred_check
        %p212 = pneg %p102
      $region22: #{seq2seq_forward.19} parent=11 // pred_check_branch
        %214 = sbr.rel (%p212) target = $region24
      $region23: #{seq2seq_forward.19} parent=11 // pred_region
        _
      $region24: #{seq2seq_forward.19} parent=11 // pred_fallthru
        _
      // Predicated region
      $region25: #{seq2seq_forward.19} parent=11 // pred_check
        %p215 = pneg %p123
      $region26: #{seq2seq_forward.19} parent=11 // pred_check_branch
        %217 = sbr.rel (%p215) target = $region28
      $region27: #{seq2seq_forward.19} parent=11 // pred_region
        _
      $region28: #{seq2seq_forward.19} parent=11 // pred_fallthru
        _
      // Predicated region
      $region29: #{seq2seq_forward.19} parent=11 // pred_check
        %p218 = pneg %p144
      $region30: #{seq2seq_forward.19} parent=11 // pred_check_branch
        %220 = sbr.rel (%p218) target = $region32
      $region31: #{seq2seq_forward.19} parent=11 // pred_region
        _
      $region32: #{seq2seq_forward.19} parent=11 // pred_fallthru
        _
      // Predicated region
      $region33: #{seq2seq_forward.19} parent=11 // pred_check
        %p221 = pneg %p165
      $region34: #{seq2seq_forward.19} parent=11 // pred_check_branch
        %223 = sbr.rel (%p221) target = $region36
      $region35: #{seq2seq_forward.19} parent=11 // pred_region
        _
      $region36: #{seq2seq_forward.19} parent=11 // pred_fallthru
        _
    $region12: #{seq2seq_forward.19} parent=5 // pred_fallthru
      _
    %p224 = scmp.lt.s32.totalorder %s13, 2
    // Predicated region
    $region37: #{seq2seq_forward.19} parent=5 // pred_check
      %p225 = pneg %p224
    $region38: #{seq2seq_forward.19} parent=5 // pred_check_branch
      %227 = sbr.rel (%p225) target = $region40
    $region39: #{seq2seq_forward.19} parent=5 // pred_region
      // Predicated region
      $region41: #{seq2seq_forward.19} parent=39 // pred_check
        %p228 = pneg %p33
      $region42: #{seq2seq_forward.19} parent=39 // pred_check_branch
        %230 = sbr.rel (%p228) target = $region44
      $region43: #{seq2seq_forward.19} parent=39 // pred_region
        %p231 = scmp.lt.s32.totalorder %s13, 1
        %s232 = scalar_select %p231, %s13, 1
        %s233 = smul.addr %s232, 2
        %s234 = smul.addr %s233, 8
        %s235 = scalar_lea.vmem %s0, %s234
      $region44: #{seq2seq_forward.19} parent=39 // pred_fallthru
        _
    $region40: #{seq2seq_forward.19} parent=5 // pred_fallthru
      _
    %p236 = scmp.le.s32.totalorder 1, %s13
    %p237 = scmp.lt.s32.totalorder %s13, 3
    %p238 = pnand %p236, %p237
    %p239 = pneg %p238
    // Predicated region
    $region45: #{seq2seq_forward.19} parent=5 // pred_check
      _
    $region46: #{seq2seq_forward.19} parent=5 // pred_check_branch
      %241 = sbr.rel (%p238) target = $region48
    $region47: #{seq2seq_forward.19} parent=5 // pred_region
      %s242 = ssub.s32 %s13, 1
      %p243 = scmp.lt.s32.totalorder %s18, 1
      %s244 = scalar_select %p243, %s18, 1
      %s245 = smul.addr %s244, 2
      %s246 = smul.addr %s245, 8
      %s247 = scalar_lea.vmem %s0, %s246
      %p248 = pneg %p39
      %p249 = pneg %p36
      %p250 = pneg %p60
      %p251 = pneg %p57
      %p252 = pneg %p81
      %p253 = pneg %p78
      %p254 = pneg %p102
      %p255 = pneg %p99
      %p256 = pneg %p123
      %p257 = pneg %p120
      %p258 = pneg %p144
      %p259 = pneg %p141
      %p260 = pneg %p165
      %p261 = pneg %p162
      %p262 = pneg %p191
      %p263 = pneg %p188
      %p264 = scmp.lt.s32.totalorder %s18, 1
      %s265 = scalar_select %p264, %s18, 1
      %s266 = smul.addr %s265, 2
      %s267 = smul.addr %s266, 8
      %s268 = scalar_lea.vmem %s7, %s267
      %p269 = scmp.lt.s32.totalorder %s18, 1
      %s270 = scalar_select %p269, %s18, 1
      %s271 = smul.addr %s270, 2
      %s272 = smul.addr %s271, 8
      %s273 = scalar_lea.vmem %s0, %s272
      %p274 = scmp.lt.s32.totalorder %s18, 1
      %s275 = scalar_select %p274, %s18, 1
      %s276 = smul.addr %s275, 2
      %s277 = smul.addr %s276, 8
      %s278 = scalar_lea.vmem %s7, %s277
      %v280 = vld [vmem:[%s273] sm:$0xff]
      %v281 = vld [vmem:[%s273 + $0x8] sm:$0x3]
      %v282 = vpack.c.bf16 %v281, %v280
      %v283 = vld [vmem:[%s1] sm:$0xf]
      %v284 = vld [vmem:[%s1 + $0x4] sm:$0xf]
      %v285 = vld [vmem:[%s1 + $0x8] sm:$0xf]
      %v286 = vld [vmem:[%s1 + $0xc] sm:$0xf]
      %v287 = vld [vmem:[%s2] sm:$0x1]
      %v289 = vlaneseq
      %v290 = vshrl.u32 %v289, 7
      %v291 = vsub.s32 0, %v290
      %v292 = vrot.slane %v287, %v291
      %v298 = vunpack.c.l.b16 %v283
      %v299 = vunpack.c.l.b16 %v284
      %v300 = vunpack.c.l.b16 %v285
      %v301 = vunpack.c.l.b16 %v286
      %v302 = vpack.c.b16 %v299, %v298
      %v303 = vpack.c.b16 %v301, %v300
      %vm306 = vcmask 261120
      %v308 = vsel %vm306, %v282, 0
      %310 = vmatprep.subr.bf16.mxu0 0
      %311 = vmatpush1.bf16.msra.mxu0 0
      %312 = vmatprep.subr.bf16.mxu0 0
      %313 = vmatpush1.bf16.msra.mxu0 0
      %314 = vmatprep.subr.bf16.mxu0 0
      %315 = vmatpush1.bf16.msra.mxu0 0
      %316 = vmatprep.subr.bf16.mxu0 0
      %317 = vmatpush1.bf16.msra.mxu0 0
      %318 = vmatprep.subr.bf16.mxu0 0
      %319 = vmatpush1.bf16.msra.mxu0 0
      %320 = vmatprep.subr.bf16.mxu0 0
      %321 = vmatpush1.bf16.msra.mxu0 0
      %322 = vmatprep.subr.bf16.mxu0 0
      %323 = vmatpush1.bf16.msra.mxu0 %v303
      %324 = vmatprep.subr.bf16.mxu0 0
      %325 = vmatpush1.bf16.msra.mxu0 %v302
      %326 = vmatprep.subr.bf16.mxu0 0
      %327 = vmatpush2.bf16.msra.mxu0 0
      %328 = vmatprep.subr.bf16.mxu0 0
      %329 = vmatpush2.bf16.msra.mxu0 0
      %330 = vmatprep.subr.bf16.mxu0 0
      %331 = vmatpush2.bf16.msra.mxu0 0
      %332 = vmatprep.subr.bf16.mxu0 0
      %333 = vmatpush2.bf16.msra.mxu0 0
      %334 = vmatprep.subr.bf16.mxu0 0
      %335 = vmatpush2.bf16.msra.mxu0 0
      %336 = vmatprep.subr.bf16.mxu0 0
      %337 = vmatpush2.bf16.msra.mxu0 0
      %338 = vmatprep.subr.bf16.mxu0 0
      %339 = vmatpush2.bf16.msra.mxu0 0
      %340 = vmatprep.subr.bf16.mxu0 0
      %341 = vmatpush2.bf16.msra.mxu0 0
      %342 = vmatprep.mubr.bf16.mxu0 0
      %343 = vmatmul.mubr.bf16.gmra.mxu0 %v308
      %v344 = vpop.f32.mrf.mxu0
      %v345 = vadd.f32 %v292, %v344
      %v346 = vpop.f32.mrf.mxu0
      %v347 = vpop.f32.mrf.mxu0
      %v348 = vadd.f32 %v292, %v347
      %v349 = vpop.f32.mrf.mxu0
      %350 = vdwg.mxu0
      %v351 = vmax.f32 %v345, 0.0
      %v352 = vmax.f32 %v348, 0.0
      %v353 = vpack.c.bf16 %v352, %v351
      %v354 = vld [vmem:[%s3] sm:$0xf]
      %v355 = vld [vmem:[%s3 + $0x4] sm:$0xf]
      %v356 = vld [vmem:[%s3 + $0x8] sm:$0xf]
      %v357 = vld [vmem:[%s3 + $0xc] sm:$0xf]
      %v358 = vld [vmem:[%s3 + $0x10] sm:$0xf]
      %v359 = vld [vmem:[%s3 + $0x14] sm:$0xf]
      %v360 = vld [vmem:[%s3 + $0x18] sm:$0xf]
      %v361 = vld [vmem:[%s3 + $0x1c] sm:$0xf]
      %v362 = vld [vmem:[%s4] sm:$0x1]
      %v364 = vlaneseq
      %v365 = vshrl.u32 %v364, 7
      %v366 = vsub.s32 0, %v365
      %v367 = vrot.slane %v362, %v366
      %v377 = vunpack.c.l.b16 %v354
      %v378 = vunpack.c.l.b16 %v355
      %v379 = vunpack.c.l.b16 %v356
      %v380 = vunpack.c.l.b16 %v357
      %v381 = vunpack.c.l.b16 %v358
      %v382 = vunpack.c.l.b16 %v359
      %v383 = vunpack.c.l.b16 %v360
      %v384 = vunpack.c.l.b16 %v361
      %v385 = vpack.c.b16 %v378, %v377
      %v386 = vpack.c.b16 %v380, %v379
      %v387 = vpack.c.b16 %v382, %v381
      %v388 = vpack.c.b16 %v384, %v383
      %vm393 = vcmask 523264
      %v395 = vsel %vm393, %v353, 0
      %397 = vmatprep.subr.bf16.mxu0 0
      %398 = vmatpush1.bf16.msra.mxu0 0
      %399 = vmatprep.subr.bf16.mxu0 0
      %400 = vmatpush1.bf16.msra.mxu0 0
      %401 = vmatprep.subr.bf16.mxu0 0
      %402 = vmatpush1.bf16.msra.mxu0 0
      %403 = vmatprep.subr.bf16.mxu0 0
      %404 = vmatpush1.bf16.msra.mxu0 0
      %405 = vmatprep.subr.bf16.mxu0 0
      %406 = vmatpush1.bf16.msra.mxu0 %v388
      %407 = vmatprep.subr.bf16.mxu0 0
      %408 = vmatpush1.bf16.msra.mxu0 %v387
      %409 = vmatprep.subr.bf16.mxu0 0
      %410 = vmatpush1.bf16.msra.mxu0 %v386
      %411 = vmatprep.subr.bf16.mxu0 0
      %412 = vmatpush1.bf16.msra.mxu0 %v385
      %413 = vmatprep.subr.bf16.mxu0 0
      %414 = vmatpush2.bf16.msra.mxu0 0
      %415 = vmatprep.subr.bf16.mxu0 0
      %416 = vmatpush2.bf16.msra.mxu0 0
      %417 = vmatprep.subr.bf16.mxu0 0
      %418 = vmatpush2.bf16.msra.mxu0 0
      %419 = vmatprep.subr.bf16.mxu0 0
      %420 = vmatpush2.bf16.msra.mxu0 0
      %421 = vmatprep.subr.bf16.mxu0 0
      %422 = vmatpush2.bf16.msra.mxu0 0
      %423 = vmatprep.subr.bf16.mxu0 0
      %424 = vmatpush2.bf16.msra.mxu0 0
      %425 = vmatprep.subr.bf16.mxu0 0
      %426 = vmatpush2.bf16.msra.mxu0 0
      %427 = vmatprep.subr.bf16.mxu0 0
      %428 = vmatpush2.bf16.msra.mxu0 0
      %429 = vmatprep.mubr.bf16.mxu0 0
      %430 = vmatmul.mubr.bf16.gmra.mxu0 %v395
      %v431 = vpop.f32.mrf.mxu0
      %v432 = vadd.f32 %v367, %v431
      %v433 = vpop.f32.mrf.mxu0
      %v434 = vpop.f32.mrf.mxu0
      %v435 = vadd.f32 %v367, %v434
      %v436 = vpop.f32.mrf.mxu0
      %437 = vdwg.mxu0
      %v438 = vadd.f32 %v280, %v432
      %v439 = vadd.f32 %v281, %v435
      %v440 = vsel %vm306, %v438, 0.0
      %441 = vadd.xlane.f32.xlu0 %v440
      %v442 = vpop.xlane.xlu0 %441
      %vm443 = vcmask 254976
      %v444 = vsel %vm443, %v439, 0.0
      %445 = vadd.xlane.f32.xlu0 %v444
      %v446 = vpop.xlane.xlu0 %445
      %v447 = vrcp.pop 32.0
      %v448 = vmul.f32 %v442, %v447
      %v449 = vmul.f32 %v446, %v447
      %v450 = vsub.f32 %v438, %v448
      %v451 = vsub.f32 %v439, %v449
      %v452 = vmul.f32 %v450, %v450
      %v453 = vmul.f32 %v451, %v451
      %v454 = vsel %vm306, %v452, 0.0
      %455 = vadd.xlane.f32.xlu0 %v454
      %v456 = vpop.xlane.xlu0 %455
      %v457 = vsel %vm443, %v453, 0.0
      %458 = vadd.xlane.f32.xlu0 %v457
      %v459 = vpop.xlane.xlu0 %458
      %v460 = vmul.f32 %v456, %v447
      %v461 = vmul.f32 %v459, %v447
      %v462 = vadd.f32 %v460, 1e-05
      %v463 = vadd.f32 %v461, 1e-05
      %v464 = vrsqrt.pop %v462
      %v465 = vrsqrt.pop %v463
      %v466 = vmul.f32 %v450, %v464
      %v467 = vmul.f32 %v451, %v465
      %v468 = vld [vmem:[%s5] sm:$0x1]
      %v470 = vlaneseq
      %v471 = vshrl.u32 %v470, 7
      %v472 = vsub.s32 0, %v471
      %v473 = vrot.slane %v468, %v472
      %v475 = vmul.f32 %v466, %v473
      %v476 = vmul.f32 %v467, %v473
      %v477 = vld [vmem:[%s6] sm:$0x1]
      %v479 = vlaneseq
      %v480 = vshrl.u32 %v479, 7
      %v481 = vsub.s32 0, %v480
      %v482 = vrot.slane %v477, %v481
      %v484 = vadd.f32 %v475, %v482
      %v485 = vadd.f32 %v476, %v482
      %486 = vst.msk [vmem:[%s278] sm:$0xff] %vm306, %v484
      %487 = vst.msk [vmem:[%s278 + $0x8] sm:$0x3] %vm443, %v485
      %p488 = scmp.lt.s32.totalorder %s18, 1
      %s489 = scalar_select %p488, %s18, 1
      %s490 = smul.addr %s489, 2
      %s491 = smul.addr %s490, 8
      %s492 = scalar_lea.vmem %s7, %s491
      // Predicated region
      $region49: #{seq2seq_forward.19} parent=47 // pred_check
        %p493 = pneg %p188
      $region50: #{seq2seq_forward.19} parent=47 // pred_check_branch
        %495 = sbr.rel (%p493) target = $region52
      $region51: #{seq2seq_forward.19} parent=47 // pred_region
        _
      $region52: #{seq2seq_forward.19} parent=47 // pred_fallthru
        _
    $region48: #{seq2seq_forward.19} parent=5 // pred_fallthru
      _
    %p496 = scmp.le.s32.totalorder 2, %s13
    // Predicated region
    $region53: #{seq2seq_forward.19} parent=5 // pred_check
      %p497 = pneg %p496
    $region54: #{seq2seq_forward.19} parent=5 // pred_check_branch
      %499 = sbr.rel (%p497) target = $region56
    $region55: #{seq2seq_forward.19} parent=5 // pred_region
      %s500 = ssub.s32 %s13, 2
      // Predicated region
      $region57: #{seq2seq_forward.19} parent=55 // pred_check
        %p501 = pneg %p194
      $region58: #{seq2seq_forward.19} parent=55 // pred_check_branch
        %503 = sbr.rel (%p501) target = $region60
      $region59: #{seq2seq_forward.19} parent=55 // pred_region
        %p504 = scmp.lt.s32.totalorder %s19, 1
        %s505 = scalar_select %p504, %s19, 1
        %s506 = smul.addr %s505, 2
        %s507 = smul.addr %s506, 8
        %s508 = scalar_lea.vmem %s7, %s507
      $region60: #{seq2seq_forward.19} parent=55 // pred_fallthru
        _
    $region56: #{seq2seq_forward.19} parent=5 // pred_fallthru
      _
  $region6: #{seq2seq_forward.19} parent=0 // loop_footer
    %s17 = sadd.s32 1, %s13
  $region7: #{seq2seq_forward.19} parent=0 // loop_footer_branch
    %12 = sbr.rel target = $region3
  $region8: #{seq2seq_forward.19} parent=0 // loop_exit
    _

// kernel: seq2seq_forward.17
$region0: #{seq2seq_forward.17}
  #allocation0 [shape = 'u32[]', space=smem, size = 0x4, offset = 0x4, fixed_abs, tag = 'smem constant byte address 0x4 - core index']
  #allocation1 [shape = 'u32[144,128]{1,0:T(1,128)}', space=vmem, size = 0x12000, scoped, tag = 'internal scratch']
  %s0 = inlined_call_operand.vmem [shape: f32[2,10,32], index: 0, kind: input, shape index: {}, may-alias: {0,1}]
  %s1 = inlined_call_operand.vmem [shape: f32[2,10,32], index: 1, kind: input, shape index: {}, may-alias: {0,1}]
  %s2 = inlined_call_operand.vmem [shape: bf16[32,96], index: 2, kind: input, shape index: {}]
  %s3 = inlined_call_operand.vmem [shape: f32[1,96], index: 3, kind: input, shape index: {}]
  %s4 = inlined_call_operand.vmem [shape: bf16[32,32], index: 4, kind: input, shape index: {}]
  %s5 = inlined_call_operand.vmem [shape: f32[1,32], index: 5, kind: input, shape index: {}]
  %s6 = inlined_call_operand.vmem [shape: f32[10,10], index: 6, kind: input, shape index: {}]
  %s7 = inlined_call_operand.vmem [shape: f32[2,1,10], index: 7, kind: input, shape index: {}]
  %s8 = inlined_call_operand.vmem [shape: f32[1,32], index: 8, kind: input, shape index: {}]
  %s9 = inlined_call_operand.vmem [shape: f32[1,32], index: 9, kind: input, shape index: {}]
  %s10 = inlined_call_operand.vmem [shape: f32[2,10,32], index: 10, kind: output, shape index: {}]
  %s11 = sld [smem:[#allocation0]]
  $region73: #{seq2seq_forward.17} parent=0
    _
  %s13 = ssub.s32 1, %s11
  %s14 = scalar_select 0, %s13, %s11
  loop: start=0, step=1, limit=4
  $region2: #{seq2seq_forward.17} parent=0 // loop_pre_header
    _
  $region3: #{seq2seq_forward.17} parent=0 // loop_header
    %s16 = sphi 0, %s20
    %p17 = scmp.ge.s32.totalorder %s16, 4
    %s26 = sphi 0, %s28
    %s29 = sphi 0, %s26
    %s30 = sphi 0, %s29
    %s46 = sphi 0, %s30
    %s52 = sphi 0, %s54
    %s55 = sphi 0, %s52
    %s56 = sphi 0, %s55
    %s72 = sphi 0, %s56
    %s76 = sphi 0, %s76
    %s78 = sphi 0, %s76
    %s79 = sphi 0, %s78
    %s93 = sphi 0, %s79
    %s97 = sphi 0, %s97
    %s99 = sphi 0, %s97
    %s100 = sphi 0, %s99
    %s114 = sphi 0, %s100
    %s118 = sphi 0, %s118
    %s120 = sphi 0, %s118
    %s121 = sphi 0, %s120
    %s135 = sphi 0, %s121
    %s139 = sphi 0, %s139
    %s141 = sphi 0, %s139
    %s142 = sphi 0, %s141
    %s156 = sphi 0, %s142
    %s160 = sphi 0, %s160
    %s162 = sphi 0, %s160
    %s163 = sphi 0, %s162
    %s177 = sphi 0, %s163
    %s183 = sphi 0, %s185
    %s186 = sphi 0, %s183
    %s187 = sphi 0, %s186
    %s203 = sphi 0, %s187
    %s207 = sphi 0, %s207
    %s209 = sphi 0, %s207
    %s210 = sphi 0, %s209
    %s224 = sphi 0, %s210
    %s228 = sphi 0, %s228
    %s230 = sphi 0, %s228
    %s231 = sphi 0, %s230
    %s245 = sphi 0, %s231
    %s251 = sphi 0, %s253
    %s254 = sphi 0, %s251
    %s255 = sphi 0, %s254
    %s271 = sphi 0, %s255
  $region4: #{seq2seq_forward.17} parent=0 // loop_header_branch
    %19 = sbr.rel (%p17) target = $region8
  $region5: #{seq2seq_forward.17} parent=0 // loop_body
    %s21 = ssub.s32 %s16, 1
    %s22 = ssub.s32 %s16, 2
    %s23 = sadd.s32 %s16, 1
    %s24 = ssub.s32 %s16, %s23
    %p25 = scmp.eq.s32.totalorder %s24, 0
    %s27 = sadd.s32 %s26, 1
    %s28 = scalar_select %p25, %s26, %s27
    %p31 = pneg %p25
    %p32 = scmp.eq.s32.totalorder %s16, 1
    %p33 = por %p31, %p32
    %p34 = scmp.ne.s32.totalorder %s26, %s29
    %p35 = scmp.eq.s32.totalorder %s16, 0
    %p36 = por %p34, %p35
    %p37 = scmp.ne.s32.totalorder %s26, %s29
    %p38 = scmp.eq.s32.totalorder %s21, 1
    %p39 = por %p37, %p38
    %p40 = scmp.ne.s32.totalorder %s29, %s30
    %p41 = scmp.eq.s32.totalorder %s21, 0
    %p42 = por %p40, %p41
    %p43 = scmp.ne.s32.totalorder %s29, %s30
    %p44 = scmp.eq.s32.totalorder %s22, 1
    %p45 = por %p43, %p44
    %p47 = scmp.ne.s32.totalorder %s30, %s46
    %p48 = scmp.eq.s32.totalorder %s22, 0
    %p49 = por %p47, %p48
    %s50 = ssub.s32 %s16, %s23
    %p51 = scmp.eq.s32.totalorder %s50, 0
    %s53 = sadd.s32 %s52, 1
    %s54 = scalar_select %p51, %s52, %s53
    %p57 = pneg %p51
    %p58 = scmp.eq.s32.totalorder %s16, 1
    %p59 = por %p57, %p58
    %p60 = scmp.ne.s32.totalorder %s52, %s55
    %p61 = scmp.eq.s32.totalorder %s16, 0
    %p62 = por %p60, %p61
    %p63 = scmp.ne.s32.totalorder %s52, %s55
    %p64 = scmp.eq.s32.totalorder %s21, 1
    %p65 = por %p63, %p64
    %p66 = scmp.ne.s32.totalorder %s55, %s56
    %p67 = scmp.eq.s32.totalorder %s21, 0
    %p68 = por %p66, %p67
    %p69 = scmp.ne.s32.totalorder %s55, %s56
    %p70 = scmp.eq.s32.totalorder %s22, 1
    %p71 = por %p69, %p70
    %p73 = scmp.ne.s32.totalorder %s56, %s72
    %p74 = scmp.eq.s32.totalorder %s22, 0
    %p75 = por %p73, %p74
    %s77 = sadd.s32 %s76, 1
    %p80 = scmp.eq.s32.totalorder %s16, 1
    %p81 = scmp.ne.s32.totalorder %s76, %s78
    %p82 = scmp.eq.s32.totalorder %s16, 0
    %p83 = por %p81, %p82
    %p84 = scmp.ne.s32.totalorder %s76, %s78
    %p85 = scmp.eq.s32.totalorder %s21, 1
    %p86 = por %p84, %p85
    %p87 = scmp.ne.s32.totalorder %s78, %s79
    %p88 = scmp.eq.s32.totalorder %s21, 0
    %p89 = por %p87, %p88
    %p90 = scmp.ne.s32.totalorder %s78, %s79
    %p91 = scmp.eq.s32.totalorder %s22, 1
    %p92 = por %p90, %p91
    %p94 = scmp.ne.s32.totalorder %s79, %s93
    %p95 = scmp.eq.s32.totalorder %s22, 0
    %p96 = por %p94, %p95
    %s98 = sadd.s32 %s97, 1
    %p101 = scmp.eq.s32.totalorder %s16, 1
    %p102 = scmp.ne.s32.totalorder %s97, %s99
    %p103 = scmp.eq.s32.totalorder %s16, 0
    %p104 = por %p102, %p103
    %p105 = scmp.ne.s32.totalorder %s97, %s99
    %p106 = scmp.eq.s32.totalorder %s21, 1
    %p107 = por %p105, %p106
    %p108 = scmp.ne.s32.totalorder %s99, %s100
    %p109 = scmp.eq.s32.totalorder %s21, 0
    %p110 = por %p108, %p109
    %p111 = scmp.ne.s32.totalorder %s99, %s100
    %p112 = scmp.eq.s32.totalorder %s22, 1
    %p113 = por %p111, %p112
    %p115 = scmp.ne.s32.totalorder %s100, %s114
    %p116 = scmp.eq.s32.totalorder %s22, 0
    %p117 = por %p115, %p116
    %s119 = sadd.s32 %s118, 1
    %p122 = scmp.eq.s32.totalorder %s16, 1
    %p123 = scmp.ne.s32.totalorder %s118, %s120
    %p124 = scmp.eq.s32.totalorder %s16, 0
    %p125 = por %p123, %p124
    %p126 = scmp.ne.s32.totalorder %s118, %s120
    %p127 = scmp.eq.s32.totalorder %s21, 1
    %p128 = por %p126, %p127
    %p129 = scmp.ne.s32.totalorder %s120, %s121
    %p130 = scmp.eq.s32.totalorder %s21, 0
    %p131 = por %p129, %p130
    %p132 = scmp.ne.s32.totalorder %s120, %s121
    %p133 = scmp.eq.s32.totalorder %s22, 1
    %p134 = por %p132, %p133
    %p136 = scmp.ne.s32.totalorder %s121, %s135
    %p137 = scmp.eq.s32.totalorder %s22, 0
    %p138 = por %p136, %p137
    %s140 = sadd.s32 %s139, 1
    %p143 = scmp.eq.s32.totalorder %s16, 1
    %p144 = scmp.ne.s32.totalorder %s139, %s141
    %p145 = scmp.eq.s32.totalorder %s16, 0
    %p146 = por %p144, %p145
    %p147 = scmp.ne.s32.totalorder %s139, %s141
    %p148 = scmp.eq.s32.totalorder %s21, 1
    %p149 = por %p147, %p148
    %p150 = scmp.ne.s32.totalorder %s141, %s142
    %p151 = scmp.eq.s32.totalorder %s21, 0
    %p152 = por %p150, %p151
    %p153 = scmp.ne.s32.totalorder %s141, %s142
    %p154 = scmp.eq.s32.totalorder %s22, 1
    %p155 = por %p153, %p154
    %p157 = scmp.ne.s32.totalorder %s142, %s156
    %p158 = scmp.eq.s32.totalorder %s22, 0
    %p159 = por %p157, %p158
    %s161 = sadd.s32 %s160, 1
    %p164 = scmp.eq.s32.totalorder %s16, 1
    %p165 = scmp.ne.s32.totalorder %s160, %s162
    %p166 = scmp.eq.s32.totalorder %s16, 0
    %p167 = por %p165, %p166
    %p168 = scmp.ne.s32.totalorder %s160, %s162
    %p169 = scmp.eq.s32.totalorder %s21, 1
    %p170 = por %p168, %p169
    %p171 = scmp.ne.s32.totalorder %s162, %s163
    %p172 = scmp.eq.s32.totalorder %s21, 0
    %p173 = por %p171, %p172
    %p174 = scmp.ne.s32.totalorder %s162, %s163
    %p175 = scmp.eq.s32.totalorder %s22, 1
    %p176 = por %p174, %p175
    %p178 = scmp.ne.s32.totalorder %s163, %s177
    %p179 = scmp.eq.s32.totalorder %s22, 0
    %p180 = por %p178, %p179
    %s181 = ssub.s32 %s16, %s23
    %p182 = scmp.eq.s32.totalorder %s181, 0
    %s184 = sadd.s32 %s183, 1
    %s185 = scalar_select %p182, %s183, %s184
    %p188 = pneg %p182
    %p189 = scmp.eq.s32.totalorder %s16, 1
    %p190 = por %p188, %p189
    %p191 = scmp.ne.s32.totalorder %s183, %s186
    %p192 = scmp.eq.s32.totalorder %s16, 0
    %p193 = por %p191, %p192
    %p194 = scmp.ne.s32.totalorder %s183, %s186
    %p195 = scmp.eq.s32.totalorder %s21, 1
    %p196 = por %p194, %p195
    %p197 = scmp.ne.s32.totalorder %s186, %s187
    %p198 = scmp.eq.s32.totalorder %s21, 0
    %p199 = por %p197, %p198
    %p200 = scmp.ne.s32.totalorder %s186, %s187
    %p201 = scmp.eq.s32.totalorder %s22, 1
    %p202 = por %p200, %p201
    %p204 = scmp.ne.s32.totalorder %s187, %s203
    %p205 = scmp.eq.s32.totalorder %s22, 0
    %p206 = por %p204, %p205
    %s208 = sadd.s32 %s207, 1
    %p211 = scmp.eq.s32.totalorder %s16, 1
    %p212 = scmp.ne.s32.totalorder %s207, %s209
    %p213 = scmp.eq.s32.totalorder %s16, 0
    %p214 = por %p212, %p213
    %p215 = scmp.ne.s32.totalorder %s207, %s209
    %p216 = scmp.eq.s32.totalorder %s21, 1
    %p217 = por %p215, %p216
    %p218 = scmp.ne.s32.totalorder %s209, %s210
    %p219 = scmp.eq.s32.totalorder %s21, 0
    %p220 = por %p218, %p219
    %p221 = scmp.ne.s32.totalorder %s209, %s210
    %p222 = scmp.eq.s32.totalorder %s22, 1
    %p223 = por %p221, %p222
    %p225 = scmp.ne.s32.totalorder %s210, %s224
    %p226 = scmp.eq.s32.totalorder %s22, 0
    %p227 = por %p225, %p226
    %s229 = sadd.s32 %s228, 1
    %p232 = scmp.eq.s32.totalorder %s16, 1
    %p233 = scmp.ne.s32.totalorder %s228, %s230
    %p234 = scmp.eq.s32.totalorder %s16, 0
    %p235 = por %p233, %p234
    %p236 = scmp.ne.s32.totalorder %s228, %s230
    %p237 = scmp.eq.s32.totalorder %s21, 1
    %p238 = por %p236, %p237
    %p239 = scmp.ne.s32.totalorder %s230, %s231
    %p240 = scmp.eq.s32.totalorder %s21, 0
    %p241 = por %p239, %p240
    %p242 = scmp.ne.s32.totalorder %s230, %s231
    %p243 = scmp.eq.s32.totalorder %s22, 1
    %p244 = por %p242, %p243
    %p246 = scmp.ne.s32.totalorder %s231, %s245
    %p247 = scmp.eq.s32.totalorder %s22, 0
    %p248 = por %p246, %p247
    %s249 = ssub.s32 %s16, %s23
    %p250 = scmp.eq.s32.totalorder %s249, 0
    %s252 = sadd.s32 %s251, 1
    %s253 = scalar_select %p250, %s251, %s252
    %p256 = pneg %p250
    %p257 = scmp.eq.s32.totalorder %s16, 1
    %p258 = por %p256, %p257
    %p259 = scmp.ne.s32.totalorder %s251, %s254
    %p260 = scmp.eq.s32.totalorder %s16, 0
    %p261 = por %p259, %p260
    %p262 = scmp.ne.s32.totalorder %s251, %s254
    %p263 = scmp.eq.s32.totalorder %s21, 1
    %p264 = por %p262, %p263
    %p265 = scmp.ne.s32.totalorder %s254, %s255
    %p266 = scmp.eq.s32.totalorder %s21, 0
    %p267 = por %p265, %p266
    %p268 = scmp.ne.s32.totalorder %s254, %s255
    %p269 = scmp.eq.s32.totalorder %s22, 1
    %p270 = por %p268, %p269
    %p272 = scmp.ne.s32.totalorder %s255, %s271
    %p273 = scmp.eq.s32.totalorder %s22, 0
    %p274 = por %p272, %p273
    %p275 = scmp.le.s32.totalorder 1, %s16
    %p276 = scmp.lt.s32.totalorder %s16, 3
    %p277 = pnand %p275, %p276
    %p278 = pneg %p277
    // Predicated region
    $region9: #{seq2seq_forward.17} parent=5 // pred_check
      _
    $region10: #{seq2seq_forward.17} parent=5 // pred_check_branch
      %280 = sbr.rel (%p277) target = $region12
    $region11: #{seq2seq_forward.17} parent=5 // pred_region
      %s281 = ssub.s32 %s16, 1
      // Predicated region
      $region13: #{seq2seq_forward.17} parent=11 // pred_check
        %p282 = pneg %p89
      $region14: #{seq2seq_forward.17} parent=11 // pred_check_branch
        %284 = sbr.rel (%p282) target = $region16
      $region15: #{seq2seq_forward.17} parent=11 // pred_region
        _
      $region16: #{seq2seq_forward.17} parent=11 // pred_fallthru
        _
      // Predicated region
      $region17: #{seq2seq_forward.17} parent=11 // pred_check
        %p285 = pneg %p110
      $region18: #{seq2seq_forward.17} parent=11 // pred_check_branch
        %287 = sbr.rel (%p285) target = $region20
      $region19: #{seq2seq_forward.17} parent=11 // pred_region
        _
      $region20: #{seq2seq_forward.17} parent=11 // pred_fallthru
        _
      // Predicated region
      $region21: #{seq2seq_forward.17} parent=11 // pred_check
        %p288 = pneg %p131
      $region22: #{seq2seq_forward.17} parent=11 // pred_check_branch
        %290 = sbr.rel (%p288) target = $region24
      $region23: #{seq2seq_forward.17} parent=11 // pred_region
        _
      $region24: #{seq2seq_forward.17} parent=11 // pred_fallthru
        _
      // Predicated region
      $region25: #{seq2seq_forward.17} parent=11 // pred_check
        %p291 = pneg %p152
      $region26: #{seq2seq_forward.17} parent=11 // pred_check_branch
        %293 = sbr.rel (%p291) target = $region28
      $region27: #{seq2seq_forward.17} parent=11 // pred_region
        _
      $region28: #{seq2seq_forward.17} parent=11 // pred_fallthru
        _
      // Predicated region
      $region29: #{seq2seq_forward.17} parent=11 // pred_check
        %p294 = pneg %p173
      $region30: #{seq2seq_forward.17} parent=11 // pred_check_branch
        %296 = sbr.rel (%p294) target = $region32
      $region31: #{seq2seq_forward.17} parent=11 // pred_region
        _
      $region32: #{seq2seq_forward.17} parent=11 // pred_fallthru
        _
      // Predicated region
      $region33: #{seq2seq_forward.17} parent=11 // pred_check
        %p297 = pneg %p220
      $region34: #{seq2seq_forward.17} parent=11 // pred_check_branch
        %299 = sbr.rel (%p297) target = $region36
      $region35: #{seq2seq_forward.17} parent=11 // pred_region
        _
      $region36: #{seq2seq_forward.17} parent=11 // pred_fallthru
        _
      // Predicated region
      $region37: #{seq2seq_forward.17} parent=11 // pred_check
        %p300 = pneg %p241
      $region38: #{seq2seq_forward.17} parent=11 // pred_check_branch
        %302 = sbr.rel (%p300) target = $region40
      $region39: #{seq2seq_forward.17} parent=11 // pred_region
        _
      $region40: #{seq2seq_forward.17} parent=11 // pred_fallthru
        _
    $region12: #{seq2seq_forward.17} parent=5 // pred_fallthru
      _
    %p303 = scmp.lt.s32.totalorder %s16, 2
    // Predicated region
    $region41: #{seq2seq_forward.17} parent=5 // pred_check
      %p304 = pneg %p303
    $region42: #{seq2seq_forward.17} parent=5 // pred_check_branch
      %306 = sbr.rel (%p304) target = $region44
    $region43: #{seq2seq_forward.17} parent=5 // pred_region
      // Predicated region
      $region45: #{seq2seq_forward.17} parent=43 // pred_check
        %p307 = pneg %p36
      $region46: #{seq2seq_forward.17} parent=43 // pred_check_branch
        %309 = sbr.rel (%p307) target = $region48
      $region47: #{seq2seq_forward.17} parent=43 // pred_region
        %p310 = scmp.lt.s32.totalorder %s16, 1
        %s311 = scalar_select %p310, %s16, 1
        %s312 = smul.addr %s311, 2
        %s313 = smul.addr %s312, 8
        %s314 = scalar_lea.vmem %s0, %s313
      $region48: #{seq2seq_forward.17} parent=43 // pred_fallthru
        _
      // Predicated region
      $region49: #{seq2seq_forward.17} parent=43 // pred_check
        %p315 = pneg %p62
      $region50: #{seq2seq_forward.17} parent=43 // pred_check_branch
        %317 = sbr.rel (%p315) target = $region52
      $region51: #{seq2seq_forward.17} parent=43 // pred_region
        %p318 = scmp.lt.s32.totalorder %s16, 1
        %s319 = scalar_select %p318, %s16, 1
        %s320 = smul.addr %s319, 2
        %s321 = smul.addr %s320, 8
        %s322 = scalar_lea.vmem %s1, %s321
      $region52: #{seq2seq_forward.17} parent=43 // pred_fallthru
        _
      // Predicated region
      $region53: #{seq2seq_forward.17} parent=43 // pred_check
        %p323 = pneg %p193
      $region54: #{seq2seq_forward.17} parent=43 // pred_check_branch
        %325 = sbr.rel (%p323) target = $region56
      $region55: #{seq2seq_forward.17} parent=43 // pred_region
        %p326 = scmp.lt.s32.totalorder %s16, 1
        %s327 = scalar_select %p326, %s16, 1
        %s328 = scalar_lea.vmem %s7, %s327
      $region56: #{seq2seq_forward.17} parent=43 // pred_fallthru
        _
    $region44: #{seq2seq_forward.17} parent=5 // pred_fallthru
      _
    %p329 = scmp.le.s32.totalorder 1, %s16
    %p330 = scmp.lt.s32.totalorder %s16, 3
    %p331 = pnand %p329, %p330
    %p332 = pneg %p331
    // Predicated region
    $region57: #{seq2seq_forward.17} parent=5 // pred_check
      _
    $region58: #{seq2seq_forward.17} parent=5 // pred_check_branch
      %334 = sbr.rel (%p331) target = $region60
    $region59: #{seq2seq_forward.17} parent=5 // pred_region
      %s335 = ssub.s32 %s16, 1
      %p336 = scmp.lt.s32.totalorder %s21, 1
      %s337 = scalar_select %p336, %s21, 1
      %s338 = smul.addr %s337, 2
      %s339 = smul.addr %s338, 8
      %s340 = scalar_lea.vmem %s0, %s339
      %p341 = pneg %p42
      %p342 = pneg %p39
      %p343 = scmp.lt.s32.totalorder %s21, 1
      %s344 = scalar_select %p343, %s21, 1
      %s345 = smul.addr %s344, 2
      %s346 = smul.addr %s345, 8
      %s347 = scalar_lea.vmem %s1, %s346
      %p348 = pneg %p68
      %p349 = pneg %p65
      %p350 = pneg %p89
      %p351 = pneg %p86
      %p352 = pneg %p110
      %p353 = pneg %p107
      %p354 = pneg %p131
      %p355 = pneg %p128
      %p356 = pneg %p152
      %p357 = pneg %p149
      %p358 = pneg %p173
      %p359 = pneg %p170
      %p360 = scmp.lt.s32.totalorder %s21, 1
      %s361 = scalar_select %p360, %s21, 1
      %s362 = scalar_lea.vmem %s7, %s361
      %p363 = pneg %p199
      %p364 = pneg %p196
      %p365 = pneg %p220
      %p366 = pneg %p217
      %p367 = pneg %p241
      %p368 = pneg %p238
      %p369 = pneg %p267
      %p370 = pneg %p264
      %p371 = scmp.lt.s32.totalorder %s21, 1
      %s372 = scalar_select %p371, %s21, 1
      %s373 = smul.addr %s372, 2
      %s374 = smul.addr %s373, 8
      %s375 = scalar_lea.vmem %s10, %s374
      %p376 = scmp.lt.s32.totalorder %s21, 1
      %s377 = scalar_select %p376, %s21, 1
      %s378 = smul.addr %s377, 2
      %s379 = smul.addr %s378, 8
      %s380 = scalar_lea.vmem %s0, %s379
      %p381 = scmp.lt.s32.totalorder %s21, 1
      %s382 = scalar_select %p381, %s21, 1
      %s383 = smul.addr %s382, 2
      %s384 = smul.addr %s383, 8
      %s385 = scalar_lea.vmem %s1, %s384
      %p386 = scmp.lt.s32.totalorder %s21, 1
      %s387 = scalar_select %p386, %s21, 1
      %s388 = scalar_lea.vmem %s7, %s387
      %p389 = scmp.lt.s32.totalorder %s21, 1
      %s390 = scalar_select %p389, %s21, 1
      %s391 = smul.addr %s390, 2
      %s392 = smul.addr %s391, 8
      %s393 = scalar_lea.vmem %s10, %s392
      %v395 = vld [vmem:[%s380] sm:$0xff]
      %v396 = vld [vmem:[%s380 + $0x8] sm:$0x3]
      %v397 = vld [vmem:[%s385] sm:$0xff]
      %v398 = vld [vmem:[%s385 + $0x8] sm:$0x3]
      %v399 = vld [vmem:[%s2] sm:$0xf]
      %v400 = vld [vmem:[%s2 + $0x4] sm:$0xf]
      %v401 = vld [vmem:[%s2 + $0x8] sm:$0xf]
      %v402 = vld [vmem:[%s2 + $0xc] sm:$0xf]
      %v403 = vld [vmem:[%s3] sm:$0x1]
      %v404 = vld [vmem:[%s4] sm:$0xf]
      %v405 = vld [vmem:[%s4 + $0x4] sm:$0xf]
      %v406 = vld [vmem:[%s4 + $0x8] sm:$0xf]
      %v407 = vld [vmem:[%s4 + $0xc] sm:$0xf]
      %v408 = vld [vmem:[%s6] sm:$0xff]
      %v409 = vld [vmem:[%s6 + $0x8] sm:$0x3]
      %v410 = vld [vmem:[%s388] sm:$0x1]
      %v412 = vlaneseq
      %v413 = vshrl.u32 %v412, 7
      %v414 = vsub.s32 0, %v413
      %v415 = vrot.slane %v410, %v414
      %v417 = vadd.f32 %v408, %v415
      %v418 = vadd.f32 %v409, %v415
      %v419 = vpack.c.bf16 %v396, %v395
      %v420 = vpack.c.bf16 %v398, %v397
      %v422 = vlaneseq
      %v423 = vshrl.u32 %v422, 7
      %v424 = vsub.s32 0, %v423
      %v425 = vrot.slane %v403, %v424
      %v431 = vunpack.c.l.b16 %v399
      %v432 = vunpack.c.l.b16 %v400
      %v433 = vunpack.c.l.b16 %v401
      %v434 = vunpack.c.l.b16 %v402
      %v435 = vpack.c.b16 %v432, %v431
      %v436 = vpack.c.b16 %v434, %v433
      %vm439 = vcmask 261120
      %v441 = vsel %vm439, %v419, 0
      %443 = vmatprep.subr.bf16.mxu0 0
      %444 = vmatpush1.bf16.msra.mxu0 0
      %445 = vmatprep.subr.bf16.mxu0 0
      %446 = vmatpush1.bf16.msra.mxu0 0
      %447 = vmatprep.subr.bf16.mxu0 0
      %448 = vmatpush1.bf16.msra.mxu0 0
      %449 = vmatprep.subr.bf16.mxu0 0
      %450 = vmatpush1.bf16.msra.mxu0 0
      %451 = vmatprep.subr.bf16.mxu0 0
      %452 = vmatpush1.bf16.msra.mxu0 0
      %453 = vmatprep.subr.bf16.mxu0 0
      %454 = vmatpush1.bf16.msra.mxu0 0
      %455 = vmatprep.subr.bf16.mxu0 0
      %456 = vmatpush1.bf16.msra.mxu0 %v436
      %457 = vmatprep.subr.bf16.mxu0 0
      %458 = vmatpush1.bf16.msra.mxu0 %v435
      %459 = vmatprep.subr.bf16.mxu0 0
      %460 = vmatpush2.bf16.msra.mxu0 0
      %461 = vmatprep.subr.bf16.mxu0 0
      %462 = vmatpush2.bf16.msra.mxu0 0
      %463 = vmatprep.subr.bf16.mxu0 0
      %464 = vmatpush2.bf16.msra.mxu0 0
      %465 = vmatprep.subr.bf16.mxu0 0
      %466 = vmatpush2.bf16.msra.mxu0 0
      %467 = vmatprep.subr.bf16.mxu0 0
      %468 = vmatpush2.bf16.msra.mxu0 0
      %469 = vmatprep.subr.bf16.mxu0 0
      %470 = vmatpush2.bf16.msra.mxu0 0
      %471 = vmatprep.subr.bf16.mxu0 0
      %472 = vmatpush2.bf16.msra.mxu0 0
      %473 = vmatprep.subr.bf16.mxu0 0
      %474 = vmatpush2.bf16.msra.mxu0 0
      %475 = vmatprep.mubr.bf16.mxu0 0
      %476 = vmatmul.mubr.bf16.gmra.mxu0 %v441
      %v477 = vpop.f32.mrf.mxu0
      %v478 = vadd.f32 %v425, %v477
      %v479 = vpop.f32.mrf.mxu0
      %v480 = vpop.f32.mrf.mxu0
      %v481 = vadd.f32 %v425, %v480
      %v482 = vpop.f32.mrf.mxu0
      %483 = vdwg.mxu0
      %484 = vrot.lane.b32.xlu0 %v435, 96
      %v485 = vpop.permute.xlu0 %484
      %486 = vrot.lane.b32.xlu0 %v436, 96
      %v487 = vpop.permute.xlu0 %486
      %490 = vrot.lane.b32.xlu0 %v425, 96
      %v491 = vpop.permute.xlu0 %490
      %v494 = vsel %vm439, %v420, 0
      %496 = vmatprep.subr.bf16.mxu0 0
      %497 = vmatpush1.bf16.msra.mxu0 0
      %498 = vmatprep.subr.bf16.mxu0 0
      %499 = vmatpush1.bf16.msra.mxu0 0
      %500 = vmatprep.subr.bf16.mxu0 0
      %501 = vmatpush1.bf16.msra.mxu0 0
      %502 = vmatprep.subr.bf16.mxu0 0
      %503 = vmatpush1.bf16.msra.mxu0 0
      %504 = vmatprep.subr.bf16.mxu0 0
      %505 = vmatpush1.bf16.msra.mxu0 0
      %506 = vmatprep.subr.bf16.mxu0 0
      %507 = vmatpush1.bf16.msra.mxu0 0
      %508 = vmatprep.subr.bf16.mxu0 0
      %509 = vmatpush1.bf16.msra.mxu0 %v487
      %510 = vmatprep.subr.bf16.mxu0 0
      %511 = vmatpush1.bf16.msra.mxu0 %v485
      %512 = vmatprep.subr.bf16.mxu0 0
      %513 = vmatpush2.bf16.msra.mxu0 0
      %514 = vmatprep.subr.bf16.mxu0 0
      %515 = vmatpush2.bf16.msra.mxu0 0
      %516 = vmatprep.subr.bf16.mxu0 0
      %517 = vmatpush2.bf16.msra.mxu0 0
      %518 = vmatprep.subr.bf16.mxu0 0
      %519 = vmatpush2.bf16.msra.mxu0 0
      %520 = vmatprep.subr.bf16.mxu0 0
      %521 = vmatpush2.bf16.msra.mxu0 0
      %522 = vmatprep.subr.bf16.mxu0 0
      %523 = vmatpush2.bf16.msra.mxu0 0
      %524 = vmatprep.subr.bf16.mxu0 0
      %525 = vmatpush2.bf16.msra.mxu0 0
      %526 = vmatprep.subr.bf16.mxu0 0
      %527 = vmatpush2.bf16.msra.mxu0 0
      %528 = vmatprep.mubr.bf16.mxu0 0
      %529 = vmatmul.mubr.bf16.gmra.mxu0 %v494
      %v530 = vpop.f32.mrf.mxu0
      %v531 = vadd.f32 %v491, %v530
      %v532 = vpop.f32.mrf.mxu0
      %v533 = vpop.f32.mrf.mxu0
      %v534 = vadd.f32 %v491, %v533
      %v535 = vpop.f32.mrf.mxu0
      %536 = vdwg.mxu0
      %v537 = vld [vmem:[%s5] sm:$0x1]
      %v538 = vpack.c.bf16 %v481, %v478
      %v539 = vpack.c.bf16 %v534, %v531
      %vm540 = vcmask 64512
      %v542 = vsel %vm540, %v538, 0
      %v545 = vsel %vm540, %v539, 0
      %547 = vmatprep.subr.bf16.mxu0 0
      %548 = vmatpush1.bf16.xpose.msra.mxu0 0
      %549 = vmatprep.subr.bf16.mxu0 0
      %550 = vmatpush1.bf16.xpose.msra.mxu0 0
      %551 = vmatprep.subr.bf16.mxu0 0
      %552 = vmatpush1.bf16.xpose.msra.mxu0 0
      %553 = vmatprep.subr.bf16.mxu0 0
      %554 = vmatpush1.bf16.xpose.msra.mxu0 0
      %555 = vmatprep.subr.bf16.mxu0 0
      %556 = vmatpush1.bf16.xpose.msra.mxu0 0
      %557 = vmatprep.subr.bf16.mxu0 0
      %558 = vmatpush1.bf16.xpose.msra.mxu0 0
      %559 = vmatprep.subr.bf16.mxu0 0
      %560 = vmatpush1.bf16.xpose.msra.mxu0 0
      %561 = vmatprep.subr.bf16.mxu0 0
      %562 = vmatpush1.bf16.xpose.msra.mxu0 %v545
      %563 = vmatprep.subr.bf16.mxu0 0
      %564 = vmatpush2.bf16.xpose.msra.mxu0 0
      %565 = vmatprep.subr.bf16.mxu0 0
      %566 = vmatpush2.bf16.xpose.msra.mxu0 0
      %567 = vmatprep.subr.bf16.mxu0 0
      %568 = vmatpush2.bf16.xpose.msra.mxu0 0
      %569 = vmatprep.subr.bf16.mxu0 0
      %570 = vmatpush2.bf16.xpose.msra.mxu0 0
      %571 = vmatprep.subr.bf16.mxu0 0
      %572 = vmatpush2.bf16.xpose.msra.mxu0 0
      %573 = vmatprep.subr.bf16.mxu0 0
      %574 = vmatpush2.bf16.xpose.msra.mxu0 0
      %575 = vmatprep.subr.bf16.mxu0 0
      %576 = vmatpush2.bf16.xpose.msra.mxu0 0
      %577 = vmatprep.subr.bf16.mxu0 0
      %578 = vmatpush2.bf16.xpose.msra.mxu0 0
      %579 = vmatprep.mubr.bf16.mxu0 0
      %580 = vmatmul.mubr.bf16.gmra.mxu0 %v542
      %v581 = vpop.f32.mrf.mxu0
      %v582 = vadd.f32 0.0, %v581
      %v583 = vpop.f32.mrf.mxu0
      %v584 = vpop.f32.mrf.mxu0
      %v585 = vadd.f32 0.0, %v584
      %v586 = vpop.f32.mrf.mxu0
      %587 = vdwg.mxu0
      %v588 = vmul.f32 %v582, 0.35355338
      %v589 = vmul.f32 %v585, 0.35355338
      %v590 = vadd.f32 %v588, %v417
      %v591 = vadd.f32 %v589, %v418
      %vm592 = vcmask 80896
      %v593 = vsel %vm592, %v590, -inf
      %594 = vmax.xlane.f32.xlu0 %v593
      %v595 = vpop.xlane.xlu0 %594
      %vm596 = vcmask 74752
      %v597 = vsel %vm596, %v591, -inf
      %598 = vmax.xlane.f32.xlu0 %v597
      %v599 = vpop.xlane.xlu0 %598
      %v600 = vsub.f32 %v590, %v595
      %v601 = vsub.f32 %v591, %v599
      %v602 = vmul.f32 %v600, 1.442695
      %v603 = vpow.pop %v602
      %v604 = vmul.f32 %v601, 1.442695
      %v605 = vpow.pop %v604
      %v606 = vsel %vm592, %v603, 0.0
      %607 = vadd.xlane.f32.xlu0 %v606
      %v608 = vpop.xlane.xlu0 %607
      %v609 = vsel %vm596, %v605, 0.0
      %610 = vadd.xlane.f32.xlu0 %v609
      %v611 = vpop.xlane.xlu0 %610
      %v612 = vrcp.pop %v608
      %v613 = vrcp.pop %v611
      %v614 = vmul.f32 %v603, %v612
      %v615 = vmul.f32 %v605, %v613
      %v616 = vpack.c.bf16 %v615, %v614
      %618 = vrot.lane.b32.xlu0 %v539, 96
      %v619 = vpop.permute.xlu0 %618
      %v621 = vsel %vm592, %v616, 0
      %vm623 = vcmask 1044480
      %v625 = vsel %vm623, %v619, 0
      %627 = vmatprep.subr.bf16.mxu0 0
      %628 = vmatpush1.bf16.msra.mxu0 0
      %629 = vmatprep.subr.bf16.mxu0 0
      %630 = vmatpush1.bf16.msra.mxu0 0
      %631 = vmatprep.subr.bf16.mxu0 0
      %632 = vmatpush1.bf16.msra.mxu0 0
      %633 = vmatprep.subr.bf16.mxu0 0
      %634 = vmatpush1.bf16.msra.mxu0 0
      %635 = vmatprep.subr.bf16.mxu0 0
      %636 = vmatpush1.bf16.msra.mxu0 0
      %637 = vmatprep.subr.bf16.mxu0 0
      %638 = vmatpush1.bf16.msra.mxu0 0
      %639 = vmatprep.subr.bf16.mxu0 0
      %640 = vmatpush1.bf16.msra.mxu0 0
      %641 = vmatprep.subr.bf16.mxu0 0
      %642 = vmatpush1.bf16.msra.mxu0 %v625
      %643 = vmatprep.subr.bf16.mxu0 0
      %644 = vmatpush2.bf16.msra.mxu0 0
      %645 = vmatprep.subr.bf16.mxu0 0
      %646 = vmatpush2.bf16.msra.mxu0 0
      %647 = vmatprep.subr.bf16.mxu0 0
      %648 = vmatpush2.bf16.msra.mxu0 0
      %649 = vmatprep.subr.bf16.mxu0 0
      %650 = vmatpush2.bf16.msra.mxu0 0
      %651 = vmatprep.subr.bf16.mxu0 0
      %652 = vmatpush2.bf16.msra.mxu0 0
      %653 = vmatprep.subr.bf16.mxu0 0
      %654 = vmatpush2.bf16.msra.mxu0 0
      %655 = vmatprep.subr.bf16.mxu0 0
      %656 = vmatpush2.bf16.msra.mxu0 0
      %657 = vmatprep.subr.bf16.mxu0 0
      %658 = vmatpush2.bf16.msra.mxu0 0
      %659 = vmatprep.mubr.bf16.mxu0 0
      %660 = vmatmul.mubr.bf16.gmra.mxu0 %v621
      %v661 = vpop.f32.mrf.mxu0
      %v662 = vadd.f32 0.0, %v661
      %v663 = vpop.f32.mrf.mxu0
      %v664 = vpop.f32.mrf.mxu0
      %v665 = vadd.f32 0.0, %v664
      %v666 = vpop.f32.mrf.mxu0
      %667 = vdwg.mxu0
      %v668 = vpack.c.bf16 %v665, %v662
      %v670 = vsel %vm540, %v668, 0
      %vm672 = vcmask 1043456
      %v674 = vsel %vm672, %v404, 0
      %676 = vmatprep.subr.bf16.mxu0 0
      %677 = vmatpush1.bf16.msra.mxu0 0
      %678 = vmatprep.subr.bf16.mxu0 0
      %679 = vmatpush1.bf16.msra.mxu0 0
      %680 = vmatprep.subr.bf16.mxu0 0
      %681 = vmatpush1.bf16.msra.mxu0 0
      %682 = vmatprep.subr.bf16.mxu0 0
      %683 = vmatpush1.bf16.msra.mxu0 0
      %684 = vmatprep.subr.bf16.mxu0 0
      %685 = vmatpush1.bf16.msra.mxu0 0
      %686 = vmatprep.subr.bf16.mxu0 0
      %687 = vmatpush1.bf16.msra.mxu0 0
      %688 = vmatprep.subr.bf16.mxu0 0
      %689 = vmatpush1.bf16.msra.mxu0 0
      %690 = vmatprep.subr.bf16.mxu0 0
      %691 = vmatpush1.bf16.msra.mxu0 %v674
      %692 = vmatprep.subr.bf16.mxu0 0
      %693 = vmatpush2.bf16.msra.mxu0 0
      %694 = vmatprep.subr.bf16.mxu0 0
      %695 = vmatpush2.bf16.msra.mxu0 0
      %696 = vmatprep.subr.bf16.mxu0 0
      %697 = vmatpush2.bf16.msra.mxu0 0
      %698 = vmatprep.subr.bf16.mxu0 0
      %699 = vmatpush2.bf16.msra.mxu0 0
      %700 = vmatprep.subr.bf16.mxu0 0
      %701 = vmatpush2.bf16.msra.mxu0 0
      %702 = vmatprep.subr.bf16.mxu0 0
      %703 = vmatpush2.bf16.msra.mxu0 0
      %704 = vmatprep.subr.bf16.mxu0 0
      %705 = vmatpush2.bf16.msra.mxu0 0
      %706 = vmatprep.subr.bf16.mxu0 0
      %707 = vmatpush2.bf16.msra.mxu0 0
      %708 = vmatprep.mubr.bf16.mxu0 0
      %709 = vmatmul.mubr.bf16.gmra.mxu0 %v670
      %v710 = vpop.f32.mrf.mxu0
      %v711 = vadd.f32 0.0, %v710
      %v712 = vpop.f32.mrf.mxu0
      %v713 = vpop.f32.mrf.mxu0
      %v714 = vadd.f32 0.0, %v713
      %v715 = vpop.f32.mrf.mxu0
      %716 = vdwg.mxu0
      %v718 = vlaneseq
      %v719 = vshrl.u32 %v718, 7
      %v720 = vsub.s32 0, %v719
      %v721 = vrot.slane %v537, %v720
      %v723 = vadd.f32 %v721, %v711
      %v724 = vadd.f32 %v721, %v714
      %726 = vrot.lane.b32.xlu0 %v538, 120
      %v727 = vpop.permute.xlu0 %726
      %728 = vrot.lane.b32.xlu0 %v539, 120
      %v729 = vpop.permute.xlu0 %728
      %v731 = vsel %vm540, %v727, 0
      %v734 = vsel %vm540, %v729, 0
      %736 = vmatprep.subr.bf16.mxu0 0
      %737 = vmatpush1.bf16.xpose.msra.mxu0 0
      %738 = vmatprep.subr.bf16.mxu0 0
      %739 = vmatpush1.bf16.xpose.msra.mxu0 0
      %740 = vmatprep.subr.bf16.mxu0 0
      %741 = vmatpush1.bf16.xpose.msra.mxu0 0
      %742 = vmatprep.subr.bf16.mxu0 0
      %743 = vmatpush1.bf16.xpose.msra.mxu0 0
      %744 = vmatprep.subr.bf16.mxu0 0
      %745 = vmatpush1.bf16.xpose.msra.mxu0 0
      %746 = vmatprep.subr.bf16.mxu0 0
      %747 = vmatpush1.bf16.xpose.msra.mxu0 0
      %748 = vmatprep.subr.bf16.mxu0 0
      %749 = vmatpush1.bf16.xpose.msra.mxu0 0
      %750 = vmatprep.subr.bf16.mxu0 0
      %751 = vmatpush1.bf16.xpose.msra.mxu0 %v734
      %752 = vmatprep.subr.bf16.mxu0 0
      %753 = vmatpush2.bf16.xpose.msra.mxu0 0
      %754 = vmatprep.subr.bf16.mxu0 0
      %755 = vmatpush2.bf16.xpose.msra.mxu0 0
      %756 = vmatprep.subr.bf16.mxu0 0
      %757 = vmatpush2.bf16.xpose.msra.mxu0 0
      %758 = vmatprep.subr.bf16.mxu0 0
      %759 = vmatpush2.bf16.xpose.msra.mxu0 0
      %760 = vmatprep.subr.bf16.mxu0 0
      %761 = vmatpush2.bf16.xpose.msra.mxu0 0
      %762 = vmatprep.subr.bf16.mxu0 0
      %763 = vmatpush2.bf16.xpose.msra.mxu0 0
      %764 = vmatprep.subr.bf16.mxu0 0
      %765 = vmatpush2.bf16.xpose.msra.mxu0 0
      %766 = vmatprep.subr.bf16.mxu0 0
      %767 = vmatpush2.bf16.xpose.msra.mxu0 0
      %768 = vmatprep.mubr.bf16.mxu0 0
      %769 = vmatmul.mubr.bf16.gmra.mxu0 %v731
      %v770 = vpop.f32.mrf.mxu0
      %v771 = vadd.f32 0.0, %v770
      %v772 = vpop.f32.mrf.mxu0
      %v773 = vpop.f32.mrf.mxu0
      %v774 = vadd.f32 0.0, %v773
      %v775 = vpop.f32.mrf.mxu0
      %776 = vdwg.mxu0
      %v777 = vmul.f32 %v771, 0.35355338
      %v778 = vmul.f32 %v774, 0.35355338
      %v779 = vadd.f32 %v777, %v417
      %v780 = vadd.f32 %v778, %v418
      %v781 = vsel %vm592, %v779, -inf
      %782 = vmax.xlane.f32.xlu0 %v781
      %v783 = vpop.xlane.xlu0 %782
      %v784 = vsel %vm596, %v780, -inf
      %785 = vmax.xlane.f32.xlu0 %v784
      %v786 = vpop.xlane.xlu0 %785
      %v787 = vsub.f32 %v779, %v783
      %v788 = vsub.f32 %v780, %v786
      %v789 = vmul.f32 %v787, 1.442695
      %v790 = vpow.pop %v789
      %v791 = vmul.f32 %v788, 1.442695
      %v792 = vpow.pop %v791
      %v793 = vsel %vm592, %v790, 0.0
      %794 = vadd.xlane.f32.xlu0 %v793
      %v795 = vpop.xlane.xlu0 %794
      %v796 = vsel %vm596, %v792, 0.0
      %797 = vadd.xlane.f32.xlu0 %v796
      %v798 = vpop.xlane.xlu0 %797
      %v799 = vrcp.pop %v795
      %v800 = vrcp.pop %v798
      %v801 = vmul.f32 %v790, %v799
      %v802 = vmul.f32 %v792, %v800
      %v803 = vpack.c.bf16 %v802, %v801
      %804 = vrot.lane.b32.xlu0 %v539, 88
      %v805 = vpop.permute.xlu0 %804
      %v807 = vsel %vm592, %v803, 0
      %v810 = vsel %vm623, %v805, 0
      %812 = vmatprep.subr.bf16.mxu0 0
      %813 = vmatpush1.bf16.msra.mxu0 0
      %814 = vmatprep.subr.bf16.mxu0 0
      %815 = vmatpush1.bf16.msra.mxu0 0
      %816 = vmatprep.subr.bf16.mxu0 0
      %817 = vmatpush1.bf16.msra.mxu0 0
      %818 = vmatprep.subr.bf16.mxu0 0
      %819 = vmatpush1.bf16.msra.mxu0 0
      %820 = vmatprep.subr.bf16.mxu0 0
      %821 = vmatpush1.bf16.msra.mxu0 0
      %822 = vmatprep.subr.bf16.mxu0 0
      %823 = vmatpush1.bf16.msra.mxu0 0
      %824 = vmatprep.subr.bf16.mxu0 0
      %825 = vmatpush1.bf16.msra.mxu0 0
      %826 = vmatprep.subr.bf16.mxu0 0
      %827 = vmatpush1.bf16.msra.mxu0 %v810
      %828 = vmatprep.subr.bf16.mxu0 0
      %829 = vmatpush2.bf16.msra.mxu0 0
      %830 = vmatprep.subr.bf16.mxu0 0
      %831 = vmatpush2.bf16.msra.mxu0 0
      %832 = vmatprep.subr.bf16.mxu0 0
      %833 = vmatpush2.bf16.msra.mxu0 0
      %834 = vmatprep.subr.bf16.mxu0 0
      %835 = vmatpush2.bf16.msra.mxu0 0
      %836 = vmatprep.subr.bf16.mxu0 0
      %837 = vmatpush2.bf16.msra.mxu0 0
      %838 = vmatprep.subr.bf16.mxu0 0
      %839 = vmatpush2.bf16.msra.mxu0 0
      %840 = vmatprep.subr.bf16.mxu0 0
      %841 = vmatpush2.bf16.msra.mxu0 0
      %842 = vmatprep.subr.bf16.mxu0 0
      %843 = vmatpush2.bf16.msra.mxu0 0
      %844 = vmatprep.mubr.bf16.mxu0 0
      %845 = vmatmul.mubr.bf16.gmra.mxu0 %v807
      %v846 = vpop.f32.mrf.mxu0
      %v847 = vadd.f32 0.0, %v846
      %v848 = vpop.f32.mrf.mxu0
      %v849 = vpop.f32.mrf.mxu0
      %v850 = vadd.f32 0.0, %v849
      %v851 = vpop.f32.mrf.mxu0
      %852 = vdwg.mxu0
      %v853 = vpack.c.bf16 %v850, %v847
      %v855 = vsel %vm540, %v853, 0
      %v858 = vsel %vm672, %v405, 0
      %860 = vmatprep.subr.bf16.mxu0 0
      %861 = vmatpush1.bf16.msra.mxu0 0
      %862 = vmatprep.subr.bf16.mxu0 0
      %863 = vmatpush1.bf16.msra.mxu0 0
      %864 = vmatprep.subr.bf16.mxu0 0
      %865 = vmatpush1.bf16.msra.mxu0 0
      %866 = vmatprep.subr.bf16.mxu0 0
      %867 = vmatpush1.bf16.msra.mxu0 0
      %868 = vmatprep.subr.bf16.mxu0 0
      %869 = vmatpush1.bf16.msra.mxu0 0
      %870 = vmatprep.subr.bf16.mxu0 0
      %871 = vmatpush1.bf16.msra.mxu0 0
      %872 = vmatprep.subr.bf16.mxu0 0
      %873 = vmatpush1.bf16.msra.mxu0 0
      %874 = vmatprep.subr.bf16.mxu0 0
      %875 = vmatpush1.bf16.msra.mxu0 %v858
      %876 = vmatprep.subr.bf16.mxu0 0
      %877 = vmatpush2.bf16.msra.mxu0 0
      %878 = vmatprep.subr.bf16.mxu0 0
      %879 = vmatpush2.bf16.msra.mxu0 0
      %880 = vmatprep.subr.bf16.mxu0 0
      %881 = vmatpush2.bf16.msra.mxu0 0
      %882 = vmatprep.subr.bf16.mxu0 0
      %883 = vmatpush2.bf16.msra.mxu0 0
      %884 = vmatprep.subr.bf16.mxu0 0
      %885 = vmatpush2.bf16.msra.mxu0 0
      %886 = vmatprep.subr.bf16.mxu0 0
      %887 = vmatpush2.bf16.msra.mxu0 0
      %888 = vmatprep.subr.bf16.mxu0 0
      %889 = vmatpush2.bf16.msra.mxu0 0
      %890 = vmatprep.subr.bf16.mxu0 0
      %891 = vmatpush2.bf16.msra.mxu0 0
      %892 = vmatprep.mubr.bf16.mxu0 0
      %893 = vmatmul.mubr.bf16.gmra.mxu0 %v855
      %v894 = vpop.f32.mrf.mxu0
      %v895 = vadd.f32 0.0, %v894
      %v896 = vpop.f32.mrf.mxu0
      %v897 = vpop.f32.mrf.mxu0
      %v898 = vadd.f32 0.0, %v897
      %v899 = vpop.f32.mrf.mxu0
      %900 = vdwg.mxu0
      %v901 = vadd.f32 %v723, %v895
      %v902 = vadd.f32 %v724, %v898
      %903 = vrot.lane.b32.xlu0 %v538, 112
      %v904 = vpop.permute.xlu0 %903
      %905 = vrot.lane.b32.xlu0 %v539, 112
      %v906 = vpop.permute.xlu0 %905
      %v908 = vsel %vm540, %v904, 0
      %v911 = vsel %vm540, %v906, 0
      %913 = vmatprep.subr.bf16.mxu0 0
      %914 = vmatpush1.bf16.xpose.msra.mxu0 0
      %915 = vmatprep.subr.bf16.mxu0 0
      %916 = vmatpush1.bf16.xpose.msra.mxu0 0
      %917 = vmatprep.subr.bf16.mxu0 0
      %918 = vmatpush1.bf16.xpose.msra.mxu0 0
      %919 = vmatprep.subr.bf16.mxu0 0
      %920 = vmatpush1.bf16.xpose.msra.mxu0 0
      %921 = vmatprep.subr.bf16.mxu0 0
      %922 = vmatpush1.bf16.xpose.msra.mxu0 0
      %923 = vmatprep.subr.bf16.mxu0 0
      %924 = vmatpush1.bf16.xpose.msra.mxu0 0
      %925 = vmatprep.subr.bf16.mxu0 0
      %926 = vmatpush1.bf16.xpose.msra.mxu0 0
      %927 = vmatprep.subr.bf16.mxu0 0
      %928 = vmatpush1.bf16.xpose.msra.mxu0 %v911
      %929 = vmatprep.subr.bf16.mxu0 0
      %930 = vmatpush2.bf16.xpose.msra.mxu0 0
      %931 = vmatprep.subr.bf16.mxu0 0
      %932 = vmatpush2.bf16.xpose.msra.mxu0 0
      %933 = vmatprep.subr.bf16.mxu0 0
      %934 = vmatpush2.bf16.xpose.msra.mxu0 0
      %935 = vmatprep.subr.bf16.mxu0 0
      %936 = vmatpush2.bf16.xpose.msra.mxu0 0
      %937 = vmatprep.subr.bf16.mxu0 0
      %938 = vmatpush2.bf16.xpose.msra.mxu0 0
      %939 = vmatprep.subr.bf16.mxu0 0
      %940 = vmatpush2.bf16.xpose.msra.mxu0 0
      %941 = vmatprep.subr.bf16.mxu0 0
      %942 = vmatpush2.bf16.xpose.msra.mxu0 0
      %943 = vmatprep.subr.bf16.mxu0 0
      %944 = vmatpush2.bf16.xpose.msra.mxu0 0
      %945 = vmatprep.mubr.bf16.mxu0 0
      %946 = vmatmul.mubr.bf16.gmra.mxu0 %v908
      %v947 = vpop.f32.mrf.mxu0
      %v948 = vadd.f32 0.0, %v947
      %v949 = vpop.f32.mrf.mxu0
      %v950 = vpop.f32.mrf.mxu0
      %v951 = vadd.f32 0.0, %v950
      %v952 = vpop.f32.mrf.mxu0
      %953 = vdwg.mxu0
      %v954 = vmul.f32 %v948, 0.35355338
      %v955 = vmul.f32 %v951, 0.35355338
      %v956 = vadd.f32 %v954, %v417
      %v957 = vadd.f32 %v955, %v418
      %v958 = vsel %vm592, %v956, -inf
      %959 = vmax.xlane.f32.xlu0 %v958
      %v960 = vpop.xlane.xlu0 %959
      %v961 = vsel %vm596, %v957, -inf
      %962 = vmax.xlane.f32.xlu0 %v961
      %v963 = vpop.xlane.xlu0 %962
      %v964 = vsub.f32 %v956, %v960
      %v965 = vsub.f32 %v957, %v963
      %v966 = vmul.f32 %v964, 1.442695
      %v967 = vpow.pop %v966
      %v968 = vmul.f32 %v965, 1.442695
      %v969 = vpow.pop %v968
      %v970 = vsel %vm592, %v967, 0.0
      %971 = vadd.xlane.f32.xlu0 %v970
      %v972 = vpop.xlane.xlu0 %971
      %v973 = vsel %vm596, %v969, 0.0
      %974 = vadd.xlane.f32.xlu0 %v973
      %v975 = vpop.xlane.xlu0 %974
      %v976 = vrcp.pop %v972
      %v977 = vrcp.pop %v975
      %v978 = vmul.f32 %v967, %v976
      %v979 = vmul.f32 %v969, %v977
      %v980 = vpack.c.bf16 %v979, %v978
      %981 = vrot.lane.b32.xlu0 %v539, 80
      %v982 = vpop.permute.xlu0 %981
      %v984 = vsel %vm592, %v980, 0
      %v987 = vsel %vm623, %v982, 0
      %989 = vmatprep.subr.bf16.mxu0 0
      %990 = vmatpush1.bf16.msra.mxu0 0
      %991 = vmatprep.subr.bf16.mxu0 0
      %992 = vmatpush1.bf16.msra.mxu0 0
      %993 = vmatprep.subr.bf16.mxu0 0
      %994 = vmatpush1.bf16.msra.mxu0 0
      %995 = vmatprep.subr.bf16.mxu0 0
      %996 = vmatpush1.bf16.msra.mxu0 0
      %997 = vmatprep.subr.bf16.mxu0 0
      %998 = vmatpush1.bf16.msra.mxu0 0
      %999 = vmatprep.subr.bf16.mxu0 0
      %1000 = vmatpush1.bf16.msra.mxu0 0
      %1001 = vmatprep.subr.bf16.mxu0 0
      %1002 = vmatpush1.bf16.msra.mxu0 0
      %1003 = vmatprep.subr.bf16.mxu0 0
      %1004 = vmatpush1.bf16.msra.mxu0 %v987
      %1005 = vmatprep.subr.bf16.mxu0 0
      %1006 = vmatpush2.bf16.msra.mxu0 0
      %1007 = vmatprep.subr.bf16.mxu0 0
      %1008 = vmatpush2.bf16.msra.mxu0 0
      %1009 = vmatprep.subr.bf16.mxu0 0
      %1010 = vmatpush2.bf16.msra.mxu0 0
      %1011 = vmatprep.subr.bf16.mxu0 0
      %1012 = vmatpush2.bf16.msra.mxu0 0
      %1013 = vmatprep.subr.bf16.mxu0 0
      %1014 = vmatpush2.bf16.msra.mxu0 0
      %1015 = vmatprep.subr.bf16.mxu0 0
      %1016 = vmatpush2.bf16.msra.mxu0 0
      %1017 = vmatprep.subr.bf16.mxu0 0
      %1018 = vmatpush2.bf16.msra.mxu0 0
      %1019 = vmatprep.subr.bf16.mxu0 0
      %1020 = vmatpush2.bf16.msra.mxu0 0
      %1021 = vmatprep.mubr.bf16.mxu0 0
      %1022 = vmatmul.mubr.bf16.gmra.mxu0 %v984
      %v1023 = vpop.f32.mrf.mxu0
      %v1024 = vadd.f32 0.0, %v1023
      %v1025 = vpop.f32.mrf.mxu0
      %v1026 = vpop.f32.mrf.mxu0
      %v1027 = vadd.f32 0.0, %v1026
      %v1028 = vpop.f32.mrf.mxu0
      %1029 = vdwg.mxu0
      %v1030 = vpack.c.bf16 %v1027, %v1024
      %v1032 = vsel %vm540, %v1030, 0
      %v1035 = vsel %vm672, %v406, 0
      %1037 = vmatprep.subr.bf16.mxu0 0
      %1038 = vmatpush1.bf16.msra.mxu0 0
      %1039 = vmatprep.subr.bf16.mxu0 0
      %1040 = vmatpush1.bf16.msra.mxu0 0
      %1041 = vmatprep.subr.bf16.mxu0 0
      %1042 = vmatpush1.bf16.msra.mxu0 0
      %1043 = vmatprep.subr.bf16.mxu0 0
      %1044 = vmatpush1.bf16.msra.mxu0 0
      %1045 = vmatprep.subr.bf16.mxu0 0
      %1046 = vmatpush1.bf16.msra.mxu0 0
      %1047 = vmatprep.subr.bf16.mxu0 0
      %1048 = vmatpush1.bf16.msra.mxu0 0
      %1049 = vmatprep.subr.bf16.mxu0 0
      %1050 = vmatpush1.bf16.msra.mxu0 0
      %1051 = vmatprep.subr.bf16.mxu0 0
      %1052 = vmatpush1.bf16.msra.mxu0 %v1035
      %1053 = vmatprep.subr.bf16.mxu0 0
      %1054 = vmatpush2.bf16.msra.mxu0 0
      %1055 = vmatprep.subr.bf16.mxu0 0
      %1056 = vmatpush2.bf16.msra.mxu0 0
      %1057 = vmatprep.subr.bf16.mxu0 0
      %1058 = vmatpush2.bf16.msra.mxu0 0
      %1059 = vmatprep.subr.bf16.mxu0 0
      %1060 = vmatpush2.bf16.msra.mxu0 0
      %1061 = vmatprep.subr.bf16.mxu0 0
      %1062 = vmatpush2.bf16.msra.mxu0 0
      %1063 = vmatprep.subr.bf16.mxu0 0
      %1064 = vmatpush2.bf16.msra.mxu0 0
      %1065 = vmatprep.subr.bf16.mxu0 0
      %1066 = vmatpush2.bf16.msra.mxu0 0
      %1067 = vmatprep.subr.bf16.mxu0 0
      %1068 = vmatpush2.bf16.msra.mxu0 0
      %1069 = vmatprep.mubr.bf16.mxu0 0
      %1070 = vmatmul.mubr.bf16.gmra.mxu0 %v1032
      %v1071 = vpop.f32.mrf.mxu0
      %v1072 = vadd.f32 0.0, %v1071
      %v1073 = vpop.f32.mrf.mxu0
      %v1074 = vpop.f32.mrf.mxu0
      %v1075 = vadd.f32 0.0, %v1074
      %v1076 = vpop.f32.mrf.mxu0
      %1077 = vdwg.mxu0
      %v1078 = vadd.f32 %v901, %v1072
      %v1079 = vadd.f32 %v902, %v1075
      %1080 = vrot.lane.b32.xlu0 %v538, 104
      %v1081 = vpop.permute.xlu0 %1080
      %1082 = vrot.lane.b32.xlu0 %v539, 104
      %v1083 = vpop.permute.xlu0 %1082
      %v1085 = vsel %vm540, %v1081, 0
      %v1088 = vsel %vm540, %v1083, 0
      %1090 = vmatprep.subr.bf16.mxu0 0
      %1091 = vmatpush1.bf16.xpose.msra.mxu0 0
      %1092 = vmatprep.subr.bf16.mxu0 0
      %1093 = vmatpush1.bf16.xpose.msra.mxu0 0
      %1094 = vmatprep.subr.bf16.mxu0 0
      %1095 = vmatpush1.bf16.xpose.msra.mxu0 0
      %1096 = vmatprep.subr.bf16.mxu0 0
      %1097 = vmatpush1.bf16.xpose.msra.mxu0 0
      %1098 = vmatprep.subr.bf16.mxu0 0
      %1099 = vmatpush1.bf16.xpose.msra.mxu0 0
      %1100 = vmatprep.subr.bf16.mxu0 0
      %1101 = vmatpush1.bf16.xpose.msra.mxu0 0
      %1102 = vmatprep.subr.bf16.mxu0 0
      %1103 = vmatpush1.bf16.xpose.msra.mxu0 0
      %1104 = vmatprep.subr.bf16.mxu0 0
      %1105 = vmatpush1.bf16.xpose.msra.mxu0 %v1088
      %1106 = vmatprep.subr.bf16.mxu0 0
      %1107 = vmatpush2.bf16.xpose.msra.mxu0 0
      %1108 = vmatprep.subr.bf16.mxu0 0
      %1109 = vmatpush2.bf16.xpose.msra.mxu0 0
      %1110 = vmatprep.subr.bf16.mxu0 0
      %1111 = vmatpush2.bf16.xpose.msra.mxu0 0
      %1112 = vmatprep.subr.bf16.mxu0 0
      %1113 = vmatpush2.bf16.xpose.msra.mxu0 0
      %1114 = vmatprep.subr.bf16.mxu0 0
      %1115 = vmatpush2.bf16.xpose.msra.mxu0 0
      %1116 = vmatprep.subr.bf16.mxu0 0
      %1117 = vmatpush2.bf16.xpose.msra.mxu0 0
      %1118 = vmatprep.subr.bf16.mxu0 0
      %1119 = vmatpush2.bf16.xpose.msra.mxu0 0
      %1120 = vmatprep.subr.bf16.mxu0 0
      %1121 = vmatpush2.bf16.xpose.msra.mxu0 0
      %1122 = vmatprep.mubr.bf16.mxu0 0
      %1123 = vmatmul.mubr.bf16.gmra.mxu0 %v1085
      %v1124 = vpop.f32.mrf.mxu0
      %v1125 = vadd.f32 0.0, %v1124
      %v1126 = vpop.f32.mrf.mxu0
      %v1127 = vpop.f32.mrf.mxu0
      %v1128 = vadd.f32 0.0, %v1127
      %v1129 = vpop.f32.mrf.mxu0
      %1130 = vdwg.mxu0
      %v1131 = vmul.f32 %v1125, 0.35355338
      %v1132 = vmul.f32 %v1128, 0.35355338
      %v1133 = vadd.f32 %v1131, %v417
      %v1134 = vadd.f32 %v1132, %v418
      %v1135 = vsel %vm592, %v1133, -inf
      %1136 = vmax.xlane.f32.xlu0 %v1135
      %v1137 = vpop.xlane.xlu0 %1136
      %v1138 = vsel %vm596, %v1134, -inf
      %1139 = vmax.xlane.f32.xlu0 %v1138
      %v1140 = vpop.xlane.xlu0 %1139
      %v1141 = vsub.f32 %v1133, %v1137
      %v1142 = vsub.f32 %v1134, %v1140
      %v1143 = vmul.f32 %v1141, 1.442695
      %v1144 = vpow.pop %v1143
      %v1145 = vmul.f32 %v1142, 1.442695
      %v1146 = vpow.pop %v1145
      %v1147 = vsel %vm592, %v1144, 0.0
      %1148 = vadd.xlane.f32.xlu0 %v1147
      %v1149 = vpop.xlane.xlu0 %1148
      %v1150 = vsel %vm596, %v1146, 0.0
      %1151 = vadd.xlane.f32.xlu0 %v1150
      %v1152 = vpop.xlane.xlu0 %1151
      %v1153 = vrcp.pop %v1149
      %v1154 = vrcp.pop %v1152
      %v1155 = vmul.f32 %v1144, %v1153
      %v1156 = vmul.f32 %v1146, %v1154
      %v1157 = vpack.c.bf16 %v1156, %v1155
      %1158 = vrot.lane.b32.xlu0 %v539, 72
      %v1159 = vpop.permute.xlu0 %1158
      %v1161 = vsel %vm592, %v1157, 0
      %v1164 = vsel %vm623, %v1159, 0
      %1166 = vmatprep.subr.bf16.mxu0 0
      %1167 = vmatpush1.bf16.msra.mxu0 0
      %1168 = vmatprep.subr.bf16.mxu0 0
      %1169 = vmatpush1.bf16.msra.mxu0 0
      %1170 = vmatprep.subr.bf16.mxu0 0
      %1171 = vmatpush1.bf16.msra.mxu0 0
      %1172 = vmatprep.subr.bf16.mxu0 0
      %1173 = vmatpush1.bf16.msra.mxu0 0
      %1174 = vmatprep.subr.bf16.mxu0 0
      %1175 = vmatpush1.bf16.msra.mxu0 0
      %1176 = vmatprep.subr.bf16.mxu0 0
      %1177 = vmatpush1.bf16.msra.mxu0 0
      %1178 = vmatprep.subr.bf16.mxu0 0
      %1179 = vmatpush1.bf16.msra.mxu0 0
      %1180 = vmatprep.subr.bf16.mxu0 0
      %1181 = vmatpush1.bf16.msra.mxu0 %v1164
      %1182 = vmatprep.subr.bf16.mxu0 0
      %1183 = vmatpush2.bf16.msra.mxu0 0
      %1184 = vmatprep.subr.bf16.mxu0 0
      %1185 = vmatpush2.bf16.msra.mxu0 0
      %1186 = vmatprep.subr.bf16.mxu0 0
      %1187 = vmatpush2.bf16.msra.mxu0 0
      %1188 = vmatprep.subr.bf16.mxu0 0
      %1189 = vmatpush2.bf16.msra.mxu0 0
      %1190 = vmatprep.subr.bf16.mxu0 0
      %1191 = vmatpush2.bf16.msra.mxu0 0
      %1192 = vmatprep.subr.bf16.mxu0 0
      %1193 = vmatpush2.bf16.msra.mxu0 0
      %1194 = vmatprep.subr.bf16.mxu0 0
      %1195 = vmatpush2.bf16.msra.mxu0 0
      %1196 = vmatprep.subr.bf16.mxu0 0
      %1197 = vmatpush2.bf16.msra.mxu0 0
      %1198 = vmatprep.mubr.bf16.mxu0 0
      %1199 = vmatmul.mubr.bf16.gmra.mxu0 %v1161
      %v1200 = vpop.f32.mrf.mxu0
      %v1201 = vadd.f32 0.0, %v1200
      %v1202 = vpop.f32.mrf.mxu0
      %v1203 = vpop.f32.mrf.mxu0
      %v1204 = vadd.f32 0.0, %v1203
      %v1205 = vpop.f32.mrf.mxu0
      %1206 = vdwg.mxu0
      %v1207 = vpack.c.bf16 %v1204, %v1201
      %v1209 = vsel %vm540, %v1207, 0
      %v1212 = vsel %vm672, %v407, 0
      %1214 = vmatprep.subr.bf16.mxu0 0
      %1215 = vmatpush1.bf16.msra.mxu0 0
      %1216 = vmatprep.subr.bf16.mxu0 0
      %1217 = vmatpush1.bf16.msra.mxu0 0
      %1218 = vmatprep.subr.bf16.mxu0 0
      %1219 = vmatpush1.bf16.msra.mxu0 0
      %1220 = vmatprep.subr.bf16.mxu0 0
      %1221 = vmatpush1.bf16.msra.mxu0 0
      %1222 = vmatprep.subr.bf16.mxu0 0
      %1223 = vmatpush1.bf16.msra.mxu0 0
      %1224 = vmatprep.subr.bf16.mxu0 0
      %1225 = vmatpush1.bf16.msra.mxu0 0
      %1226 = vmatprep.subr.bf16.mxu0 0
      %1227 = vmatpush1.bf16.msra.mxu0 0
      %1228 = vmatprep.subr.bf16.mxu0 0
      %1229 = vmatpush1.bf16.msra.mxu0 %v1212
      %1230 = vmatprep.subr.bf16.mxu0 0
      %1231 = vmatpush2.bf16.msra.mxu0 0
      %1232 = vmatprep.subr.bf16.mxu0 0
      %1233 = vmatpush2.bf16.msra.mxu0 0
      %1234 = vmatprep.subr.bf16.mxu0 0
      %1235 = vmatpush2.bf16.msra.mxu0 0
      %1236 = vmatprep.subr.bf16.mxu0 0
      %1237 = vmatpush2.bf16.msra.mxu0 0
      %1238 = vmatprep.subr.bf16.mxu0 0
      %1239 = vmatpush2.bf16.msra.mxu0 0
      %1240 = vmatprep.subr.bf16.mxu0 0
      %1241 = vmatpush2.bf16.msra.mxu0 0
      %1242 = vmatprep.subr.bf16.mxu0 0
      %1243 = vmatpush2.bf16.msra.mxu0 0
      %1244 = vmatprep.subr.bf16.mxu0 0
      %1245 = vmatpush2.bf16.msra.mxu0 0
      %1246 = vmatprep.mubr.bf16.mxu0 0
      %1247 = vmatmul.mubr.bf16.gmra.mxu0 %v1209
      %v1248 = vpop.f32.mrf.mxu0
      %v1249 = vadd.f32 0.0, %v1248
      %v1250 = vpop.f32.mrf.mxu0
      %v1251 = vpop.f32.mrf.mxu0
      %v1252 = vadd.f32 0.0, %v1251
      %v1253 = vpop.f32.mrf.mxu0
      %1254 = vdwg.mxu0
      %v1255 = vadd.f32 %v1078, %v1249
      %v1256 = vadd.f32 %v1079, %v1252
      %v1257 = vadd.f32 %v395, %v1255
      %v1258 = vadd.f32 %v396, %v1256
      %v1259 = vsel %vm439, %v1257, 0.0
      %1260 = vadd.xlane.f32.xlu0 %v1259
      %v1261 = vpop.xlane.xlu0 %1260
      %vm1262 = vcmask 254976
      %v1263 = vsel %vm1262, %v1258, 0.0
      %1264 = vadd.xlane.f32.xlu0 %v1263
      %v1265 = vpop.xlane.xlu0 %1264
      %v1266 = vrcp.pop 32.0
      %v1267 = vmul.f32 %v1261, %v1266
      %v1268 = vmul.f32 %v1265, %v1266
      %v1269 = vsub.f32 %v1257, %v1267
      %v1270 = vsub.f32 %v1258, %v1268
      %v1271 = vmul.f32 %v1269, %v1269
      %v1272 = vmul.f32 %v1270, %v1270
      %v1273 = vsel %vm439, %v1271, 0.0
      %1274 = vadd.xlane.f32.xlu0 %v1273
      %v1275 = vpop.xlane.xlu0 %1274
      %v1276 = vsel %vm1262, %v1272, 0.0
      %1277 = vadd.xlane.f32.xlu0 %v1276
      %v1278 = vpop.xlane.xlu0 %1277
      %v1279 = vmul.f32 %v1275, %v1266
      %v1280 = vmul.f32 %v1278, %v1266
      %v1281 = vadd.f32 %v1279, 1e-05
      %v1282 = vadd.f32 %v1280, 1e-05
      %v1283 = vrsqrt.pop %v1281
      %v1284 = vrsqrt.pop %v1282
      %v1285 = vmul.f32 %v1269, %v1283
      %v1286 = vmul.f32 %v1270, %v1284
      %v1287 = vld [vmem:[%s8] sm:$0x1]
      %v1289 = vlaneseq
      %v1290 = vshrl.u32 %v1289, 7
      %v1291 = vsub.s32 0, %v1290
      %v1292 = vrot.slane %v1287, %v1291
      %v1294 = vmul.f32 %v1285, %v1292
      %v1295 = vmul.f32 %v1286, %v1292
      %v1296 = vld [vmem:[%s9] sm:$0x1]
      %v1298 = vlaneseq
      %v1299 = vshrl.u32 %v1298, 7
      %v1300 = vsub.s32 0, %v1299
      %v1301 = vrot.slane %v1296, %v1300
      %v1303 = vadd.f32 %v1294, %v1301
      %v1304 = vadd.f32 %v1295, %v1301
      %1305 = vst.msk [vmem:[%s393] sm:$0xff] %vm439, %v1303
      %1306 = vst.msk [vmem:[%s393 + $0x8] sm:$0x3] %vm1262, %v1304
      %p1307 = scmp.lt.s32.totalorder %s21, 1
      %s1308 = scalar_select %p1307, %s21, 1
      %s1309 = smul.addr %s1308, 2
      %s1310 = smul.addr %s1309, 8
      %s1311 = scalar_lea.vmem %s10, %s1310
      // Predicated region
      $region61: #{seq2seq_forward.17} parent=59 // pred_check
        %p1312 = pneg %p264
      $region62: #{seq2seq_forward.17} parent=59 // pred_check_branch
        %1314 = sbr.rel (%p1312) target = $region64
      $region63: #{seq2seq_forward.17} parent=59 // pred_region
        _
      $region64: #{seq2seq_forward.17} parent=59 // pred_fallthru
        _
    $region60: #{seq2seq_forward.17} parent=5 // pred_fallthru
      _
    %p1315 = scmp.le.s32.totalorder 2, %s16
    // Predicated region
    $region65: #{seq2seq_forward.17} parent=5 // pred_check
      %p1316 = pneg %p1315
    $region66: #{seq2seq_forward.17} parent=5 // pred_check_branch
      %1318 = sbr.rel (%p1316) target = $region68
    $region67: #{seq2seq_forward.17} parent=5 // pred_region
      %s1319 = ssub.s32 %s16, 2
      // Predicated region
      $region69: #{seq2seq_forward.17} parent=67 // pred_check
        %p1320 = pneg %p270
      $region70: #{seq2seq_forward.17} parent=67 // pred_check_branch
        %1322 = sbr.rel (%p1320) target = $region72
      $region71: #{seq2seq_forward.17} parent=67 // pred_region
        %p1323 = scmp.lt.s32.totalorder %s22, 1
        %s1324 = scalar_select %p1323, %s22, 1
        %s1325 = smul.addr %s1324, 2
        %s1326 = smul.addr %s1325, 8
        %s1327 = scalar_lea.vmem %s10, %s1326
      $region72: #{seq2seq_forward.17} parent=67 // pred_fallthru
        _
    $region68: #{seq2seq_forward.17} parent=5 // pred_fallthru
      _
  $region6: #{seq2seq_forward.17} parent=0 // loop_footer
    %s20 = sadd.s32 1, %s16
  $region7: #{seq2seq_forward.17} parent=0 // loop_footer_branch
    %15 = sbr.rel target = $region3
  $region8: #{seq2seq_forward.17} parent=0 // loop_exit
    _

// kernel: seq2seq_forward.23
$region0: #{seq2seq_forward.23}
  #allocation0 [shape = 'u32[]', space=smem, size = 0x4, offset = 0x4, fixed_abs, tag = 'smem constant byte address 0x4 - core index']
  #allocation1 [shape = 'u32[144,128]{1,0:T(1,128)}', space=vmem, size = 0x12000, scoped, tag = 'internal scratch']
  %s0 = inlined_call_operand.vmem [shape: f32[2,10,32], index: 0, kind: input, shape index: {}]
  %s1 = inlined_call_operand.vmem [shape: f32[1,32], index: 1, kind: input, shape index: {}]
  %s2 = inlined_call_operand.vmem [shape: f32[1,32], index: 2, kind: input, shape index: {}]
  %s3 = inlined_call_operand.vmem [shape: bf16[32,128], index: 3, kind: input, shape index: {}]
  %s4 = inlined_call_operand.vmem [shape: f32[1,128], index: 4, kind: input, shape index: {}]
  %s5 = inlined_call_operand.vmem [shape: f32[2,10,128], index: 5, kind: output, shape index: {}]
  %s6 = sld [smem:[#allocation0]]
  $region53: #{seq2seq_forward.23} parent=0
    _
  %s8 = ssub.s32 1, %s6
  %s9 = scalar_select 0, %s8, %s6
  loop: start=0, step=1, limit=4
  $region2: #{seq2seq_forward.23} parent=0 // loop_pre_header
    _
  $region3: #{seq2seq_forward.23} parent=0 // loop_header
    %s11 = sphi 0, %s15
    %p12 = scmp.ge.s32.totalorder %s11, 4
    %s21 = sphi 0, %s23
    %s24 = sphi 0, %s21
    %s25 = sphi 0, %s24
    %s41 = sphi 0, %s25
    %s45 = sphi 0, %s45
    %s47 = sphi 0, %s45
    %s48 = sphi 0, %s47
    %s62 = sphi 0, %s48
    %s66 = sphi 0, %s66
    %s68 = sphi 0, %s66
    %s69 = sphi 0, %s68
    %s83 = sphi 0, %s69
    %s87 = sphi 0, %s87
    %s89 = sphi 0, %s87
    %s90 = sphi 0, %s89
    %s104 = sphi 0, %s90
    %s108 = sphi 0, %s108
    %s110 = sphi 0, %s108
    %s111 = sphi 0, %s110
    %s125 = sphi 0, %s111
    %s131 = sphi 0, %s133
    %s134 = sphi 0, %s131
    %s135 = sphi 0, %s134
    %s151 = sphi 0, %s135
  $region4: #{seq2seq_forward.23} parent=0 // loop_header_branch
    %14 = sbr.rel (%p12) target = $region8
  $region5: #{seq2seq_forward.23} parent=0 // loop_body
    %s16 = ssub.s32 %s11, 1
    %s17 = ssub.s32 %s11, 2
    %s18 = sadd.s32 %s11, 1
    %s19 = ssub.s32 %s11, %s18
    %p20 = scmp.eq.s32.totalorder %s19, 0
    %s22 = sadd.s32 %s21, 1
    %s23 = scalar_select %p20, %s21, %s22
    %p26 = pneg %p20
    %p27 = scmp.eq.s32.totalorder %s11, 1
    %p28 = por %p26, %p27
    %p29 = scmp.ne.s32.totalorder %s21, %s24
    %p30 = scmp.eq.s32.totalorder %s11, 0
    %p31 = por %p29, %p30
    %p32 = scmp.ne.s32.totalorder %s21, %s24
    %p33 = scmp.eq.s32.totalorder %s16, 1
    %p34 = por %p32, %p33
    %p35 = scmp.ne.s32.totalorder %s24, %s25
    %p36 = scmp.eq.s32.totalorder %s16, 0
    %p37 = por %p35, %p36
    %p38 = scmp.ne.s32.totalorder %s24, %s25
    %p39 = scmp.eq.s32.totalorder %s17, 1
    %p40 = por %p38, %p39
    %p42 = scmp.ne.s32.totalorder %s25, %s41
    %p43 = scmp.eq.s32.totalorder %s17, 0
    %p44 = por %p42, %p43
    %s46 = sadd.s32 %s45, 1
    %p49 = scmp.eq.s32.totalorder %s11, 1
    %p50 = scmp.ne.s32.totalorder %s45, %s47
    %p51 = scmp.eq.s32.totalorder %s11, 0
    %p52 = por %p50, %p51
    %p53 = scmp.ne.s32.totalorder %s45, %s47
    %p54 = scmp.eq.s32.totalorder %s16, 1
    %p55 = por %p53, %p54
    %p56 = scmp.ne.s32.totalorder %s47, %s48
    %p57 = scmp.eq.s32.totalorder %s16, 0
    %p58 = por %p56, %p57
    %p59 = scmp.ne.s32.totalorder %s47, %s48
    %p60 = scmp.eq.s32.totalorder %s17, 1
    %p61 = por %p59, %p60
    %p63 = scmp.ne.s32.totalorder %s48, %s62
    %p64 = scmp.eq.s32.totalorder %s17, 0
    %p65 = por %p63, %p64
    %s67 = sadd.s32 %s66, 1
    %p70 = scmp.eq.s32.totalorder %s11, 1
    %p71 = scmp.ne.s32.totalorder %s66, %s68
    %p72 = scmp.eq.s32.totalorder %s11, 0
    %p73 = por %p71, %p72
    %p74 = scmp.ne.s32.totalorder %s66, %s68
    %p75 = scmp.eq.s32.totalorder %s16, 1
    %p76 = por %p74, %p75
    %p77 = scmp.ne.s32.totalorder %s68, %s69
    %p78 = scmp.eq.s32.totalorder %s16, 0
    %p79 = por %p77, %p78
    %p80 = scmp.ne.s32.totalorder %s68, %s69
    %p81 = scmp.eq.s32.totalorder %s17, 1
    %p82 = por %p80, %p81
    %p84 = scmp.ne.s32.totalorder %s69, %s83
    %p85 = scmp.eq.s32.totalorder %s17, 0
    %p86 = por %p84, %p85
    %s88 = sadd.s32 %s87, 1
    %p91 = scmp.eq.s32.totalorder %s11, 1
    %p92 = scmp.ne.s32.totalorder %s87, %s89
    %p93 = scmp.eq.s32.totalorder %s11, 0
    %p94 = por %p92, %p93
    %p95 = scmp.ne.s32.totalorder %s87, %s89
    %p96 = scmp.eq.s32.totalorder %s16, 1
    %p97 = por %p95, %p96
    %p98 = scmp.ne.s32.totalorder %s89, %s90
    %p99 = scmp.eq.s32.totalorder %s16, 0
    %p100 = por %p98, %p99
    %p101 = scmp.ne.s32.totalorder %s89, %s90
    %p102 = scmp.eq.s32.totalorder %s17, 1
    %p103 = por %p101, %p102
    %p105 = scmp.ne.s32.totalorder %s90, %s104
    %p106 = scmp.eq.s32.totalorder %s17, 0
    %p107 = por %p105, %p106
    %s109 = sadd.s32 %s108, 1
    %p112 = scmp.eq.s32.totalorder %s11, 1
    %p113 = scmp.ne.s32.totalorder %s108, %s110
    %p114 = scmp.eq.s32.totalorder %s11, 0
    %p115 = por %p113, %p114
    %p116 = scmp.ne.s32.totalorder %s108, %s110
    %p117 = scmp.eq.s32.totalorder %s16, 1
    %p118 = por %p116, %p117
    %p119 = scmp.ne.s32.totalorder %s110, %s111
    %p120 = scmp.eq.s32.totalorder %s16, 0
    %p121 = por %p119, %p120
    %p122 = scmp.ne.s32.totalorder %s110, %s111
    %p123 = scmp.eq.s32.totalorder %s17, 1
    %p124 = por %p122, %p123
    %p126 = scmp.ne.s32.totalorder %s111, %s125
    %p127 = scmp.eq.s32.totalorder %s17, 0
    %p128 = por %p126, %p127
    %s129 = ssub.s32 %s11, %s18
    %p130 = scmp.eq.s32.totalorder %s129, 0
    %s132 = sadd.s32 %s131, 1
    %s133 = scalar_select %p130, %s131, %s132
    %p136 = pneg %p130
    %p137 = scmp.eq.s32.totalorder %s11, 1
    %p138 = por %p136, %p137
    %p139 = scmp.ne.s32.totalorder %s131, %s134
    %p140 = scmp.eq.s32.totalorder %s11, 0
    %p141 = por %p139, %p140
    %p142 = scmp.ne.s32.totalorder %s131, %s134
    %p143 = scmp.eq.s32.totalorder %s16, 1
    %p144 = por %p142, %p143
    %p145 = scmp.ne.s32.totalorder %s134, %s135
    %p146 = scmp.eq.s32.totalorder %s16, 0
    %p147 = por %p145, %p146
    %p148 = scmp.ne.s32.totalorder %s134, %s135
    %p149 = scmp.eq.s32.totalorder %s17, 1
    %p150 = por %p148, %p149
    %p152 = scmp.ne.s32.totalorder %s135, %s151
    %p153 = scmp.eq.s32.totalorder %s17, 0
    %p154 = por %p152, %p153
    %p155 = scmp.le.s32.totalorder 1, %s11
    %p156 = scmp.lt.s32.totalorder %s11, 3
    %p157 = pnand %p155, %p156
    %p158 = pneg %p157
    // Predicated region
    $region9: #{seq2seq_forward.23} parent=5 // pred_check
      _
    $region10: #{seq2seq_forward.23} parent=5 // pred_check_branch
      %160 = sbr.rel (%p157) target = $region12
    $region11: #{seq2seq_forward.23} parent=5 // pred_region
      %s161 = ssub.s32 %s11, 1
      // Predicated region
      $region13: #{seq2seq_forward.23} parent=11 // pred_check
        %p162 = pneg %p58
      $region14: #{seq2seq_forward.23} parent=11 // pred_check_branch
        %164 = sbr.rel (%p162) target = $region16
      $region15: #{seq2seq_forward.23} parent=11 // pred_region
        _
      $region16: #{seq2seq_forward.23} parent=11 // pred_fallthru
        _
      // Predicated region
      $region17: #{seq2seq_forward.23} parent=11 // pred_check
        %p165 = pneg %p79
      $region18: #{seq2seq_forward.23} parent=11 // pred_check_branch
        %167 = sbr.rel (%p165) target = $region20
      $region19: #{seq2seq_forward.23} parent=11 // pred_region
        _
      $region20: #{seq2seq_forward.23} parent=11 // pred_fallthru
        _
      // Predicated region
      $region21: #{seq2seq_forward.23} parent=11 // pred_check
        %p168 = pneg %p100
      $region22: #{seq2seq_forward.23} parent=11 // pred_check_branch
        %170 = sbr.rel (%p168) target = $region24
      $region23: #{seq2seq_forward.23} parent=11 // pred_region
        _
      $region24: #{seq2seq_forward.23} parent=11 // pred_fallthru
        _
      // Predicated region
      $region25: #{seq2seq_forward.23} parent=11 // pred_check
        %p171 = pneg %p121
      $region26: #{seq2seq_forward.23} parent=11 // pred_check_branch
        %173 = sbr.rel (%p171) target = $region28
      $region27: #{seq2seq_forward.23} parent=11 // pred_region
        _
      $region28: #{seq2seq_forward.23} parent=11 // pred_fallthru
        _
    $region12: #{seq2seq_forward.23} parent=5 // pred_fallthru
      _
    %p174 = scmp.lt.s32.totalorder %s11, 2
    // Predicated region
    $region29: #{seq2seq_forward.23} parent=5 // pred_check
      %p175 = pneg %p174
    $region30: #{seq2seq_forward.23} parent=5 // pred_check_branch
      %177 = sbr.rel (%p175) target = $region32
    $region31: #{seq2seq_forward.23} parent=5 // pred_region
      // Predicated region
      $region33: #{seq2seq_forward.23} parent=31 // pred_check
        %p178 = pneg %p31
      $region34: #{seq2seq_forward.23} parent=31 // pred_check_branch
        %180 = sbr.rel (%p178) target = $region36
      $region35: #{seq2seq_forward.23} parent=31 // pred_region
        %p181 = scmp.lt.s32.totalorder %s11, 1
        %s182 = scalar_select %p181, %s11, 1
        %s183 = smul.addr %s182, 2
        %s184 = smul.addr %s183, 8
        %s185 = scalar_lea.vmem %s0, %s184
      $region36: #{seq2seq_forward.23} parent=31 // pred_fallthru
        _
    $region32: #{seq2seq_forward.23} parent=5 // pred_fallthru
      _
    %p186 = scmp.le.s32.totalorder 1, %s11
    %p187 = scmp.lt.s32.totalorder %s11, 3
    %p188 = pnand %p186, %p187
    %p189 = pneg %p188
    // Predicated region
    $region37: #{seq2seq_forward.23} parent=5 // pred_check
      _
    $region38: #{seq2seq_forward.23} parent=5 // pred_check_branch
      %191 = sbr.rel (%p188) target = $region40
    $region39: #{seq2seq_forward.23} parent=5 // pred_region
      %s192 = ssub.s32 %s11, 1
      %p193 = scmp.lt.s32.totalorder %s16, 1
      %s194 = scalar_select %p193, %s16, 1
      %s195 = smul.addr %s194, 2
      %s196 = smul.addr %s195, 8
      %s197 = scalar_lea.vmem %s0, %s196
      %p198 = pneg %p37
      %p199 = pneg %p34
      %p200 = pneg %p58
      %p201 = pneg %p55
      %p202 = pneg %p79
      %p203 = pneg %p76
      %p204 = pneg %p100
      %p205 = pneg %p97
      %p206 = pneg %p121
      %p207 = pneg %p118
      %p208 = pneg %p147
      %p209 = pneg %p144
      %p210 = scmp.lt.s32.totalorder %s16, 1
      %s211 = scalar_select %p210, %s16, 1
      %s212 = smul.addr %s211, 2
      %s213 = smul.addr %s212, 8
      %s214 = scalar_lea.vmem %s5, %s213
      %p215 = scmp.lt.s32.totalorder %s16, 1
      %s216 = scalar_select %p215, %s16, 1
      %s217 = smul.addr %s216, 2
      %s218 = smul.addr %s217, 8
      %s219 = scalar_lea.vmem %s0, %s218
      %p220 = scmp.lt.s32.totalorder %s16, 1
      %s221 = scalar_select %p220, %s16, 1
      %s222 = smul.addr %s221, 2
      %s223 = smul.addr %s222, 8
      %s224 = scalar_lea.vmem %s5, %s223
      %v226 = vld [vmem:[%s219] sm:$0xff]
      %v227 = vld [vmem:[%s219 + $0x8] sm:$0x3]
      %vm228 = vcmask 261120
      %v229 = vsel %vm228, %v226, 0.0
      %230 = vadd.xlane.f32.xlu0 %v229
      %v231 = vpop.xlane.xlu0 %230
      %vm232 = vcmask 254976
      %v233 = vsel %vm232, %v227, 0.0
      %234 = vadd.xlane.f32.xlu0 %v233
      %v235 = vpop.xlane.xlu0 %234
      %v236 = vrcp.pop 32.0
      %v237 = vmul.f32 %v231, %v236
      %v238 = vmul.f32 %v235, %v236
      %v239 = vsub.f32 %v226, %v237
      %v240 = vsub.f32 %v227, %v238
      %v241 = vmul.f32 %v239, %v239
      %v242 = vmul.f32 %v240, %v240
      %v243 = vsel %vm228, %v241, 0.0
      %244 = vadd.xlane.f32.xlu0 %v243
      %v245 = vpop.xlane.xlu0 %244
      %v246 = vsel %vm232, %v242, 0.0
      %247 = vadd.xlane.f32.xlu0 %v246
      %v248 = vpop.xlane.xlu0 %247
      %v249 = vmul.f32 %v245, %v236
      %v250 = vmul.f32 %v248, %v236
      %v251 = vadd.f32 %v249, 1e-05
      %v252 = vadd.f32 %v250, 1e-05
      %v253 = vrsqrt.pop %v251
      %v254 = vrsqrt.pop %v252
      %v255 = vmul.f32 %v239, %v253
      %v256 = vmul.f32 %v240, %v254
      %v257 = vld [vmem:[%s1] sm:$0x1]
      %v259 = vlaneseq
      %v260 = vshrl.u32 %v259, 7
      %v261 = vsub.s32 0, %v260
      %v262 = vrot.slane %v257, %v261
      %v264 = vmul.f32 %v255, %v262
      %v265 = vmul.f32 %v256, %v262
      %v266 = vld [vmem:[%s2] sm:$0x1]
      %v268 = vlaneseq
      %v269 = vshrl.u32 %v268, 7
      %v270 = vsub.s32 0, %v269
      %v271 = vrot.slane %v266, %v270
      %v273 = vadd.f32 %v264, %v271
      %v274 = vadd.f32 %v265, %v271
      %v275 = vpack.c.bf16 %v274, %v273
      %v276 = vld [vmem:[%s3] sm:$0xf]
      %v277 = vld [vmem:[%s3 + $0x4] sm:$0xf]
      %v278 = vld [vmem:[%s3 + $0x8] sm:$0xf]
      %v279 = vld [vmem:[%s3 + $0xc] sm:$0xf]
      %v280 = vld [vmem:[%s4] sm:$0x1]
      %v282 = vlaneseq
      %v283 = vshrl.u32 %v282, 7
      %v284 = vsub.s32 0, %v283
      %v285 = vrot.slane %v280, %v284
      %v291 = vunpack.c.l.b16 %v276
      %v292 = vunpack.c.l.b16 %v277
      %v293 = vunpack.c.l.b16 %v278
      %v294 = vunpack.c.l.b16 %v279
      %v295 = vpack.c.b16 %v292, %v291
      %v296 = vpack.c.b16 %v294, %v293
      %v300 = vsel %vm228, %v275, 0
      %302 = vmatprep.subr.bf16.mxu0 0
      %303 = vmatpush1.bf16.msra.mxu0 0
      %304 = vmatprep.subr.bf16.mxu0 0
      %305 = vmatpush1.bf16.msra.mxu0 0
      %306 = vmatprep.subr.bf16.mxu0 0
      %307 = vmatpush1.bf16.msra.mxu0 0
      %308 = vmatprep.subr.bf16.mxu0 0
      %309 = vmatpush1.bf16.msra.mxu0 0
      %310 = vmatprep.subr.bf16.mxu0 0
      %311 = vmatpush1.bf16.msra.mxu0 0
      %312 = vmatprep.subr.bf16.mxu0 0
      %313 = vmatpush1.bf16.msra.mxu0 0
      %314 = vmatprep.subr.bf16.mxu0 0
      %315 = vmatpush1.bf16.msra.mxu0 %v296
      %316 = vmatprep.subr.bf16.mxu0 0
      %317 = vmatpush1.bf16.msra.mxu0 %v295
      %318 = vmatprep.subr.bf16.mxu0 0
      %319 = vmatpush2.bf16.msra.mxu0 0
      %320 = vmatprep.subr.bf16.mxu0 0
      %321 = vmatpush2.bf16.msra.mxu0 0
      %322 = vmatprep.subr.bf16.mxu0 0
      %323 = vmatpush2.bf16.msra.mxu0 0
      %324 = vmatprep.subr.bf16.mxu0 0
      %325 = vmatpush2.bf16.msra.mxu0 0
      %326 = vmatprep.subr.bf16.mxu0 0
      %327 = vmatpush2.bf16.msra.mxu0 0
      %328 = vmatprep.subr.bf16.mxu0 0
      %329 = vmatpush2.bf16.msra.mxu0 0
      %330 = vmatprep.subr.bf16.mxu0 0
      %331 = vmatpush2.bf16.msra.mxu0 0
      %332 = vmatprep.subr.bf16.mxu0 0
      %333 = vmatpush2.bf16.msra.mxu0 0
      %334 = vmatprep.mubr.bf16.mxu0 0
      %335 = vmatmul.mubr.bf16.gmra.mxu0 %v300
      %v336 = vpop.f32.mrf.mxu0
      %v337 = vadd.f32 %v285, %v336
      %v338 = vpop.f32.mrf.mxu0
      %v339 = vpop.f32.mrf.mxu0
      %v340 = vadd.f32 %v285, %v339
      %v341 = vpop.f32.mrf.mxu0
      %342 = vdwg.mxu0
      %343 = vst [vmem:[%s224] sm:$0xff] %v337
      %344 = vst [vmem:[%s224 + $0x8] sm:$0x3] %v340
      %p345 = scmp.lt.s32.totalorder %s16, 1
      %s346 = scalar_select %p345, %s16, 1
      %s347 = smul.addr %s346, 2
      %s348 = smul.addr %s347, 8
      %s349 = scalar_lea.vmem %s5, %s348
      // Predicated region
      $region41: #{seq2seq_forward.23} parent=39 // pred_check
        %p350 = pneg %p144
      $region42: #{seq2seq_forward.23} parent=39 // pred_check_branch
        %352 = sbr.rel (%p350) target = $region44
      $region43: #{seq2seq_forward.23} parent=39 // pred_region
        _
      $region44: #{seq2seq_forward.23} parent=39 // pred_fallthru
        _
    $region40: #{seq2seq_forward.23} parent=5 // pred_fallthru
      _
    %p353 = scmp.le.s32.totalorder 2, %s11
    // Predicated region
    $region45: #{seq2seq_forward.23} parent=5 // pred_check
      %p354 = pneg %p353
    $region46: #{seq2seq_forward.23} parent=5 // pred_check_branch
      %356 = sbr.rel (%p354) target = $region48
    $region47: #{seq2seq_forward.23} parent=5 // pred_region
      %s357 = ssub.s32 %s11, 2
      // Predicated region
      $region49: #{seq2seq_forward.23} parent=47 // pred_check
        %p358 = pneg %p150
      $region50: #{seq2seq_forward.23} parent=47 // pred_check_branch
        %360 = sbr.rel (%p358) target = $region52
      $region51: #{seq2seq_forward.23} parent=47 // pred_region
        %p361 = scmp.lt.s32.totalorder %s17, 1
        %s362 = scalar_select %p361, %s17, 1
        %s363 = smul.addr %s362, 2
        %s364 = smul.addr %s363, 8
        %s365 = scalar_lea.vmem %s5, %s364
      $region52: #{seq2seq_forward.23} parent=47 // pred_fallthru
        _
    $region48: #{seq2seq_forward.23} parent=5 // pred_fallthru
      _
  $region6: #{seq2seq_forward.23} parent=0 // loop_footer
    %s15 = sadd.s32 1, %s11
  $region7: #{seq2seq_forward.23} parent=0 // loop_footer_branch
    %10 = sbr.rel target = $region3
  $region8: #{seq2seq_forward.23} parent=0 // loop_exit
    _

// kernel: seq2seq_forward.18
$region0: #{seq2seq_forward.18}
  #allocation0 [shape = 'u32[]', space=smem, size = 0x4, offset = 0x4, fixed_abs, tag = 'smem constant byte address 0x4 - core index']
  #allocation1 [shape = 'u32[144,128]{1,0:T(1,128)}', space=vmem, size = 0x12000, scoped, tag = 'internal scratch']
  %s0 = inlined_call_operand.vmem [shape: f32[2,10,32], index: 0, kind: input, shape index: {}]
  %s1 = inlined_call_operand.vmem [shape: f32[2,12,32], index: 1, kind: input, shape index: {}]
  %s2 = inlined_call_operand.vmem [shape: bf16[32,96], index: 2, kind: input, shape index: {}]
  %s3 = inlined_call_operand.vmem [shape: f32[1,96], index: 3, kind: input, shape index: {}]
  %s4 = inlined_call_operand.vmem [shape: bf16[32,32], index: 4, kind: input, shape index: {}]
  %s5 = inlined_call_operand.vmem [shape: f32[1,32], index: 5, kind: input, shape index: {}]
  %s6 = inlined_call_operand.vmem [shape: f32[10,12], index: 6, kind: input, shape index: {}]
  %s7 = inlined_call_operand.vmem [shape: f32[2,1,12], index: 7, kind: input, shape index: {}]
  %s8 = inlined_call_operand.vmem [shape: f32[1,32], index: 8, kind: input, shape index: {}]
  %s9 = inlined_call_operand.vmem [shape: f32[1,32], index: 9, kind: input, shape index: {}]
  %s10 = inlined_call_operand.vmem [shape: f32[2,10,32], index: 10, kind: output, shape index: {}]
  %s11 = sld [smem:[#allocation0]]
  $region73: #{seq2seq_forward.18} parent=0
    _
  %s13 = ssub.s32 1, %s11
  %s14 = scalar_select 0, %s13, %s11
  loop: start=0, step=1, limit=4
  $region2: #{seq2seq_forward.18} parent=0 // loop_pre_header
    _
  $region3: #{seq2seq_forward.18} parent=0 // loop_header
    %s16 = sphi 0, %s20
    %p17 = scmp.ge.s32.totalorder %s16, 4
    %s26 = sphi 0, %s28
    %s29 = sphi 0, %s26
    %s30 = sphi 0, %s29
    %s46 = sphi 0, %s30
    %s52 = sphi 0, %s54
    %s55 = sphi 0, %s52
    %s56 = sphi 0, %s55
    %s72 = sphi 0, %s56
    %s76 = sphi 0, %s76
    %s78 = sphi 0, %s76
    %s79 = sphi 0, %s78
    %s93 = sphi 0, %s79
    %s97 = sphi 0, %s97
    %s99 = sphi 0, %s97
    %s100 = sphi 0, %s99
    %s114 = sphi 0, %s100
    %s118 = sphi 0, %s118
    %s120 = sphi 0, %s118
    %s121 = sphi 0, %s120
    %s135 = sphi 0, %s121
    %s139 = sphi 0, %s139
    %s141 = sphi 0, %s139
    %s142 = sphi 0, %s141
    %s156 = sphi 0, %s142
    %s160 = sphi 0, %s160
    %s162 = sphi 0, %s160
    %s163 = sphi 0, %s162
    %s177 = sphi 0, %s163
    %s183 = sphi 0, %s185
    %s186 = sphi 0, %s183
    %s187 = sphi 0, %s186
    %s203 = sphi 0, %s187
    %s207 = sphi 0, %s207
    %s209 = sphi 0, %s207
    %s210 = sphi 0, %s209
    %s224 = sphi 0, %s210
    %s228 = sphi 0, %s228
    %s230 = sphi 0, %s228
    %s231 = sphi 0, %s230
    %s245 = sphi 0, %s231
    %s251 = sphi 0, %s253
    %s254 = sphi 0, %s251
    %s255 = sphi 0, %s254
    %s271 = sphi 0, %s255
  $region4: #{seq2seq_forward.18} parent=0 // loop_header_branch
    %19 = sbr.rel (%p17) target = $region8
  $region5: #{seq2seq_forward.18} parent=0 // loop_body
    %s21 = ssub.s32 %s16, 1
    %s22 = ssub.s32 %s16, 2
    %s23 = sadd.s32 %s16, 1
    %s24 = ssub.s32 %s16, %s23
    %p25 = scmp.eq.s32.totalorder %s24, 0
    %s27 = sadd.s32 %s26, 1
    %s28 = scalar_select %p25, %s26, %s27
    %p31 = pneg %p25
    %p32 = scmp.eq.s32.totalorder %s16, 1
    %p33 = por %p31, %p32
    %p34 = scmp.ne.s32.totalorder %s26, %s29
    %p35 = scmp.eq.s32.totalorder %s16, 0
    %p36 = por %p34, %p35
    %p37 = scmp.ne.s32.totalorder %s26, %s29
    %p38 = scmp.eq.s32.totalorder %s21, 1
    %p39 = por %p37, %p38
    %p40 = scmp.ne.s32.totalorder %s29, %s30
    %p41 = scmp.eq.s32.totalorder %s21, 0
    %p42 = por %p40, %p41
    %p43 = scmp.ne.s32.totalorder %s29, %s30
    %p44 = scmp.eq.s32.totalorder %s22, 1
    %p45 = por %p43, %p44
    %p47 = scmp.ne.s32.totalorder %s30, %s46
    %p48 = scmp.eq.s32.totalorder %s22, 0
    %p49 = por %p47, %p48
    %s50 = ssub.s32 %s16, %s23
    %p51 = scmp.eq.s32.totalorder %s50, 0
    %s53 = sadd.s32 %s52, 1
    %s54 = scalar_select %p51, %s52, %s53
    %p57 = pneg %p51
    %p58 = scmp.eq.s32.totalorder %s16, 1
    %p59 = por %p57, %p58
    %p60 = scmp.ne.s32.totalorder %s52, %s55
    %p61 = scmp.eq.s32.totalorder %s16, 0
    %p62 = por %p60, %p61
    %p63 = scmp.ne.s32.totalorder %s52, %s55
    %p64 = scmp.eq.s32.totalorder %s21, 1
    %p65 = por %p63, %p64
    %p66 = scmp.ne.s32.totalorder %s55, %s56
    %p67 = scmp.eq.s32.totalorder %s21, 0
    %p68 = por %p66, %p67
    %p69 = scmp.ne.s32.totalorder %s55, %s56
    %p70 = scmp.eq.s32.totalorder %s22, 1
    %p71 = por %p69, %p70
    %p73 = scmp.ne.s32.totalorder %s56, %s72
    %p74 = scmp.eq.s32.totalorder %s22, 0
    %p75 = por %p73, %p74
    %s77 = sadd.s32 %s76, 1
    %p80 = scmp.eq.s32.totalorder %s16, 1
    %p81 = scmp.ne.s32.totalorder %s76, %s78
    %p82 = scmp.eq.s32.totalorder %s16, 0
    %p83 = por %p81, %p82
    %p84 = scmp.ne.s32.totalorder %s76, %s78
    %p85 = scmp.eq.s32.totalorder %s21, 1
    %p86 = por %p84, %p85
    %p87 = scmp.ne.s32.totalorder %s78, %s79
    %p88 = scmp.eq.s32.totalorder %s21, 0
    %p89 = por %p87, %p88
    %p90 = scmp.ne.s32.totalorder %s78, %s79
    %p91 = scmp.eq.s32.totalorder %s22, 1
    %p92 = por %p90, %p91
    %p94 = scmp.ne.s32.totalorder %s79, %s93
    %p95 = scmp.eq.s32.totalorder %s22, 0
    %p96 = por %p94, %p95
    %s98 = sadd.s32 %s97, 1
    %p101 = scmp.eq.s32.totalorder %s16, 1
    %p102 = scmp.ne.s32.totalorder %s97, %s99
    %p103 = scmp.eq.s32.totalorder %s16, 0
    %p104 = por %p102, %p103
    %p105 = scmp.ne.s32.totalorder %s97, %s99
    %p106 = scmp.eq.s32.totalorder %s21, 1
    %p107 = por %p105, %p106
    %p108 = scmp.ne.s32.totalorder %s99, %s100
    %p109 = scmp.eq.s32.totalorder %s21, 0
    %p110 = por %p108, %p109
    %p111 = scmp.ne.s32.totalorder %s99, %s100
    %p112 = scmp.eq.s32.totalorder %s22, 1
    %p113 = por %p111, %p112
    %p115 = scmp.ne.s32.totalorder %s100, %s114
    %p116 = scmp.eq.s32.totalorder %s22, 0
    %p117 = por %p115, %p116
    %s119 = sadd.s32 %s118, 1
    %p122 = scmp.eq.s32.totalorder %s16, 1
    %p123 = scmp.ne.s32.totalorder %s118, %s120
    %p124 = scmp.eq.s32.totalorder %s16, 0
    %p125 = por %p123, %p124
    %p126 = scmp.ne.s32.totalorder %s118, %s120
    %p127 = scmp.eq.s32.totalorder %s21, 1
    %p128 = por %p126, %p127
    %p129 = scmp.ne.s32.totalorder %s120, %s121
    %p130 = scmp.eq.s32.totalorder %s21, 0
    %p131 = por %p129, %p130
    %p132 = scmp.ne.s32.totalorder %s120, %s121
    %p133 = scmp.eq.s32.totalorder %s22, 1
    %p134 = por %p132, %p133
    %p136 = scmp.ne.s32.totalorder %s121, %s135
    %p137 = scmp.eq.s32.totalorder %s22, 0
    %p138 = por %p136, %p137
    %s140 = sadd.s32 %s139, 1
    %p143 = scmp.eq.s32.totalorder %s16, 1
    %p144 = scmp.ne.s32.totalorder %s139, %s141
    %p145 = scmp.eq.s32.totalorder %s16, 0
    %p146 = por %p144, %p145
    %p147 = scmp.ne.s32.totalorder %s139, %s141
    %p148 = scmp.eq.s32.totalorder %s21, 1
    %p149 = por %p147, %p148
    %p150 = scmp.ne.s32.totalorder %s141, %s142
    %p151 = scmp.eq.s32.totalorder %s21, 0
    %p152 = por %p150, %p151
    %p153 = scmp.ne.s32.totalorder %s141, %s142
    %p154 = scmp.eq.s32.totalorder %s22, 1
    %p155 = por %p153, %p154
    %p157 = scmp.ne.s32.totalorder %s142, %s156
    %p158 = scmp.eq.s32.totalorder %s22, 0
    %p159 = por %p157, %p158
    %s161 = sadd.s32 %s160, 1
    %p164 = scmp.eq.s32.totalorder %s16, 1
    %p165 = scmp.ne.s32.totalorder %s160, %s162
    %p166 = scmp.eq.s32.totalorder %s16, 0
    %p167 = por %p165, %p166
    %p168 = scmp.ne.s32.totalorder %s160, %s162
    %p169 = scmp.eq.s32.totalorder %s21, 1
    %p170 = por %p168, %p169
    %p171 = scmp.ne.s32.totalorder %s162, %s163
    %p172 = scmp.eq.s32.totalorder %s21, 0
    %p173 = por %p171, %p172
    %p174 = scmp.ne.s32.totalorder %s162, %s163
    %p175 = scmp.eq.s32.totalorder %s22, 1
    %p176 = por %p174, %p175
    %p178 = scmp.ne.s32.totalorder %s163, %s177
    %p179 = scmp.eq.s32.totalorder %s22, 0
    %p180 = por %p178, %p179
    %s181 = ssub.s32 %s16, %s23
    %p182 = scmp.eq.s32.totalorder %s181, 0
    %s184 = sadd.s32 %s183, 1
    %s185 = scalar_select %p182, %s183, %s184
    %p188 = pneg %p182
    %p189 = scmp.eq.s32.totalorder %s16, 1
    %p190 = por %p188, %p189
    %p191 = scmp.ne.s32.totalorder %s183, %s186
    %p192 = scmp.eq.s32.totalorder %s16, 0
    %p193 = por %p191, %p192
    %p194 = scmp.ne.s32.totalorder %s183, %s186
    %p195 = scmp.eq.s32.totalorder %s21, 1
    %p196 = por %p194, %p195
    %p197 = scmp.ne.s32.totalorder %s186, %s187
    %p198 = scmp.eq.s32.totalorder %s21, 0
    %p199 = por %p197, %p198
    %p200 = scmp.ne.s32.totalorder %s186, %s187
    %p201 = scmp.eq.s32.totalorder %s22, 1
    %p202 = por %p200, %p201
    %p204 = scmp.ne.s32.totalorder %s187, %s203
    %p205 = scmp.eq.s32.totalorder %s22, 0
    %p206 = por %p204, %p205
    %s208 = sadd.s32 %s207, 1
    %p211 = scmp.eq.s32.totalorder %s16, 1
    %p212 = scmp.ne.s32.totalorder %s207, %s209
    %p213 = scmp.eq.s32.totalorder %s16, 0
    %p214 = por %p212, %p213
    %p215 = scmp.ne.s32.totalorder %s207, %s209
    %p216 = scmp.eq.s32.totalorder %s21, 1
    %p217 = por %p215, %p216
    %p218 = scmp.ne.s32.totalorder %s209, %s210
    %p219 = scmp.eq.s32.totalorder %s21, 0
    %p220 = por %p218, %p219
    %p221 = scmp.ne.s32.totalorder %s209, %s210
    %p222 = scmp.eq.s32.totalorder %s22, 1
    %p223 = por %p221, %p222
    %p225 = scmp.ne.s32.totalorder %s210, %s224
    %p226 = scmp.eq.s32.totalorder %s22, 0
    %p227 = por %p225, %p226
    %s229 = sadd.s32 %s228, 1
    %p232 = scmp.eq.s32.totalorder %s16, 1
    %p233 = scmp.ne.s32.totalorder %s228, %s230
    %p234 = scmp.eq.s32.totalorder %s16, 0
    %p235 = por %p233, %p234
    %p236 = scmp.ne.s32.totalorder %s228, %s230
    %p237 = scmp.eq.s32.totalorder %s21, 1
    %p238 = por %p236, %p237
    %p239 = scmp.ne.s32.totalorder %s230, %s231
    %p240 = scmp.eq.s32.totalorder %s21, 0
    %p241 = por %p239, %p240
    %p242 = scmp.ne.s32.totalorder %s230, %s231
    %p243 = scmp.eq.s32.totalorder %s22, 1
    %p244 = por %p242, %p243
    %p246 = scmp.ne.s32.totalorder %s231, %s245
    %p247 = scmp.eq.s32.totalorder %s22, 0
    %p248 = por %p246, %p247
    %s249 = ssub.s32 %s16, %s23
    %p250 = scmp.eq.s32.totalorder %s249, 0
    %s252 = sadd.s32 %s251, 1
    %s253 = scalar_select %p250, %s251, %s252
    %p256 = pneg %p250
    %p257 = scmp.eq.s32.totalorder %s16, 1
    %p258 = por %p256, %p257
    %p259 = scmp.ne.s32.totalorder %s251, %s254
    %p260 = scmp.eq.s32.totalorder %s16, 0
    %p261 = por %p259, %p260
    %p262 = scmp.ne.s32.totalorder %s251, %s254
    %p263 = scmp.eq.s32.totalorder %s21, 1
    %p264 = por %p262, %p263
    %p265 = scmp.ne.s32.totalorder %s254, %s255
    %p266 = scmp.eq.s32.totalorder %s21, 0
    %p267 = por %p265, %p266
    %p268 = scmp.ne.s32.totalorder %s254, %s255
    %p269 = scmp.eq.s32.totalorder %s22, 1
    %p270 = por %p268, %p269
    %p272 = scmp.ne.s32.totalorder %s255, %s271
    %p273 = scmp.eq.s32.totalorder %s22, 0
    %p274 = por %p272, %p273
    %p275 = scmp.le.s32.totalorder 1, %s16
    %p276 = scmp.lt.s32.totalorder %s16, 3
    %p277 = pnand %p275, %p276
    %p278 = pneg %p277
    // Predicated region
    $region9: #{seq2seq_forward.18} parent=5 // pred_check
      _
    $region10: #{seq2seq_forward.18} parent=5 // pred_check_branch
      %280 = sbr.rel (%p277) target = $region12
    $region11: #{seq2seq_forward.18} parent=5 // pred_region
      %s281 = ssub.s32 %s16, 1
      // Predicated region
      $region13: #{seq2seq_forward.18} parent=11 // pred_check
        %p282 = pneg %p89
      $region14: #{seq2seq_forward.18} parent=11 // pred_check_branch
        %284 = sbr.rel (%p282) target = $region16
      $region15: #{seq2seq_forward.18} parent=11 // pred_region
        _
      $region16: #{seq2seq_forward.18} parent=11 // pred_fallthru
        _
      // Predicated region
      $region17: #{seq2seq_forward.18} parent=11 // pred_check
        %p285 = pneg %p110
      $region18: #{seq2seq_forward.18} parent=11 // pred_check_branch
        %287 = sbr.rel (%p285) target = $region20
      $region19: #{seq2seq_forward.18} parent=11 // pred_region
        _
      $region20: #{seq2seq_forward.18} parent=11 // pred_fallthru
        _
      // Predicated region
      $region21: #{seq2seq_forward.18} parent=11 // pred_check
        %p288 = pneg %p131
      $region22: #{seq2seq_forward.18} parent=11 // pred_check_branch
        %290 = sbr.rel (%p288) target = $region24
      $region23: #{seq2seq_forward.18} parent=11 // pred_region
        _
      $region24: #{seq2seq_forward.18} parent=11 // pred_fallthru
        _
      // Predicated region
      $region25: #{seq2seq_forward.18} parent=11 // pred_check
        %p291 = pneg %p152
      $region26: #{seq2seq_forward.18} parent=11 // pred_check_branch
        %293 = sbr.rel (%p291) target = $region28
      $region27: #{seq2seq_forward.18} parent=11 // pred_region
        _
      $region28: #{seq2seq_forward.18} parent=11 // pred_fallthru
        _
      // Predicated region
      $region29: #{seq2seq_forward.18} parent=11 // pred_check
        %p294 = pneg %p173
      $region30: #{seq2seq_forward.18} parent=11 // pred_check_branch
        %296 = sbr.rel (%p294) target = $region32
      $region31: #{seq2seq_forward.18} parent=11 // pred_region
        _
      $region32: #{seq2seq_forward.18} parent=11 // pred_fallthru
        _
      // Predicated region
      $region33: #{seq2seq_forward.18} parent=11 // pred_check
        %p297 = pneg %p220
      $region34: #{seq2seq_forward.18} parent=11 // pred_check_branch
        %299 = sbr.rel (%p297) target = $region36
      $region35: #{seq2seq_forward.18} parent=11 // pred_region
        _
      $region36: #{seq2seq_forward.18} parent=11 // pred_fallthru
        _
      // Predicated region
      $region37: #{seq2seq_forward.18} parent=11 // pred_check
        %p300 = pneg %p241
      $region38: #{seq2seq_forward.18} parent=11 // pred_check_branch
        %302 = sbr.rel (%p300) target = $region40
      $region39: #{seq2seq_forward.18} parent=11 // pred_region
        _
      $region40: #{seq2seq_forward.18} parent=11 // pred_fallthru
        _
    $region12: #{seq2seq_forward.18} parent=5 // pred_fallthru
      _
    %p303 = scmp.lt.s32.totalorder %s16, 2
    // Predicated region
    $region41: #{seq2seq_forward.18} parent=5 // pred_check
      %p304 = pneg %p303
    $region42: #{seq2seq_forward.18} parent=5 // pred_check_branch
      %306 = sbr.rel (%p304) target = $region44
    $region43: #{seq2seq_forward.18} parent=5 // pred_region
      // Predicated region
      $region45: #{seq2seq_forward.18} parent=43 // pred_check
        %p307 = pneg %p36
      $region46: #{seq2seq_forward.18} parent=43 // pred_check_branch
        %309 = sbr.rel (%p307) target = $region48
      $region47: #{seq2seq_forward.18} parent=43 // pred_region
        %p310 = scmp.lt.s32.totalorder %s16, 1
        %s311 = scalar_select %p310, %s16, 1
        %s312 = smul.addr %s311, 2
        %s313 = smul.addr %s312, 8
        %s314 = scalar_lea.vmem %s0, %s313
      $region48: #{seq2seq_forward.18} parent=43 // pred_fallthru
        _
      // Predicated region
      $region49: #{seq2seq_forward.18} parent=43 // pred_check
        %p315 = pneg %p62
      $region50: #{seq2seq_forward.18} parent=43 // pred_check_branch
        %317 = sbr.rel (%p315) target = $region52
      $region51: #{seq2seq_forward.18} parent=43 // pred_region
        %p318 = scmp.lt.s32.totalorder %s16, 1
        %s319 = scalar_select %p318, %s16, 1
        %s320 = smul.addr %s319, 2
        %s321 = smul.addr %s320, 8
        %s322 = scalar_lea.vmem %s1, %s321
      $region52: #{seq2seq_forward.18} parent=43 // pred_fallthru
        _
      // Predicated region
      $region53: #{seq2seq_forward.18} parent=43 // pred_check
        %p323 = pneg %p193
      $region54: #{seq2seq_forward.18} parent=43 // pred_check_branch
        %325 = sbr.rel (%p323) target = $region56
      $region55: #{seq2seq_forward.18} parent=43 // pred_region
        %p326 = scmp.lt.s32.totalorder %s16, 1
        %s327 = scalar_select %p326, %s16, 1
        %s328 = scalar_lea.vmem %s7, %s327
      $region56: #{seq2seq_forward.18} parent=43 // pred_fallthru
        _
    $region44: #{seq2seq_forward.18} parent=5 // pred_fallthru
      _
    %p329 = scmp.le.s32.totalorder 1, %s16
    %p330 = scmp.lt.s32.totalorder %s16, 3
    %p331 = pnand %p329, %p330
    %p332 = pneg %p331
    // Predicated region
    $region57: #{seq2seq_forward.18} parent=5 // pred_check
      _
    $region58: #{seq2seq_forward.18} parent=5 // pred_check_branch
      %334 = sbr.rel (%p331) target = $region60
    $region59: #{seq2seq_forward.18} parent=5 // pred_region
      %s335 = ssub.s32 %s16, 1
      %p336 = scmp.lt.s32.totalorder %s21, 1
      %s337 = scalar_select %p336, %s21, 1
      %s338 = smul.addr %s337, 2
      %s339 = smul.addr %s338, 8
      %s340 = scalar_lea.vmem %s0, %s339
      %p341 = pneg %p42
      %p342 = pneg %p39
      %p343 = scmp.lt.s32.totalorder %s21, 1
      %s344 = scalar_select %p343, %s21, 1
      %s345 = smul.addr %s344, 2
      %s346 = smul.addr %s345, 8
      %s347 = scalar_lea.vmem %s1, %s346
      %p348 = pneg %p68
      %p349 = pneg %p65
      %p350 = pneg %p89
      %p351 = pneg %p86
      %p352 = pneg %p110
      %p353 = pneg %p107
      %p354 = pneg %p131
      %p355 = pneg %p128
      %p356 = pneg %p152
      %p357 = pneg %p149
      %p358 = pneg %p173
      %p359 = pneg %p170
      %p360 = scmp.lt.s32.totalorder %s21, 1
      %s361 = scalar_select %p360, %s21, 1
      %s362 = scalar_lea.vmem %s7, %s361
      %p363 = pneg %p199
      %p364 = pneg %p196
      %p365 = pneg %p220
      %p366 = pneg %p217
      %p367 = pneg %p241
      %p368 = pneg %p238
      %p369 = pneg %p267
      %p370 = pneg %p264
      %p371 = scmp.lt.s32.totalorder %s21, 1
      %s372 = scalar_select %p371, %s21, 1
      %s373 = smul.addr %s372, 2
      %s374 = smul.addr %s373, 8
      %s375 = scalar_lea.vmem %s10, %s374
      %p376 = scmp.lt.s32.totalorder %s21, 1
      %s377 = scalar_select %p376, %s21, 1
      %s378 = smul.addr %s377, 2
      %s379 = smul.addr %s378, 8
      %s380 = scalar_lea.vmem %s0, %s379
      %p381 = scmp.lt.s32.totalorder %s21, 1
      %s382 = scalar_select %p381, %s21, 1
      %s383 = smul.addr %s382, 2
      %s384 = smul.addr %s383, 8
      %s385 = scalar_lea.vmem %s1, %s384
      %p386 = scmp.lt.s32.totalorder %s21, 1
      %s387 = scalar_select %p386, %s21, 1
      %s388 = scalar_lea.vmem %s7, %s387
      %p389 = scmp.lt.s32.totalorder %s21, 1
      %s390 = scalar_select %p389, %s21, 1
      %s391 = smul.addr %s390, 2
      %s392 = smul.addr %s391, 8
      %s393 = scalar_lea.vmem %s10, %s392
      %v395 = vld [vmem:[%s380] sm:$0xff]
      %v396 = vld [vmem:[%s380 + $0x8] sm:$0x3]
      %v397 = vld [vmem:[%s385] sm:$0xff]
      %v398 = vld [vmem:[%s385 + $0x8] sm:$0xf]
      %v399 = vld [vmem:[%s2] sm:$0xf]
      %v400 = vld [vmem:[%s2 + $0x4] sm:$0xf]
      %v401 = vld [vmem:[%s2 + $0x8] sm:$0xf]
      %v402 = vld [vmem:[%s2 + $0xc] sm:$0xf]
      %v403 = vld [vmem:[%s3] sm:$0x1]
      %v404 = vld [vmem:[%s4] sm:$0xf]
      %v405 = vld [vmem:[%s4 + $0x4] sm:$0xf]
      %v406 = vld [vmem:[%s4 + $0x8] sm:$0xf]
      %v407 = vld [vmem:[%s4 + $0xc] sm:$0xf]
      %v408 = vld [vmem:[%s6] sm:$0xff]
      %v409 = vld [vmem:[%s6 + $0x8] sm:$0x3]
      %v410 = vld [vmem:[%s388] sm:$0x1]
      %v412 = vlaneseq
      %v413 = vshrl.u32 %v412, 7
      %v414 = vsub.s32 0, %v413
      %v415 = vrot.slane %v410, %v414
      %v417 = vadd.f32 %v408, %v415
      %v418 = vadd.f32 %v409, %v415
      %v419 = vpack.c.bf16 %v396, %v395
      %v420 = vpack.c.bf16 %v398, %v397
      %v422 = vlaneseq
      %v423 = vshrl.u32 %v422, 7
      %v424 = vsub.s32 0, %v423
      %v425 = vrot.slane %v403, %v424
      %v431 = vunpack.c.l.b16 %v399
      %v432 = vunpack.c.l.b16 %v400
      %v433 = vunpack.c.l.b16 %v401
      %v434 = vunpack.c.l.b16 %v402
      %v435 = vpack.c.b16 %v432, %v431
      %v436 = vpack.c.b16 %v434, %v433
      %vm439 = vcmask 261120
      %v441 = vsel %vm439, %v419, 0
      %443 = vmatprep.subr.bf16.mxu0 0
      %444 = vmatpush1.bf16.msra.mxu0 0
      %445 = vmatprep.subr.bf16.mxu0 0
      %446 = vmatpush1.bf16.msra.mxu0 0
      %447 = vmatprep.subr.bf16.mxu0 0
      %448 = vmatpush1.bf16.msra.mxu0 0
      %449 = vmatprep.subr.bf16.mxu0 0
      %450 = vmatpush1.bf16.msra.mxu0 0
      %451 = vmatprep.subr.bf16.mxu0 0
      %452 = vmatpush1.bf16.msra.mxu0 0
      %453 = vmatprep.subr.bf16.mxu0 0
      %454 = vmatpush1.bf16.msra.mxu0 0
      %455 = vmatprep.subr.bf16.mxu0 0
      %456 = vmatpush1.bf16.msra.mxu0 %v436
      %457 = vmatprep.subr.bf16.mxu0 0
      %458 = vmatpush1.bf16.msra.mxu0 %v435
      %459 = vmatprep.subr.bf16.mxu0 0
      %460 = vmatpush2.bf16.msra.mxu0 0
      %461 = vmatprep.subr.bf16.mxu0 0
      %462 = vmatpush2.bf16.msra.mxu0 0
      %463 = vmatprep.subr.bf16.mxu0 0
      %464 = vmatpush2.bf16.msra.mxu0 0
      %465 = vmatprep.subr.bf16.mxu0 0
      %466 = vmatpush2.bf16.msra.mxu0 0
      %467 = vmatprep.subr.bf16.mxu0 0
      %468 = vmatpush2.bf16.msra.mxu0 0
      %469 = vmatprep.subr.bf16.mxu0 0
      %470 = vmatpush2.bf16.msra.mxu0 0
      %471 = vmatprep.subr.bf16.mxu0 0
      %472 = vmatpush2.bf16.msra.mxu0 0
      %473 = vmatprep.subr.bf16.mxu0 0
      %474 = vmatpush2.bf16.msra.mxu0 0
      %475 = vmatprep.mubr.bf16.mxu0 0
      %476 = vmatmul.mubr.bf16.gmra.mxu0 %v441
      %v477 = vpop.f32.mrf.mxu0
      %v478 = vadd.f32 %v425, %v477
      %v479 = vpop.f32.mrf.mxu0
      %v480 = vpop.f32.mrf.mxu0
      %v481 = vadd.f32 %v425, %v480
      %v482 = vpop.f32.mrf.mxu0
      %483 = vdwg.mxu0
      %484 = vrot.lane.b32.xlu0 %v435, 96
      %v485 = vpop.permute.xlu0 %484
      %486 = vrot.lane.b32.xlu0 %v436, 96
      %v487 = vpop.permute.xlu0 %486
      %490 = vrot.lane.b32.xlu0 %v425, 96
      %v491 = vpop.permute.xlu0 %490
      %v494 = vsel %vm439, %v420, 0
      %496 = vmatprep.subr.bf16.mxu0 0
      %497 = vmatpush1.bf16.msra.mxu0 0
      %498 = vmatprep.subr.bf16.mxu0 0
      %499 = vmatpush1.bf16.msra.mxu0 0
      %500 = vmatprep.subr.bf16.mxu0 0
      %501 = vmatpush1.bf16.msra.mxu0 0
      %502 = vmatprep.subr.bf16.mxu0 0
      %503 = vmatpush1.bf16.msra.mxu0 0
      %504 = vmatprep.subr.bf16.mxu0 0
      %505 = vmatpush1.bf16.msra.mxu0 0
      %506 = vmatprep.subr.bf16.mxu0 0
      %507 = vmatpush1.bf16.msra.mxu0 0
      %508 = vmatprep.subr.bf16.mxu0 0
      %509 = vmatpush1.bf16.msra.mxu0 %v487
      %510 = vmatprep.subr.bf16.mxu0 0
      %511 = vmatpush1.bf16.msra.mxu0 %v485
      %512 = vmatprep.subr.bf16.mxu0 0
      %513 = vmatpush2.bf16.msra.mxu0 0
      %514 = vmatprep.subr.bf16.mxu0 0
      %515 = vmatpush2.bf16.msra.mxu0 0
      %516 = vmatprep.subr.bf16.mxu0 0
      %517 = vmatpush2.bf16.msra.mxu0 0
      %518 = vmatprep.subr.bf16.mxu0 0
      %519 = vmatpush2.bf16.msra.mxu0 0
      %520 = vmatprep.subr.bf16.mxu0 0
      %521 = vmatpush2.bf16.msra.mxu0 0
      %522 = vmatprep.subr.bf16.mxu0 0
      %523 = vmatpush2.bf16.msra.mxu0 0
      %524 = vmatprep.subr.bf16.mxu0 0
      %525 = vmatpush2.bf16.msra.mxu0 0
      %526 = vmatprep.subr.bf16.mxu0 0
      %527 = vmatpush2.bf16.msra.mxu0 0
      %528 = vmatprep.mubr.bf16.mxu0 0
      %529 = vmatmul.mubr.bf16.gmra.mxu0 %v494
      %v530 = vpop.f32.mrf.mxu0
      %v531 = vadd.f32 %v491, %v530
      %v532 = vpop.f32.mrf.mxu0
      %v533 = vpop.f32.mrf.mxu0
      %v534 = vadd.f32 %v491, %v533
      %v535 = vpop.f32.mrf.mxu0
      %536 = vdwg.mxu0
      %v537 = vld [vmem:[%s5] sm:$0x1]
      %v538 = vpack.c.bf16 %v481, %v478
      %v539 = vpack.c.bf16 %v534, %v531
      %vm540 = vcmask 64512
      %v542 = vsel %vm540, %v538, 0
      %v545 = vsel %vm540, %v539, 0
      %547 = vmatprep.subr.bf16.mxu0 0
      %548 = vmatpush1.bf16.xpose.msra.mxu0 0
      %549 = vmatprep.subr.bf16.mxu0 0
      %550 = vmatpush1.bf16.xpose.msra.mxu0 0
      %551 = vmatprep.subr.bf16.mxu0 0
      %552 = vmatpush1.bf16.xpose.msra.mxu0 0
      %553 = vmatprep.subr.bf16.mxu0 0
      %554 = vmatpush1.bf16.xpose.msra.mxu0 0
      %555 = vmatprep.subr.bf16.mxu0 0
      %556 = vmatpush1.bf16.xpose.msra.mxu0 0
      %557 = vmatprep.subr.bf16.mxu0 0
      %558 = vmatpush1.bf16.xpose.msra.mxu0 0
      %559 = vmatprep.subr.bf16.mxu0 0
      %560 = vmatpush1.bf16.xpose.msra.mxu0 0
      %561 = vmatprep.subr.bf16.mxu0 0
      %562 = vmatpush1.bf16.xpose.msra.mxu0 %v545
      %563 = vmatprep.subr.bf16.mxu0 0
      %564 = vmatpush2.bf16.xpose.msra.mxu0 0
      %565 = vmatprep.subr.bf16.mxu0 0
      %566 = vmatpush2.bf16.xpose.msra.mxu0 0
      %567 = vmatprep.subr.bf16.mxu0 0
      %568 = vmatpush2.bf16.xpose.msra.mxu0 0
      %569 = vmatprep.subr.bf16.mxu0 0
      %570 = vmatpush2.bf16.xpose.msra.mxu0 0
      %571 = vmatprep.subr.bf16.mxu0 0
      %572 = vmatpush2.bf16.xpose.msra.mxu0 0
      %573 = vmatprep.subr.bf16.mxu0 0
      %574 = vmatpush2.bf16.xpose.msra.mxu0 0
      %575 = vmatprep.subr.bf16.mxu0 0
      %576 = vmatpush2.bf16.xpose.msra.mxu0 0
      %577 = vmatprep.subr.bf16.mxu0 0
      %578 = vmatpush2.bf16.xpose.msra.mxu0 0
      %579 = vmatprep.mubr.bf16.mxu0 0
      %580 = vmatmul.mubr.bf16.gmra.mxu0 %v542
      %v581 = vpop.f32.mrf.mxu0
      %v582 = vadd.f32 0.0, %v581
      %v583 = vpop.f32.mrf.mxu0
      %v584 = vpop.f32.mrf.mxu0
      %v585 = vadd.f32 0.0, %v584
      %v586 = vpop.f32.mrf.mxu0
      %587 = vdwg.mxu0
      %v588 = vmul.f32 %v582, 0.35355338
      %v589 = vmul.f32 %v585, 0.35355338
      %v590 = vadd.f32 %v588, %v417
      %v591 = vadd.f32 %v589, %v418
      %vm592 = vcmask 97280
      %v593 = vsel %vm592, %v590, -inf
      %594 = vmax.xlane.f32.xlu0 %v593
      %v595 = vpop.xlane.xlu0 %594
      %vm596 = vcmask 91136
      %v597 = vsel %vm596, %v591, -inf
      %598 = vmax.xlane.f32.xlu0 %v597
      %v599 = vpop.xlane.xlu0 %598
      %v600 = vsub.f32 %v590, %v595
      %v601 = vsub.f32 %v591, %v599
      %v602 = vmul.f32 %v600, 1.442695
      %v603 = vpow.pop %v602
      %v604 = vmul.f32 %v601, 1.442695
      %v605 = vpow.pop %v604
      %v606 = vsel %vm592, %v603, 0.0
      %607 = vadd.xlane.f32.xlu0 %v606
      %v608 = vpop.xlane.xlu0 %607
      %v609 = vsel %vm596, %v605, 0.0
      %610 = vadd.xlane.f32.xlu0 %v609
      %v611 = vpop.xlane.xlu0 %610
      %v612 = vrcp.pop %v608
      %v613 = vrcp.pop %v611
      %v614 = vmul.f32 %v603, %v612
      %v615 = vmul.f32 %v605, %v613
      %v616 = vpack.c.bf16 %v615, %v614
      %618 = vrot.lane.b32.xlu0 %v539, 96
      %v619 = vpop.permute.xlu0 %618
      %v621 = vsel %vm592, %v616, 0
      %vm623 = vcmask 1045504
      %v625 = vsel %vm623, %v619, 0
      %627 = vmatprep.subr.bf16.mxu0 0
      %628 = vmatpush1.bf16.msra.mxu0 0
      %629 = vmatprep.subr.bf16.mxu0 0
      %630 = vmatpush1.bf16.msra.mxu0 0
      %631 = vmatprep.subr.bf16.mxu0 0
      %632 = vmatpush1.bf16.msra.mxu0 0
      %633 = vmatprep.subr.bf16.mxu0 0
      %634 = vmatpush1.bf16.msra.mxu0 0
      %635 = vmatprep.subr.bf16.mxu0 0
      %636 = vmatpush1.bf16.msra.mxu0 0
      %637 = vmatprep.subr.bf16.mxu0 0
      %638 = vmatpush1.bf16.msra.mxu0 0
      %639 = vmatprep.subr.bf16.mxu0 0
      %640 = vmatpush1.bf16.msra.mxu0 0
      %641 = vmatprep.subr.bf16.mxu0 0
      %642 = vmatpush1.bf16.msra.mxu0 %v625
      %643 = vmatprep.subr.bf16.mxu0 0
      %644 = vmatpush2.bf16.msra.mxu0 0
      %645 = vmatprep.subr.bf16.mxu0 0
      %646 = vmatpush2.bf16.msra.mxu0 0
      %647 = vmatprep.subr.bf16.mxu0 0
      %648 = vmatpush2.bf16.msra.mxu0 0
      %649 = vmatprep.subr.bf16.mxu0 0
      %650 = vmatpush2.bf16.msra.mxu0 0
      %651 = vmatprep.subr.bf16.mxu0 0
      %652 = vmatpush2.bf16.msra.mxu0 0
      %653 = vmatprep.subr.bf16.mxu0 0
      %654 = vmatpush2.bf16.msra.mxu0 0
      %655 = vmatprep.subr.bf16.mxu0 0
      %656 = vmatpush2.bf16.msra.mxu0 0
      %657 = vmatprep.subr.bf16.mxu0 0
      %658 = vmatpush2.bf16.msra.mxu0 0
      %659 = vmatprep.mubr.bf16.mxu0 0
      %660 = vmatmul.mubr.bf16.gmra.mxu0 %v621
      %v661 = vpop.f32.mrf.mxu0
      %v662 = vadd.f32 0.0, %v661
      %v663 = vpop.f32.mrf.mxu0
      %v664 = vpop.f32.mrf.mxu0
      %v665 = vadd.f32 0.0, %v664
      %v666 = vpop.f32.mrf.mxu0
      %667 = vdwg.mxu0
      %v668 = vpack.c.bf16 %v665, %v662
      %v670 = vsel %vm540, %v668, 0
      %vm672 = vcmask 1043456
      %v674 = vsel %vm672, %v404, 0
      %676 = vmatprep.subr.bf16.mxu0 0
      %677 = vmatpush1.bf16.msra.mxu0 0
      %678 = vmatprep.subr.bf16.mxu0 0
      %679 = vmatpush1.bf16.msra.mxu0 0
      %680 = vmatprep.subr.bf16.mxu0 0
      %681 = vmatpush1.bf16.msra.mxu0 0
      %682 = vmatprep.subr.bf16.mxu0 0
      %683 = vmatpush1.bf16.msra.mxu0 0
      %684 = vmatprep.subr.bf16.mxu0 0
      %685 = vmatpush1.bf16.msra.mxu0 0
      %686 = vmatprep.subr.bf16.mxu0 0
      %687 = vmatpush1.bf16.msra.mxu0 0
      %688 = vmatprep.subr.bf16.mxu0 0
      %689 = vmatpush1.bf16.msra.mxu0 0
      %690 = vmatprep.subr.bf16.mxu0 0
      %691 = vmatpush1.bf16.msra.mxu0 %v674
      %692 = vmatprep.subr.bf16.mxu0 0
      %693 = vmatpush2.bf16.msra.mxu0 0
      %694 = vmatprep.subr.bf16.mxu0 0
      %695 = vmatpush2.bf16.msra.mxu0 0
      %696 = vmatprep.subr.bf16.mxu0 0
      %697 = vmatpush2.bf16.msra.mxu0 0
      %698 = vmatprep.subr.bf16.mxu0 0
      %699 = vmatpush2.bf16.msra.mxu0 0
      %700 = vmatprep.subr.bf16.mxu0 0
      %701 = vmatpush2.bf16.msra.mxu0 0
      %702 = vmatprep.subr.bf16.mxu0 0
      %703 = vmatpush2.bf16.msra.mxu0 0
      %704 = vmatprep.subr.bf16.mxu0 0
      %705 = vmatpush2.bf16.msra.mxu0 0
      %706 = vmatprep.subr.bf16.mxu0 0
      %707 = vmatpush2.bf16.msra.mxu0 0
      %708 = vmatprep.mubr.bf16.mxu0 0
      %709 = vmatmul.mubr.bf16.gmra.mxu0 %v670
      %v710 = vpop.f32.mrf.mxu0
      %v711 = vadd.f32 0.0, %v710
      %v712 = vpop.f32.mrf.mxu0
      %v713 = vpop.f32.mrf.mxu0
      %v714 = vadd.f32 0.0, %v713
      %v715 = vpop.f32.mrf.mxu0
      %716 = vdwg.mxu0
      %v718 = vlaneseq
      %v719 = vshrl.u32 %v718, 7
      %v720 = vsub.s32 0, %v719
      %v721 = vrot.slane %v537, %v720
      %v723 = vadd.f32 %v721, %v711
      %v724 = vadd.f32 %v721, %v714
      %726 = vrot.lane.b32.xlu0 %v538, 120
      %v727 = vpop.permute.xlu0 %726
      %728 = vrot.lane.b32.xlu0 %v539, 120
      %v729 = vpop.permute.xlu0 %728
      %v731 = vsel %vm540, %v727, 0
      %v734 = vsel %vm540, %v729, 0
      %736 = vmatprep.subr.bf16.mxu0 0
      %737 = vmatpush1.bf16.xpose.msra.mxu0 0
      %738 = vmatprep.subr.bf16.mxu0 0
      %739 = vmatpush1.bf16.xpose.msra.mxu0 0
      %740 = vmatprep.subr.bf16.mxu0 0
      %741 = vmatpush1.bf16.xpose.msra.mxu0 0
      %742 = vmatprep.subr.bf16.mxu0 0
      %743 = vmatpush1.bf16.xpose.msra.mxu0 0
      %744 = vmatprep.subr.bf16.mxu0 0
      %745 = vmatpush1.bf16.xpose.msra.mxu0 0
      %746 = vmatprep.subr.bf16.mxu0 0
      %747 = vmatpush1.bf16.xpose.msra.mxu0 0
      %748 = vmatprep.subr.bf16.mxu0 0
      %749 = vmatpush1.bf16.xpose.msra.mxu0 0
      %750 = vmatprep.subr.bf16.mxu0 0
      %751 = vmatpush1.bf16.xpose.msra.mxu0 %v734
      %752 = vmatprep.subr.bf16.mxu0 0
      %753 = vmatpush2.bf16.xpose.msra.mxu0 0
      %754 = vmatprep.subr.bf16.mxu0 0
      %755 = vmatpush2.bf16.xpose.msra.mxu0 0
      %756 = vmatprep.subr.bf16.mxu0 0
      %757 = vmatpush2.bf16.xpose.msra.mxu0 0
      %758 = vmatprep.subr.bf16.mxu0 0
      %759 = vmatpush2.bf16.xpose.msra.mxu0 0
      %760 = vmatprep.subr.bf16.mxu0 0
      %761 = vmatpush2.bf16.xpose.msra.mxu0 0
      %762 = vmatprep.subr.bf16.mxu0 0
      %763 = vmatpush2.bf16.xpose.msra.mxu0 0
      %764 = vmatprep.subr.bf16.mxu0 0
      %765 = vmatpush2.bf16.xpose.msra.mxu0 0
      %766 = vmatprep.subr.bf16.mxu0 0
      %767 = vmatpush2.bf16.xpose.msra.mxu0 0
      %768 = vmatprep.mubr.bf16.mxu0 0
      %769 = vmatmul.mubr.bf16.gmra.mxu0 %v731
      %v770 = vpop.f32.mrf.mxu0
      %v771 = vadd.f32 0.0, %v770
      %v772 = vpop.f32.mrf.mxu0
      %v773 = vpop.f32.mrf.mxu0
      %v774 = vadd.f32 0.0, %v773
      %v775 = vpop.f32.mrf.mxu0
      %776 = vdwg.mxu0
      %v777 = vmul.f32 %v771, 0.35355338
      %v778 = vmul.f32 %v774, 0.35355338
      %v779 = vadd.f32 %v777, %v417
      %v780 = vadd.f32 %v778, %v418
      %v781 = vsel %vm592, %v779, -inf
      %782 = vmax.xlane.f32.xlu0 %v781
      %v783 = vpop.xlane.xlu0 %782
      %v784 = vsel %vm596, %v780, -inf
      %785 = vmax.xlane.f32.xlu0 %v784
      %v786 = vpop.xlane.xlu0 %785
      %v787 = vsub.f32 %v779, %v783
      %v788 = vsub.f32 %v780, %v786
      %v789 = vmul.f32 %v787, 1.442695
      %v790 = vpow.pop %v789
      %v791 = vmul.f32 %v788, 1.442695
      %v792 = vpow.pop %v791
      %v793 = vsel %vm592, %v790, 0.0
      %794 = vadd.xlane.f32.xlu0 %v793
      %v795 = vpop.xlane.xlu0 %794
      %v796 = vsel %vm596, %v792, 0.0
      %797 = vadd.xlane.f32.xlu0 %v796
      %v798 = vpop.xlane.xlu0 %797
      %v799 = vrcp.pop %v795
      %v800 = vrcp.pop %v798
      %v801 = vmul.f32 %v790, %v799
      %v802 = vmul.f32 %v792, %v800
      %v803 = vpack.c.bf16 %v802, %v801
      %804 = vrot.lane.b32.xlu0 %v539, 88
      %v805 = vpop.permute.xlu0 %804
      %v807 = vsel %vm592, %v803, 0
      %v810 = vsel %vm623, %v805, 0
      %812 = vmatprep.subr.bf16.mxu0 0
      %813 = vmatpush1.bf16.msra.mxu0 0
      %814 = vmatprep.subr.bf16.mxu0 0
      %815 = vmatpush1.bf16.msra.mxu0 0
      %816 = vmatprep.subr.bf16.mxu0 0
      %817 = vmatpush1.bf16.msra.mxu0 0
      %818 = vmatprep.subr.bf16.mxu0 0
      %819 = vmatpush1.bf16.msra.mxu0 0
      %820 = vmatprep.subr.bf16.mxu0 0
      %821 = vmatpush1.bf16.msra.mxu0 0
      %822 = vmatprep.subr.bf16.mxu0 0
      %823 = vmatpush1.bf16.msra.mxu0 0
      %824 = vmatprep.subr.bf16.mxu0 0
      %825 = vmatpush1.bf16.msra.mxu0 0
      %826 = vmatprep.subr.bf16.mxu0 0
      %827 = vmatpush1.bf16.msra.mxu0 %v810
      %828 = vmatprep.subr.bf16.mxu0 0
      %829 = vmatpush2.bf16.msra.mxu0 0
      %830 = vmatprep.subr.bf16.mxu0 0
      %831 = vmatpush2.bf16.msra.mxu0 0
      %832 = vmatprep.subr.bf16.mxu0 0
      %833 = vmatpush2.bf16.msra.mxu0 0
      %834 = vmatprep.subr.bf16.mxu0 0
      %835 = vmatpush2.bf16.msra.mxu0 0
      %836 = vmatprep.subr.bf16.mxu0 0
      %837 = vmatpush2.bf16.msra.mxu0 0
      %838 = vmatprep.subr.bf16.mxu0 0
      %839 = vmatpush2.bf16.msra.mxu0 0
      %840 = vmatprep.subr.bf16.mxu0 0
      %841 = vmatpush2.bf16.msra.mxu0 0
      %842 = vmatprep.subr.bf16.mxu0 0
      %843 = vmatpush2.bf16.msra.mxu0 0
      %844 = vmatprep.mubr.bf16.mxu0 0
      %845 = vmatmul.mubr.bf16.gmra.mxu0 %v807
      %v846 = vpop.f32.mrf.mxu0
      %v847 = vadd.f32 0.0, %v846
      %v848 = vpop.f32.mrf.mxu0
      %v849 = vpop.f32.mrf.mxu0
      %v850 = vadd.f32 0.0, %v849
      %v851 = vpop.f32.mrf.mxu0
      %852 = vdwg.mxu0
      %v853 = vpack.c.bf16 %v850, %v847
      %v855 = vsel %vm540, %v853, 0
      %v858 = vsel %vm672, %v405, 0
      %860 = vmatprep.subr.bf16.mxu0 0
      %861 = vmatpush1.bf16.msra.mxu0 0
      %862 = vmatprep.subr.bf16.mxu0 0
      %863 = vmatpush1.bf16.msra.mxu0 0
      %864 = vmatprep.subr.bf16.mxu0 0
      %865 = vmatpush1.bf16.msra.mxu0 0
      %866 = vmatprep.subr.bf16.mxu0 0
      %867 = vmatpush1.bf16.msra.mxu0 0
      %868 = vmatprep.subr.bf16.mxu0 0
      %869 = vmatpush1.bf16.msra.mxu0 0
      %870 = vmatprep.subr.bf16.mxu0 0
      %871 = vmatpush1.bf16.msra.mxu0 0
      %872 = vmatprep.subr.bf16.mxu0 0
      %873 = vmatpush1.bf16.msra.mxu0 0
      %874 = vmatprep.subr.bf16.mxu0 0
      %875 = vmatpush1.bf16.msra.mxu0 %v858
      %876 = vmatprep.subr.bf16.mxu0 0
      %877 = vmatpush2.bf16.msra.mxu0 0
      %878 = vmatprep.subr.bf16.mxu0 0
      %879 = vmatpush2.bf16.msra.mxu0 0
      %880 = vmatprep.subr.bf16.mxu0 0
      %881 = vmatpush2.bf16.msra.mxu0 0
      %882 = vmatprep.subr.bf16.mxu0 0
      %883 = vmatpush2.bf16.msra.mxu0 0
      %884 = vmatprep.subr.bf16.mxu0 0
      %885 = vmatpush2.bf16.msra.mxu0 0
      %886 = vmatprep.subr.bf16.mxu0 0
      %887 = vmatpush2.bf16.msra.mxu0 0
      %888 = vmatprep.subr.bf16.mxu0 0
      %889 = vmatpush2.bf16.msra.mxu0 0
      %890 = vmatprep.subr.bf16.mxu0 0
      %891 = vmatpush2.bf16.msra.mxu0 0
      %892 = vmatprep.mubr.bf16.mxu0 0
      %893 = vmatmul.mubr.bf16.gmra.mxu0 %v855
      %v894 = vpop.f32.mrf.mxu0
      %v895 = vadd.f32 0.0, %v894
      %v896 = vpop.f32.mrf.mxu0
      %v897 = vpop.f32.mrf.mxu0
      %v898 = vadd.f32 0.0, %v897
      %v899 = vpop.f32.mrf.mxu0
      %900 = vdwg.mxu0
      %v901 = vadd.f32 %v723, %v895
      %v902 = vadd.f32 %v724, %v898
      %903 = vrot.lane.b32.xlu0 %v538, 112
      %v904 = vpop.permute.xlu0 %903
      %905 = vrot.lane.b32.xlu0 %v539, 112
      %v906 = vpop.permute.xlu0 %905
      %v908 = vsel %vm540, %v904, 0
      %v911 = vsel %vm540, %v906, 0
      %913 = vmatprep.subr.bf16.mxu0 0
      %914 = vmatpush1.bf16.xpose.msra.mxu0 0
      %915 = vmatprep.subr.bf16.mxu0 0
      %916 = vmatpush1.bf16.xpose.msra.mxu0 0
      %917 = vmatprep.subr.bf16.mxu0 0
      %918 = vmatpush1.bf16.xpose.msra.mxu0 0
      %919 = vmatprep.subr.bf16.mxu0 0
      %920 = vmatpush1.bf16.xpose.msra.mxu0 0
      %921 = vmatprep.subr.bf16.mxu0 0
      %922 = vmatpush1.bf16.xpose.msra.mxu0 0
      %923 = vmatprep.subr.bf16.mxu0 0
      %924 = vmatpush1.bf16.xpose.msra.mxu0 0
      %925 = vmatprep.subr.bf16.mxu0 0
      %926 = vmatpush1.bf16.xpose.msra.mxu0 0
      %927 = vmatprep.subr.bf16.mxu0 0
      %928 = vmatpush1.bf16.xpose.msra.mxu0 %v911
      %929 = vmatprep.subr.bf16.mxu0 0
      %930 = vmatpush2.bf16.xpose.msra.mxu0 0
      %931 = vmatprep.subr.bf16.mxu0 0
      %932 = vmatpush2.bf16.xpose.msra.mxu0 0
      %933 = vmatprep.subr.bf16.mxu0 0
      %934 = vmatpush2.bf16.xpose.msra.mxu0 0
      %935 = vmatprep.subr.bf16.mxu0 0
      %936 = vmatpush2.bf16.xpose.msra.mxu0 0
      %937 = vmatprep.subr.bf16.mxu0 0
      %938 = vmatpush2.bf16.xpose.msra.mxu0 0
      %939 = vmatprep.subr.bf16.mxu0 0
      %940 = vmatpush2.bf16.xpose.msra.mxu0 0
      %941 = vmatprep.subr.bf16.mxu0 0
      %942 = vmatpush2.bf16.xpose.msra.mxu0 0
      %943 = vmatprep.subr.bf16.mxu0 0
      %944 = vmatpush2.bf16.xpose.msra.mxu0 0
      %945 = vmatprep.mubr.bf16.mxu0 0
      %946 = vmatmul.mubr.bf16.gmra.mxu0 %v908
      %v947 = vpop.f32.mrf.mxu0
      %v948 = vadd.f32 0.0, %v947
      %v949 = vpop.f32.mrf.mxu0
      %v950 = vpop.f32.mrf.mxu0
      %v951 = vadd.f32 0.0, %v950
      %v952 = vpop.f32.mrf.mxu0
      %953 = vdwg.mxu0
      %v954 = vmul.f32 %v948, 0.35355338
      %v955 = vmul.f32 %v951, 0.35355338
      %v956 = vadd.f32 %v954, %v417
      %v957 = vadd.f32 %v955, %v418
      %v958 = vsel %vm592, %v956, -inf
      %959 = vmax.xlane.f32.xlu0 %v958
      %v960 = vpop.xlane.xlu0 %959
      %v961 = vsel %vm596, %v957, -inf
      %962 = vmax.xlane.f32.xlu0 %v961
      %v963 = vpop.xlane.xlu0 %962
      %v964 = vsub.f32 %v956, %v960
      %v965 = vsub.f32 %v957, %v963
      %v966 = vmul.f32 %v964, 1.442695
      %v967 = vpow.pop %v966
      %v968 = vmul.f32 %v965, 1.442695
      %v969 = vpow.pop %v968
      %v970 = vsel %vm592, %v967, 0.0
      %971 = vadd.xlane.f32.xlu0 %v970
      %v972 = vpop.xlane.xlu0 %971
      %v973 = vsel %vm596, %v969, 0.0
      %974 = vadd.xlane.f32.xlu0 %v973
      %v975 = vpop.xlane.xlu0 %974
      %v976 = vrcp.pop %v972
      %v977 = vrcp.pop %v975
      %v978 = vmul.f32 %v967, %v976
      %v979 = vmul.f32 %v969, %v977
      %v980 = vpack.c.bf16 %v979, %v978
      %981 = vrot.lane.b32.xlu0 %v539, 80
      %v982 = vpop.permute.xlu0 %981
      %v984 = vsel %vm592, %v980, 0
      %v987 = vsel %vm623, %v982, 0
      %989 = vmatprep.subr.bf16.mxu0 0
      %990 = vmatpush1.bf16.msra.mxu0 0
      %991 = vmatprep.subr.bf16.mxu0 0
      %992 = vmatpush1.bf16.msra.mxu0 0
      %993 = vmatprep.subr.bf16.mxu0 0
      %994 = vmatpush1.bf16.msra.mxu0 0
      %995 = vmatprep.subr.bf16.mxu0 0
      %996 = vmatpush1.bf16.msra.mxu0 0
      %997 = vmatprep.subr.bf16.mxu0 0
      %998 = vmatpush1.bf16.msra.mxu0 0
      %999 = vmatprep.subr.bf16.mxu0 0
      %1000 = vmatpush1.bf16.msra.mxu0 0
      %1001 = vmatprep.subr.bf16.mxu0 0
      %1002 = vmatpush1.bf16.msra.mxu0 0
      %1003 = vmatprep.subr.bf16.mxu0 0
      %1004 = vmatpush1.bf16.msra.mxu0 %v987
      %1005 = vmatprep.subr.bf16.mxu0 0
      %1006 = vmatpush2.bf16.msra.mxu0 0
      %1007 = vmatprep.subr.bf16.mxu0 0
      %1008 = vmatpush2.bf16.msra.mxu0 0
      %1009 = vmatprep.subr.bf16.mxu0 0
      %1010 = vmatpush2.bf16.msra.mxu0 0
      %1011 = vmatprep.subr.bf16.mxu0 0
      %1012 = vmatpush2.bf16.msra.mxu0 0
      %1013 = vmatprep.subr.bf16.mxu0 0
      %1014 = vmatpush2.bf16.msra.mxu0 0
      %1015 = vmatprep.subr.bf16.mxu0 0
      %1016 = vmatpush2.bf16.msra.mxu0 0
      %1017 = vmatprep.subr.bf16.mxu0 0
      %1018 = vmatpush2.bf16.msra.mxu0 0
      %1019 = vmatprep.subr.bf16.mxu0 0
      %1020 = vmatpush2.bf16.msra.mxu0 0
      %1021 = vmatprep.mubr.bf16.mxu0 0
      %1022 = vmatmul.mubr.bf16.gmra.mxu0 %v984
      %v1023 = vpop.f32.mrf.mxu0
      %v1024 = vadd.f32 0.0, %v1023
      %v1025 = vpop.f32.mrf.mxu0
      %v1026 = vpop.f32.mrf.mxu0
      %v1027 = vadd.f32 0.0, %v1026
      %v1028 = vpop.f32.mrf.mxu0
      %1029 = vdwg.mxu0
      %v1030 = vpack.c.bf16 %v1027, %v1024
      %v1032 = vsel %vm540, %v1030, 0
      %v1035 = vsel %vm672, %v406, 0
      %1037 = vmatprep.subr.bf16.mxu0 0
      %1038 = vmatpush1.bf16.msra.mxu0 0
      %1039 = vmatprep.subr.bf16.mxu0 0
      %1040 = vmatpush1.bf16.msra.mxu0 0
      %1041 = vmatprep.subr.bf16.mxu0 0
      %1042 = vmatpush1.bf16.msra.mxu0 0
      %1043 = vmatprep.subr.bf16.mxu0 0
      %1044 = vmatpush1.bf16.msra.mxu0 0
      %1045 = vmatprep.subr.bf16.mxu0 0
      %1046 = vmatpush1.bf16.msra.mxu0 0
      %1047 = vmatprep.subr.bf16.mxu0 0
      %1048 = vmatpush1.bf16.msra.mxu0 0
      %1049 = vmatprep.subr.bf16.mxu0 0
      %1050 = vmatpush1.bf16.msra.mxu0 0
      %1051 = vmatprep.subr.bf16.mxu0 0
      %1052 = vmatpush1.bf16.msra.mxu0 %v1035
      %1053 = vmatprep.subr.bf16.mxu0 0
      %1054 = vmatpush2.bf16.msra.mxu0 0
      %1055 = vmatprep.subr.bf16.mxu0 0
      %1056 = vmatpush2.bf16.msra.mxu0 0
      %1057 = vmatprep.subr.bf16.mxu0 0
      %1058 = vmatpush2.bf16.msra.mxu0 0
      %1059 = vmatprep.subr.bf16.mxu0 0
      %1060 = vmatpush2.bf16.msra.mxu0 0
      %1061 = vmatprep.subr.bf16.mxu0 0
      %1062 = vmatpush2.bf16.msra.mxu0 0
      %1063 = vmatprep.subr.bf16.mxu0 0
      %1064 = vmatpush2.bf16.msra.mxu0 0
      %1065 = vmatprep.subr.bf16.mxu0 0
      %1066 = vmatpush2.bf16.msra.mxu0 0
      %1067 = vmatprep.subr.bf16.mxu0 0
      %1068 = vmatpush2.bf16.msra.mxu0 0
      %1069 = vmatprep.mubr.bf16.mxu0 0
      %1070 = vmatmul.mubr.bf16.gmra.mxu0 %v1032
      %v1071 = vpop.f32.mrf.mxu0
      %v1072 = vadd.f32 0.0, %v1071
      %v1073 = vpop.f32.mrf.mxu0
      %v1074 = vpop.f32.mrf.mxu0
      %v1075 = vadd.f32 0.0, %v1074
      %v1076 = vpop.f32.mrf.mxu0
      %1077 = vdwg.mxu0
      %v1078 = vadd.f32 %v901, %v1072
      %v1079 = vadd.f32 %v902, %v1075
      %1080 = vrot.lane.b32.xlu0 %v538, 104
      %v1081 = vpop.permute.xlu0 %1080
      %1082 = vrot.lane.b32.xlu0 %v539, 104
      %v1083 = vpop.permute.xlu0 %1082
      %v1085 = vsel %vm540, %v1081, 0
      %v1088 = vsel %vm540, %v1083, 0
      %1090 = vmatprep.subr.bf16.mxu0 0
      %1091 = vmatpush1.bf16.xpose.msra.mxu0 0
      %1092 = vmatprep.subr.bf16.mxu0 0
      %1093 = vmatpush1.bf16.xpose.msra.mxu0 0
      %1094 = vmatprep.subr.bf16.mxu0 0
      %1095 = vmatpush1.bf16.xpose.msra.mxu0 0
      %1096 = vmatprep.subr.bf16.mxu0 0
      %1097 = vmatpush1.bf16.xpose.msra.mxu0 0
      %1098 = vmatprep.subr.bf16.mxu0 0
      %1099 = vmatpush1.bf16.xpose.msra.mxu0 0
      %1100 = vmatprep.subr.bf16.mxu0 0
      %1101 = vmatpush1.bf16.xpose.msra.mxu0 0
      %1102 = vmatprep.subr.bf16.mxu0 0
      %1103 = vmatpush1.bf16.xpose.msra.mxu0 0
      %1104 = vmatprep.subr.bf16.mxu0 0
      %1105 = vmatpush1.bf16.xpose.msra.mxu0 %v1088
      %1106 = vmatprep.subr.bf16.mxu0 0
      %1107 = vmatpush2.bf16.xpose.msra.mxu0 0
      %1108 = vmatprep.subr.bf16.mxu0 0
      %1109 = vmatpush2.bf16.xpose.msra.mxu0 0
      %1110 = vmatprep.subr.bf16.mxu0 0
      %1111 = vmatpush2.bf16.xpose.msra.mxu0 0
      %1112 = vmatprep.subr.bf16.mxu0 0
      %1113 = vmatpush2.bf16.xpose.msra.mxu0 0
      %1114 = vmatprep.subr.bf16.mxu0 0
      %1115 = vmatpush2.bf16.xpose.msra.mxu0 0
      %1116 = vmatprep.subr.bf16.mxu0 0
      %1117 = vmatpush2.bf16.xpose.msra.mxu0 0
      %1118 = vmatprep.subr.bf16.mxu0 0
      %1119 = vmatpush2.bf16.xpose.msra.mxu0 0
      %1120 = vmatprep.subr.bf16.mxu0 0
      %1121 = vmatpush2.bf16.xpose.msra.mxu0 0
      %1122 = vmatprep.mubr.bf16.mxu0 0
      %1123 = vmatmul.mubr.bf16.gmra.mxu0 %v1085
      %v1124 = vpop.f32.mrf.mxu0
      %v1125 = vadd.f32 0.0, %v1124
      %v1126 = vpop.f32.mrf.mxu0
      %v1127 = vpop.f32.mrf.mxu0
      %v1128 = vadd.f32 0.0, %v1127
      %v1129 = vpop.f32.mrf.mxu0
      %1130 = vdwg.mxu0
      %v1131 = vmul.f32 %v1125, 0.35355338
      %v1132 = vmul.f32 %v1128, 0.35355338
      %v1133 = vadd.f32 %v1131, %v417
      %v1134 = vadd.f32 %v1132, %v418
      %v1135 = vsel %vm592, %v1133, -inf
      %1136 = vmax.xlane.f32.xlu0 %v1135
      %v1137 = vpop.xlane.xlu0 %1136
      %v1138 = vsel %vm596, %v1134, -inf
      %1139 = vmax.xlane.f32.xlu0 %v1138
      %v1140 = vpop.xlane.xlu0 %1139
      %v1141 = vsub.f32 %v1133, %v1137
      %v1142 = vsub.f32 %v1134, %v1140
      %v1143 = vmul.f32 %v1141, 1.442695
      %v1144 = vpow.pop %v1143
      %v1145 = vmul.f32 %v1142, 1.442695
      %v1146 = vpow.pop %v1145
      %v1147 = vsel %vm592, %v1144, 0.0
      %1148 = vadd.xlane.f32.xlu0 %v1147
      %v1149 = vpop.xlane.xlu0 %1148
      %v1150 = vsel %vm596, %v1146, 0.0
      %1151 = vadd.xlane.f32.xlu0 %v1150
      %v1152 = vpop.xlane.xlu0 %1151
      %v1153 = vrcp.pop %v1149
      %v1154 = vrcp.pop %v1152
      %v1155 = vmul.f32 %v1144, %v1153
      %v1156 = vmul.f32 %v1146, %v1154
      %v1157 = vpack.c.bf16 %v1156, %v1155
      %1158 = vrot.lane.b32.xlu0 %v539, 72
      %v1159 = vpop.permute.xlu0 %1158
      %v1161 = vsel %vm592, %v1157, 0
      %v1164 = vsel %vm623, %v1159, 0
      %1166 = vmatprep.subr.bf16.mxu0 0
      %1167 = vmatpush1.bf16.msra.mxu0 0
      %1168 = vmatprep.subr.bf16.mxu0 0
      %1169 = vmatpush1.bf16.msra.mxu0 0
      %1170 = vmatprep.subr.bf16.mxu0 0
      %1171 = vmatpush1.bf16.msra.mxu0 0
      %1172 = vmatprep.subr.bf16.mxu0 0
      %1173 = vmatpush1.bf16.msra.mxu0 0
      %1174 = vmatprep.subr.bf16.mxu0 0
      %1175 = vmatpush1.bf16.msra.mxu0 0
      %1176 = vmatprep.subr.bf16.mxu0 0
      %1177 = vmatpush1.bf16.msra.mxu0 0
      %1178 = vmatprep.subr.bf16.mxu0 0
      %1179 = vmatpush1.bf16.msra.mxu0 0
      %1180 = vmatprep.subr.bf16.mxu0 0
      %1181 = vmatpush1.bf16.msra.mxu0 %v1164
      %1182 = vmatprep.subr.bf16.mxu0 0
      %1183 = vmatpush2.bf16.msra.mxu0 0
      %1184 = vmatprep.subr.bf16.mxu0 0
      %1185 = vmatpush2.bf16.msra.mxu0 0
      %1186 = vmatprep.subr.bf16.mxu0 0
      %1187 = vmatpush2.bf16.msra.mxu0 0
      %1188 = vmatprep.subr.bf16.mxu0 0
      %1189 = vmatpush2.bf16.msra.mxu0 0
      %1190 = vmatprep.subr.bf16.mxu0 0
      %1191 = vmatpush2.bf16.msra.mxu0 0
      %1192 = vmatprep.subr.bf16.mxu0 0
      %1193 = vmatpush2.bf16.msra.mxu0 0
      %1194 = vmatprep.subr.bf16.mxu0 0
      %1195 = vmatpush2.bf16.msra.mxu0 0
      %1196 = vmatprep.subr.bf16.mxu0 0
      %1197 = vmatpush2.bf16.msra.mxu0 0
      %1198 = vmatprep.mubr.bf16.mxu0 0
      %1199 = vmatmul.mubr.bf16.gmra.mxu0 %v1161
      %v1200 = vpop.f32.mrf.mxu0
      %v1201 = vadd.f32 0.0, %v1200
      %v1202 = vpop.f32.mrf.mxu0
      %v1203 = vpop.f32.mrf.mxu0
      %v1204 = vadd.f32 0.0, %v1203
      %v1205 = vpop.f32.mrf.mxu0
      %1206 = vdwg.mxu0
      %v1207 = vpack.c.bf16 %v1204, %v1201
      %v1209 = vsel %vm540, %v1207, 0
      %v1212 = vsel %vm672, %v407, 0
      %1214 = vmatprep.subr.bf16.mxu0 0
      %1215 = vmatpush1.bf16.msra.mxu0 0
      %1216 = vmatprep.subr.bf16.mxu0 0
      %1217 = vmatpush1.bf16.msra.mxu0 0
      %1218 = vmatprep.subr.bf16.mxu0 0
      %1219 = vmatpush1.bf16.msra.mxu0 0
      %1220 = vmatprep.subr.bf16.mxu0 0
      %1221 = vmatpush1.bf16.msra.mxu0 0
      %1222 = vmatprep.subr.bf16.mxu0 0
      %1223 = vmatpush1.bf16.msra.mxu0 0
      %1224 = vmatprep.subr.bf16.mxu0 0
      %1225 = vmatpush1.bf16.msra.mxu0 0
      %1226 = vmatprep.subr.bf16.mxu0 0
      %1227 = vmatpush1.bf16.msra.mxu0 0
      %1228 = vmatprep.subr.bf16.mxu0 0
      %1229 = vmatpush1.bf16.msra.mxu0 %v1212
      %1230 = vmatprep.subr.bf16.mxu0 0
      %1231 = vmatpush2.bf16.msra.mxu0 0
      %1232 = vmatprep.subr.bf16.mxu0 0
      %1233 = vmatpush2.bf16.msra.mxu0 0
      %1234 = vmatprep.subr.bf16.mxu0 0
      %1235 = vmatpush2.bf16.msra.mxu0 0
      %1236 = vmatprep.subr.bf16.mxu0 0
      %1237 = vmatpush2.bf16.msra.mxu0 0
      %1238 = vmatprep.subr.bf16.mxu0 0
      %1239 = vmatpush2.bf16.msra.mxu0 0
      %1240 = vmatprep.subr.bf16.mxu0 0
      %1241 = vmatpush2.bf16.msra.mxu0 0
      %1242 = vmatprep.subr.bf16.mxu0 0
      %1243 = vmatpush2.bf16.msra.mxu0 0
      %1244 = vmatprep.subr.bf16.mxu0 0
      %1245 = vmatpush2.bf16.msra.mxu0 0
      %1246 = vmatprep.mubr.bf16.mxu0 0
      %1247 = vmatmul.mubr.bf16.gmra.mxu0 %v1209
      %v1248 = vpop.f32.mrf.mxu0
      %v1249 = vadd.f32 0.0, %v1248
      %v1250 = vpop.f32.mrf.mxu0
      %v1251 = vpop.f32.mrf.mxu0
      %v1252 = vadd.f32 0.0, %v1251
      %v1253 = vpop.f32.mrf.mxu0
      %1254 = vdwg.mxu0
      %v1255 = vadd.f32 %v1078, %v1249
      %v1256 = vadd.f32 %v1079, %v1252
      %v1257 = vadd.f32 %v395, %v1255
      %v1258 = vadd.f32 %v396, %v1256
      %v1259 = vsel %vm439, %v1257, 0.0
      %1260 = vadd.xlane.f32.xlu0 %v1259
      %v1261 = vpop.xlane.xlu0 %1260
      %vm1262 = vcmask 254976
      %v1263 = vsel %vm1262, %v1258, 0.0
      %1264 = vadd.xlane.f32.xlu0 %v1263
      %v1265 = vpop.xlane.xlu0 %1264
      %v1266 = vrcp.pop 32.0
      %v1267 = vmul.f32 %v1261, %v1266
      %v1268 = vmul.f32 %v1265, %v1266
      %v1269 = vsub.f32 %v1257, %v1267
      %v1270 = vsub.f32 %v1258, %v1268
      %v1271 = vmul.f32 %v1269, %v1269
      %v1272 = vmul.f32 %v1270, %v1270
      %v1273 = vsel %vm439, %v1271, 0.0
      %1274 = vadd.xlane.f32.xlu0 %v1273
      %v1275 = vpop.xlane.xlu0 %1274
      %v1276 = vsel %vm1262, %v1272, 0.0
      %1277 = vadd.xlane.f32.xlu0 %v1276
      %v1278 = vpop.xlane.xlu0 %1277
      %v1279 = vmul.f32 %v1275, %v1266
      %v1280 = vmul.f32 %v1278, %v1266
      %v1281 = vadd.f32 %v1279, 1e-05
      %v1282 = vadd.f32 %v1280, 1e-05
      %v1283 = vrsqrt.pop %v1281
      %v1284 = vrsqrt.pop %v1282
      %v1285 = vmul.f32 %v1269, %v1283
      %v1286 = vmul.f32 %v1270, %v1284
      %v1287 = vld [vmem:[%s8] sm:$0x1]
      %v1289 = vlaneseq
      %v1290 = vshrl.u32 %v1289, 7
      %v1291 = vsub.s32 0, %v1290
      %v1292 = vrot.slane %v1287, %v1291
      %v1294 = vmul.f32 %v1285, %v1292
      %v1295 = vmul.f32 %v1286, %v1292
      %v1296 = vld [vmem:[%s9] sm:$0x1]
      %v1298 = vlaneseq
      %v1299 = vshrl.u32 %v1298, 7
      %v1300 = vsub.s32 0, %v1299
      %v1301 = vrot.slane %v1296, %v1300
      %v1303 = vadd.f32 %v1294, %v1301
      %v1304 = vadd.f32 %v1295, %v1301
      %1305 = vst.msk [vmem:[%s393] sm:$0xff] %vm439, %v1303
      %1306 = vst.msk [vmem:[%s393 + $0x8] sm:$0x3] %vm1262, %v1304
      %p1307 = scmp.lt.s32.totalorder %s21, 1
      %s1308 = scalar_select %p1307, %s21, 1
      %s1309 = smul.addr %s1308, 2
      %s1310 = smul.addr %s1309, 8
      %s1311 = scalar_lea.vmem %s10, %s1310
      // Predicated region
      $region61: #{seq2seq_forward.18} parent=59 // pred_check
        %p1312 = pneg %p264
      $region62: #{seq2seq_forward.18} parent=59 // pred_check_branch
        %1314 = sbr.rel (%p1312) target = $region64
      $region63: #{seq2seq_forward.18} parent=59 // pred_region
        _
      $region64: #{seq2seq_forward.18} parent=59 // pred_fallthru
        _
    $region60: #{seq2seq_forward.18} parent=5 // pred_fallthru
      _
    %p1315 = scmp.le.s32.totalorder 2, %s16
    // Predicated region
    $region65: #{seq2seq_forward.18} parent=5 // pred_check
      %p1316 = pneg %p1315
    $region66: #{seq2seq_forward.18} parent=5 // pred_check_branch
      %1318 = sbr.rel (%p1316) target = $region68
    $region67: #{seq2seq_forward.18} parent=5 // pred_region
      %s1319 = ssub.s32 %s16, 2
      // Predicated region
      $region69: #{seq2seq_forward.18} parent=67 // pred_check
        %p1320 = pneg %p270
      $region70: #{seq2seq_forward.18} parent=67 // pred_check_branch
        %1322 = sbr.rel (%p1320) target = $region72
      $region71: #{seq2seq_forward.18} parent=67 // pred_region
        %p1323 = scmp.lt.s32.totalorder %s22, 1
        %s1324 = scalar_select %p1323, %s22, 1
        %s1325 = smul.addr %s1324, 2
        %s1326 = smul.addr %s1325, 8
        %s1327 = scalar_lea.vmem %s10, %s1326
      $region72: #{seq2seq_forward.18} parent=67 // pred_fallthru
        _
    $region68: #{seq2seq_forward.18} parent=5 // pred_fallthru
      _
  $region6: #{seq2seq_forward.18} parent=0 // loop_footer
    %s20 = sadd.s32 1, %s16
  $region7: #{seq2seq_forward.18} parent=0 // loop_footer_branch
    %15 = sbr.rel target = $region3
  $region8: #{seq2seq_forward.18} parent=0 // loop_exit
    _

</llo_original>
